<compile_context>
chip_gen: v7x
topology: tpu7x:2x2x1
jax: 0.10.0
libtpu: 0.0.40
codegen_flags: <defaults>
</compile_context>

<pallas_src>
import numpy as np
import jax
import jax.numpy as jnp
from jax.experimental import pallas as pl
from jax.experimental.pallas import tpu as pltpu


# ----------------------------------------------------------------------------
# Fused Pallas kernel: conv1/conv3 -> pool -> conv2/conv4 -> pool -> fc1 -> fc2
# ----------------------------------------------------------------------------
def dclass_fused_kernel(xp1_ref, w1_ref, b1_ref, w2_ref, b2_ref,
                        fc1w_ref, fc1b_ref, fc2w_ref, fc2b_ref,
                        out_ref, xp2_ref):
    B = xp1_ref.shape[0]
    C1 = b1_ref.shape[1]                 # 32 joint stage-1 output channels
    C2 = b2_ref.shape[1]                 # 64 joint stage-2 output channels
    Ho1 = xp1_ref.shape[1] - 2           # conv(k=3, pad=2): H + 2 = 16
    Wo1 = xp1_ref.shape[2] - 2           # 16
    Hp1, Wp1 = Ho1 // 2, Wo1 // 2        # 8, 8 after 2x2 max-pool
    Ho2 = Hp1 + 2                        # 10
    Wc2 = xp2_ref.shape[2] - 2           # 16 (stage-2 conv width, padded to 8k
                                         #     so all reshapes stay layout-free)
    Hp2, Wp2 = Ho2 // 2, (Wp1 + 2) // 2  # 5, 5

    # ---- stage 1: conv1 (+) conv3 as ONE im2col matmul --------------------
    # im2col: 9 contiguous tap slices of the padded NHWC input, lane-concat.
    p1 = jnp.concatenate(
        [xp1_ref[:, di:di + Ho1, dj:dj + Wo1, :]
         for di in range(3) for dj in range(3)],
        axis=-1)                                       # [B, 16, 16, 9*Cin]
    p1 = p1.reshape(B * Ho1 * Wo1, p1.shape[-1])       # [B*256, 162]  (free)
    y1 = jnp.dot(p1, w1_ref[...],
                 preferred_element_type=jnp.float32) + b1_ref[...]
    y1 = jnp.maximum(y1, 0.0)                          # [B*256, 32]
    # H-pool: free leading-dim split + max; W-pool: shifted max + even cols.
    y1 = y1.reshape(B, Hp1, 2, Wo1, C1)
    z1 = jnp.max(y1, axis=2)                           # [B, 8, 16, 32]
    t1 = jnp.maximum(z1[:, :, :Wo1 - 1, :], z1[:, :, 1:, :])   # [B, 8, 15, 32]
    z1p = jnp.stack([t1[:, :, 2 * j, :] for j in range(Wp1)],
                    axis=2)                            # [B, 8, 8, 32] pooled

    # ---- stage-2 zero-padded input (padding=2) in VMEM scratch ------------
    xp2_ref[...] = jnp.zeros(xp2_ref.shape, xp2_ref.dtype)
    xp2_ref[:, 2:2 + Hp1, 2:2 + Wp1, :] = z1p

    # ---- stage 2: conv2 (+) conv4 as ONE im2col matmul --------------------
    # conv is evaluated on a width-16 window (cols >= 10 read zeros -> unused).
    p2 = jnp.concatenate(
        [xp2_ref[:, di:di + Ho2, dj:dj + Wc2, :]
         for di in range(3) for dj in range(3)],
        axis=-1)                                       # [B, 10, 16, 9*C1]
    p2 = p2.reshape(B * Ho2 * Wc2, p2.shape[-1])       # [B*160, 288]  (free)
    y2 = jnp.dot(p2, w2_ref[...],
                 preferred_element_type=jnp.float32) + b2_ref[...]
    y2 = jnp.maximum(y2, 0.0)                          # [B*160, 64]
    y2 = y2.reshape(B, Hp2, 2, Wc2, C2)
    z2 = jnp.max(y2, axis=2)                           # [B, 5, 16, 64]
    t2 = jnp.maximum(z2[:, :, :Wc2 - 1, :], z2[:, :, 1:, :])   # [B, 5, 15, 64]

    # ---- flatten pooled features in (i, j, c) order (fc1 rows pre-permuted)
    feat = jnp.concatenate(
        [t2[:, i, 2 * j, :] for i in range(Hp2) for j in range(Wp2)],
        axis=-1)                                       # [B, 1600]

    # ---- MLP: fc1 -> ReLU -> fc2 (matches x = fc1(x); x = fc2(relu(x))) ---
    h = jnp.dot(feat, fc1w_ref[...],
                preferred_element_type=jnp.float32) + fc1b_ref[...]
    h = jnp.maximum(h, 0.0)
    out_ref[...] = jnp.dot(h, fc2w_ref[...],
                           preferred_element_type=jnp.float32) + fc2b_ref[...]


# ----------------------------------------------------------------------------
# Trace-time parameter preparation (branch merge + fc1 row permutation)
# ----------------------------------------------------------------------------
def prepare_params(p):
    cin1 = p['conv1_w'].shape[1]         # 9
    c1a = p['conv1_w'].shape[2]          # 16
    c1 = 2 * c1a                         # 32 joint
    c2a = p['conv2_w'].shape[2]          # 32
    c2 = 2 * c2a                         # 64 joint

    # stage-1 joint weight: block-diagonal (conv1 on ch 0:9 -> out 0:16,
    # conv3 on ch 9:18 -> out 16:32); K order = tap*Cin + c, tap = di*3 + dj.
    w1 = jnp.zeros((9, 2 * cin1, c1), jnp.float32)
    w1 = w1.at[:, :cin1, :c1a].set(p['conv1_w'])
    w1 = w1.at[:, cin1:, c1a:].set(p['conv3_w'])
    w1 = w1.reshape(9 * 2 * cin1, c1)
    b1 = jnp.concatenate([p['conv1_b'], p['conv3_b']], axis=1)

    # stage-2 joint weight: block-diagonal (conv2 on ch 0:16 -> out 0:32,
    # conv4 on ch 16:32 -> out 32:64).
    w2 = jnp.zeros((9, c1, c2), jnp.float32)
    w2 = w2.at[:, :c1a, :c2a].set(p['conv2_w'])
    w2 = w2.at[:, c1a:, c2a:].set(p['conv4_w'])
    w2 = w2.reshape(9 * c1, c2)
    b2 = jnp.concatenate([p['conv2_b'], p['conv4_b']], axis=1)

    # fc1 row permutation (absorbs the torch (C,H,W) flatten + branch concat):
    #   kernel feature col = (i*Wp2 + j)*C2 + cj
    #   torch  feature row = branch*C2a*Hp2*Wp2 + c*(Hp2*Wp2) + i*Wp2 + j
    hp2 = wp2 = 5                        # fixed by fc1 in-features = 1600
    perm = np.empty((hp2, wp2, c2), np.int32)
    for i in range(hp2):
        for j in range(wp2):
            for cj in range(c2):
                br, c = divmod(cj, c2a)
                perm[i, j, cj] = (br * (c2a * hp2 * wp2)
                                  + c * (hp2 * wp2) + i * wp2 + j)
    fc1w = p['fc1_w'][perm.reshape(-1), :]

    return dict(w1=w1, b1=b1, w2=w2, b2=b2,
                fc1w=fc1w, fc1b=p['fc1_b'], fc2w=p['fc2_w'], fc2b=p['fc2_b'])


# ----------------------------------------------------------------------------
# Forward wrapper (one pallas_call; glue = cheap NCHW->NHWC + pad-2 layout prep)
# ----------------------------------------------------------------------------
def dclass_net_forward(x, pp):
    """x: [B, 18, 14, 14] NCHW (torch-style); pp = prepare_params(params)."""
    B, C, H, W = x.shape
    x_nhwc = jnp.transpose(x, (0, 2, 3, 1))
    xp1 = jnp.pad(x_nhwc, ((0, 0), (2, 2), (2, 2), (0, 0)))   # padding=2
    Hp1, Wp1 = (H + 2) // 2, (W + 2) // 2                     # 8, 8
    Wo2 = Wp1 + 2                                             # 10
    Wc2 = ((Wo2 + 7) // 8) * 8                                # 16 (8-aligned)
    C1 = pp['b1'].shape[1]
    num_class = pp['fc2w'].shape[1]
    vmem = pl.BlockSpec(memory_space=pltpu.MemorySpace.VMEM)
    return pl.pallas_call(
        dclass_fused_kernel,
        out_shape=jax.ShapeDtypeStruct((B, num_class), jnp.float32),
        in_specs=[vmem] * 9,
        out_specs=vmem,
        scratch_shapes=[
            pltpu.VMEM((B, Hp1 + 4, Wc2 + 2, C1), jnp.float32),  # xp2 (padded)
        ],
    )(xp1, pp['w1'], pp['b1'], pp['w2'], pp['b2'],
      pp['fc1w'], pp['fc1b'], pp['fc2w'], pp['fc2b'])


# ----------------------------------------------------------------------------
# Deterministic synthetic parameters (shapes from DClass_Net.__init__)
# ----------------------------------------------------------------------------
def init_params(key, num_class=4):
    keys = jax.random.split(key, 12)

    def conv_init(kw, kb, cin, cout):
        w = jax.random.normal(kw, (9, cin, cout), jnp.float32) / jnp.sqrt(9.0 * cin)
        b = jax.random.normal(kb, (1, cout), jnp.float32) * 0.05
        return w, b

    def fc_init(kw, kb, din, dout):
        w = jax.random.normal(kw, (din, dout), jnp.float32) / jnp.sqrt(1.0 * din)
        b = jax.random.normal(kb, (1, dout), jnp.float32) * 0.05
        return w, b

    p = {}
    p['conv1_w'], p['conv1_b'] = conv_init(keys[0], keys[1], 9, 16)
    p['conv2_w'], p['conv2_b'] = conv_init(keys[2], keys[3], 16, 32)
    p['conv3_w'], p['conv3_b'] = conv_init(keys[4], keys[5], 9, 16)
    p['conv4_w'], p['conv4_b'] = conv_init(keys[6], keys[7], 16, 32)
    p['fc1_w'], p['fc1_b'] = fc_init(keys[8], keys[9], 1600, 256)
    p['fc2_w'], p['fc2_b'] = fc_init(keys[10], keys[11], 256, num_class)
    return p


# ----------------------------------------------------------------------------
# Pure-JAX reference (mirrors the PyTorch forward) for validation
# ----------------------------------------------------------------------------
def reference_forward(x, p):
    def conv(x_nchw, w9, b):
        cin, cout = w9.shape[1], w9.shape[2]
        w_oihw = jnp.transpose(w9.reshape(3, 3, cin, cout), (3, 2, 0, 1))
        y = jax.lax.conv_general_dilated(
            x_nchw, w_oihw, window_strides=(1, 1), padding=((2, 2), (2, 2)),
            dimension_numbers=('NCHW', 'OIHW', 'NCHW'))
        return y + b.reshape(1, cout, 1, 1)

    def mp(t):
        B, C, H, W = t.shape
        return t.reshape(B, C, H // 2, 2, W // 2, 2).max(axis=(3, 5))

    relu = lambda t: jnp.maximum(t, 0.0)
    B = x.shape[0]
    x1 = mp(relu(conv(x[:, 0:9], p['conv1_w'], p['conv1_b'])))
    x1 = mp(relu(conv(x1, p['conv2_w'], p['conv2_b'])))
    x2 = mp(relu(conv(x[:, 9:18], p['conv3_w'], p['conv3_b'])))
    x2 = mp(relu(conv(x2, p['conv4_w'], p['conv4_b'])))
    feat = jnp.concatenate([x1.reshape(B, -1), x2.reshape(B, -1)], axis=1)
    h = feat @ p['fc1_w'] + p['fc1_b']
    return relu(h) @ p['fc2_w'] + p['fc2_b']


if __name__ == "__main__":
    key = jax.random.PRNGKey(0)
    kx, kp = jax.random.split(key)
    # spatial 14x14 is what fc1's 1600 input features imply:
    # 14 -> conv(+2)=16 -> pool=8 -> conv(+2)=10 -> pool=5 ; 2*32*5*5 = 1600
    x = jax.random.normal(kx, (2, 18, 14, 14), jnp.float32)
    params = init_params(kp, num_class=4)

    prepped = prepare_params(params)          # one-time trace-time weight prep
    fwd = jax.jit(dclass_net_forward)
    out = jax.block_until_ready(fwd(x, prepped))
    ref = jax.block_until_ready(reference_forward(x, params))

    assert out.shape == (2, 4), out.shape
    if not jnp.allclose(out, ref, rtol=2e-2, atol=2e-2):
        raise AssertionError(
            f"mismatch: max abs err = {jnp.max(jnp.abs(out - ref))}")
    print("KERNEL_OK")
</pallas_src>

<mosaic_0001>
module attributes {stable_mosaic.version = 11 : i64} {
  func.func @dclass_fused_kernel(%arg0: memref<2x18x18x18xf32, #tpu.memory_space<vmem>>, %arg1: memref<162x32xf32, #tpu.memory_space<vmem>>, %arg2: memref<1x32xf32, #tpu.memory_space<vmem>>, %arg3: memref<288x64xf32, #tpu.memory_space<vmem>>, %arg4: memref<1x64xf32, #tpu.memory_space<vmem>>, %arg5: memref<1600x256xf32, #tpu.memory_space<vmem>>, %arg6: memref<1x256xf32, #tpu.memory_space<vmem>>, %arg7: memref<256x4xf32, #tpu.memory_space<vmem>>, %arg8: memref<1x4xf32, #tpu.memory_space<vmem>>, %arg9: memref<2x4xf32, #tpu.memory_space<vmem>>, %arg10: memref<2x12x18x32xf32, #tpu.memory_space<vmem>>) attributes {dimension_semantics = [], scalar_prefetch = 0 : i64, scratch_operands = 1 : i64, tpu.core_type = #tpu.core_type<tc>} {
    %c0 = arith.constant 0 : index
    %c0_0 = arith.constant 0 : index
    %c0_1 = arith.constant 0 : index
    %c0_2 = arith.constant 0 : index
    %0 = vector.load %arg0[%c0, %c0_0, %c0_1, %c0_2] : memref<2x18x18x18xf32, #tpu.memory_space<vmem>>, vector<2x16x16x18xf32>
    %c0_3 = arith.constant 0 : index
    %c0_4 = arith.constant 0 : index
    %c1 = arith.constant 1 : index
    %c0_5 = arith.constant 0 : index
    %1 = vector.load %arg0[%c0_3, %c0_4, %c1, %c0_5] : memref<2x18x18x18xf32, #tpu.memory_space<vmem>>, vector<2x16x16x18xf32>
    %c0_6 = arith.constant 0 : index
    %c0_7 = arith.constant 0 : index
    %c2 = arith.constant 2 : index
    %c0_8 = arith.constant 0 : index
    %2 = vector.load %arg0[%c0_6, %c0_7, %c2, %c0_8] : memref<2x18x18x18xf32, #tpu.memory_space<vmem>>, vector<2x16x16x18xf32>
    %c0_9 = arith.constant 0 : index
    %c1_10 = arith.constant 1 : index
    %c0_11 = arith.constant 0 : index
    %c0_12 = arith.constant 0 : index
    %3 = vector.load %arg0[%c0_9, %c1_10, %c0_11, %c0_12] : memref<2x18x18x18xf32, #tpu.memory_space<vmem>>, vector<2x16x16x18xf32>
    %c0_13 = arith.constant 0 : index
    %c1_14 = arith.constant 1 : index
    %c1_15 = arith.constant 1 : index
    %c0_16 = arith.constant 0 : index
    %4 = vector.load %arg0[%c0_13, %c1_14, %c1_15, %c0_16] : memref<2x18x18x18xf32, #tpu.memory_space<vmem>>, vector<2x16x16x18xf32>
    %c0_17 = arith.constant 0 : index
    %c1_18 = arith.constant 1 : index
    %c2_19 = arith.constant 2 : index
    %c0_20 = arith.constant 0 : index
    %5 = vector.load %arg0[%c0_17, %c1_18, %c2_19, %c0_20] : memref<2x18x18x18xf32, #tpu.memory_space<vmem>>, vector<2x16x16x18xf32>
    %c0_21 = arith.constant 0 : index
    %c2_22 = arith.constant 2 : index
    %c0_23 = arith.constant 0 : index
    %c0_24 = arith.constant 0 : index
    %6 = vector.load %arg0[%c0_21, %c2_22, %c0_23, %c0_24] : memref<2x18x18x18xf32, #tpu.memory_space<vmem>>, vector<2x16x16x18xf32>
    %c0_25 = arith.constant 0 : index
    %c2_26 = arith.constant 2 : index
    %c1_27 = arith.constant 1 : index
    %c0_28 = arith.constant 0 : index
    %7 = vector.load %arg0[%c0_25, %c2_26, %c1_27, %c0_28] : memref<2x18x18x18xf32, #tpu.memory_space<vmem>>, vector<2x16x16x18xf32>
    %c0_29 = arith.constant 0 : index
    %c2_30 = arith.constant 2 : index
    %c2_31 = arith.constant 2 : index
    %c0_32 = arith.constant 0 : index
    %8 = vector.load %arg0[%c0_29, %c2_30, %c2_31, %c0_32] : memref<2x18x18x18xf32, #tpu.memory_space<vmem>>, vector<2x16x16x18xf32>
    %9 = tpu.concatenate %0, %1, %2, %3, %4, %5, %6, %7, %8 in 3 : vector<2x16x16x18xf32>, vector<2x16x16x18xf32>, vector<2x16x16x18xf32>, vector<2x16x16x18xf32>, vector<2x16x16x18xf32>, vector<2x16x16x18xf32>, vector<2x16x16x18xf32>, vector<2x16x16x18xf32>, vector<2x16x16x18xf32> -> vector<2x16x16x162xf32>
    %10 = vector.shape_cast %9 : vector<2x16x16x162xf32> to vector<512x162xf32>
    %c0_33 = arith.constant 0 : index
    %c0_34 = arith.constant 0 : index
    %11 = vector.load %arg1[%c0_33, %c0_34] : memref<162x32xf32, #tpu.memory_space<vmem>>, vector<162x32xf32>
    %cst = arith.constant dense<0.000000e+00> : vector<512x32xf32>
    %12 = tpu.matmul %10, %11, %cst {dimension_numbers = #tpu.dot_dimension_numbers<[1], [0], [0], [1], [0, 0, 1, 1], [], []>} : vector<512x162xf32>, vector<162x32xf32>, vector<512x32xf32> -> vector<512x32xf32>
    %c0_35 = arith.constant 0 : index
    %c0_36 = arith.constant 0 : index
    %13 = vector.load %arg2[%c0_35, %c0_36] : memref<1x32xf32, #tpu.memory_space<vmem>>, vector<1x32xf32>
    %14 = vector.broadcast %13 : vector<1x32xf32> to vector<512x32xf32>
    %15 = arith.addf %12, %14 : vector<512x32xf32>
    %cst_37 = arith.constant 0.000000e+00 : f32
    %16 = vector.broadcast %cst_37 : f32 to vector<512x32xf32>
    %17 = arith.maximumf %15, %16 : vector<512x32xf32>
    %18 = vector.shape_cast %17 : vector<512x32xf32> to vector<2x8x2x16x32xf32>
    %cst_38 = arith.constant dense<0xFF800000> : vector<2x8x16x32xf32>
    %19 = vector.multi_reduction <maximumf>, %18, %cst_38 [2] : vector<2x8x2x16x32xf32> to vector<2x8x16x32xf32>
    %20 = vector.extract_strided_slice %19 {offsets = [0, 0, 0, 0], sizes = [2, 8, 15, 32], strides = [1, 1, 1, 1]} : vector<2x8x16x32xf32> to vector<2x8x15x32xf32>
    %21 = vector.extract_strided_slice %19 {offsets = [0, 0, 1, 0], sizes = [2, 8, 15, 32], strides = [1, 1, 1, 1]} : vector<2x8x16x32xf32> to vector<2x8x15x32xf32>
    %22 = arith.maximumf %20, %21 : vector<2x8x15x32xf32>
    %23 = vector.extract_strided_slice %22 {offsets = [0, 0, 0, 0], sizes = [2, 8, 1, 32], strides = [1, 1, 1, 1]} : vector<2x8x15x32xf32> to vector<2x8x1x32xf32>
    %24 = vector.shape_cast %23 : vector<2x8x1x32xf32> to vector<2x8x32xf32>
    %25 = vector.extract_strided_slice %22 {offsets = [0, 0, 2, 0], sizes = [2, 8, 1, 32], strides = [1, 1, 1, 1]} : vector<2x8x15x32xf32> to vector<2x8x1x32xf32>
    %26 = vector.shape_cast %25 : vector<2x8x1x32xf32> to vector<2x8x32xf32>
    %27 = vector.extract_strided_slice %22 {offsets = [0, 0, 4, 0], sizes = [2, 8, 1, 32], strides = [1, 1, 1, 1]} : vector<2x8x15x32xf32> to vector<2x8x1x32xf32>
    %28 = vector.shape_cast %27 : vector<2x8x1x32xf32> to vector<2x8x32xf32>
    %29 = vector.extract_strided_slice %22 {offsets = [0, 0, 6, 0], sizes = [2, 8, 1, 32], strides = [1, 1, 1, 1]} : vector<2x8x15x32xf32> to vector<2x8x1x32xf32>
    %30 = vector.shape_cast %29 : vector<2x8x1x32xf32> to vector<2x8x32xf32>
    %31 = vector.extract_strided_slice %22 {offsets = [0, 0, 8, 0], sizes = [2, 8, 1, 32], strides = [1, 1, 1, 1]} : vector<2x8x15x32xf32> to vector<2x8x1x32xf32>
    %32 = vector.shape_cast %31 : vector<2x8x1x32xf32> to vector<2x8x32xf32>
    %33 = vector.extract_strided_slice %22 {offsets = [0, 0, 10, 0], sizes = [2, 8, 1, 32], strides = [1, 1, 1, 1]} : vector<2x8x15x32xf32> to vector<2x8x1x32xf32>
    %34 = vector.shape_cast %33 : vector<2x8x1x32xf32> to vector<2x8x32xf32>
    %35 = vector.extract_strided_slice %22 {offsets = [0, 0, 12, 0], sizes = [2, 8, 1, 32], strides = [1, 1, 1, 1]} : vector<2x8x15x32xf32> to vector<2x8x1x32xf32>
    %36 = vector.shape_cast %35 : vector<2x8x1x32xf32> to vector<2x8x32xf32>
    %37 = vector.extract_strided_slice %22 {offsets = [0, 0, 14, 0], sizes = [2, 8, 1, 32], strides = [1, 1, 1, 1]} : vector<2x8x15x32xf32> to vector<2x8x1x32xf32>
    %38 = vector.shape_cast %37 : vector<2x8x1x32xf32> to vector<2x8x32xf32>
    %39 = vector.shape_cast %24 : vector<2x8x32xf32> to vector<2x8x1x32xf32>
    %40 = vector.shape_cast %26 : vector<2x8x32xf32> to vector<2x8x1x32xf32>
    %41 = vector.shape_cast %28 : vector<2x8x32xf32> to vector<2x8x1x32xf32>
    %42 = vector.shape_cast %30 : vector<2x8x32xf32> to vector<2x8x1x32xf32>
    %43 = vector.shape_cast %32 : vector<2x8x32xf32> to vector<2x8x1x32xf32>
    %44 = vector.shape_cast %34 : vector<2x8x32xf32> to vector<2x8x1x32xf32>
    %45 = vector.shape_cast %36 : vector<2x8x32xf32> to vector<2x8x1x32xf32>
    %46 = vector.shape_cast %38 : vector<2x8x32xf32> to vector<2x8x1x32xf32>
    %47 = tpu.concatenate %39, %40, %41, %42, %43, %44, %45, %46 in 2 : vector<2x8x1x32xf32>, vector<2x8x1x32xf32>, vector<2x8x1x32xf32>, vector<2x8x1x32xf32>, vector<2x8x1x32xf32>, vector<2x8x1x32xf32>, vector<2x8x1x32xf32>, vector<2x8x1x32xf32> -> vector<2x8x8x32xf32>
    %cst_39 = arith.constant 0.000000e+00 : f32
    %48 = vector.broadcast %cst_39 : f32 to vector<2x12x18x32xf32>
    %c0_40 = arith.constant 0 : index
    %c0_41 = arith.constant 0 : index
    %c0_42 = arith.constant 0 : index
    %c0_43 = arith.constant 0 : index
    %49 = vector.load %arg10[%c0_40, %c0_41, %c0_42, %c0_43] : memref<2x12x18x32xf32, #tpu.memory_space<vmem>>, vector<2x12x18x32xf32>
    tpu.vector_store %arg10[%c0_40, %c0_41, %c0_42, %c0_43], %48 {strides = array<i32>} : memref<2x12x18x32xf32, #tpu.memory_space<vmem>>, vector<2x12x18x32xf32>,
    %c0_44 = arith.constant 0 : index
    %c2_45 = arith.constant 2 : index
    %c2_46 = arith.constant 2 : index
    %c0_47 = arith.constant 0 : index
    %50 = vector.load %arg10[%c0_44, %c2_45, %c2_46, %c0_47] : memref<2x12x18x32xf32, #tpu.memory_space<vmem>>, vector<2x8x8x32xf32>
    tpu.vector_store %arg10[%c0_44, %c2_45, %c2_46, %c0_47], %47 {strides = array<i32>} : memref<2x12x18x32xf32, #tpu.memory_space<vmem>>, vector<2x8x8x32xf32>,
    %c0_48 = arith.constant 0 : index
    %c0_49 = arith.constant 0 : index
    %c0_50 = arith.constant 0 : index
    %c0_51 = arith.constant 0 : index
    %51 = vector.load %arg10[%c0_48, %c0_49, %c0_50, %c0_51] : memref<2x12x18x32xf32, #tpu.memory_space<vmem>>, vector<2x10x16x32xf32>
    %c0_52 = arith.constant 0 : index
    %c0_53 = arith.constant 0 : index
    %c1_54 = arith.constant 1 : index
    %c0_55 = arith.constant 0 : index
    %52 = vector.load %arg10[%c0_52, %c0_53, %c1_54, %c0_55] : memref<2x12x18x32xf32, #tpu.memory_space<vmem>>, vector<2x10x16x32xf32>
    %c0_56 = arith.constant 0 : index
    %c0_57 = arith.constant 0 : index
    %c2_58 = arith.constant 2 : index
    %c0_59 = arith.constant 0 : index
    %53 = vector.load %arg10[%c0_56, %c0_57, %c2_58, %c0_59] : memref<2x12x18x32xf32, #tpu.memory_space<vmem>>, vector<2x10x16x32xf32>
    %c0_60 = arith.constant 0 : index
    %c1_61 = arith.constant 1 : index
    %c0_62 = arith.constant 0 : index
    %c0_63 = arith.constant 0 : index
    %54 = vector.load %arg10[%c0_60, %c1_61, %c0_62, %c0_63] : memref<2x12x18x32xf32, #tpu.memory_space<vmem>>, vector<2x10x16x32xf32>
    %c0_64 = arith.constant 0 : index
    %c1_65 = arith.constant 1 : index
    %c1_66 = arith.constant 1 : index
    %c0_67 = arith.constant 0 : index
    %55 = vector.load %arg10[%c0_64, %c1_65, %c1_66, %c0_67] : memref<2x12x18x32xf32, #tpu.memory_space<vmem>>, vector<2x10x16x32xf32>
    %c0_68 = arith.constant 0 : index
    %c1_69 = arith.constant 1 : index
    %c2_70 = arith.constant 2 : index
    %c0_71 = arith.constant 0 : index
    %56 = vector.load %arg10[%c0_68, %c1_69, %c2_70, %c0_71] : memref<2x12x18x32xf32, #tpu.memory_space<vmem>>, vector<2x10x16x32xf32>
    %c0_72 = arith.constant 0 : index
    %c2_73 = arith.constant 2 : index
    %c0_74 = arith.constant 0 : index
    %c0_75 = arith.constant 0 : index
    %57 = vector.load %arg10[%c0_72, %c2_73, %c0_74, %c0_75] : memref<2x12x18x32xf32, #tpu.memory_space<vmem>>, vector<2x10x16x32xf32>
    %c0_76 = arith.constant 0 : index
    %c2_77 = arith.constant 2 : index
    %c1_78 = arith.constant 1 : index
    %c0_79 = arith.constant 0 : index
    %58 = vector.load %arg10[%c0_76, %c2_77, %c1_78, %c0_79] : memref<2x12x18x32xf32, #tpu.memory_space<vmem>>, vector<2x10x16x32xf32>
    %c0_80 = arith.constant 0 : index
    %c2_81 = arith.constant 2 : index
    %c2_82 = arith.constant 2 : index
    %c0_83 = arith.constant 0 : index
    %59 = vector.load %arg10[%c0_80, %c2_81, %c2_82, %c0_83] : memref<2x12x18x32xf32, #tpu.memory_space<vmem>>, vector<2x10x16x32xf32>
    %60 = tpu.concatenate %51, %52, %53, %54, %55, %56, %57, %58, %59 in 3 : vector<2x10x16x32xf32>, vector<2x10x16x32xf32>, vector<2x10x16x32xf32>, vector<2x10x16x32xf32>, vector<2x10x16x32xf32>, vector<2x10x16x32xf32>, vector<2x10x16x32xf32>, vector<2x10x16x32xf32>, vector<2x10x16x32xf32> -> vector<2x10x16x288xf32>
    %61 = vector.shape_cast %60 : vector<2x10x16x288xf32> to vector<320x288xf32>
    %c0_84 = arith.constant 0 : index
    %c0_85 = arith.constant 0 : index
    %62 = vector.load %arg3[%c0_84, %c0_85] : memref<288x64xf32, #tpu.memory_space<vmem>>, vector<288x64xf32>
    %cst_86 = arith.constant dense<0.000000e+00> : vector<320x64xf32>
    %63 = tpu.matmul %61, %62, %cst_86 {dimension_numbers = #tpu.dot_dimension_numbers<[1], [0], [0], [1], [0, 0, 1, 1], [], []>} : vector<320x288xf32>, vector<288x64xf32>, vector<320x64xf32> -> vector<320x64xf32>
    %c0_87 = arith.constant 0 : index
    %c0_88 = arith.constant 0 : index
    %64 = vector.load %arg4[%c0_87, %c0_88] : memref<1x64xf32, #tpu.memory_space<vmem>>, vector<1x64xf32>
    %65 = vector.broadcast %64 : vector<1x64xf32> to vector<320x64xf32>
    %66 = arith.addf %63, %65 : vector<320x64xf32>
    %cst_89 = arith.constant 0.000000e+00 : f32
    %67 = vector.broadcast %cst_89 : f32 to vector<320x64xf32>
    %68 = arith.maximumf %66, %67 : vector<320x64xf32>
    %69 = vector.shape_cast %68 : vector<320x64xf32> to vector<2x5x2x16x64xf32>
    %cst_90 = arith.constant dense<0xFF800000> : vector<2x5x16x64xf32>
    %70 = vector.multi_reduction <maximumf>, %69, %cst_90 [2] : vector<2x5x2x16x64xf32> to vector<2x5x16x64xf32>
    %71 = vector.extract_strided_slice %70 {offsets = [0, 0, 0, 0], sizes = [2, 5, 15, 64], strides = [1, 1, 1, 1]} : vector<2x5x16x64xf32> to vector<2x5x15x64xf32>
    %72 = vector.extract_strided_slice %70 {offsets = [0, 0, 1, 0], sizes = [2, 5, 15, 64], strides = [1, 1, 1, 1]} : vector<2x5x16x64xf32> to vector<2x5x15x64xf32>
    %73 = arith.maximumf %71, %72 : vector<2x5x15x64xf32>
    %74 = vector.extract_strided_slice %73 {offsets = [0, 0, 0, 0], sizes = [2, 1, 1, 64], strides = [1, 1, 1, 1]} : vector<2x5x15x64xf32> to vector<2x1x1x64xf32>
    %75 = vector.shape_cast %74 : vector<2x1x1x64xf32> to vector<2x64xf32>
    %76 = vector.extract_strided_slice %73 {offsets = [0, 0, 2, 0], sizes = [2, 1, 1, 64], strides = [1, 1, 1, 1]} : vector<2x5x15x64xf32> to vector<2x1x1x64xf32>
    %77 = vector.shape_cast %76 : vector<2x1x1x64xf32> to vector<2x64xf32>
    %78 = vector.extract_strided_slice %73 {offsets = [0, 0, 4, 0], sizes = [2, 1, 1, 64], strides = [1, 1, 1, 1]} : vector<2x5x15x64xf32> to vector<2x1x1x64xf32>
    %79 = vector.shape_cast %78 : vector<2x1x1x64xf32> to vector<2x64xf32>
    %80 = vector.extract_strided_slice %73 {offsets = [0, 0, 6, 0], sizes = [2, 1, 1, 64], strides = [1, 1, 1, 1]} : vector<2x5x15x64xf32> to vector<2x1x1x64xf32>
    %81 = vector.shape_cast %80 : vector<2x1x1x64xf32> to vector<2x64xf32>
    %82 = vector.extract_strided_slice %73 {offsets = [0, 0, 8, 0], sizes = [2, 1, 1, 64], strides = [1, 1, 1, 1]} : vector<2x5x15x64xf32> to vector<2x1x1x64xf32>
    %83 = vector.shape_cast %82 : vector<2x1x1x64xf32> to vector<2x64xf32>
    %84 = vector.extract_strided_slice %73 {offsets = [0, 1, 0, 0], sizes = [2, 1, 1, 64], strides = [1, 1, 1, 1]} : vector<2x5x15x64xf32> to vector<2x1x1x64xf32>
    %85 = vector.shape_cast %84 : vector<2x1x1x64xf32> to vector<2x64xf32>
    %86 = vector.extract_strided_slice %73 {offsets = [0, 1, 2, 0], sizes = [2, 1, 1, 64], strides = [1, 1, 1, 1]} : vector<2x5x15x64xf32> to vector<2x1x1x64xf32>
    %87 = vector.shape_cast %86 : vector<2x1x1x64xf32> to vector<2x64xf32>
    %88 = vector.extract_strided_slice %73 {offsets = [0, 1, 4, 0], sizes = [2, 1, 1, 64], strides = [1, 1, 1, 1]} : vector<2x5x15x64xf32> to vector<2x1x1x64xf32>
    %89 = vector.shape_cast %88 : vector<2x1x1x64xf32> to vector<2x64xf32>
    %90 = vector.extract_strided_slice %73 {offsets = [0, 1, 6, 0], sizes = [2, 1, 1, 64], strides = [1, 1, 1, 1]} : vector<2x5x15x64xf32> to vector<2x1x1x64xf32>
    %91 = vector.shape_cast %90 : vector<2x1x1x64xf32> to vector<2x64xf32>
    %92 = vector.extract_strided_slice %73 {offsets = [0, 1, 8, 0], sizes = [2, 1, 1, 64], strides = [1, 1, 1, 1]} : vector<2x5x15x64xf32> to vector<2x1x1x64xf32>
    %93 = vector.shape_cast %92 : vector<2x1x1x64xf32> to vector<2x64xf32>
    %94 = vector.extract_strided_slice %73 {offsets = [0, 2, 0, 0], sizes = [2, 1, 1, 64], strides = [1, 1, 1, 1]} : vector<2x5x15x64xf32> to vector<2x1x1x64xf32>
    %95 = vector.shape_cast %94 : vector<2x1x1x64xf32> to vector<2x64xf32>
    %96 = vector.extract_strided_slice %73 {offsets = [0, 2, 2, 0], sizes = [2, 1, 1, 64], strides = [1, 1, 1, 1]} : vector<2x5x15x64xf32> to vector<2x1x1x64xf32>
    %97 = vector.shape_cast %96 : vector<2x1x1x64xf32> to vector<2x64xf32>
    %98 = vector.extract_strided_slice %73 {offsets = [0, 2, 4, 0], sizes = [2, 1, 1, 64], strides = [1, 1, 1, 1]} : vector<2x5x15x64xf32> to vector<2x1x1x64xf32>
    %99 = vector.shape_cast %98 : vector<2x1x1x64xf32> to vector<2x64xf32>
    %100 = vector.extract_strided_slice %73 {offsets = [0, 2, 6, 0], sizes = [2, 1, 1, 64], strides = [1, 1, 1, 1]} : vector<2x5x15x64xf32> to vector<2x1x1x64xf32>
    %101 = vector.shape_cast %100 : vector<2x1x1x64xf32> to vector<2x64xf32>
    %102 = vector.extract_strided_slice %73 {offsets = [0, 2, 8, 0], sizes = [2, 1, 1, 64], strides = [1, 1, 1, 1]} : vector<2x5x15x64xf32> to vector<2x1x1x64xf32>
    %103 = vector.shape_cast %102 : vector<2x1x1x64xf32> to vector<2x64xf32>
    %104 = vector.extract_strided_slice %73 {offsets = [0, 3, 0, 0], sizes = [2, 1, 1, 64], strides = [1, 1, 1, 1]} : vector<2x5x15x64xf32> to vector<2x1x1x64xf32>
    %105 = vector.shape_cast %104 : vector<2x1x1x64xf32> to vector<2x64xf32>
    %106 = vector.extract_strided_slice %73 {offsets = [0, 3, 2, 0], sizes = [2, 1, 1, 64], strides = [1, 1, 1, 1]} : vector<2x5x15x64xf32> to vector<2x1x1x64xf32>
    %107 = vector.shape_cast %106 : vector<2x1x1x64xf32> to vector<2x64xf32>
    %108 = vector.extract_strided_slice %73 {offsets = [0, 3, 4, 0], sizes = [2, 1, 1, 64], strides = [1, 1, 1, 1]} : vector<2x5x15x64xf32> to vector<2x1x1x64xf32>
    %109 = vector.shape_cast %108 : vector<2x1x1x64xf32> to vector<2x64xf32>
    %110 = vector.extract_strided_slice %73 {offsets = [0, 3, 6, 0], sizes = [2, 1, 1, 64], strides = [1, 1, 1, 1]} : vector<2x5x15x64xf32> to vector<2x1x1x64xf32>
    %111 = vector.shape_cast %110 : vector<2x1x1x64xf32> to vector<2x64xf32>
    %112 = vector.extract_strided_slice %73 {offsets = [0, 3, 8, 0], sizes = [2, 1, 1, 64], strides = [1, 1, 1, 1]} : vector<2x5x15x64xf32> to vector<2x1x1x64xf32>
    %113 = vector.shape_cast %112 : vector<2x1x1x64xf32> to vector<2x64xf32>
    %114 = vector.extract_strided_slice %73 {offsets = [0, 4, 0, 0], sizes = [2, 1, 1, 64], strides = [1, 1, 1, 1]} : vector<2x5x15x64xf32> to vector<2x1x1x64xf32>
    %115 = vector.shape_cast %114 : vector<2x1x1x64xf32> to vector<2x64xf32>
    %116 = vector.extract_strided_slice %73 {offsets = [0, 4, 2, 0], sizes = [2, 1, 1, 64], strides = [1, 1, 1, 1]} : vector<2x5x15x64xf32> to vector<2x1x1x64xf32>
    %117 = vector.shape_cast %116 : vector<2x1x1x64xf32> to vector<2x64xf32>
    %118 = vector.extract_strided_slice %73 {offsets = [0, 4, 4, 0], sizes = [2, 1, 1, 64], strides = [1, 1, 1, 1]} : vector<2x5x15x64xf32> to vector<2x1x1x64xf32>
    %119 = vector.shape_cast %118 : vector<2x1x1x64xf32> to vector<2x64xf32>
    %120 = vector.extract_strided_slice %73 {offsets = [0, 4, 6, 0], sizes = [2, 1, 1, 64], strides = [1, 1, 1, 1]} : vector<2x5x15x64xf32> to vector<2x1x1x64xf32>
    %121 = vector.shape_cast %120 : vector<2x1x1x64xf32> to vector<2x64xf32>
    %122 = vector.extract_strided_slice %73 {offsets = [0, 4, 8, 0], sizes = [2, 1, 1, 64], strides = [1, 1, 1, 1]} : vector<2x5x15x64xf32> to vector<2x1x1x64xf32>
    %123 = vector.shape_cast %122 : vector<2x1x1x64xf32> to vector<2x64xf32>
    %124 = tpu.concatenate %75, %77, %79, %81, %83, %85, %87, %89, %91, %93, %95, %97, %99, %101, %103, %105 in 1 : vector<2x64xf32>, vector<2x64xf32>, vector<2x64xf32>, vector<2x64xf32>, vector<2x64xf32>, vector<2x64xf32>, vector<2x64xf32>, vector<2x64xf32>, vector<2x64xf32>, vector<2x64xf32>, vector<2x64xf32>, vector<2x64xf32>, vector<2x64xf32>, vector<2x64xf32>, vector<2x64xf32>, vector<2x64xf32> -> vector<2x1024xf32>
    %125 = tpu.concatenate %107, %109, %111, %113, %115, %117, %119, %121, %123 in 1 : vector<2x64xf32>, vector<2x64xf32>, vector<2x64xf32>, vector<2x64xf32>, vector<2x64xf32>, vector<2x64xf32>, vector<2x64xf32>, vector<2x64xf32>, vector<2x64xf32> -> vector<2x576xf32>
    %126 = tpu.concatenate %124, %125 in 1 : vector<2x1024xf32>, vector<2x576xf32> -> vector<2x1600xf32>
    %c0_91 = arith.constant 0 : index
    %c0_92 = arith.constant 0 : index
    %127 = vector.load %arg5[%c0_91, %c0_92] : memref<1600x256xf32, #tpu.memory_space<vmem>>, vector<1600x256xf32>
    %cst_93 = arith.constant dense<0.000000e+00> : vector<2x256xf32>
    %128 = tpu.matmul %126, %127, %cst_93 {dimension_numbers = #tpu.dot_dimension_numbers<[1], [0], [0], [1], [0, 0, 1, 1], [], []>} : vector<2x1600xf32>, vector<1600x256xf32>, vector<2x256xf32> -> vector<2x256xf32>
    %c0_94 = arith.constant 0 : index
    %c0_95 = arith.constant 0 : index
    %129 = vector.load %arg6[%c0_94, %c0_95] : memref<1x256xf32, #tpu.memory_space<vmem>>, vector<1x256xf32>
    %130 = vector.broadcast %129 : vector<1x256xf32> to vector<2x256xf32>
    %131 = arith.addf %128, %130 : vector<2x256xf32>
    %cst_96 = arith.constant 0.000000e+00 : f32
    %132 = vector.broadcast %cst_96 : f32 to vector<2x256xf32>
    %133 = arith.maximumf %131, %132 : vector<2x256xf32>
    %c0_97 = arith.constant 0 : index
    %c0_98 = arith.constant 0 : index
    %134 = vector.load %arg7[%c0_97, %c0_98] : memref<256x4xf32, #tpu.memory_space<vmem>>, vector<256x4xf32>
    %cst_99 = arith.constant dense<0.000000e+00> : vector<2x4xf32>
    %135 = tpu.matmul %133, %134, %cst_99 {dimension_numbers = #tpu.dot_dimension_numbers<[1], [0], [0], [1], [0, 0, 1, 1], [], []>} : vector<2x256xf32>, vector<256x4xf32>, vector<2x4xf32> -> vector<2x4xf32>
    %c0_100 = arith.constant 0 : index
    %c0_101 = arith.constant 0 : index
    %136 = vector.load %arg8[%c0_100, %c0_101] : memref<1x4xf32, #tpu.memory_space<vmem>>, vector<1x4xf32>
    %137 = vector.broadcast %136 : vector<1x4xf32> to vector<2x4xf32>
    %138 = arith.addf %135, %137 : vector<2x4xf32>
    %c0_102 = arith.constant 0 : index
    %c0_103 = arith.constant 0 : index
    %139 = vector.load %arg9[%c0_102, %c0_103] : memref<2x4xf32, #tpu.memory_space<vmem>>, vector<2x4xf32>
    tpu.vector_store %arg9[%c0_102, %c0_103], %138 {strides = array<i32>} : memref<2x4xf32, #tpu.memory_space<vmem>>, vector<2x4xf32>,
    return
  }
}

</mosaic_0001>

<llo_original>
// kernel: dclass_net_forward.1
$region0: #{dclass_net_forward.1}
  #allocation0 [shape = 'u32[]', space=smem, size = 0x4, offset = 0x4, fixed_abs, tag = 'smem constant byte address 0x4 - core index']
  #allocation1 [shape = 'u32[144,128]{1,0:T(1,128)}', space=vmem, size = 0x12000, scoped, tag = 'internal scratch']
  #allocation2 [shape = 'f32[2,12,18,32]{3,2,1,0:T(8,128)}', space=vmem, size = 0x48000, scoped, tag = 'scratch operand']
  %s0 = inlined_call_operand.vmem [shape: f32[2,18,18,18], index: 0, kind: input, shape index: {}]
  %s1 = inlined_call_operand.vmem [shape: f32[162,32], index: 1, kind: input, shape index: {}]
  %s2 = inlined_call_operand.hbm [shape: f32[1,32], index: 2, kind: input, shape index: {}]
  %s3 = inlined_call_operand.vmem [shape: f32[288,64], index: 3, kind: input, shape index: {}]
  %s4 = inlined_call_operand.hbm [shape: f32[1,64], index: 4, kind: input, shape index: {}]
  %s5 = inlined_call_operand.hbm [shape: f32[1600,256], index: 5, kind: input, shape index: {}]
  %s6 = inlined_call_operand.hbm [shape: f32[1,256], index: 6, kind: input, shape index: {}]
  %s7 = inlined_call_operand.vmem [shape: f32[256,4], index: 7, kind: input, shape index: {}]
  %s8 = inlined_call_operand.hbm [shape: f32[1,4], index: 8, kind: input, shape index: {}]
  %s9 = inlined_call_operand.hbm [shape: f32[2,4], index: 9, kind: output, shape index: {}]
  %s10 = sld [smem:[#allocation0]]
  $region66: #{dclass_net_forward.1} parent=0
    _
  %s12 = ssub.s32 1, %s10
  %s13 = scalar_select 0, %s12, %s10
  $region1: #{dclass_net_forward.1} parent=0
    #allocation3 [shape = 'u8[512]{0}', space=vmem, size = 0x400, scoped, tag = 'input window, operand 2, single buffered']
    #allocation4 [shape = 's32[1]{0}', space=sflag, size = 0x4, scoped, tag = 'scoped memory for dclass_net_forward.1']
    #allocation5 [shape = 's32[1]{0}', space=sflag, size = 0x4, scoped, tag = 'scoped memory for dclass_net_forward.1']
    #allocation6 [shape = 'u8[512]{0}', space=vmem, size = 0x400, scoped, tag = 'input window, operand 4, single buffered']
    #allocation7 [shape = 's32[1]{0}', space=sflag, size = 0x4, scoped, tag = 'scoped memory for dclass_net_forward.1']
    #allocation8 [shape = 'u8[1638400]{0}', space=vmem, size = 0x190000, scoped, tag = 'input window, operand 5, single buffered']
    #allocation9 [shape = 'u8[1024]{0}', space=vmem, size = 0x400, scoped, tag = 'input window, operand 6, single buffered']
    #allocation10 [shape = 's32[1]{0}', space=sflag, size = 0x4, scoped, tag = 'scoped memory for dclass_net_forward.1']
    #allocation11 [shape = 'u8[512]{0}', space=vmem, size = 0x400, scoped, tag = 'input window, operand 8, single buffered']
    #allocation12 [shape = 'u8[1024]{0}', space=vmem, size = 0x400, scoped, tag = 'output window, operand 0, single buffered']
    %14 = vsyncpa [#allocation4], 0
    %15 = vsyncpa [#allocation7], 0
    %16 = vsyncpa [#allocation10], 0
    %17 = vsyncpa [#allocation5], 0
    // Predicated region
    $region2: #{dclass_net_forward.1} parent=1 // pred_check
      _
    $region3: #{dclass_net_forward.1} parent=1 // pred_check_branch
      %19 = sbr.rel (0) target = $region5
    $region4: #{dclass_net_forward.1} parent=1 // pred_region
      _
    $region5: #{dclass_net_forward.1} parent=1 // pred_fallthru
      _
    // Predicated region
    $region6: #{dclass_net_forward.1} parent=1 // pred_check
      _
    $region7: #{dclass_net_forward.1} parent=1 // pred_check_branch
      %21 = sbr.rel (0) target = $region9
    $region8: #{dclass_net_forward.1} parent=1 // pred_region
      _
    $region9: #{dclass_net_forward.1} parent=1 // pred_fallthru
      _
    // Predicated region
    $region10: #{dclass_net_forward.1} parent=1 // pred_check
      _
    $region11: #{dclass_net_forward.1} parent=1 // pred_check_branch
      %23 = sbr.rel (0) target = $region13
    $region12: #{dclass_net_forward.1} parent=1 // pred_region
      %s25 = ssub.s32 16, 16
      %26 = vsyncadd [#allocation4], %s25
      %s28 = sshll.u32 [#allocation3], 4
      %s29 = int_to_ptr.vmem [resolvable:$true] %s28
      %31 = dma.hbm_to_vmem [thread:$0]  %s2, 16, %s29, [#allocation4]
    $region13: #{dclass_net_forward.1} parent=1 // pred_fallthru
      _
    // Predicated region
    $region14: #{dclass_net_forward.1} parent=1 // pred_check
      _
    $region15: #{dclass_net_forward.1} parent=1 // pred_check_branch
      %33 = sbr.rel (0) target = $region17
    $region16: #{dclass_net_forward.1} parent=1 // pred_region
      _
    $region17: #{dclass_net_forward.1} parent=1 // pred_fallthru
      _
    // Predicated region
    $region18: #{dclass_net_forward.1} parent=1 // pred_check
      _
    $region19: #{dclass_net_forward.1} parent=1 // pred_check_branch
      %35 = sbr.rel (0) target = $region21
    $region20: #{dclass_net_forward.1} parent=1 // pred_region
      %s37 = ssub.s32 16, 16
      %38 = vsyncadd [#allocation7], %s37
      %s40 = sshll.u32 [#allocation6], 4
      %s41 = int_to_ptr.vmem [resolvable:$true] %s40
      %43 = dma.hbm_to_vmem [thread:$0]  %s4, 16, %s41, [#allocation7]
    $region21: #{dclass_net_forward.1} parent=1 // pred_fallthru
      _
    // Predicated region
    $region22: #{dclass_net_forward.1} parent=1 // pred_check
      _
    $region23: #{dclass_net_forward.1} parent=1 // pred_check_branch
      %45 = sbr.rel (0) target = $region25
    $region24: #{dclass_net_forward.1} parent=1 // pred_region
      %s47 = ssub.s32 51200, 51200
      %48 = vsyncadd [#allocation7], %s47
      %s49 = sshll.u32 [#allocation8], 4
      %s50 = int_to_ptr.vmem [resolvable:$true] %s49
      %55 = dma.hbm_to_vmem [thread:$0]  %s5, 51200, %s50, [#allocation7], 256, 256, 16
    $region25: #{dclass_net_forward.1} parent=1 // pred_fallthru
      _
    // Predicated region
    $region26: #{dclass_net_forward.1} parent=1 // pred_check
      _
    $region27: #{dclass_net_forward.1} parent=1 // pred_check_branch
      %57 = sbr.rel (0) target = $region29
    $region28: #{dclass_net_forward.1} parent=1 // pred_region
      %s59 = ssub.s32 32, 32
      %60 = vsyncadd [#allocation10], %s59
      %s62 = sshll.u32 [#allocation9], 4
      %s63 = int_to_ptr.vmem [resolvable:$true] %s62
      %65 = dma.hbm_to_vmem [thread:$0]  %s6, 32, %s63, [#allocation10]
    $region29: #{dclass_net_forward.1} parent=1 // pred_fallthru
      _
    // Predicated region
    $region30: #{dclass_net_forward.1} parent=1 // pred_check
      _
    $region31: #{dclass_net_forward.1} parent=1 // pred_check_branch
      %67 = sbr.rel (0) target = $region33
    $region32: #{dclass_net_forward.1} parent=1 // pred_region
      _
    $region33: #{dclass_net_forward.1} parent=1 // pred_fallthru
      _
    // Predicated region
    $region34: #{dclass_net_forward.1} parent=1 // pred_check
      _
    $region35: #{dclass_net_forward.1} parent=1 // pred_check_branch
      %69 = sbr.rel (0) target = $region37
    $region36: #{dclass_net_forward.1} parent=1 // pred_region
      %s71 = ssub.s32 16, 16
      %72 = vsyncadd [#allocation10], %s71
      %s74 = sshll.u32 [#allocation11], 4
      %s75 = int_to_ptr.vmem [resolvable:$true] %s74
      %77 = dma.hbm_to_vmem [thread:$0]  %s8, 16, %s75, [#allocation10]
    $region37: #{dclass_net_forward.1} parent=1 // pred_fallthru
      _
    // Predicated region
    $region38: #{dclass_net_forward.1} parent=1 // pred_check
      _
    $region39: #{dclass_net_forward.1} parent=1 // pred_check_branch
      %79 = sbr.rel (0) target = $region41
    $region40: #{dclass_net_forward.1} parent=1 // pred_region
      %80 = dma.done [#allocation4], 16
    $region41: #{dclass_net_forward.1} parent=1 // pred_fallthru
      _
    // Predicated region
    $region42: #{dclass_net_forward.1} parent=1 // pred_check
      _
    $region43: #{dclass_net_forward.1} parent=1 // pred_check_branch
      %82 = sbr.rel (0) target = $region45
    $region44: #{dclass_net_forward.1} parent=1 // pred_region
      %83 = dma.done [#allocation7], 16
    $region45: #{dclass_net_forward.1} parent=1 // pred_fallthru
      _
    // Predicated region
    $region46: #{dclass_net_forward.1} parent=1 // pred_check
      _
    $region47: #{dclass_net_forward.1} parent=1 // pred_check_branch
      %85 = sbr.rel (0) target = $region49
    $region48: #{dclass_net_forward.1} parent=1 // pred_region
      %86 = dma.done [#allocation7], 51200
    $region49: #{dclass_net_forward.1} parent=1 // pred_fallthru
      _
    // Predicated region
    $region50: #{dclass_net_forward.1} parent=1 // pred_check
      _
    $region51: #{dclass_net_forward.1} parent=1 // pred_check_branch
      %88 = sbr.rel (0) target = $region53
    $region52: #{dclass_net_forward.1} parent=1 // pred_region
      %89 = dma.done [#allocation10], 32
    $region53: #{dclass_net_forward.1} parent=1 // pred_fallthru
      _
    // Predicated region
    $region54: #{dclass_net_forward.1} parent=1 // pred_check
      _
    $region55: #{dclass_net_forward.1} parent=1 // pred_check_branch
      %91 = sbr.rel (0) target = $region57
    $region56: #{dclass_net_forward.1} parent=1 // pred_region
      %92 = dma.done [#allocation10], 16
    $region57: #{dclass_net_forward.1} parent=1 // pred_fallthru
      _
    %v93 = vld [vmem:[%s0] sm:$0xff]
    %v94 = vld [vmem:[%s0 + $0x8] sm:$0xff]
    %v95 = vld [vmem:[%s0 + $0x18] sm:$0xff]
    %v96 = vld [vmem:[%s0 + $0x20] sm:$0xff]
    %v97 = vld [vmem:[%s0 + $0x30] sm:$0xff]
    %v98 = vld [vmem:[%s0 + $0x38] sm:$0xff]
    %v99 = vld [vmem:[%s0 + $0x48] sm:$0xff]
    %v100 = vld [vmem:[%s0 + $0x50] sm:$0xff]
    %v101 = vld [vmem:[%s0 + $0x60] sm:$0xff]
    %v102 = vld [vmem:[%s0 + $0x68] sm:$0xff]
    %v103 = vld [vmem:[%s0 + $0x78] sm:$0xff]
    %v104 = vld [vmem:[%s0 + $0x80] sm:$0xff]
    %v105 = vld [vmem:[%s0 + $0x90] sm:$0xff]
    %v106 = vld [vmem:[%s0 + $0x98] sm:$0xff]
    %v107 = vld [vmem:[%s0 + $0xa8] sm:$0xff]
    %v108 = vld [vmem:[%s0 + $0xb0] sm:$0xff]
    %v109 = vld [vmem:[%s0 + $0xc0] sm:$0xff]
    %v110 = vld [vmem:[%s0 + $0xc8] sm:$0xff]
    %v111 = vld [vmem:[%s0 + $0xd8] sm:$0xff]
    %v112 = vld [vmem:[%s0 + $0xe0] sm:$0xff]
    %v113 = vld [vmem:[%s0 + $0xf0] sm:$0xff]
    %v114 = vld [vmem:[%s0 + $0xf8] sm:$0xff]
    %v115 = vld [vmem:[%s0 + $0x108] sm:$0xff]
    %v116 = vld [vmem:[%s0 + $0x110] sm:$0xff]
    %v117 = vld [vmem:[%s0 + $0x120] sm:$0xff]
    %v118 = vld [vmem:[%s0 + $0x128] sm:$0xff]
    %v119 = vld [vmem:[%s0 + $0x138] sm:$0xff]
    %v120 = vld [vmem:[%s0 + $0x140] sm:$0xff]
    %v121 = vld [vmem:[%s0 + $0x150] sm:$0xff]
    %v122 = vld [vmem:[%s0 + $0x158] sm:$0xff]
    %v123 = vld [vmem:[%s0 + $0x168] sm:$0xff]
    %v124 = vld [vmem:[%s0 + $0x170] sm:$0xff]
    %v125 = vld [vmem:[%s0 + $0x1b0] sm:$0xff]
    %v126 = vld [vmem:[%s0 + $0x1b8] sm:$0xff]
    %v127 = vld [vmem:[%s0 + $0x1c8] sm:$0xff]
    %v128 = vld [vmem:[%s0 + $0x1d0] sm:$0xff]
    %v129 = vld [vmem:[%s0 + $0x1e0] sm:$0xff]
    %v130 = vld [vmem:[%s0 + $0x1e8] sm:$0xff]
    %v131 = vld [vmem:[%s0 + $0x1f8] sm:$0xff]
    %v132 = vld [vmem:[%s0 + $0x200] sm:$0xff]
    %v133 = vld [vmem:[%s0 + $0x210] sm:$0xff]
    %v134 = vld [vmem:[%s0 + $0x218] sm:$0xff]
    %v135 = vld [vmem:[%s0 + $0x228] sm:$0xff]
    %v136 = vld [vmem:[%s0 + $0x230] sm:$0xff]
    %v137 = vld [vmem:[%s0 + $0x240] sm:$0xff]
    %v138 = vld [vmem:[%s0 + $0x248] sm:$0xff]
    %v139 = vld [vmem:[%s0 + $0x258] sm:$0xff]
    %v140 = vld [vmem:[%s0 + $0x260] sm:$0xff]
    %v141 = vld [vmem:[%s0 + $0x270] sm:$0xff]
    %v142 = vld [vmem:[%s0 + $0x278] sm:$0xff]
    %v143 = vld [vmem:[%s0 + $0x288] sm:$0xff]
    %v144 = vld [vmem:[%s0 + $0x290] sm:$0xff]
    %v145 = vld [vmem:[%s0 + $0x2a0] sm:$0xff]
    %v146 = vld [vmem:[%s0 + $0x2a8] sm:$0xff]
    %v147 = vld [vmem:[%s0 + $0x2b8] sm:$0xff]
    %v148 = vld [vmem:[%s0 + $0x2c0] sm:$0xff]
    %v149 = vld [vmem:[%s0 + $0x2d0] sm:$0xff]
    %v150 = vld [vmem:[%s0 + $0x2d8] sm:$0xff]
    %v151 = vld [vmem:[%s0 + $0x2e8] sm:$0xff]
    %v152 = vld [vmem:[%s0 + $0x2f0] sm:$0xff]
    %v153 = vld [vmem:[%s0 + $0x300] sm:$0xff]
    %v154 = vld [vmem:[%s0 + $0x308] sm:$0xff]
    %v155 = vld [vmem:[%s0 + $0x318] sm:$0xff]
    %v156 = vld [vmem:[%s0 + $0x320] sm:$0xff]
    %v157 = vld [vmem:[%s0 + $0x1] sm:$0xff]
    %v158 = vld [vmem:[%s0 + $0x9] sm:$0xff]
    %v159 = vld [vmem:[%s0 + $0x19] sm:$0xff]
    %v160 = vld [vmem:[%s0 + $0x21] sm:$0xff]
    %v161 = vld [vmem:[%s0 + $0x31] sm:$0xff]
    %v162 = vld [vmem:[%s0 + $0x39] sm:$0xff]
    %v163 = vld [vmem:[%s0 + $0x49] sm:$0xff]
    %v164 = vld [vmem:[%s0 + $0x51] sm:$0xff]
    %v165 = vld [vmem:[%s0 + $0x61] sm:$0xff]
    %v166 = vld [vmem:[%s0 + $0x69] sm:$0xff]
    %v167 = vld [vmem:[%s0 + $0x79] sm:$0xff]
    %v168 = vld [vmem:[%s0 + $0x81] sm:$0xff]
    %v169 = vld [vmem:[%s0 + $0x91] sm:$0xff]
    %v170 = vld [vmem:[%s0 + $0x99] sm:$0xff]
    %v171 = vld [vmem:[%s0 + $0xa9] sm:$0xff]
    %v172 = vld [vmem:[%s0 + $0xb1] sm:$0xff]
    %v173 = vld [vmem:[%s0 + $0xc1] sm:$0xff]
    %v174 = vld [vmem:[%s0 + $0xc9] sm:$0xff]
    %v175 = vld [vmem:[%s0 + $0xd9] sm:$0xff]
    %v176 = vld [vmem:[%s0 + $0xe1] sm:$0xff]
    %v177 = vld [vmem:[%s0 + $0xf1] sm:$0xff]
    %v178 = vld [vmem:[%s0 + $0xf9] sm:$0xff]
    %v179 = vld [vmem:[%s0 + $0x109] sm:$0xff]
    %v180 = vld [vmem:[%s0 + $0x111] sm:$0xff]
    %v181 = vld [vmem:[%s0 + $0x121] sm:$0xff]
    %v182 = vld [vmem:[%s0 + $0x129] sm:$0xff]
    %v183 = vld [vmem:[%s0 + $0x139] sm:$0xff]
    %v184 = vld [vmem:[%s0 + $0x141] sm:$0xff]
    %v185 = vld [vmem:[%s0 + $0x151] sm:$0xff]
    %v186 = vld [vmem:[%s0 + $0x159] sm:$0xff]
    %v187 = vld [vmem:[%s0 + $0x169] sm:$0xff]
    %v188 = vld [vmem:[%s0 + $0x171] sm:$0xff]
    %v189 = vld [vmem:[%s0 + $0x1b1] sm:$0xff]
    %v190 = vld [vmem:[%s0 + $0x1b9] sm:$0xff]
    %v191 = vld [vmem:[%s0 + $0x1c9] sm:$0xff]
    %v192 = vld [vmem:[%s0 + $0x1d1] sm:$0xff]
    %v193 = vld [vmem:[%s0 + $0x1e1] sm:$0xff]
    %v194 = vld [vmem:[%s0 + $0x1e9] sm:$0xff]
    %v195 = vld [vmem:[%s0 + $0x1f9] sm:$0xff]
    %v196 = vld [vmem:[%s0 + $0x201] sm:$0xff]
    %v197 = vld [vmem:[%s0 + $0x211] sm:$0xff]
    %v198 = vld [vmem:[%s0 + $0x219] sm:$0xff]
    %v199 = vld [vmem:[%s0 + $0x229] sm:$0xff]
    %v200 = vld [vmem:[%s0 + $0x231] sm:$0xff]
    %v201 = vld [vmem:[%s0 + $0x241] sm:$0xff]
    %v202 = vld [vmem:[%s0 + $0x249] sm:$0xff]
    %v203 = vld [vmem:[%s0 + $0x259] sm:$0xff]
    %v204 = vld [vmem:[%s0 + $0x261] sm:$0xff]
    %v205 = vld [vmem:[%s0 + $0x271] sm:$0xff]
    %v206 = vld [vmem:[%s0 + $0x279] sm:$0xff]
    %v207 = vld [vmem:[%s0 + $0x289] sm:$0xff]
    %v208 = vld [vmem:[%s0 + $0x291] sm:$0xff]
    %v209 = vld [vmem:[%s0 + $0x2a1] sm:$0xff]
    %v210 = vld [vmem:[%s0 + $0x2a9] sm:$0xff]
    %v211 = vld [vmem:[%s0 + $0x2b9] sm:$0xff]
    %v212 = vld [vmem:[%s0 + $0x2c1] sm:$0xff]
    %v213 = vld [vmem:[%s0 + $0x2d1] sm:$0xff]
    %v214 = vld [vmem:[%s0 + $0x2d9] sm:$0xff]
    %v215 = vld [vmem:[%s0 + $0x2e9] sm:$0xff]
    %v216 = vld [vmem:[%s0 + $0x2f1] sm:$0xff]
    %v217 = vld [vmem:[%s0 + $0x301] sm:$0xff]
    %v218 = vld [vmem:[%s0 + $0x309] sm:$0xff]
    %v219 = vld [vmem:[%s0 + $0x319] sm:$0xff]
    %v220 = vld [vmem:[%s0 + $0x321] sm:$0xff]
    %v221 = vld [vmem:[%s0 + $0x2] sm:$0xff]
    %v222 = vld [vmem:[%s0 + $0xa] sm:$0xff]
    %v223 = vld [vmem:[%s0 + $0x1a] sm:$0xff]
    %v224 = vld [vmem:[%s0 + $0x22] sm:$0xff]
    %v225 = vld [vmem:[%s0 + $0x32] sm:$0xff]
    %v226 = vld [vmem:[%s0 + $0x3a] sm:$0xff]
    %v227 = vld [vmem:[%s0 + $0x4a] sm:$0xff]
    %v228 = vld [vmem:[%s0 + $0x52] sm:$0xff]
    %v229 = vld [vmem:[%s0 + $0x62] sm:$0xff]
    %v230 = vld [vmem:[%s0 + $0x6a] sm:$0xff]
    %v231 = vld [vmem:[%s0 + $0x7a] sm:$0xff]
    %v232 = vld [vmem:[%s0 + $0x82] sm:$0xff]
    %v233 = vld [vmem:[%s0 + $0x92] sm:$0xff]
    %v234 = vld [vmem:[%s0 + $0x9a] sm:$0xff]
    %v235 = vld [vmem:[%s0 + $0xaa] sm:$0xff]
    %v236 = vld [vmem:[%s0 + $0xb2] sm:$0xff]
    %v237 = vld [vmem:[%s0 + $0xc2] sm:$0xff]
    %v238 = vld [vmem:[%s0 + $0xca] sm:$0xff]
    %v239 = vld [vmem:[%s0 + $0xda] sm:$0xff]
    %v240 = vld [vmem:[%s0 + $0xe2] sm:$0xff]
    %v241 = vld [vmem:[%s0 + $0xf2] sm:$0xff]
    %v242 = vld [vmem:[%s0 + $0xfa] sm:$0xff]
    %v243 = vld [vmem:[%s0 + $0x10a] sm:$0xff]
    %v244 = vld [vmem:[%s0 + $0x112] sm:$0xff]
    %v245 = vld [vmem:[%s0 + $0x122] sm:$0xff]
    %v246 = vld [vmem:[%s0 + $0x12a] sm:$0xff]
    %v247 = vld [vmem:[%s0 + $0x13a] sm:$0xff]
    %v248 = vld [vmem:[%s0 + $0x142] sm:$0xff]
    %v249 = vld [vmem:[%s0 + $0x152] sm:$0xff]
    %v250 = vld [vmem:[%s0 + $0x15a] sm:$0xff]
    %v251 = vld [vmem:[%s0 + $0x16a] sm:$0xff]
    %v252 = vld [vmem:[%s0 + $0x172] sm:$0xff]
    %v253 = vld [vmem:[%s0 + $0x1b2] sm:$0xff]
    %v254 = vld [vmem:[%s0 + $0x1ba] sm:$0xff]
    %v255 = vld [vmem:[%s0 + $0x1ca] sm:$0xff]
    %v256 = vld [vmem:[%s0 + $0x1d2] sm:$0xff]
    %v257 = vld [vmem:[%s0 + $0x1e2] sm:$0xff]
    %v258 = vld [vmem:[%s0 + $0x1ea] sm:$0xff]
    %v259 = vld [vmem:[%s0 + $0x1fa] sm:$0xff]
    %v260 = vld [vmem:[%s0 + $0x202] sm:$0xff]
    %v261 = vld [vmem:[%s0 + $0x212] sm:$0xff]
    %v262 = vld [vmem:[%s0 + $0x21a] sm:$0xff]
    %v263 = vld [vmem:[%s0 + $0x22a] sm:$0xff]
    %v264 = vld [vmem:[%s0 + $0x232] sm:$0xff]
    %v265 = vld [vmem:[%s0 + $0x242] sm:$0xff]
    %v266 = vld [vmem:[%s0 + $0x24a] sm:$0xff]
    %v267 = vld [vmem:[%s0 + $0x25a] sm:$0xff]
    %v268 = vld [vmem:[%s0 + $0x262] sm:$0xff]
    %v269 = vld [vmem:[%s0 + $0x272] sm:$0xff]
    %v270 = vld [vmem:[%s0 + $0x27a] sm:$0xff]
    %v271 = vld [vmem:[%s0 + $0x28a] sm:$0xff]
    %v272 = vld [vmem:[%s0 + $0x292] sm:$0xff]
    %v273 = vld [vmem:[%s0 + $0x2a2] sm:$0xff]
    %v274 = vld [vmem:[%s0 + $0x2aa] sm:$0xff]
    %v275 = vld [vmem:[%s0 + $0x2ba] sm:$0xff]
    %v276 = vld [vmem:[%s0 + $0x2c2] sm:$0xff]
    %v277 = vld [vmem:[%s0 + $0x2d2] sm:$0xff]
    %v278 = vld [vmem:[%s0 + $0x2da] sm:$0xff]
    %v279 = vld [vmem:[%s0 + $0x2ea] sm:$0xff]
    %v280 = vld [vmem:[%s0 + $0x2f2] sm:$0xff]
    %v281 = vld [vmem:[%s0 + $0x302] sm:$0xff]
    %v282 = vld [vmem:[%s0 + $0x30a] sm:$0xff]
    %v283 = vld [vmem:[%s0 + $0x31a] sm:$0xff]
    %v284 = vld [vmem:[%s0 + $0x322] sm:$0xff]
    %s285 = scalar_lea.vmem %s0, 24
    %v286 = vld [vmem:[%s285] sm:$0xff]
    %v287 = vld [vmem:[%s285 + $0x8] sm:$0xff]
    %v288 = vld [vmem:[%s285 + $0x18] sm:$0xff]
    %v289 = vld [vmem:[%s285 + $0x20] sm:$0xff]
    %v290 = vld [vmem:[%s285 + $0x30] sm:$0xff]
    %v291 = vld [vmem:[%s285 + $0x38] sm:$0xff]
    %v292 = vld [vmem:[%s285 + $0x48] sm:$0xff]
    %v293 = vld [vmem:[%s285 + $0x50] sm:$0xff]
    %v294 = vld [vmem:[%s285 + $0x60] sm:$0xff]
    %v295 = vld [vmem:[%s285 + $0x68] sm:$0xff]
    %v296 = vld [vmem:[%s285 + $0x78] sm:$0xff]
    %v297 = vld [vmem:[%s285 + $0x80] sm:$0xff]
    %v298 = vld [vmem:[%s285 + $0x90] sm:$0xff]
    %v299 = vld [vmem:[%s285 + $0x98] sm:$0xff]
    %v300 = vld [vmem:[%s285 + $0xa8] sm:$0xff]
    %v301 = vld [vmem:[%s285 + $0xb0] sm:$0xff]
    %v302 = vld [vmem:[%s285 + $0xc0] sm:$0xff]
    %v303 = vld [vmem:[%s285 + $0xc8] sm:$0xff]
    %v304 = vld [vmem:[%s285 + $0xd8] sm:$0xff]
    %v305 = vld [vmem:[%s285 + $0xe0] sm:$0xff]
    %v306 = vld [vmem:[%s285 + $0xf0] sm:$0xff]
    %v307 = vld [vmem:[%s285 + $0xf8] sm:$0xff]
    %v308 = vld [vmem:[%s285 + $0x108] sm:$0xff]
    %v309 = vld [vmem:[%s285 + $0x110] sm:$0xff]
    %v310 = vld [vmem:[%s285 + $0x120] sm:$0xff]
    %v311 = vld [vmem:[%s285 + $0x128] sm:$0xff]
    %v312 = vld [vmem:[%s285 + $0x138] sm:$0xff]
    %v313 = vld [vmem:[%s285 + $0x140] sm:$0xff]
    %v314 = vld [vmem:[%s285 + $0x150] sm:$0xff]
    %v315 = vld [vmem:[%s285 + $0x158] sm:$0xff]
    %v316 = vld [vmem:[%s285 + $0x168] sm:$0xff]
    %v317 = vld [vmem:[%s285 + $0x170] sm:$0xff]
    %v318 = vld [vmem:[%s285 + $0x1b0] sm:$0xff]
    %v319 = vld [vmem:[%s285 + $0x1b8] sm:$0xff]
    %v320 = vld [vmem:[%s285 + $0x1c8] sm:$0xff]
    %v321 = vld [vmem:[%s285 + $0x1d0] sm:$0xff]
    %v322 = vld [vmem:[%s285 + $0x1e0] sm:$0xff]
    %v323 = vld [vmem:[%s285 + $0x1e8] sm:$0xff]
    %v324 = vld [vmem:[%s285 + $0x1f8] sm:$0xff]
    %v325 = vld [vmem:[%s285 + $0x200] sm:$0xff]
    %v326 = vld [vmem:[%s285 + $0x210] sm:$0xff]
    %v327 = vld [vmem:[%s285 + $0x218] sm:$0xff]
    %v328 = vld [vmem:[%s285 + $0x228] sm:$0xff]
    %v329 = vld [vmem:[%s285 + $0x230] sm:$0xff]
    %v330 = vld [vmem:[%s285 + $0x240] sm:$0xff]
    %v331 = vld [vmem:[%s285 + $0x248] sm:$0xff]
    %v332 = vld [vmem:[%s285 + $0x258] sm:$0xff]
    %v333 = vld [vmem:[%s285 + $0x260] sm:$0xff]
    %v334 = vld [vmem:[%s285 + $0x270] sm:$0xff]
    %v335 = vld [vmem:[%s285 + $0x278] sm:$0xff]
    %v336 = vld [vmem:[%s285 + $0x288] sm:$0xff]
    %v337 = vld [vmem:[%s285 + $0x290] sm:$0xff]
    %v338 = vld [vmem:[%s285 + $0x2a0] sm:$0xff]
    %v339 = vld [vmem:[%s285 + $0x2a8] sm:$0xff]
    %v340 = vld [vmem:[%s285 + $0x2b8] sm:$0xff]
    %v341 = vld [vmem:[%s285 + $0x2c0] sm:$0xff]
    %v342 = vld [vmem:[%s285 + $0x2d0] sm:$0xff]
    %v343 = vld [vmem:[%s285 + $0x2d8] sm:$0xff]
    %v344 = vld [vmem:[%s285 + $0x2e8] sm:$0xff]
    %v345 = vld [vmem:[%s285 + $0x2f0] sm:$0xff]
    %v346 = vld [vmem:[%s285 + $0x300] sm:$0xff]
    %v347 = vld [vmem:[%s285 + $0x308] sm:$0xff]
    %v348 = vld [vmem:[%s285 + $0x318] sm:$0xff]
    %v349 = vld [vmem:[%s285 + $0x320] sm:$0xff]
    %v350 = vld [vmem:[%s285 + $0x1] sm:$0xff]
    %v351 = vld [vmem:[%s285 + $0x9] sm:$0xff]
    %v352 = vld [vmem:[%s285 + $0x19] sm:$0xff]
    %v353 = vld [vmem:[%s285 + $0x21] sm:$0xff]
    %v354 = vld [vmem:[%s285 + $0x31] sm:$0xff]
    %v355 = vld [vmem:[%s285 + $0x39] sm:$0xff]
    %v356 = vld [vmem:[%s285 + $0x49] sm:$0xff]
    %v357 = vld [vmem:[%s285 + $0x51] sm:$0xff]
    %v358 = vld [vmem:[%s285 + $0x61] sm:$0xff]
    %v359 = vld [vmem:[%s285 + $0x69] sm:$0xff]
    %v360 = vld [vmem:[%s285 + $0x79] sm:$0xff]
    %v361 = vld [vmem:[%s285 + $0x81] sm:$0xff]
    %v362 = vld [vmem:[%s285 + $0x91] sm:$0xff]
    %v363 = vld [vmem:[%s285 + $0x99] sm:$0xff]
    %v364 = vld [vmem:[%s285 + $0xa9] sm:$0xff]
    %v365 = vld [vmem:[%s285 + $0xb1] sm:$0xff]
    %v366 = vld [vmem:[%s285 + $0xc1] sm:$0xff]
    %v367 = vld [vmem:[%s285 + $0xc9] sm:$0xff]
    %v368 = vld [vmem:[%s285 + $0xd9] sm:$0xff]
    %v369 = vld [vmem:[%s285 + $0xe1] sm:$0xff]
    %v370 = vld [vmem:[%s285 + $0xf1] sm:$0xff]
    %v371 = vld [vmem:[%s285 + $0xf9] sm:$0xff]
    %v372 = vld [vmem:[%s285 + $0x109] sm:$0xff]
    %v373 = vld [vmem:[%s285 + $0x111] sm:$0xff]
    %v374 = vld [vmem:[%s285 + $0x121] sm:$0xff]
    %v375 = vld [vmem:[%s285 + $0x129] sm:$0xff]
    %v376 = vld [vmem:[%s285 + $0x139] sm:$0xff]
    %v377 = vld [vmem:[%s285 + $0x141] sm:$0xff]
    %v378 = vld [vmem:[%s285 + $0x151] sm:$0xff]
    %v379 = vld [vmem:[%s285 + $0x159] sm:$0xff]
    %v380 = vld [vmem:[%s285 + $0x169] sm:$0xff]
    %v381 = vld [vmem:[%s285 + $0x171] sm:$0xff]
    %v382 = vld [vmem:[%s285 + $0x1b1] sm:$0xff]
    %v383 = vld [vmem:[%s285 + $0x1b9] sm:$0xff]
    %v384 = vld [vmem:[%s285 + $0x1c9] sm:$0xff]
    %v385 = vld [vmem:[%s285 + $0x1d1] sm:$0xff]
    %v386 = vld [vmem:[%s285 + $0x1e1] sm:$0xff]
    %v387 = vld [vmem:[%s285 + $0x1e9] sm:$0xff]
    %v388 = vld [vmem:[%s285 + $0x1f9] sm:$0xff]
    %v389 = vld [vmem:[%s285 + $0x201] sm:$0xff]
    %v390 = vld [vmem:[%s285 + $0x211] sm:$0xff]
    %v391 = vld [vmem:[%s285 + $0x219] sm:$0xff]
    %v392 = vld [vmem:[%s285 + $0x229] sm:$0xff]
    %v393 = vld [vmem:[%s285 + $0x231] sm:$0xff]
    %v394 = vld [vmem:[%s285 + $0x241] sm:$0xff]
    %v395 = vld [vmem:[%s285 + $0x249] sm:$0xff]
    %v396 = vld [vmem:[%s285 + $0x259] sm:$0xff]
    %v397 = vld [vmem:[%s285 + $0x261] sm:$0xff]
    %v398 = vld [vmem:[%s285 + $0x271] sm:$0xff]
    %v399 = vld [vmem:[%s285 + $0x279] sm:$0xff]
    %v400 = vld [vmem:[%s285 + $0x289] sm:$0xff]
    %v401 = vld [vmem:[%s285 + $0x291] sm:$0xff]
    %v402 = vld [vmem:[%s285 + $0x2a1] sm:$0xff]
    %v403 = vld [vmem:[%s285 + $0x2a9] sm:$0xff]
    %v404 = vld [vmem:[%s285 + $0x2b9] sm:$0xff]
    %v405 = vld [vmem:[%s285 + $0x2c1] sm:$0xff]
    %v406 = vld [vmem:[%s285 + $0x2d1] sm:$0xff]
    %v407 = vld [vmem:[%s285 + $0x2d9] sm:$0xff]
    %v408 = vld [vmem:[%s285 + $0x2e9] sm:$0xff]
    %v409 = vld [vmem:[%s285 + $0x2f1] sm:$0xff]
    %v410 = vld [vmem:[%s285 + $0x301] sm:$0xff]
    %v411 = vld [vmem:[%s285 + $0x309] sm:$0xff]
    %v412 = vld [vmem:[%s285 + $0x319] sm:$0xff]
    %v413 = vld [vmem:[%s285 + $0x321] sm:$0xff]
    %v414 = vld [vmem:[%s285 + $0x2] sm:$0xff]
    %v415 = vld [vmem:[%s285 + $0xa] sm:$0xff]
    %v416 = vld [vmem:[%s285 + $0x1a] sm:$0xff]
    %v417 = vld [vmem:[%s285 + $0x22] sm:$0xff]
    %v418 = vld [vmem:[%s285 + $0x32] sm:$0xff]
    %v419 = vld [vmem:[%s285 + $0x3a] sm:$0xff]
    %v420 = vld [vmem:[%s285 + $0x4a] sm:$0xff]
    %v421 = vld [vmem:[%s285 + $0x52] sm:$0xff]
    %v422 = vld [vmem:[%s285 + $0x62] sm:$0xff]
    %v423 = vld [vmem:[%s285 + $0x6a] sm:$0xff]
    %v424 = vld [vmem:[%s285 + $0x7a] sm:$0xff]
    %v425 = vld [vmem:[%s285 + $0x82] sm:$0xff]
    %v426 = vld [vmem:[%s285 + $0x92] sm:$0xff]
    %v427 = vld [vmem:[%s285 + $0x9a] sm:$0xff]
    %v428 = vld [vmem:[%s285 + $0xaa] sm:$0xff]
    %v429 = vld [vmem:[%s285 + $0xb2] sm:$0xff]
    %v430 = vld [vmem:[%s285 + $0xc2] sm:$0xff]
    %v431 = vld [vmem:[%s285 + $0xca] sm:$0xff]
    %v432 = vld [vmem:[%s285 + $0xda] sm:$0xff]
    %v433 = vld [vmem:[%s285 + $0xe2] sm:$0xff]
    %v434 = vld [vmem:[%s285 + $0xf2] sm:$0xff]
    %v435 = vld [vmem:[%s285 + $0xfa] sm:$0xff]
    %v436 = vld [vmem:[%s285 + $0x10a] sm:$0xff]
    %v437 = vld [vmem:[%s285 + $0x112] sm:$0xff]
    %v438 = vld [vmem:[%s285 + $0x122] sm:$0xff]
    %v439 = vld [vmem:[%s285 + $0x12a] sm:$0xff]
    %v440 = vld [vmem:[%s285 + $0x13a] sm:$0xff]
    %v441 = vld [vmem:[%s285 + $0x142] sm:$0xff]
    %v442 = vld [vmem:[%s285 + $0x152] sm:$0xff]
    %v443 = vld [vmem:[%s285 + $0x15a] sm:$0xff]
    %v444 = vld [vmem:[%s285 + $0x16a] sm:$0xff]
    %v445 = vld [vmem:[%s285 + $0x172] sm:$0xff]
    %v446 = vld [vmem:[%s285 + $0x1b2] sm:$0xff]
    %v447 = vld [vmem:[%s285 + $0x1ba] sm:$0xff]
    %v448 = vld [vmem:[%s285 + $0x1ca] sm:$0xff]
    %v449 = vld [vmem:[%s285 + $0x1d2] sm:$0xff]
    %v450 = vld [vmem:[%s285 + $0x1e2] sm:$0xff]
    %v451 = vld [vmem:[%s285 + $0x1ea] sm:$0xff]
    %v452 = vld [vmem:[%s285 + $0x1fa] sm:$0xff]
    %v453 = vld [vmem:[%s285 + $0x202] sm:$0xff]
    %v454 = vld [vmem:[%s285 + $0x212] sm:$0xff]
    %v455 = vld [vmem:[%s285 + $0x21a] sm:$0xff]
    %v456 = vld [vmem:[%s285 + $0x22a] sm:$0xff]
    %v457 = vld [vmem:[%s285 + $0x232] sm:$0xff]
    %v458 = vld [vmem:[%s285 + $0x242] sm:$0xff]
    %v459 = vld [vmem:[%s285 + $0x24a] sm:$0xff]
    %v460 = vld [vmem:[%s285 + $0x25a] sm:$0xff]
    %v461 = vld [vmem:[%s285 + $0x262] sm:$0xff]
    %v462 = vld [vmem:[%s285 + $0x272] sm:$0xff]
    %v463 = vld [vmem:[%s285 + $0x27a] sm:$0xff]
    %v464 = vld [vmem:[%s285 + $0x28a] sm:$0xff]
    %v465 = vld [vmem:[%s285 + $0x292] sm:$0xff]
    %v466 = vld [vmem:[%s285 + $0x2a2] sm:$0xff]
    %v467 = vld [vmem:[%s285 + $0x2aa] sm:$0xff]
    %v468 = vld [vmem:[%s285 + $0x2ba] sm:$0xff]
    %v469 = vld [vmem:[%s285 + $0x2c2] sm:$0xff]
    %v470 = vld [vmem:[%s285 + $0x2d2] sm:$0xff]
    %v471 = vld [vmem:[%s285 + $0x2da] sm:$0xff]
    %v472 = vld [vmem:[%s285 + $0x2ea] sm:$0xff]
    %v473 = vld [vmem:[%s285 + $0x2f2] sm:$0xff]
    %v474 = vld [vmem:[%s285 + $0x302] sm:$0xff]
    %v475 = vld [vmem:[%s285 + $0x30a] sm:$0xff]
    %v476 = vld [vmem:[%s285 + $0x31a] sm:$0xff]
    %v477 = vld [vmem:[%s285 + $0x322] sm:$0xff]
    %s478 = scalar_lea.vmem %s0, 48
    %v479 = vld [vmem:[%s478] sm:$0xff]
    %v480 = vld [vmem:[%s478 + $0x8] sm:$0xff]
    %v481 = vld [vmem:[%s478 + $0x18] sm:$0xff]
    %v482 = vld [vmem:[%s478 + $0x20] sm:$0xff]
    %v483 = vld [vmem:[%s478 + $0x30] sm:$0xff]
    %v484 = vld [vmem:[%s478 + $0x38] sm:$0xff]
    %v485 = vld [vmem:[%s478 + $0x48] sm:$0xff]
    %v486 = vld [vmem:[%s478 + $0x50] sm:$0xff]
    %v487 = vld [vmem:[%s478 + $0x60] sm:$0xff]
    %v488 = vld [vmem:[%s478 + $0x68] sm:$0xff]
    %v489 = vld [vmem:[%s478 + $0x78] sm:$0xff]
    %v490 = vld [vmem:[%s478 + $0x80] sm:$0xff]
    %v491 = vld [vmem:[%s478 + $0x90] sm:$0xff]
    %v492 = vld [vmem:[%s478 + $0x98] sm:$0xff]
    %v493 = vld [vmem:[%s478 + $0xa8] sm:$0xff]
    %v494 = vld [vmem:[%s478 + $0xb0] sm:$0xff]
    %v495 = vld [vmem:[%s478 + $0xc0] sm:$0xff]
    %v496 = vld [vmem:[%s478 + $0xc8] sm:$0xff]
    %v497 = vld [vmem:[%s478 + $0xd8] sm:$0xff]
    %v498 = vld [vmem:[%s478 + $0xe0] sm:$0xff]
    %v499 = vld [vmem:[%s478 + $0xf0] sm:$0xff]
    %v500 = vld [vmem:[%s478 + $0xf8] sm:$0xff]
    %v501 = vld [vmem:[%s478 + $0x108] sm:$0xff]
    %v502 = vld [vmem:[%s478 + $0x110] sm:$0xff]
    %v503 = vld [vmem:[%s478 + $0x120] sm:$0xff]
    %v504 = vld [vmem:[%s478 + $0x128] sm:$0xff]
    %v505 = vld [vmem:[%s478 + $0x138] sm:$0xff]
    %v506 = vld [vmem:[%s478 + $0x140] sm:$0xff]
    %v507 = vld [vmem:[%s478 + $0x150] sm:$0xff]
    %v508 = vld [vmem:[%s478 + $0x158] sm:$0xff]
    %v509 = vld [vmem:[%s478 + $0x168] sm:$0xff]
    %v510 = vld [vmem:[%s478 + $0x170] sm:$0xff]
    %v511 = vld [vmem:[%s478 + $0x1b0] sm:$0xff]
    %v512 = vld [vmem:[%s478 + $0x1b8] sm:$0xff]
    %v513 = vld [vmem:[%s478 + $0x1c8] sm:$0xff]
    %v514 = vld [vmem:[%s478 + $0x1d0] sm:$0xff]
    %v515 = vld [vmem:[%s478 + $0x1e0] sm:$0xff]
    %v516 = vld [vmem:[%s478 + $0x1e8] sm:$0xff]
    %v517 = vld [vmem:[%s478 + $0x1f8] sm:$0xff]
    %v518 = vld [vmem:[%s478 + $0x200] sm:$0xff]
    %v519 = vld [vmem:[%s478 + $0x210] sm:$0xff]
    %v520 = vld [vmem:[%s478 + $0x218] sm:$0xff]
    %v521 = vld [vmem:[%s478 + $0x228] sm:$0xff]
    %v522 = vld [vmem:[%s478 + $0x230] sm:$0xff]
    %v523 = vld [vmem:[%s478 + $0x240] sm:$0xff]
    %v524 = vld [vmem:[%s478 + $0x248] sm:$0xff]
    %v525 = vld [vmem:[%s478 + $0x258] sm:$0xff]
    %v526 = vld [vmem:[%s478 + $0x260] sm:$0xff]
    %v527 = vld [vmem:[%s478 + $0x270] sm:$0xff]
    %v528 = vld [vmem:[%s478 + $0x278] sm:$0xff]
    %v529 = vld [vmem:[%s478 + $0x288] sm:$0xff]
    %v530 = vld [vmem:[%s478 + $0x290] sm:$0xff]
    %v531 = vld [vmem:[%s478 + $0x2a0] sm:$0xff]
    %v532 = vld [vmem:[%s478 + $0x2a8] sm:$0xff]
    %v533 = vld [vmem:[%s478 + $0x2b8] sm:$0xff]
    %v534 = vld [vmem:[%s478 + $0x2c0] sm:$0xff]
    %v535 = vld [vmem:[%s478 + $0x2d0] sm:$0xff]
    %v536 = vld [vmem:[%s478 + $0x2d8] sm:$0xff]
    %v537 = vld [vmem:[%s478 + $0x2e8] sm:$0xff]
    %v538 = vld [vmem:[%s478 + $0x2f0] sm:$0xff]
    %v539 = vld [vmem:[%s478 + $0x300] sm:$0xff]
    %v540 = vld [vmem:[%s478 + $0x308] sm:$0xff]
    %v541 = vld [vmem:[%s478 + $0x318] sm:$0xff]
    %v542 = vld [vmem:[%s478 + $0x320] sm:$0xff]
    %v543 = vld [vmem:[%s478 + $0x1] sm:$0xff]
    %v544 = vld [vmem:[%s478 + $0x9] sm:$0xff]
    %v545 = vld [vmem:[%s478 + $0x19] sm:$0xff]
    %v546 = vld [vmem:[%s478 + $0x21] sm:$0xff]
    %v547 = vld [vmem:[%s478 + $0x31] sm:$0xff]
    %v548 = vld [vmem:[%s478 + $0x39] sm:$0xff]
    %v549 = vld [vmem:[%s478 + $0x49] sm:$0xff]
    %v550 = vld [vmem:[%s478 + $0x51] sm:$0xff]
    %v551 = vld [vmem:[%s478 + $0x61] sm:$0xff]
    %v552 = vld [vmem:[%s478 + $0x69] sm:$0xff]
    %v553 = vld [vmem:[%s478 + $0x79] sm:$0xff]
    %v554 = vld [vmem:[%s478 + $0x81] sm:$0xff]
    %v555 = vld [vmem:[%s478 + $0x91] sm:$0xff]
    %v556 = vld [vmem:[%s478 + $0x99] sm:$0xff]
    %v557 = vld [vmem:[%s478 + $0xa9] sm:$0xff]
    %v558 = vld [vmem:[%s478 + $0xb1] sm:$0xff]
    %v559 = vld [vmem:[%s478 + $0xc1] sm:$0xff]
    %v560 = vld [vmem:[%s478 + $0xc9] sm:$0xff]
    %v561 = vld [vmem:[%s478 + $0xd9] sm:$0xff]
    %v562 = vld [vmem:[%s478 + $0xe1] sm:$0xff]
    %v563 = vld [vmem:[%s478 + $0xf1] sm:$0xff]
    %v564 = vld [vmem:[%s478 + $0xf9] sm:$0xff]
    %v565 = vld [vmem:[%s478 + $0x109] sm:$0xff]
    %v566 = vld [vmem:[%s478 + $0x111] sm:$0xff]
    %v567 = vld [vmem:[%s478 + $0x121] sm:$0xff]
    %v568 = vld [vmem:[%s478 + $0x129] sm:$0xff]
    %v569 = vld [vmem:[%s478 + $0x139] sm:$0xff]
    %v570 = vld [vmem:[%s478 + $0x141] sm:$0xff]
    %v571 = vld [vmem:[%s478 + $0x151] sm:$0xff]
    %v572 = vld [vmem:[%s478 + $0x159] sm:$0xff]
    %v573 = vld [vmem:[%s478 + $0x169] sm:$0xff]
    %v574 = vld [vmem:[%s478 + $0x171] sm:$0xff]
    %v575 = vld [vmem:[%s478 + $0x1b1] sm:$0xff]
    %v576 = vld [vmem:[%s478 + $0x1b9] sm:$0xff]
    %v577 = vld [vmem:[%s478 + $0x1c9] sm:$0xff]
    %v578 = vld [vmem:[%s478 + $0x1d1] sm:$0xff]
    %v579 = vld [vmem:[%s478 + $0x1e1] sm:$0xff]
    %v580 = vld [vmem:[%s478 + $0x1e9] sm:$0xff]
    %v581 = vld [vmem:[%s478 + $0x1f9] sm:$0xff]
    %v582 = vld [vmem:[%s478 + $0x201] sm:$0xff]
    %v583 = vld [vmem:[%s478 + $0x211] sm:$0xff]
    %v584 = vld [vmem:[%s478 + $0x219] sm:$0xff]
    %v585 = vld [vmem:[%s478 + $0x229] sm:$0xff]
    %v586 = vld [vmem:[%s478 + $0x231] sm:$0xff]
    %v587 = vld [vmem:[%s478 + $0x241] sm:$0xff]
    %v588 = vld [vmem:[%s478 + $0x249] sm:$0xff]
    %v589 = vld [vmem:[%s478 + $0x259] sm:$0xff]
    %v590 = vld [vmem:[%s478 + $0x261] sm:$0xff]
    %v591 = vld [vmem:[%s478 + $0x271] sm:$0xff]
    %v592 = vld [vmem:[%s478 + $0x279] sm:$0xff]
    %v593 = vld [vmem:[%s478 + $0x289] sm:$0xff]
    %v594 = vld [vmem:[%s478 + $0x291] sm:$0xff]
    %v595 = vld [vmem:[%s478 + $0x2a1] sm:$0xff]
    %v596 = vld [vmem:[%s478 + $0x2a9] sm:$0xff]
    %v597 = vld [vmem:[%s478 + $0x2b9] sm:$0xff]
    %v598 = vld [vmem:[%s478 + $0x2c1] sm:$0xff]
    %v599 = vld [vmem:[%s478 + $0x2d1] sm:$0xff]
    %v600 = vld [vmem:[%s478 + $0x2d9] sm:$0xff]
    %v601 = vld [vmem:[%s478 + $0x2e9] sm:$0xff]
    %v602 = vld [vmem:[%s478 + $0x2f1] sm:$0xff]
    %v603 = vld [vmem:[%s478 + $0x301] sm:$0xff]
    %v604 = vld [vmem:[%s478 + $0x309] sm:$0xff]
    %v605 = vld [vmem:[%s478 + $0x319] sm:$0xff]
    %v606 = vld [vmem:[%s478 + $0x321] sm:$0xff]
    %v607 = vld [vmem:[%s478 + $0x2] sm:$0xff]
    %v608 = vld [vmem:[%s478 + $0xa] sm:$0xff]
    %v609 = vld [vmem:[%s478 + $0x1a] sm:$0xff]
    %v610 = vld [vmem:[%s478 + $0x22] sm:$0xff]
    %v611 = vld [vmem:[%s478 + $0x32] sm:$0xff]
    %v612 = vld [vmem:[%s478 + $0x3a] sm:$0xff]
    %v613 = vld [vmem:[%s478 + $0x4a] sm:$0xff]
    %v614 = vld [vmem:[%s478 + $0x52] sm:$0xff]
    %v615 = vld [vmem:[%s478 + $0x62] sm:$0xff]
    %v616 = vld [vmem:[%s478 + $0x6a] sm:$0xff]
    %v617 = vld [vmem:[%s478 + $0x7a] sm:$0xff]
    %v618 = vld [vmem:[%s478 + $0x82] sm:$0xff]
    %v619 = vld [vmem:[%s478 + $0x92] sm:$0xff]
    %v620 = vld [vmem:[%s478 + $0x9a] sm:$0xff]
    %v621 = vld [vmem:[%s478 + $0xaa] sm:$0xff]
    %v622 = vld [vmem:[%s478 + $0xb2] sm:$0xff]
    %v623 = vld [vmem:[%s478 + $0xc2] sm:$0xff]
    %v624 = vld [vmem:[%s478 + $0xca] sm:$0xff]
    %v625 = vld [vmem:[%s478 + $0xda] sm:$0xff]
    %v626 = vld [vmem:[%s478 + $0xe2] sm:$0xff]
    %v627 = vld [vmem:[%s478 + $0xf2] sm:$0xff]
    %v628 = vld [vmem:[%s478 + $0xfa] sm:$0xff]
    %v629 = vld [vmem:[%s478 + $0x10a] sm:$0xff]
    %v630 = vld [vmem:[%s478 + $0x112] sm:$0xff]
    %v631 = vld [vmem:[%s478 + $0x122] sm:$0xff]
    %v632 = vld [vmem:[%s478 + $0x12a] sm:$0xff]
    %v633 = vld [vmem:[%s478 + $0x13a] sm:$0xff]
    %v634 = vld [vmem:[%s478 + $0x142] sm:$0xff]
    %v635 = vld [vmem:[%s478 + $0x152] sm:$0xff]
    %v636 = vld [vmem:[%s478 + $0x15a] sm:$0xff]
    %v637 = vld [vmem:[%s478 + $0x16a] sm:$0xff]
    %v638 = vld [vmem:[%s478 + $0x172] sm:$0xff]
    %v639 = vld [vmem:[%s478 + $0x1b2] sm:$0xff]
    %v640 = vld [vmem:[%s478 + $0x1ba] sm:$0xff]
    %v641 = vld [vmem:[%s478 + $0x1ca] sm:$0xff]
    %v642 = vld [vmem:[%s478 + $0x1d2] sm:$0xff]
    %v643 = vld [vmem:[%s478 + $0x1e2] sm:$0xff]
    %v644 = vld [vmem:[%s478 + $0x1ea] sm:$0xff]
    %v645 = vld [vmem:[%s478 + $0x1fa] sm:$0xff]
    %v646 = vld [vmem:[%s478 + $0x202] sm:$0xff]
    %v647 = vld [vmem:[%s478 + $0x212] sm:$0xff]
    %v648 = vld [vmem:[%s478 + $0x21a] sm:$0xff]
    %v649 = vld [vmem:[%s478 + $0x22a] sm:$0xff]
    %v650 = vld [vmem:[%s478 + $0x232] sm:$0xff]
    %v651 = vld [vmem:[%s478 + $0x242] sm:$0xff]
    %v652 = vld [vmem:[%s478 + $0x24a] sm:$0xff]
    %v653 = vld [vmem:[%s478 + $0x25a] sm:$0xff]
    %v654 = vld [vmem:[%s478 + $0x262] sm:$0xff]
    %v655 = vld [vmem:[%s478 + $0x272] sm:$0xff]
    %v656 = vld [vmem:[%s478 + $0x27a] sm:$0xff]
    %v657 = vld [vmem:[%s478 + $0x28a] sm:$0xff]
    %v658 = vld [vmem:[%s478 + $0x292] sm:$0xff]
    %v659 = vld [vmem:[%s478 + $0x2a2] sm:$0xff]
    %v660 = vld [vmem:[%s478 + $0x2aa] sm:$0xff]
    %v661 = vld [vmem:[%s478 + $0x2ba] sm:$0xff]
    %v662 = vld [vmem:[%s478 + $0x2c2] sm:$0xff]
    %v663 = vld [vmem:[%s478 + $0x2d2] sm:$0xff]
    %v664 = vld [vmem:[%s478 + $0x2da] sm:$0xff]
    %v665 = vld [vmem:[%s478 + $0x2ea] sm:$0xff]
    %v666 = vld [vmem:[%s478 + $0x2f2] sm:$0xff]
    %v667 = vld [vmem:[%s478 + $0x302] sm:$0xff]
    %v668 = vld [vmem:[%s478 + $0x30a] sm:$0xff]
    %v669 = vld [vmem:[%s478 + $0x31a] sm:$0xff]
    %v670 = vld [vmem:[%s478 + $0x322] sm:$0xff]
    %735 = vrot.lane.b32.xlu0 %v157, 18
    %v736 = vpop.permute.xlu0 %735
    %737 = vrot.lane.b32.xlu0 %v158, 18
    %v738 = vpop.permute.xlu0 %737
    %739 = vrot.lane.b32.xlu0 %v159, 18
    %v740 = vpop.permute.xlu0 %739
    %741 = vrot.lane.b32.xlu0 %v160, 18
    %v742 = vpop.permute.xlu0 %741
    %743 = vrot.lane.b32.xlu0 %v161, 18
    %v744 = vpop.permute.xlu0 %743
    %745 = vrot.lane.b32.xlu0 %v162, 18
    %v746 = vpop.permute.xlu0 %745
    %747 = vrot.lane.b32.xlu0 %v163, 18
    %v748 = vpop.permute.xlu0 %747
    %749 = vrot.lane.b32.xlu0 %v164, 18
    %v750 = vpop.permute.xlu0 %749
    %751 = vrot.lane.b32.xlu0 %v165, 18
    %v752 = vpop.permute.xlu0 %751
    %753 = vrot.lane.b32.xlu0 %v166, 18
    %v754 = vpop.permute.xlu0 %753
    %755 = vrot.lane.b32.xlu0 %v167, 18
    %v756 = vpop.permute.xlu0 %755
    %757 = vrot.lane.b32.xlu0 %v168, 18
    %v758 = vpop.permute.xlu0 %757
    %759 = vrot.lane.b32.xlu0 %v169, 18
    %v760 = vpop.permute.xlu0 %759
    %761 = vrot.lane.b32.xlu0 %v170, 18
    %v762 = vpop.permute.xlu0 %761
    %763 = vrot.lane.b32.xlu0 %v171, 18
    %v764 = vpop.permute.xlu0 %763
    %765 = vrot.lane.b32.xlu0 %v172, 18
    %v766 = vpop.permute.xlu0 %765
    %767 = vrot.lane.b32.xlu0 %v173, 18
    %v768 = vpop.permute.xlu0 %767
    %769 = vrot.lane.b32.xlu0 %v174, 18
    %v770 = vpop.permute.xlu0 %769
    %771 = vrot.lane.b32.xlu0 %v175, 18
    %v772 = vpop.permute.xlu0 %771
    %773 = vrot.lane.b32.xlu0 %v176, 18
    %v774 = vpop.permute.xlu0 %773
    %775 = vrot.lane.b32.xlu0 %v177, 18
    %v776 = vpop.permute.xlu0 %775
    %777 = vrot.lane.b32.xlu0 %v178, 18
    %v778 = vpop.permute.xlu0 %777
    %779 = vrot.lane.b32.xlu0 %v179, 18
    %v780 = vpop.permute.xlu0 %779
    %781 = vrot.lane.b32.xlu0 %v180, 18
    %v782 = vpop.permute.xlu0 %781
    %783 = vrot.lane.b32.xlu0 %v181, 18
    %v784 = vpop.permute.xlu0 %783
    %785 = vrot.lane.b32.xlu0 %v182, 18
    %v786 = vpop.permute.xlu0 %785
    %787 = vrot.lane.b32.xlu0 %v183, 18
    %v788 = vpop.permute.xlu0 %787
    %789 = vrot.lane.b32.xlu0 %v184, 18
    %v790 = vpop.permute.xlu0 %789
    %791 = vrot.lane.b32.xlu0 %v185, 18
    %v792 = vpop.permute.xlu0 %791
    %793 = vrot.lane.b32.xlu0 %v186, 18
    %v794 = vpop.permute.xlu0 %793
    %795 = vrot.lane.b32.xlu0 %v187, 18
    %v796 = vpop.permute.xlu0 %795
    %797 = vrot.lane.b32.xlu0 %v188, 18
    %v798 = vpop.permute.xlu0 %797
    %799 = vrot.lane.b32.xlu0 %v189, 18
    %v800 = vpop.permute.xlu0 %799
    %801 = vrot.lane.b32.xlu0 %v190, 18
    %v802 = vpop.permute.xlu0 %801
    %803 = vrot.lane.b32.xlu0 %v191, 18
    %v804 = vpop.permute.xlu0 %803
    %805 = vrot.lane.b32.xlu0 %v192, 18
    %v806 = vpop.permute.xlu0 %805
    %807 = vrot.lane.b32.xlu0 %v193, 18
    %v808 = vpop.permute.xlu0 %807
    %809 = vrot.lane.b32.xlu0 %v194, 18
    %v810 = vpop.permute.xlu0 %809
    %811 = vrot.lane.b32.xlu0 %v195, 18
    %v812 = vpop.permute.xlu0 %811
    %813 = vrot.lane.b32.xlu0 %v196, 18
    %v814 = vpop.permute.xlu0 %813
    %815 = vrot.lane.b32.xlu0 %v197, 18
    %v816 = vpop.permute.xlu0 %815
    %817 = vrot.lane.b32.xlu0 %v198, 18
    %v818 = vpop.permute.xlu0 %817
    %819 = vrot.lane.b32.xlu0 %v199, 18
    %v820 = vpop.permute.xlu0 %819
    %821 = vrot.lane.b32.xlu0 %v200, 18
    %v822 = vpop.permute.xlu0 %821
    %823 = vrot.lane.b32.xlu0 %v201, 18
    %v824 = vpop.permute.xlu0 %823
    %825 = vrot.lane.b32.xlu0 %v202, 18
    %v826 = vpop.permute.xlu0 %825
    %827 = vrot.lane.b32.xlu0 %v203, 18
    %v828 = vpop.permute.xlu0 %827
    %829 = vrot.lane.b32.xlu0 %v204, 18
    %v830 = vpop.permute.xlu0 %829
    %831 = vrot.lane.b32.xlu0 %v205, 18
    %v832 = vpop.permute.xlu0 %831
    %833 = vrot.lane.b32.xlu0 %v206, 18
    %v834 = vpop.permute.xlu0 %833
    %835 = vrot.lane.b32.xlu0 %v207, 18
    %v836 = vpop.permute.xlu0 %835
    %837 = vrot.lane.b32.xlu0 %v208, 18
    %v838 = vpop.permute.xlu0 %837
    %839 = vrot.lane.b32.xlu0 %v209, 18
    %v840 = vpop.permute.xlu0 %839
    %841 = vrot.lane.b32.xlu0 %v210, 18
    %v842 = vpop.permute.xlu0 %841
    %843 = vrot.lane.b32.xlu0 %v211, 18
    %v844 = vpop.permute.xlu0 %843
    %845 = vrot.lane.b32.xlu0 %v212, 18
    %v846 = vpop.permute.xlu0 %845
    %847 = vrot.lane.b32.xlu0 %v213, 18
    %v848 = vpop.permute.xlu0 %847
    %849 = vrot.lane.b32.xlu0 %v214, 18
    %v850 = vpop.permute.xlu0 %849
    %851 = vrot.lane.b32.xlu0 %v215, 18
    %v852 = vpop.permute.xlu0 %851
    %853 = vrot.lane.b32.xlu0 %v216, 18
    %v854 = vpop.permute.xlu0 %853
    %855 = vrot.lane.b32.xlu0 %v217, 18
    %v856 = vpop.permute.xlu0 %855
    %857 = vrot.lane.b32.xlu0 %v218, 18
    %v858 = vpop.permute.xlu0 %857
    %859 = vrot.lane.b32.xlu0 %v219, 18
    %v860 = vpop.permute.xlu0 %859
    %861 = vrot.lane.b32.xlu0 %v220, 18
    %v862 = vpop.permute.xlu0 %861
    %991 = vrot.lane.b32.xlu0 %v221, 36
    %v992 = vpop.permute.xlu0 %991
    %993 = vrot.lane.b32.xlu0 %v222, 36
    %v994 = vpop.permute.xlu0 %993
    %995 = vrot.lane.b32.xlu0 %v223, 36
    %v996 = vpop.permute.xlu0 %995
    %997 = vrot.lane.b32.xlu0 %v224, 36
    %v998 = vpop.permute.xlu0 %997
    %999 = vrot.lane.b32.xlu0 %v225, 36
    %v1000 = vpop.permute.xlu0 %999
    %1001 = vrot.lane.b32.xlu0 %v226, 36
    %v1002 = vpop.permute.xlu0 %1001
    %1003 = vrot.lane.b32.xlu0 %v227, 36
    %v1004 = vpop.permute.xlu0 %1003
    %1005 = vrot.lane.b32.xlu0 %v228, 36
    %v1006 = vpop.permute.xlu0 %1005
    %1007 = vrot.lane.b32.xlu0 %v229, 36
    %v1008 = vpop.permute.xlu0 %1007
    %1009 = vrot.lane.b32.xlu0 %v230, 36
    %v1010 = vpop.permute.xlu0 %1009
    %1011 = vrot.lane.b32.xlu0 %v231, 36
    %v1012 = vpop.permute.xlu0 %1011
    %1013 = vrot.lane.b32.xlu0 %v232, 36
    %v1014 = vpop.permute.xlu0 %1013
    %1015 = vrot.lane.b32.xlu0 %v233, 36
    %v1016 = vpop.permute.xlu0 %1015
    %1017 = vrot.lane.b32.xlu0 %v234, 36
    %v1018 = vpop.permute.xlu0 %1017
    %1019 = vrot.lane.b32.xlu0 %v235, 36
    %v1020 = vpop.permute.xlu0 %1019
    %1021 = vrot.lane.b32.xlu0 %v236, 36
    %v1022 = vpop.permute.xlu0 %1021
    %1023 = vrot.lane.b32.xlu0 %v237, 36
    %v1024 = vpop.permute.xlu0 %1023
    %1025 = vrot.lane.b32.xlu0 %v238, 36
    %v1026 = vpop.permute.xlu0 %1025
    %1027 = vrot.lane.b32.xlu0 %v239, 36
    %v1028 = vpop.permute.xlu0 %1027
    %1029 = vrot.lane.b32.xlu0 %v240, 36
    %v1030 = vpop.permute.xlu0 %1029
    %1031 = vrot.lane.b32.xlu0 %v241, 36
    %v1032 = vpop.permute.xlu0 %1031
    %1033 = vrot.lane.b32.xlu0 %v242, 36
    %v1034 = vpop.permute.xlu0 %1033
    %1035 = vrot.lane.b32.xlu0 %v243, 36
    %v1036 = vpop.permute.xlu0 %1035
    %1037 = vrot.lane.b32.xlu0 %v244, 36
    %v1038 = vpop.permute.xlu0 %1037
    %1039 = vrot.lane.b32.xlu0 %v245, 36
    %v1040 = vpop.permute.xlu0 %1039
    %1041 = vrot.lane.b32.xlu0 %v246, 36
    %v1042 = vpop.permute.xlu0 %1041
    %1043 = vrot.lane.b32.xlu0 %v247, 36
    %v1044 = vpop.permute.xlu0 %1043
    %1045 = vrot.lane.b32.xlu0 %v248, 36
    %v1046 = vpop.permute.xlu0 %1045
    %1047 = vrot.lane.b32.xlu0 %v249, 36
    %v1048 = vpop.permute.xlu0 %1047
    %1049 = vrot.lane.b32.xlu0 %v250, 36
    %v1050 = vpop.permute.xlu0 %1049
    %1051 = vrot.lane.b32.xlu0 %v251, 36
    %v1052 = vpop.permute.xlu0 %1051
    %1053 = vrot.lane.b32.xlu0 %v252, 36
    %v1054 = vpop.permute.xlu0 %1053
    %1055 = vrot.lane.b32.xlu0 %v253, 36
    %v1056 = vpop.permute.xlu0 %1055
    %1057 = vrot.lane.b32.xlu0 %v254, 36
    %v1058 = vpop.permute.xlu0 %1057
    %1059 = vrot.lane.b32.xlu0 %v255, 36
    %v1060 = vpop.permute.xlu0 %1059
    %1061 = vrot.lane.b32.xlu0 %v256, 36
    %v1062 = vpop.permute.xlu0 %1061
    %1063 = vrot.lane.b32.xlu0 %v257, 36
    %v1064 = vpop.permute.xlu0 %1063
    %1065 = vrot.lane.b32.xlu0 %v258, 36
    %v1066 = vpop.permute.xlu0 %1065
    %1067 = vrot.lane.b32.xlu0 %v259, 36
    %v1068 = vpop.permute.xlu0 %1067
    %1069 = vrot.lane.b32.xlu0 %v260, 36
    %v1070 = vpop.permute.xlu0 %1069
    %1071 = vrot.lane.b32.xlu0 %v261, 36
    %v1072 = vpop.permute.xlu0 %1071
    %1073 = vrot.lane.b32.xlu0 %v262, 36
    %v1074 = vpop.permute.xlu0 %1073
    %1075 = vrot.lane.b32.xlu0 %v263, 36
    %v1076 = vpop.permute.xlu0 %1075
    %1077 = vrot.lane.b32.xlu0 %v264, 36
    %v1078 = vpop.permute.xlu0 %1077
    %1079 = vrot.lane.b32.xlu0 %v265, 36
    %v1080 = vpop.permute.xlu0 %1079
    %1081 = vrot.lane.b32.xlu0 %v266, 36
    %v1082 = vpop.permute.xlu0 %1081
    %1083 = vrot.lane.b32.xlu0 %v267, 36
    %v1084 = vpop.permute.xlu0 %1083
    %1085 = vrot.lane.b32.xlu0 %v268, 36
    %v1086 = vpop.permute.xlu0 %1085
    %1087 = vrot.lane.b32.xlu0 %v269, 36
    %v1088 = vpop.permute.xlu0 %1087
    %1089 = vrot.lane.b32.xlu0 %v270, 36
    %v1090 = vpop.permute.xlu0 %1089
    %1091 = vrot.lane.b32.xlu0 %v271, 36
    %v1092 = vpop.permute.xlu0 %1091
    %1093 = vrot.lane.b32.xlu0 %v272, 36
    %v1094 = vpop.permute.xlu0 %1093
    %1095 = vrot.lane.b32.xlu0 %v273, 36
    %v1096 = vpop.permute.xlu0 %1095
    %1097 = vrot.lane.b32.xlu0 %v274, 36
    %v1098 = vpop.permute.xlu0 %1097
    %1099 = vrot.lane.b32.xlu0 %v275, 36
    %v1100 = vpop.permute.xlu0 %1099
    %1101 = vrot.lane.b32.xlu0 %v276, 36
    %v1102 = vpop.permute.xlu0 %1101
    %1103 = vrot.lane.b32.xlu0 %v277, 36
    %v1104 = vpop.permute.xlu0 %1103
    %1105 = vrot.lane.b32.xlu0 %v278, 36
    %v1106 = vpop.permute.xlu0 %1105
    %1107 = vrot.lane.b32.xlu0 %v279, 36
    %v1108 = vpop.permute.xlu0 %1107
    %1109 = vrot.lane.b32.xlu0 %v280, 36
    %v1110 = vpop.permute.xlu0 %1109
    %1111 = vrot.lane.b32.xlu0 %v281, 36
    %v1112 = vpop.permute.xlu0 %1111
    %1113 = vrot.lane.b32.xlu0 %v282, 36
    %v1114 = vpop.permute.xlu0 %1113
    %1115 = vrot.lane.b32.xlu0 %v283, 36
    %v1116 = vpop.permute.xlu0 %1115
    %1117 = vrot.lane.b32.xlu0 %v284, 36
    %v1118 = vpop.permute.xlu0 %1117
    %1247 = vrot.lane.b32.xlu0 %v286, 54
    %v1248 = vpop.permute.xlu0 %1247
    %1249 = vrot.lane.b32.xlu0 %v287, 54
    %v1250 = vpop.permute.xlu0 %1249
    %1251 = vrot.lane.b32.xlu0 %v288, 54
    %v1252 = vpop.permute.xlu0 %1251
    %1253 = vrot.lane.b32.xlu0 %v289, 54
    %v1254 = vpop.permute.xlu0 %1253
    %1255 = vrot.lane.b32.xlu0 %v290, 54
    %v1256 = vpop.permute.xlu0 %1255
    %1257 = vrot.lane.b32.xlu0 %v291, 54
    %v1258 = vpop.permute.xlu0 %1257
    %1259 = vrot.lane.b32.xlu0 %v292, 54
    %v1260 = vpop.permute.xlu0 %1259
    %1261 = vrot.lane.b32.xlu0 %v293, 54
    %v1262 = vpop.permute.xlu0 %1261
    %1263 = vrot.lane.b32.xlu0 %v294, 54
    %v1264 = vpop.permute.xlu0 %1263
    %1265 = vrot.lane.b32.xlu0 %v295, 54
    %v1266 = vpop.permute.xlu0 %1265
    %1267 = vrot.lane.b32.xlu0 %v296, 54
    %v1268 = vpop.permute.xlu0 %1267
    %1269 = vrot.lane.b32.xlu0 %v297, 54
    %v1270 = vpop.permute.xlu0 %1269
    %1271 = vrot.lane.b32.xlu0 %v298, 54
    %v1272 = vpop.permute.xlu0 %1271
    %1273 = vrot.lane.b32.xlu0 %v299, 54
    %v1274 = vpop.permute.xlu0 %1273
    %1275 = vrot.lane.b32.xlu0 %v300, 54
    %v1276 = vpop.permute.xlu0 %1275
    %1277 = vrot.lane.b32.xlu0 %v301, 54
    %v1278 = vpop.permute.xlu0 %1277
    %1279 = vrot.lane.b32.xlu0 %v302, 54
    %v1280 = vpop.permute.xlu0 %1279
    %1281 = vrot.lane.b32.xlu0 %v303, 54
    %v1282 = vpop.permute.xlu0 %1281
    %1283 = vrot.lane.b32.xlu0 %v304, 54
    %v1284 = vpop.permute.xlu0 %1283
    %1285 = vrot.lane.b32.xlu0 %v305, 54
    %v1286 = vpop.permute.xlu0 %1285
    %1287 = vrot.lane.b32.xlu0 %v306, 54
    %v1288 = vpop.permute.xlu0 %1287
    %1289 = vrot.lane.b32.xlu0 %v307, 54
    %v1290 = vpop.permute.xlu0 %1289
    %1291 = vrot.lane.b32.xlu0 %v308, 54
    %v1292 = vpop.permute.xlu0 %1291
    %1293 = vrot.lane.b32.xlu0 %v309, 54
    %v1294 = vpop.permute.xlu0 %1293
    %1295 = vrot.lane.b32.xlu0 %v310, 54
    %v1296 = vpop.permute.xlu0 %1295
    %1297 = vrot.lane.b32.xlu0 %v311, 54
    %v1298 = vpop.permute.xlu0 %1297
    %1299 = vrot.lane.b32.xlu0 %v312, 54
    %v1300 = vpop.permute.xlu0 %1299
    %1301 = vrot.lane.b32.xlu0 %v313, 54
    %v1302 = vpop.permute.xlu0 %1301
    %1303 = vrot.lane.b32.xlu0 %v314, 54
    %v1304 = vpop.permute.xlu0 %1303
    %1305 = vrot.lane.b32.xlu0 %v315, 54
    %v1306 = vpop.permute.xlu0 %1305
    %1307 = vrot.lane.b32.xlu0 %v316, 54
    %v1308 = vpop.permute.xlu0 %1307
    %1309 = vrot.lane.b32.xlu0 %v317, 54
    %v1310 = vpop.permute.xlu0 %1309
    %1311 = vrot.lane.b32.xlu0 %v318, 54
    %v1312 = vpop.permute.xlu0 %1311
    %1313 = vrot.lane.b32.xlu0 %v319, 54
    %v1314 = vpop.permute.xlu0 %1313
    %1315 = vrot.lane.b32.xlu0 %v320, 54
    %v1316 = vpop.permute.xlu0 %1315
    %1317 = vrot.lane.b32.xlu0 %v321, 54
    %v1318 = vpop.permute.xlu0 %1317
    %1319 = vrot.lane.b32.xlu0 %v322, 54
    %v1320 = vpop.permute.xlu0 %1319
    %1321 = vrot.lane.b32.xlu0 %v323, 54
    %v1322 = vpop.permute.xlu0 %1321
    %1323 = vrot.lane.b32.xlu0 %v324, 54
    %v1324 = vpop.permute.xlu0 %1323
    %1325 = vrot.lane.b32.xlu0 %v325, 54
    %v1326 = vpop.permute.xlu0 %1325
    %1327 = vrot.lane.b32.xlu0 %v326, 54
    %v1328 = vpop.permute.xlu0 %1327
    %1329 = vrot.lane.b32.xlu0 %v327, 54
    %v1330 = vpop.permute.xlu0 %1329
    %1331 = vrot.lane.b32.xlu0 %v328, 54
    %v1332 = vpop.permute.xlu0 %1331
    %1333 = vrot.lane.b32.xlu0 %v329, 54
    %v1334 = vpop.permute.xlu0 %1333
    %1335 = vrot.lane.b32.xlu0 %v330, 54
    %v1336 = vpop.permute.xlu0 %1335
    %1337 = vrot.lane.b32.xlu0 %v331, 54
    %v1338 = vpop.permute.xlu0 %1337
    %1339 = vrot.lane.b32.xlu0 %v332, 54
    %v1340 = vpop.permute.xlu0 %1339
    %1341 = vrot.lane.b32.xlu0 %v333, 54
    %v1342 = vpop.permute.xlu0 %1341
    %1343 = vrot.lane.b32.xlu0 %v334, 54
    %v1344 = vpop.permute.xlu0 %1343
    %1345 = vrot.lane.b32.xlu0 %v335, 54
    %v1346 = vpop.permute.xlu0 %1345
    %1347 = vrot.lane.b32.xlu0 %v336, 54
    %v1348 = vpop.permute.xlu0 %1347
    %1349 = vrot.lane.b32.xlu0 %v337, 54
    %v1350 = vpop.permute.xlu0 %1349
    %1351 = vrot.lane.b32.xlu0 %v338, 54
    %v1352 = vpop.permute.xlu0 %1351
    %1353 = vrot.lane.b32.xlu0 %v339, 54
    %v1354 = vpop.permute.xlu0 %1353
    %1355 = vrot.lane.b32.xlu0 %v340, 54
    %v1356 = vpop.permute.xlu0 %1355
    %1357 = vrot.lane.b32.xlu0 %v341, 54
    %v1358 = vpop.permute.xlu0 %1357
    %1359 = vrot.lane.b32.xlu0 %v342, 54
    %v1360 = vpop.permute.xlu0 %1359
    %1361 = vrot.lane.b32.xlu0 %v343, 54
    %v1362 = vpop.permute.xlu0 %1361
    %1363 = vrot.lane.b32.xlu0 %v344, 54
    %v1364 = vpop.permute.xlu0 %1363
    %1365 = vrot.lane.b32.xlu0 %v345, 54
    %v1366 = vpop.permute.xlu0 %1365
    %1367 = vrot.lane.b32.xlu0 %v346, 54
    %v1368 = vpop.permute.xlu0 %1367
    %1369 = vrot.lane.b32.xlu0 %v347, 54
    %v1370 = vpop.permute.xlu0 %1369
    %1371 = vrot.lane.b32.xlu0 %v348, 54
    %v1372 = vpop.permute.xlu0 %1371
    %1373 = vrot.lane.b32.xlu0 %v349, 54
    %v1374 = vpop.permute.xlu0 %1373
    %1503 = vrot.lane.b32.xlu0 %v350, 72
    %v1504 = vpop.permute.xlu0 %1503
    %1505 = vrot.lane.b32.xlu0 %v351, 72
    %v1506 = vpop.permute.xlu0 %1505
    %1507 = vrot.lane.b32.xlu0 %v352, 72
    %v1508 = vpop.permute.xlu0 %1507
    %1509 = vrot.lane.b32.xlu0 %v353, 72
    %v1510 = vpop.permute.xlu0 %1509
    %1511 = vrot.lane.b32.xlu0 %v354, 72
    %v1512 = vpop.permute.xlu0 %1511
    %1513 = vrot.lane.b32.xlu0 %v355, 72
    %v1514 = vpop.permute.xlu0 %1513
    %1515 = vrot.lane.b32.xlu0 %v356, 72
    %v1516 = vpop.permute.xlu0 %1515
    %1517 = vrot.lane.b32.xlu0 %v357, 72
    %v1518 = vpop.permute.xlu0 %1517
    %1519 = vrot.lane.b32.xlu0 %v358, 72
    %v1520 = vpop.permute.xlu0 %1519
    %1521 = vrot.lane.b32.xlu0 %v359, 72
    %v1522 = vpop.permute.xlu0 %1521
    %1523 = vrot.lane.b32.xlu0 %v360, 72
    %v1524 = vpop.permute.xlu0 %1523
    %1525 = vrot.lane.b32.xlu0 %v361, 72
    %v1526 = vpop.permute.xlu0 %1525
    %1527 = vrot.lane.b32.xlu0 %v362, 72
    %v1528 = vpop.permute.xlu0 %1527
    %1529 = vrot.lane.b32.xlu0 %v363, 72
    %v1530 = vpop.permute.xlu0 %1529
    %1531 = vrot.lane.b32.xlu0 %v364, 72
    %v1532 = vpop.permute.xlu0 %1531
    %1533 = vrot.lane.b32.xlu0 %v365, 72
    %v1534 = vpop.permute.xlu0 %1533
    %1535 = vrot.lane.b32.xlu0 %v366, 72
    %v1536 = vpop.permute.xlu0 %1535
    %1537 = vrot.lane.b32.xlu0 %v367, 72
    %v1538 = vpop.permute.xlu0 %1537
    %1539 = vrot.lane.b32.xlu0 %v368, 72
    %v1540 = vpop.permute.xlu0 %1539
    %1541 = vrot.lane.b32.xlu0 %v369, 72
    %v1542 = vpop.permute.xlu0 %1541
    %1543 = vrot.lane.b32.xlu0 %v370, 72
    %v1544 = vpop.permute.xlu0 %1543
    %1545 = vrot.lane.b32.xlu0 %v371, 72
    %v1546 = vpop.permute.xlu0 %1545
    %1547 = vrot.lane.b32.xlu0 %v372, 72
    %v1548 = vpop.permute.xlu0 %1547
    %1549 = vrot.lane.b32.xlu0 %v373, 72
    %v1550 = vpop.permute.xlu0 %1549
    %1551 = vrot.lane.b32.xlu0 %v374, 72
    %v1552 = vpop.permute.xlu0 %1551
    %1553 = vrot.lane.b32.xlu0 %v375, 72
    %v1554 = vpop.permute.xlu0 %1553
    %1555 = vrot.lane.b32.xlu0 %v376, 72
    %v1556 = vpop.permute.xlu0 %1555
    %1557 = vrot.lane.b32.xlu0 %v377, 72
    %v1558 = vpop.permute.xlu0 %1557
    %1559 = vrot.lane.b32.xlu0 %v378, 72
    %v1560 = vpop.permute.xlu0 %1559
    %1561 = vrot.lane.b32.xlu0 %v379, 72
    %v1562 = vpop.permute.xlu0 %1561
    %1563 = vrot.lane.b32.xlu0 %v380, 72
    %v1564 = vpop.permute.xlu0 %1563
    %1565 = vrot.lane.b32.xlu0 %v381, 72
    %v1566 = vpop.permute.xlu0 %1565
    %1567 = vrot.lane.b32.xlu0 %v382, 72
    %v1568 = vpop.permute.xlu0 %1567
    %1569 = vrot.lane.b32.xlu0 %v383, 72
    %v1570 = vpop.permute.xlu0 %1569
    %1571 = vrot.lane.b32.xlu0 %v384, 72
    %v1572 = vpop.permute.xlu0 %1571
    %1573 = vrot.lane.b32.xlu0 %v385, 72
    %v1574 = vpop.permute.xlu0 %1573
    %1575 = vrot.lane.b32.xlu0 %v386, 72
    %v1576 = vpop.permute.xlu0 %1575
    %1577 = vrot.lane.b32.xlu0 %v387, 72
    %v1578 = vpop.permute.xlu0 %1577
    %1579 = vrot.lane.b32.xlu0 %v388, 72
    %v1580 = vpop.permute.xlu0 %1579
    %1581 = vrot.lane.b32.xlu0 %v389, 72
    %v1582 = vpop.permute.xlu0 %1581
    %1583 = vrot.lane.b32.xlu0 %v390, 72
    %v1584 = vpop.permute.xlu0 %1583
    %1585 = vrot.lane.b32.xlu0 %v391, 72
    %v1586 = vpop.permute.xlu0 %1585
    %1587 = vrot.lane.b32.xlu0 %v392, 72
    %v1588 = vpop.permute.xlu0 %1587
    %1589 = vrot.lane.b32.xlu0 %v393, 72
    %v1590 = vpop.permute.xlu0 %1589
    %1591 = vrot.lane.b32.xlu0 %v394, 72
    %v1592 = vpop.permute.xlu0 %1591
    %1593 = vrot.lane.b32.xlu0 %v395, 72
    %v1594 = vpop.permute.xlu0 %1593
    %1595 = vrot.lane.b32.xlu0 %v396, 72
    %v1596 = vpop.permute.xlu0 %1595
    %1597 = vrot.lane.b32.xlu0 %v397, 72
    %v1598 = vpop.permute.xlu0 %1597
    %1599 = vrot.lane.b32.xlu0 %v398, 72
    %v1600 = vpop.permute.xlu0 %1599
    %1601 = vrot.lane.b32.xlu0 %v399, 72
    %v1602 = vpop.permute.xlu0 %1601
    %1603 = vrot.lane.b32.xlu0 %v400, 72
    %v1604 = vpop.permute.xlu0 %1603
    %1605 = vrot.lane.b32.xlu0 %v401, 72
    %v1606 = vpop.permute.xlu0 %1605
    %1607 = vrot.lane.b32.xlu0 %v402, 72
    %v1608 = vpop.permute.xlu0 %1607
    %1609 = vrot.lane.b32.xlu0 %v403, 72
    %v1610 = vpop.permute.xlu0 %1609
    %1611 = vrot.lane.b32.xlu0 %v404, 72
    %v1612 = vpop.permute.xlu0 %1611
    %1613 = vrot.lane.b32.xlu0 %v405, 72
    %v1614 = vpop.permute.xlu0 %1613
    %1615 = vrot.lane.b32.xlu0 %v406, 72
    %v1616 = vpop.permute.xlu0 %1615
    %1617 = vrot.lane.b32.xlu0 %v407, 72
    %v1618 = vpop.permute.xlu0 %1617
    %1619 = vrot.lane.b32.xlu0 %v408, 72
    %v1620 = vpop.permute.xlu0 %1619
    %1621 = vrot.lane.b32.xlu0 %v409, 72
    %v1622 = vpop.permute.xlu0 %1621
    %1623 = vrot.lane.b32.xlu0 %v410, 72
    %v1624 = vpop.permute.xlu0 %1623
    %1625 = vrot.lane.b32.xlu0 %v411, 72
    %v1626 = vpop.permute.xlu0 %1625
    %1627 = vrot.lane.b32.xlu0 %v412, 72
    %v1628 = vpop.permute.xlu0 %1627
    %1629 = vrot.lane.b32.xlu0 %v413, 72
    %v1630 = vpop.permute.xlu0 %1629
    %1759 = vrot.lane.b32.xlu0 %v414, 90
    %v1760 = vpop.permute.xlu0 %1759
    %1761 = vrot.lane.b32.xlu0 %v415, 90
    %v1762 = vpop.permute.xlu0 %1761
    %1763 = vrot.lane.b32.xlu0 %v416, 90
    %v1764 = vpop.permute.xlu0 %1763
    %1765 = vrot.lane.b32.xlu0 %v417, 90
    %v1766 = vpop.permute.xlu0 %1765
    %1767 = vrot.lane.b32.xlu0 %v418, 90
    %v1768 = vpop.permute.xlu0 %1767
    %1769 = vrot.lane.b32.xlu0 %v419, 90
    %v1770 = vpop.permute.xlu0 %1769
    %1771 = vrot.lane.b32.xlu0 %v420, 90
    %v1772 = vpop.permute.xlu0 %1771
    %1773 = vrot.lane.b32.xlu0 %v421, 90
    %v1774 = vpop.permute.xlu0 %1773
    %1775 = vrot.lane.b32.xlu0 %v422, 90
    %v1776 = vpop.permute.xlu0 %1775
    %1777 = vrot.lane.b32.xlu0 %v423, 90
    %v1778 = vpop.permute.xlu0 %1777
    %1779 = vrot.lane.b32.xlu0 %v424, 90
    %v1780 = vpop.permute.xlu0 %1779
    %1781 = vrot.lane.b32.xlu0 %v425, 90
    %v1782 = vpop.permute.xlu0 %1781
    %1783 = vrot.lane.b32.xlu0 %v426, 90
    %v1784 = vpop.permute.xlu0 %1783
    %1785 = vrot.lane.b32.xlu0 %v427, 90
    %v1786 = vpop.permute.xlu0 %1785
    %1787 = vrot.lane.b32.xlu0 %v428, 90
    %v1788 = vpop.permute.xlu0 %1787
    %1789 = vrot.lane.b32.xlu0 %v429, 90
    %v1790 = vpop.permute.xlu0 %1789
    %1791 = vrot.lane.b32.xlu0 %v430, 90
    %v1792 = vpop.permute.xlu0 %1791
    %1793 = vrot.lane.b32.xlu0 %v431, 90
    %v1794 = vpop.permute.xlu0 %1793
    %1795 = vrot.lane.b32.xlu0 %v432, 90
    %v1796 = vpop.permute.xlu0 %1795
    %1797 = vrot.lane.b32.xlu0 %v433, 90
    %v1798 = vpop.permute.xlu0 %1797
    %1799 = vrot.lane.b32.xlu0 %v434, 90
    %v1800 = vpop.permute.xlu0 %1799
    %1801 = vrot.lane.b32.xlu0 %v435, 90
    %v1802 = vpop.permute.xlu0 %1801
    %1803 = vrot.lane.b32.xlu0 %v436, 90
    %v1804 = vpop.permute.xlu0 %1803
    %1805 = vrot.lane.b32.xlu0 %v437, 90
    %v1806 = vpop.permute.xlu0 %1805
    %1807 = vrot.lane.b32.xlu0 %v438, 90
    %v1808 = vpop.permute.xlu0 %1807
    %1809 = vrot.lane.b32.xlu0 %v439, 90
    %v1810 = vpop.permute.xlu0 %1809
    %1811 = vrot.lane.b32.xlu0 %v440, 90
    %v1812 = vpop.permute.xlu0 %1811
    %1813 = vrot.lane.b32.xlu0 %v441, 90
    %v1814 = vpop.permute.xlu0 %1813
    %1815 = vrot.lane.b32.xlu0 %v442, 90
    %v1816 = vpop.permute.xlu0 %1815
    %1817 = vrot.lane.b32.xlu0 %v443, 90
    %v1818 = vpop.permute.xlu0 %1817
    %1819 = vrot.lane.b32.xlu0 %v444, 90
    %v1820 = vpop.permute.xlu0 %1819
    %1821 = vrot.lane.b32.xlu0 %v445, 90
    %v1822 = vpop.permute.xlu0 %1821
    %1823 = vrot.lane.b32.xlu0 %v446, 90
    %v1824 = vpop.permute.xlu0 %1823
    %1825 = vrot.lane.b32.xlu0 %v447, 90
    %v1826 = vpop.permute.xlu0 %1825
    %1827 = vrot.lane.b32.xlu0 %v448, 90
    %v1828 = vpop.permute.xlu0 %1827
    %1829 = vrot.lane.b32.xlu0 %v449, 90
    %v1830 = vpop.permute.xlu0 %1829
    %1831 = vrot.lane.b32.xlu0 %v450, 90
    %v1832 = vpop.permute.xlu0 %1831
    %1833 = vrot.lane.b32.xlu0 %v451, 90
    %v1834 = vpop.permute.xlu0 %1833
    %1835 = vrot.lane.b32.xlu0 %v452, 90
    %v1836 = vpop.permute.xlu0 %1835
    %1837 = vrot.lane.b32.xlu0 %v453, 90
    %v1838 = vpop.permute.xlu0 %1837
    %1839 = vrot.lane.b32.xlu0 %v454, 90
    %v1840 = vpop.permute.xlu0 %1839
    %1841 = vrot.lane.b32.xlu0 %v455, 90
    %v1842 = vpop.permute.xlu0 %1841
    %1843 = vrot.lane.b32.xlu0 %v456, 90
    %v1844 = vpop.permute.xlu0 %1843
    %1845 = vrot.lane.b32.xlu0 %v457, 90
    %v1846 = vpop.permute.xlu0 %1845
    %1847 = vrot.lane.b32.xlu0 %v458, 90
    %v1848 = vpop.permute.xlu0 %1847
    %1849 = vrot.lane.b32.xlu0 %v459, 90
    %v1850 = vpop.permute.xlu0 %1849
    %1851 = vrot.lane.b32.xlu0 %v460, 90
    %v1852 = vpop.permute.xlu0 %1851
    %1853 = vrot.lane.b32.xlu0 %v461, 90
    %v1854 = vpop.permute.xlu0 %1853
    %1855 = vrot.lane.b32.xlu0 %v462, 90
    %v1856 = vpop.permute.xlu0 %1855
    %1857 = vrot.lane.b32.xlu0 %v463, 90
    %v1858 = vpop.permute.xlu0 %1857
    %1859 = vrot.lane.b32.xlu0 %v464, 90
    %v1860 = vpop.permute.xlu0 %1859
    %1861 = vrot.lane.b32.xlu0 %v465, 90
    %v1862 = vpop.permute.xlu0 %1861
    %1863 = vrot.lane.b32.xlu0 %v466, 90
    %v1864 = vpop.permute.xlu0 %1863
    %1865 = vrot.lane.b32.xlu0 %v467, 90
    %v1866 = vpop.permute.xlu0 %1865
    %1867 = vrot.lane.b32.xlu0 %v468, 90
    %v1868 = vpop.permute.xlu0 %1867
    %1869 = vrot.lane.b32.xlu0 %v469, 90
    %v1870 = vpop.permute.xlu0 %1869
    %1871 = vrot.lane.b32.xlu0 %v470, 90
    %v1872 = vpop.permute.xlu0 %1871
    %1873 = vrot.lane.b32.xlu0 %v471, 90
    %v1874 = vpop.permute.xlu0 %1873
    %1875 = vrot.lane.b32.xlu0 %v472, 90
    %v1876 = vpop.permute.xlu0 %1875
    %1877 = vrot.lane.b32.xlu0 %v473, 90
    %v1878 = vpop.permute.xlu0 %1877
    %1879 = vrot.lane.b32.xlu0 %v474, 90
    %v1880 = vpop.permute.xlu0 %1879
    %1881 = vrot.lane.b32.xlu0 %v475, 90
    %v1882 = vpop.permute.xlu0 %1881
    %1883 = vrot.lane.b32.xlu0 %v476, 90
    %v1884 = vpop.permute.xlu0 %1883
    %1885 = vrot.lane.b32.xlu0 %v477, 90
    %v1886 = vpop.permute.xlu0 %1885
    %2015 = vrot.lane.b32.xlu0 %v479, 108
    %v2016 = vpop.permute.xlu0 %2015
    %2017 = vrot.lane.b32.xlu0 %v480, 108
    %v2018 = vpop.permute.xlu0 %2017
    %2019 = vrot.lane.b32.xlu0 %v481, 108
    %v2020 = vpop.permute.xlu0 %2019
    %2021 = vrot.lane.b32.xlu0 %v482, 108
    %v2022 = vpop.permute.xlu0 %2021
    %2023 = vrot.lane.b32.xlu0 %v483, 108
    %v2024 = vpop.permute.xlu0 %2023
    %2025 = vrot.lane.b32.xlu0 %v484, 108
    %v2026 = vpop.permute.xlu0 %2025
    %2027 = vrot.lane.b32.xlu0 %v485, 108
    %v2028 = vpop.permute.xlu0 %2027
    %2029 = vrot.lane.b32.xlu0 %v486, 108
    %v2030 = vpop.permute.xlu0 %2029
    %2031 = vrot.lane.b32.xlu0 %v487, 108
    %v2032 = vpop.permute.xlu0 %2031
    %2033 = vrot.lane.b32.xlu0 %v488, 108
    %v2034 = vpop.permute.xlu0 %2033
    %2035 = vrot.lane.b32.xlu0 %v489, 108
    %v2036 = vpop.permute.xlu0 %2035
    %2037 = vrot.lane.b32.xlu0 %v490, 108
    %v2038 = vpop.permute.xlu0 %2037
    %2039 = vrot.lane.b32.xlu0 %v491, 108
    %v2040 = vpop.permute.xlu0 %2039
    %2041 = vrot.lane.b32.xlu0 %v492, 108
    %v2042 = vpop.permute.xlu0 %2041
    %2043 = vrot.lane.b32.xlu0 %v493, 108
    %v2044 = vpop.permute.xlu0 %2043
    %2045 = vrot.lane.b32.xlu0 %v494, 108
    %v2046 = vpop.permute.xlu0 %2045
    %2047 = vrot.lane.b32.xlu0 %v495, 108
    %v2048 = vpop.permute.xlu0 %2047
    %2049 = vrot.lane.b32.xlu0 %v496, 108
    %v2050 = vpop.permute.xlu0 %2049
    %2051 = vrot.lane.b32.xlu0 %v497, 108
    %v2052 = vpop.permute.xlu0 %2051
    %2053 = vrot.lane.b32.xlu0 %v498, 108
    %v2054 = vpop.permute.xlu0 %2053
    %2055 = vrot.lane.b32.xlu0 %v499, 108
    %v2056 = vpop.permute.xlu0 %2055
    %2057 = vrot.lane.b32.xlu0 %v500, 108
    %v2058 = vpop.permute.xlu0 %2057
    %2059 = vrot.lane.b32.xlu0 %v501, 108
    %v2060 = vpop.permute.xlu0 %2059
    %2061 = vrot.lane.b32.xlu0 %v502, 108
    %v2062 = vpop.permute.xlu0 %2061
    %2063 = vrot.lane.b32.xlu0 %v503, 108
    %v2064 = vpop.permute.xlu0 %2063
    %2065 = vrot.lane.b32.xlu0 %v504, 108
    %v2066 = vpop.permute.xlu0 %2065
    %2067 = vrot.lane.b32.xlu0 %v505, 108
    %v2068 = vpop.permute.xlu0 %2067
    %2069 = vrot.lane.b32.xlu0 %v506, 108
    %v2070 = vpop.permute.xlu0 %2069
    %2071 = vrot.lane.b32.xlu0 %v507, 108
    %v2072 = vpop.permute.xlu0 %2071
    %2073 = vrot.lane.b32.xlu0 %v508, 108
    %v2074 = vpop.permute.xlu0 %2073
    %2075 = vrot.lane.b32.xlu0 %v509, 108
    %v2076 = vpop.permute.xlu0 %2075
    %2077 = vrot.lane.b32.xlu0 %v510, 108
    %v2078 = vpop.permute.xlu0 %2077
    %2079 = vrot.lane.b32.xlu0 %v511, 108
    %v2080 = vpop.permute.xlu0 %2079
    %2081 = vrot.lane.b32.xlu0 %v512, 108
    %v2082 = vpop.permute.xlu0 %2081
    %2083 = vrot.lane.b32.xlu0 %v513, 108
    %v2084 = vpop.permute.xlu0 %2083
    %2085 = vrot.lane.b32.xlu0 %v514, 108
    %v2086 = vpop.permute.xlu0 %2085
    %2087 = vrot.lane.b32.xlu0 %v515, 108
    %v2088 = vpop.permute.xlu0 %2087
    %2089 = vrot.lane.b32.xlu0 %v516, 108
    %v2090 = vpop.permute.xlu0 %2089
    %2091 = vrot.lane.b32.xlu0 %v517, 108
    %v2092 = vpop.permute.xlu0 %2091
    %2093 = vrot.lane.b32.xlu0 %v518, 108
    %v2094 = vpop.permute.xlu0 %2093
    %2095 = vrot.lane.b32.xlu0 %v519, 108
    %v2096 = vpop.permute.xlu0 %2095
    %2097 = vrot.lane.b32.xlu0 %v520, 108
    %v2098 = vpop.permute.xlu0 %2097
    %2099 = vrot.lane.b32.xlu0 %v521, 108
    %v2100 = vpop.permute.xlu0 %2099
    %2101 = vrot.lane.b32.xlu0 %v522, 108
    %v2102 = vpop.permute.xlu0 %2101
    %2103 = vrot.lane.b32.xlu0 %v523, 108
    %v2104 = vpop.permute.xlu0 %2103
    %2105 = vrot.lane.b32.xlu0 %v524, 108
    %v2106 = vpop.permute.xlu0 %2105
    %2107 = vrot.lane.b32.xlu0 %v525, 108
    %v2108 = vpop.permute.xlu0 %2107
    %2109 = vrot.lane.b32.xlu0 %v526, 108
    %v2110 = vpop.permute.xlu0 %2109
    %2111 = vrot.lane.b32.xlu0 %v527, 108
    %v2112 = vpop.permute.xlu0 %2111
    %2113 = vrot.lane.b32.xlu0 %v528, 108
    %v2114 = vpop.permute.xlu0 %2113
    %2115 = vrot.lane.b32.xlu0 %v529, 108
    %v2116 = vpop.permute.xlu0 %2115
    %2117 = vrot.lane.b32.xlu0 %v530, 108
    %v2118 = vpop.permute.xlu0 %2117
    %2119 = vrot.lane.b32.xlu0 %v531, 108
    %v2120 = vpop.permute.xlu0 %2119
    %2121 = vrot.lane.b32.xlu0 %v532, 108
    %v2122 = vpop.permute.xlu0 %2121
    %2123 = vrot.lane.b32.xlu0 %v533, 108
    %v2124 = vpop.permute.xlu0 %2123
    %2125 = vrot.lane.b32.xlu0 %v534, 108
    %v2126 = vpop.permute.xlu0 %2125
    %2127 = vrot.lane.b32.xlu0 %v535, 108
    %v2128 = vpop.permute.xlu0 %2127
    %2129 = vrot.lane.b32.xlu0 %v536, 108
    %v2130 = vpop.permute.xlu0 %2129
    %2131 = vrot.lane.b32.xlu0 %v537, 108
    %v2132 = vpop.permute.xlu0 %2131
    %2133 = vrot.lane.b32.xlu0 %v538, 108
    %v2134 = vpop.permute.xlu0 %2133
    %2135 = vrot.lane.b32.xlu0 %v539, 108
    %v2136 = vpop.permute.xlu0 %2135
    %2137 = vrot.lane.b32.xlu0 %v540, 108
    %v2138 = vpop.permute.xlu0 %2137
    %2139 = vrot.lane.b32.xlu0 %v541, 108
    %v2140 = vpop.permute.xlu0 %2139
    %2141 = vrot.lane.b32.xlu0 %v542, 108
    %v2142 = vpop.permute.xlu0 %2141
    %2271 = vrot.lane.b32.xlu0 %v543, 126
    %v2272 = vpop.permute.xlu0 %2271
    %2273 = vrot.lane.b32.xlu0 %v544, 126
    %v2274 = vpop.permute.xlu0 %2273
    %2275 = vrot.lane.b32.xlu0 %v545, 126
    %v2276 = vpop.permute.xlu0 %2275
    %2277 = vrot.lane.b32.xlu0 %v546, 126
    %v2278 = vpop.permute.xlu0 %2277
    %2279 = vrot.lane.b32.xlu0 %v547, 126
    %v2280 = vpop.permute.xlu0 %2279
    %2281 = vrot.lane.b32.xlu0 %v548, 126
    %v2282 = vpop.permute.xlu0 %2281
    %2283 = vrot.lane.b32.xlu0 %v549, 126
    %v2284 = vpop.permute.xlu0 %2283
    %2285 = vrot.lane.b32.xlu0 %v550, 126
    %v2286 = vpop.permute.xlu0 %2285
    %2287 = vrot.lane.b32.xlu0 %v551, 126
    %v2288 = vpop.permute.xlu0 %2287
    %2289 = vrot.lane.b32.xlu0 %v552, 126
    %v2290 = vpop.permute.xlu0 %2289
    %2291 = vrot.lane.b32.xlu0 %v553, 126
    %v2292 = vpop.permute.xlu0 %2291
    %2293 = vrot.lane.b32.xlu0 %v554, 126
    %v2294 = vpop.permute.xlu0 %2293
    %2295 = vrot.lane.b32.xlu0 %v555, 126
    %v2296 = vpop.permute.xlu0 %2295
    %2297 = vrot.lane.b32.xlu0 %v556, 126
    %v2298 = vpop.permute.xlu0 %2297
    %2299 = vrot.lane.b32.xlu0 %v557, 126
    %v2300 = vpop.permute.xlu0 %2299
    %2301 = vrot.lane.b32.xlu0 %v558, 126
    %v2302 = vpop.permute.xlu0 %2301
    %2303 = vrot.lane.b32.xlu0 %v559, 126
    %v2304 = vpop.permute.xlu0 %2303
    %2305 = vrot.lane.b32.xlu0 %v560, 126
    %v2306 = vpop.permute.xlu0 %2305
    %2307 = vrot.lane.b32.xlu0 %v561, 126
    %v2308 = vpop.permute.xlu0 %2307
    %2309 = vrot.lane.b32.xlu0 %v562, 126
    %v2310 = vpop.permute.xlu0 %2309
    %2311 = vrot.lane.b32.xlu0 %v563, 126
    %v2312 = vpop.permute.xlu0 %2311
    %2313 = vrot.lane.b32.xlu0 %v564, 126
    %v2314 = vpop.permute.xlu0 %2313
    %2315 = vrot.lane.b32.xlu0 %v565, 126
    %v2316 = vpop.permute.xlu0 %2315
    %2317 = vrot.lane.b32.xlu0 %v566, 126
    %v2318 = vpop.permute.xlu0 %2317
    %2319 = vrot.lane.b32.xlu0 %v567, 126
    %v2320 = vpop.permute.xlu0 %2319
    %2321 = vrot.lane.b32.xlu0 %v568, 126
    %v2322 = vpop.permute.xlu0 %2321
    %2323 = vrot.lane.b32.xlu0 %v569, 126
    %v2324 = vpop.permute.xlu0 %2323
    %2325 = vrot.lane.b32.xlu0 %v570, 126
    %v2326 = vpop.permute.xlu0 %2325
    %2327 = vrot.lane.b32.xlu0 %v571, 126
    %v2328 = vpop.permute.xlu0 %2327
    %2329 = vrot.lane.b32.xlu0 %v572, 126
    %v2330 = vpop.permute.xlu0 %2329
    %2331 = vrot.lane.b32.xlu0 %v573, 126
    %v2332 = vpop.permute.xlu0 %2331
    %2333 = vrot.lane.b32.xlu0 %v574, 126
    %v2334 = vpop.permute.xlu0 %2333
    %2335 = vrot.lane.b32.xlu0 %v575, 126
    %v2336 = vpop.permute.xlu0 %2335
    %2337 = vrot.lane.b32.xlu0 %v576, 126
    %v2338 = vpop.permute.xlu0 %2337
    %2339 = vrot.lane.b32.xlu0 %v577, 126
    %v2340 = vpop.permute.xlu0 %2339
    %2341 = vrot.lane.b32.xlu0 %v578, 126
    %v2342 = vpop.permute.xlu0 %2341
    %2343 = vrot.lane.b32.xlu0 %v579, 126
    %v2344 = vpop.permute.xlu0 %2343
    %2345 = vrot.lane.b32.xlu0 %v580, 126
    %v2346 = vpop.permute.xlu0 %2345
    %2347 = vrot.lane.b32.xlu0 %v581, 126
    %v2348 = vpop.permute.xlu0 %2347
    %2349 = vrot.lane.b32.xlu0 %v582, 126
    %v2350 = vpop.permute.xlu0 %2349
    %2351 = vrot.lane.b32.xlu0 %v583, 126
    %v2352 = vpop.permute.xlu0 %2351
    %2353 = vrot.lane.b32.xlu0 %v584, 126
    %v2354 = vpop.permute.xlu0 %2353
    %2355 = vrot.lane.b32.xlu0 %v585, 126
    %v2356 = vpop.permute.xlu0 %2355
    %2357 = vrot.lane.b32.xlu0 %v586, 126
    %v2358 = vpop.permute.xlu0 %2357
    %2359 = vrot.lane.b32.xlu0 %v587, 126
    %v2360 = vpop.permute.xlu0 %2359
    %2361 = vrot.lane.b32.xlu0 %v588, 126
    %v2362 = vpop.permute.xlu0 %2361
    %2363 = vrot.lane.b32.xlu0 %v589, 126
    %v2364 = vpop.permute.xlu0 %2363
    %2365 = vrot.lane.b32.xlu0 %v590, 126
    %v2366 = vpop.permute.xlu0 %2365
    %2367 = vrot.lane.b32.xlu0 %v591, 126
    %v2368 = vpop.permute.xlu0 %2367
    %2369 = vrot.lane.b32.xlu0 %v592, 126
    %v2370 = vpop.permute.xlu0 %2369
    %2371 = vrot.lane.b32.xlu0 %v593, 126
    %v2372 = vpop.permute.xlu0 %2371
    %2373 = vrot.lane.b32.xlu0 %v594, 126
    %v2374 = vpop.permute.xlu0 %2373
    %2375 = vrot.lane.b32.xlu0 %v595, 126
    %v2376 = vpop.permute.xlu0 %2375
    %2377 = vrot.lane.b32.xlu0 %v596, 126
    %v2378 = vpop.permute.xlu0 %2377
    %2379 = vrot.lane.b32.xlu0 %v597, 126
    %v2380 = vpop.permute.xlu0 %2379
    %2381 = vrot.lane.b32.xlu0 %v598, 126
    %v2382 = vpop.permute.xlu0 %2381
    %2383 = vrot.lane.b32.xlu0 %v599, 126
    %v2384 = vpop.permute.xlu0 %2383
    %2385 = vrot.lane.b32.xlu0 %v600, 126
    %v2386 = vpop.permute.xlu0 %2385
    %2387 = vrot.lane.b32.xlu0 %v601, 126
    %v2388 = vpop.permute.xlu0 %2387
    %2389 = vrot.lane.b32.xlu0 %v602, 126
    %v2390 = vpop.permute.xlu0 %2389
    %2391 = vrot.lane.b32.xlu0 %v603, 126
    %v2392 = vpop.permute.xlu0 %2391
    %2393 = vrot.lane.b32.xlu0 %v604, 126
    %v2394 = vpop.permute.xlu0 %2393
    %2395 = vrot.lane.b32.xlu0 %v605, 126
    %v2396 = vpop.permute.xlu0 %2395
    %2397 = vrot.lane.b32.xlu0 %v606, 126
    %v2398 = vpop.permute.xlu0 %2397
    %2527 = vrot.lane.b32.xlu0 %v607, 16
    %v2528 = vpop.permute.xlu0 %2527
    %2529 = vrot.lane.b32.xlu0 %v608, 16
    %v2530 = vpop.permute.xlu0 %2529
    %2531 = vrot.lane.b32.xlu0 %v609, 16
    %v2532 = vpop.permute.xlu0 %2531
    %2533 = vrot.lane.b32.xlu0 %v610, 16
    %v2534 = vpop.permute.xlu0 %2533
    %2535 = vrot.lane.b32.xlu0 %v611, 16
    %v2536 = vpop.permute.xlu0 %2535
    %2537 = vrot.lane.b32.xlu0 %v612, 16
    %v2538 = vpop.permute.xlu0 %2537
    %2539 = vrot.lane.b32.xlu0 %v613, 16
    %v2540 = vpop.permute.xlu0 %2539
    %2541 = vrot.lane.b32.xlu0 %v614, 16
    %v2542 = vpop.permute.xlu0 %2541
    %2543 = vrot.lane.b32.xlu0 %v615, 16
    %v2544 = vpop.permute.xlu0 %2543
    %2545 = vrot.lane.b32.xlu0 %v616, 16
    %v2546 = vpop.permute.xlu0 %2545
    %2547 = vrot.lane.b32.xlu0 %v617, 16
    %v2548 = vpop.permute.xlu0 %2547
    %2549 = vrot.lane.b32.xlu0 %v618, 16
    %v2550 = vpop.permute.xlu0 %2549
    %2551 = vrot.lane.b32.xlu0 %v619, 16
    %v2552 = vpop.permute.xlu0 %2551
    %2553 = vrot.lane.b32.xlu0 %v620, 16
    %v2554 = vpop.permute.xlu0 %2553
    %2555 = vrot.lane.b32.xlu0 %v621, 16
    %v2556 = vpop.permute.xlu0 %2555
    %2557 = vrot.lane.b32.xlu0 %v622, 16
    %v2558 = vpop.permute.xlu0 %2557
    %2559 = vrot.lane.b32.xlu0 %v623, 16
    %v2560 = vpop.permute.xlu0 %2559
    %2561 = vrot.lane.b32.xlu0 %v624, 16
    %v2562 = vpop.permute.xlu0 %2561
    %2563 = vrot.lane.b32.xlu0 %v625, 16
    %v2564 = vpop.permute.xlu0 %2563
    %2565 = vrot.lane.b32.xlu0 %v626, 16
    %v2566 = vpop.permute.xlu0 %2565
    %2567 = vrot.lane.b32.xlu0 %v627, 16
    %v2568 = vpop.permute.xlu0 %2567
    %2569 = vrot.lane.b32.xlu0 %v628, 16
    %v2570 = vpop.permute.xlu0 %2569
    %2571 = vrot.lane.b32.xlu0 %v629, 16
    %v2572 = vpop.permute.xlu0 %2571
    %2573 = vrot.lane.b32.xlu0 %v630, 16
    %v2574 = vpop.permute.xlu0 %2573
    %2575 = vrot.lane.b32.xlu0 %v631, 16
    %v2576 = vpop.permute.xlu0 %2575
    %2577 = vrot.lane.b32.xlu0 %v632, 16
    %v2578 = vpop.permute.xlu0 %2577
    %2579 = vrot.lane.b32.xlu0 %v633, 16
    %v2580 = vpop.permute.xlu0 %2579
    %2581 = vrot.lane.b32.xlu0 %v634, 16
    %v2582 = vpop.permute.xlu0 %2581
    %2583 = vrot.lane.b32.xlu0 %v635, 16
    %v2584 = vpop.permute.xlu0 %2583
    %2585 = vrot.lane.b32.xlu0 %v636, 16
    %v2586 = vpop.permute.xlu0 %2585
    %2587 = vrot.lane.b32.xlu0 %v637, 16
    %v2588 = vpop.permute.xlu0 %2587
    %2589 = vrot.lane.b32.xlu0 %v638, 16
    %v2590 = vpop.permute.xlu0 %2589
    %2591 = vrot.lane.b32.xlu0 %v639, 16
    %v2592 = vpop.permute.xlu0 %2591
    %2593 = vrot.lane.b32.xlu0 %v640, 16
    %v2594 = vpop.permute.xlu0 %2593
    %2595 = vrot.lane.b32.xlu0 %v641, 16
    %v2596 = vpop.permute.xlu0 %2595
    %2597 = vrot.lane.b32.xlu0 %v642, 16
    %v2598 = vpop.permute.xlu0 %2597
    %2599 = vrot.lane.b32.xlu0 %v643, 16
    %v2600 = vpop.permute.xlu0 %2599
    %2601 = vrot.lane.b32.xlu0 %v644, 16
    %v2602 = vpop.permute.xlu0 %2601
    %2603 = vrot.lane.b32.xlu0 %v645, 16
    %v2604 = vpop.permute.xlu0 %2603
    %2605 = vrot.lane.b32.xlu0 %v646, 16
    %v2606 = vpop.permute.xlu0 %2605
    %2607 = vrot.lane.b32.xlu0 %v647, 16
    %v2608 = vpop.permute.xlu0 %2607
    %2609 = vrot.lane.b32.xlu0 %v648, 16
    %v2610 = vpop.permute.xlu0 %2609
    %2611 = vrot.lane.b32.xlu0 %v649, 16
    %v2612 = vpop.permute.xlu0 %2611
    %2613 = vrot.lane.b32.xlu0 %v650, 16
    %v2614 = vpop.permute.xlu0 %2613
    %2615 = vrot.lane.b32.xlu0 %v651, 16
    %v2616 = vpop.permute.xlu0 %2615
    %2617 = vrot.lane.b32.xlu0 %v652, 16
    %v2618 = vpop.permute.xlu0 %2617
    %2619 = vrot.lane.b32.xlu0 %v653, 16
    %v2620 = vpop.permute.xlu0 %2619
    %2621 = vrot.lane.b32.xlu0 %v654, 16
    %v2622 = vpop.permute.xlu0 %2621
    %2623 = vrot.lane.b32.xlu0 %v655, 16
    %v2624 = vpop.permute.xlu0 %2623
    %2625 = vrot.lane.b32.xlu0 %v656, 16
    %v2626 = vpop.permute.xlu0 %2625
    %2627 = vrot.lane.b32.xlu0 %v657, 16
    %v2628 = vpop.permute.xlu0 %2627
    %2629 = vrot.lane.b32.xlu0 %v658, 16
    %v2630 = vpop.permute.xlu0 %2629
    %2631 = vrot.lane.b32.xlu0 %v659, 16
    %v2632 = vpop.permute.xlu0 %2631
    %2633 = vrot.lane.b32.xlu0 %v660, 16
    %v2634 = vpop.permute.xlu0 %2633
    %2635 = vrot.lane.b32.xlu0 %v661, 16
    %v2636 = vpop.permute.xlu0 %2635
    %2637 = vrot.lane.b32.xlu0 %v662, 16
    %v2638 = vpop.permute.xlu0 %2637
    %2639 = vrot.lane.b32.xlu0 %v663, 16
    %v2640 = vpop.permute.xlu0 %2639
    %2641 = vrot.lane.b32.xlu0 %v664, 16
    %v2642 = vpop.permute.xlu0 %2641
    %2643 = vrot.lane.b32.xlu0 %v665, 16
    %v2644 = vpop.permute.xlu0 %2643
    %2645 = vrot.lane.b32.xlu0 %v666, 16
    %v2646 = vpop.permute.xlu0 %2645
    %2647 = vrot.lane.b32.xlu0 %v667, 16
    %v2648 = vpop.permute.xlu0 %2647
    %2649 = vrot.lane.b32.xlu0 %v668, 16
    %v2650 = vpop.permute.xlu0 %2649
    %2651 = vrot.lane.b32.xlu0 %v669, 16
    %v2652 = vpop.permute.xlu0 %2651
    %2653 = vrot.lane.b32.xlu0 %v670, 16
    %v2654 = vpop.permute.xlu0 %2653
    %vm2719 = vcmask 146432
    %v2720 = vsel %vm2719, %v93, %v736
    %v2721 = vsel %vm2719, %v94, %v738
    %v2722 = vsel %vm2719, %v95, %v740
    %v2723 = vsel %vm2719, %v96, %v742
    %v2724 = vsel %vm2719, %v97, %v744
    %v2725 = vsel %vm2719, %v98, %v746
    %v2726 = vsel %vm2719, %v99, %v748
    %v2727 = vsel %vm2719, %v100, %v750
    %v2728 = vsel %vm2719, %v101, %v752
    %v2729 = vsel %vm2719, %v102, %v754
    %v2730 = vsel %vm2719, %v103, %v756
    %v2731 = vsel %vm2719, %v104, %v758
    %v2732 = vsel %vm2719, %v105, %v760
    %v2733 = vsel %vm2719, %v106, %v762
    %v2734 = vsel %vm2719, %v107, %v764
    %v2735 = vsel %vm2719, %v108, %v766
    %v2736 = vsel %vm2719, %v109, %v768
    %v2737 = vsel %vm2719, %v110, %v770
    %v2738 = vsel %vm2719, %v111, %v772
    %v2739 = vsel %vm2719, %v112, %v774
    %v2740 = vsel %vm2719, %v113, %v776
    %v2741 = vsel %vm2719, %v114, %v778
    %v2742 = vsel %vm2719, %v115, %v780
    %v2743 = vsel %vm2719, %v116, %v782
    %v2744 = vsel %vm2719, %v117, %v784
    %v2745 = vsel %vm2719, %v118, %v786
    %v2746 = vsel %vm2719, %v119, %v788
    %v2747 = vsel %vm2719, %v120, %v790
    %v2748 = vsel %vm2719, %v121, %v792
    %v2749 = vsel %vm2719, %v122, %v794
    %v2750 = vsel %vm2719, %v123, %v796
    %v2751 = vsel %vm2719, %v124, %v798
    %v2752 = vsel %vm2719, %v125, %v800
    %v2753 = vsel %vm2719, %v126, %v802
    %v2754 = vsel %vm2719, %v127, %v804
    %v2755 = vsel %vm2719, %v128, %v806
    %v2756 = vsel %vm2719, %v129, %v808
    %v2757 = vsel %vm2719, %v130, %v810
    %v2758 = vsel %vm2719, %v131, %v812
    %v2759 = vsel %vm2719, %v132, %v814
    %v2760 = vsel %vm2719, %v133, %v816
    %v2761 = vsel %vm2719, %v134, %v818
    %v2762 = vsel %vm2719, %v135, %v820
    %v2763 = vsel %vm2719, %v136, %v822
    %v2764 = vsel %vm2719, %v137, %v824
    %v2765 = vsel %vm2719, %v138, %v826
    %v2766 = vsel %vm2719, %v139, %v828
    %v2767 = vsel %vm2719, %v140, %v830
    %v2768 = vsel %vm2719, %v141, %v832
    %v2769 = vsel %vm2719, %v142, %v834
    %v2770 = vsel %vm2719, %v143, %v836
    %v2771 = vsel %vm2719, %v144, %v838
    %v2772 = vsel %vm2719, %v145, %v840
    %v2773 = vsel %vm2719, %v146, %v842
    %v2774 = vsel %vm2719, %v147, %v844
    %v2775 = vsel %vm2719, %v148, %v846
    %v2776 = vsel %vm2719, %v149, %v848
    %v2777 = vsel %vm2719, %v150, %v850
    %v2778 = vsel %vm2719, %v151, %v852
    %v2779 = vsel %vm2719, %v152, %v854
    %v2780 = vsel %vm2719, %v153, %v856
    %v2781 = vsel %vm2719, %v154, %v858
    %v2782 = vsel %vm2719, %v155, %v860
    %v2783 = vsel %vm2719, %v156, %v862
    %vm2784 = vcmask 293888
    %v2785 = vsel %vm2784, %v2720, %v992
    %v2786 = vsel %vm2784, %v2721, %v994
    %v2787 = vsel %vm2784, %v2722, %v996
    %v2788 = vsel %vm2784, %v2723, %v998
    %v2789 = vsel %vm2784, %v2724, %v1000
    %v2790 = vsel %vm2784, %v2725, %v1002
    %v2791 = vsel %vm2784, %v2726, %v1004
    %v2792 = vsel %vm2784, %v2727, %v1006
    %v2793 = vsel %vm2784, %v2728, %v1008
    %v2794 = vsel %vm2784, %v2729, %v1010
    %v2795 = vsel %vm2784, %v2730, %v1012
    %v2796 = vsel %vm2784, %v2731, %v1014
    %v2797 = vsel %vm2784, %v2732, %v1016
    %v2798 = vsel %vm2784, %v2733, %v1018
    %v2799 = vsel %vm2784, %v2734, %v1020
    %v2800 = vsel %vm2784, %v2735, %v1022
    %v2801 = vsel %vm2784, %v2736, %v1024
    %v2802 = vsel %vm2784, %v2737, %v1026
    %v2803 = vsel %vm2784, %v2738, %v1028
    %v2804 = vsel %vm2784, %v2739, %v1030
    %v2805 = vsel %vm2784, %v2740, %v1032
    %v2806 = vsel %vm2784, %v2741, %v1034
    %v2807 = vsel %vm2784, %v2742, %v1036
    %v2808 = vsel %vm2784, %v2743, %v1038
    %v2809 = vsel %vm2784, %v2744, %v1040
    %v2810 = vsel %vm2784, %v2745, %v1042
    %v2811 = vsel %vm2784, %v2746, %v1044
    %v2812 = vsel %vm2784, %v2747, %v1046
    %v2813 = vsel %vm2784, %v2748, %v1048
    %v2814 = vsel %vm2784, %v2749, %v1050
    %v2815 = vsel %vm2784, %v2750, %v1052
    %v2816 = vsel %vm2784, %v2751, %v1054
    %v2817 = vsel %vm2784, %v2752, %v1056
    %v2818 = vsel %vm2784, %v2753, %v1058
    %v2819 = vsel %vm2784, %v2754, %v1060
    %v2820 = vsel %vm2784, %v2755, %v1062
    %v2821 = vsel %vm2784, %v2756, %v1064
    %v2822 = vsel %vm2784, %v2757, %v1066
    %v2823 = vsel %vm2784, %v2758, %v1068
    %v2824 = vsel %vm2784, %v2759, %v1070
    %v2825 = vsel %vm2784, %v2760, %v1072
    %v2826 = vsel %vm2784, %v2761, %v1074
    %v2827 = vsel %vm2784, %v2762, %v1076
    %v2828 = vsel %vm2784, %v2763, %v1078
    %v2829 = vsel %vm2784, %v2764, %v1080
    %v2830 = vsel %vm2784, %v2765, %v1082
    %v2831 = vsel %vm2784, %v2766, %v1084
    %v2832 = vsel %vm2784, %v2767, %v1086
    %v2833 = vsel %vm2784, %v2768, %v1088
    %v2834 = vsel %vm2784, %v2769, %v1090
    %v2835 = vsel %vm2784, %v2770, %v1092
    %v2836 = vsel %vm2784, %v2771, %v1094
    %v2837 = vsel %vm2784, %v2772, %v1096
    %v2838 = vsel %vm2784, %v2773, %v1098
    %v2839 = vsel %vm2784, %v2774, %v1100
    %v2840 = vsel %vm2784, %v2775, %v1102
    %v2841 = vsel %vm2784, %v2776, %v1104
    %v2842 = vsel %vm2784, %v2777, %v1106
    %v2843 = vsel %vm2784, %v2778, %v1108
    %v2844 = vsel %vm2784, %v2779, %v1110
    %v2845 = vsel %vm2784, %v2780, %v1112
    %v2846 = vsel %vm2784, %v2781, %v1114
    %v2847 = vsel %vm2784, %v2782, %v1116
    %v2848 = vsel %vm2784, %v2783, %v1118
    %vm2849 = vcmask 441344
    %v2850 = vsel %vm2849, %v2785, %v1248
    %v2851 = vsel %vm2849, %v2786, %v1250
    %v2852 = vsel %vm2849, %v2787, %v1252
    %v2853 = vsel %vm2849, %v2788, %v1254
    %v2854 = vsel %vm2849, %v2789, %v1256
    %v2855 = vsel %vm2849, %v2790, %v1258
    %v2856 = vsel %vm2849, %v2791, %v1260
    %v2857 = vsel %vm2849, %v2792, %v1262
    %v2858 = vsel %vm2849, %v2793, %v1264
    %v2859 = vsel %vm2849, %v2794, %v1266
    %v2860 = vsel %vm2849, %v2795, %v1268
    %v2861 = vsel %vm2849, %v2796, %v1270
    %v2862 = vsel %vm2849, %v2797, %v1272
    %v2863 = vsel %vm2849, %v2798, %v1274
    %v2864 = vsel %vm2849, %v2799, %v1276
    %v2865 = vsel %vm2849, %v2800, %v1278
    %v2866 = vsel %vm2849, %v2801, %v1280
    %v2867 = vsel %vm2849, %v2802, %v1282
    %v2868 = vsel %vm2849, %v2803, %v1284
    %v2869 = vsel %vm2849, %v2804, %v1286
    %v2870 = vsel %vm2849, %v2805, %v1288
    %v2871 = vsel %vm2849, %v2806, %v1290
    %v2872 = vsel %vm2849, %v2807, %v1292
    %v2873 = vsel %vm2849, %v2808, %v1294
    %v2874 = vsel %vm2849, %v2809, %v1296
    %v2875 = vsel %vm2849, %v2810, %v1298
    %v2876 = vsel %vm2849, %v2811, %v1300
    %v2877 = vsel %vm2849, %v2812, %v1302
    %v2878 = vsel %vm2849, %v2813, %v1304
    %v2879 = vsel %vm2849, %v2814, %v1306
    %v2880 = vsel %vm2849, %v2815, %v1308
    %v2881 = vsel %vm2849, %v2816, %v1310
    %v2882 = vsel %vm2849, %v2817, %v1312
    %v2883 = vsel %vm2849, %v2818, %v1314
    %v2884 = vsel %vm2849, %v2819, %v1316
    %v2885 = vsel %vm2849, %v2820, %v1318
    %v2886 = vsel %vm2849, %v2821, %v1320
    %v2887 = vsel %vm2849, %v2822, %v1322
    %v2888 = vsel %vm2849, %v2823, %v1324
    %v2889 = vsel %vm2849, %v2824, %v1326
    %v2890 = vsel %vm2849, %v2825, %v1328
    %v2891 = vsel %vm2849, %v2826, %v1330
    %v2892 = vsel %vm2849, %v2827, %v1332
    %v2893 = vsel %vm2849, %v2828, %v1334
    %v2894 = vsel %vm2849, %v2829, %v1336
    %v2895 = vsel %vm2849, %v2830, %v1338
    %v2896 = vsel %vm2849, %v2831, %v1340
    %v2897 = vsel %vm2849, %v2832, %v1342
    %v2898 = vsel %vm2849, %v2833, %v1344
    %v2899 = vsel %vm2849, %v2834, %v1346
    %v2900 = vsel %vm2849, %v2835, %v1348
    %v2901 = vsel %vm2849, %v2836, %v1350
    %v2902 = vsel %vm2849, %v2837, %v1352
    %v2903 = vsel %vm2849, %v2838, %v1354
    %v2904 = vsel %vm2849, %v2839, %v1356
    %v2905 = vsel %vm2849, %v2840, %v1358
    %v2906 = vsel %vm2849, %v2841, %v1360
    %v2907 = vsel %vm2849, %v2842, %v1362
    %v2908 = vsel %vm2849, %v2843, %v1364
    %v2909 = vsel %vm2849, %v2844, %v1366
    %v2910 = vsel %vm2849, %v2845, %v1368
    %v2911 = vsel %vm2849, %v2846, %v1370
    %v2912 = vsel %vm2849, %v2847, %v1372
    %v2913 = vsel %vm2849, %v2848, %v1374
    %vm2914 = vcmask 588800
    %v2915 = vsel %vm2914, %v2850, %v1504
    %v2916 = vsel %vm2914, %v2851, %v1506
    %v2917 = vsel %vm2914, %v2852, %v1508
    %v2918 = vsel %vm2914, %v2853, %v1510
    %v2919 = vsel %vm2914, %v2854, %v1512
    %v2920 = vsel %vm2914, %v2855, %v1514
    %v2921 = vsel %vm2914, %v2856, %v1516
    %v2922 = vsel %vm2914, %v2857, %v1518
    %v2923 = vsel %vm2914, %v2858, %v1520
    %v2924 = vsel %vm2914, %v2859, %v1522
    %v2925 = vsel %vm2914, %v2860, %v1524
    %v2926 = vsel %vm2914, %v2861, %v1526
    %v2927 = vsel %vm2914, %v2862, %v1528
    %v2928 = vsel %vm2914, %v2863, %v1530
    %v2929 = vsel %vm2914, %v2864, %v1532
    %v2930 = vsel %vm2914, %v2865, %v1534
    %v2931 = vsel %vm2914, %v2866, %v1536
    %v2932 = vsel %vm2914, %v2867, %v1538
    %v2933 = vsel %vm2914, %v2868, %v1540
    %v2934 = vsel %vm2914, %v2869, %v1542
    %v2935 = vsel %vm2914, %v2870, %v1544
    %v2936 = vsel %vm2914, %v2871, %v1546
    %v2937 = vsel %vm2914, %v2872, %v1548
    %v2938 = vsel %vm2914, %v2873, %v1550
    %v2939 = vsel %vm2914, %v2874, %v1552
    %v2940 = vsel %vm2914, %v2875, %v1554
    %v2941 = vsel %vm2914, %v2876, %v1556
    %v2942 = vsel %vm2914, %v2877, %v1558
    %v2943 = vsel %vm2914, %v2878, %v1560
    %v2944 = vsel %vm2914, %v2879, %v1562
    %v2945 = vsel %vm2914, %v2880, %v1564
    %v2946 = vsel %vm2914, %v2881, %v1566
    %v2947 = vsel %vm2914, %v2882, %v1568
    %v2948 = vsel %vm2914, %v2883, %v1570
    %v2949 = vsel %vm2914, %v2884, %v1572
    %v2950 = vsel %vm2914, %v2885, %v1574
    %v2951 = vsel %vm2914, %v2886, %v1576
    %v2952 = vsel %vm2914, %v2887, %v1578
    %v2953 = vsel %vm2914, %v2888, %v1580
    %v2954 = vsel %vm2914, %v2889, %v1582
    %v2955 = vsel %vm2914, %v2890, %v1584
    %v2956 = vsel %vm2914, %v2891, %v1586
    %v2957 = vsel %vm2914, %v2892, %v1588
    %v2958 = vsel %vm2914, %v2893, %v1590
    %v2959 = vsel %vm2914, %v2894, %v1592
    %v2960 = vsel %vm2914, %v2895, %v1594
    %v2961 = vsel %vm2914, %v2896, %v1596
    %v2962 = vsel %vm2914, %v2897, %v1598
    %v2963 = vsel %vm2914, %v2898, %v1600
    %v2964 = vsel %vm2914, %v2899, %v1602
    %v2965 = vsel %vm2914, %v2900, %v1604
    %v2966 = vsel %vm2914, %v2901, %v1606
    %v2967 = vsel %vm2914, %v2902, %v1608
    %v2968 = vsel %vm2914, %v2903, %v1610
    %v2969 = vsel %vm2914, %v2904, %v1612
    %v2970 = vsel %vm2914, %v2905, %v1614
    %v2971 = vsel %vm2914, %v2906, %v1616
    %v2972 = vsel %vm2914, %v2907, %v1618
    %v2973 = vsel %vm2914, %v2908, %v1620
    %v2974 = vsel %vm2914, %v2909, %v1622
    %v2975 = vsel %vm2914, %v2910, %v1624
    %v2976 = vsel %vm2914, %v2911, %v1626
    %v2977 = vsel %vm2914, %v2912, %v1628
    %v2978 = vsel %vm2914, %v2913, %v1630
    %vm2979 = vcmask 736256
    %v2980 = vsel %vm2979, %v2915, %v1760
    %v2981 = vsel %vm2979, %v2916, %v1762
    %v2982 = vsel %vm2979, %v2917, %v1764
    %v2983 = vsel %vm2979, %v2918, %v1766
    %v2984 = vsel %vm2979, %v2919, %v1768
    %v2985 = vsel %vm2979, %v2920, %v1770
    %v2986 = vsel %vm2979, %v2921, %v1772
    %v2987 = vsel %vm2979, %v2922, %v1774
    %v2988 = vsel %vm2979, %v2923, %v1776
    %v2989 = vsel %vm2979, %v2924, %v1778
    %v2990 = vsel %vm2979, %v2925, %v1780
    %v2991 = vsel %vm2979, %v2926, %v1782
    %v2992 = vsel %vm2979, %v2927, %v1784
    %v2993 = vsel %vm2979, %v2928, %v1786
    %v2994 = vsel %vm2979, %v2929, %v1788
    %v2995 = vsel %vm2979, %v2930, %v1790
    %v2996 = vsel %vm2979, %v2931, %v1792
    %v2997 = vsel %vm2979, %v2932, %v1794
    %v2998 = vsel %vm2979, %v2933, %v1796
    %v2999 = vsel %vm2979, %v2934, %v1798
    %v3000 = vsel %vm2979, %v2935, %v1800
    %v3001 = vsel %vm2979, %v2936, %v1802
    %v3002 = vsel %vm2979, %v2937, %v1804
    %v3003 = vsel %vm2979, %v2938, %v1806
    %v3004 = vsel %vm2979, %v2939, %v1808
    %v3005 = vsel %vm2979, %v2940, %v1810
    %v3006 = vsel %vm2979, %v2941, %v1812
    %v3007 = vsel %vm2979, %v2942, %v1814
    %v3008 = vsel %vm2979, %v2943, %v1816
    %v3009 = vsel %vm2979, %v2944, %v1818
    %v3010 = vsel %vm2979, %v2945, %v1820
    %v3011 = vsel %vm2979, %v2946, %v1822
    %v3012 = vsel %vm2979, %v2947, %v1824
    %v3013 = vsel %vm2979, %v2948, %v1826
    %v3014 = vsel %vm2979, %v2949, %v1828
    %v3015 = vsel %vm2979, %v2950, %v1830
    %v3016 = vsel %vm2979, %v2951, %v1832
    %v3017 = vsel %vm2979, %v2952, %v1834
    %v3018 = vsel %vm2979, %v2953, %v1836
    %v3019 = vsel %vm2979, %v2954, %v1838
    %v3020 = vsel %vm2979, %v2955, %v1840
    %v3021 = vsel %vm2979, %v2956, %v1842
    %v3022 = vsel %vm2979, %v2957, %v1844
    %v3023 = vsel %vm2979, %v2958, %v1846
    %v3024 = vsel %vm2979, %v2959, %v1848
    %v3025 = vsel %vm2979, %v2960, %v1850
    %v3026 = vsel %vm2979, %v2961, %v1852
    %v3027 = vsel %vm2979, %v2962, %v1854
    %v3028 = vsel %vm2979, %v2963, %v1856
    %v3029 = vsel %vm2979, %v2964, %v1858
    %v3030 = vsel %vm2979, %v2965, %v1860
    %v3031 = vsel %vm2979, %v2966, %v1862
    %v3032 = vsel %vm2979, %v2967, %v1864
    %v3033 = vsel %vm2979, %v2968, %v1866
    %v3034 = vsel %vm2979, %v2969, %v1868
    %v3035 = vsel %vm2979, %v2970, %v1870
    %v3036 = vsel %vm2979, %v2971, %v1872
    %v3037 = vsel %vm2979, %v2972, %v1874
    %v3038 = vsel %vm2979, %v2973, %v1876
    %v3039 = vsel %vm2979, %v2974, %v1878
    %v3040 = vsel %vm2979, %v2975, %v1880
    %v3041 = vsel %vm2979, %v2976, %v1882
    %v3042 = vsel %vm2979, %v2977, %v1884
    %v3043 = vsel %vm2979, %v2978, %v1886
    %vm3044 = vcmask 883712
    %v3045 = vsel %vm3044, %v2980, %v2016
    %v3046 = vsel %vm3044, %v2981, %v2018
    %v3047 = vsel %vm3044, %v2982, %v2020
    %v3048 = vsel %vm3044, %v2983, %v2022
    %v3049 = vsel %vm3044, %v2984, %v2024
    %v3050 = vsel %vm3044, %v2985, %v2026
    %v3051 = vsel %vm3044, %v2986, %v2028
    %v3052 = vsel %vm3044, %v2987, %v2030
    %v3053 = vsel %vm3044, %v2988, %v2032
    %v3054 = vsel %vm3044, %v2989, %v2034
    %v3055 = vsel %vm3044, %v2990, %v2036
    %v3056 = vsel %vm3044, %v2991, %v2038
    %v3057 = vsel %vm3044, %v2992, %v2040
    %v3058 = vsel %vm3044, %v2993, %v2042
    %v3059 = vsel %vm3044, %v2994, %v2044
    %v3060 = vsel %vm3044, %v2995, %v2046
    %v3061 = vsel %vm3044, %v2996, %v2048
    %v3062 = vsel %vm3044, %v2997, %v2050
    %v3063 = vsel %vm3044, %v2998, %v2052
    %v3064 = vsel %vm3044, %v2999, %v2054
    %v3065 = vsel %vm3044, %v3000, %v2056
    %v3066 = vsel %vm3044, %v3001, %v2058
    %v3067 = vsel %vm3044, %v3002, %v2060
    %v3068 = vsel %vm3044, %v3003, %v2062
    %v3069 = vsel %vm3044, %v3004, %v2064
    %v3070 = vsel %vm3044, %v3005, %v2066
    %v3071 = vsel %vm3044, %v3006, %v2068
    %v3072 = vsel %vm3044, %v3007, %v2070
    %v3073 = vsel %vm3044, %v3008, %v2072
    %v3074 = vsel %vm3044, %v3009, %v2074
    %v3075 = vsel %vm3044, %v3010, %v2076
    %v3076 = vsel %vm3044, %v3011, %v2078
    %v3077 = vsel %vm3044, %v3012, %v2080
    %v3078 = vsel %vm3044, %v3013, %v2082
    %v3079 = vsel %vm3044, %v3014, %v2084
    %v3080 = vsel %vm3044, %v3015, %v2086
    %v3081 = vsel %vm3044, %v3016, %v2088
    %v3082 = vsel %vm3044, %v3017, %v2090
    %v3083 = vsel %vm3044, %v3018, %v2092
    %v3084 = vsel %vm3044, %v3019, %v2094
    %v3085 = vsel %vm3044, %v3020, %v2096
    %v3086 = vsel %vm3044, %v3021, %v2098
    %v3087 = vsel %vm3044, %v3022, %v2100
    %v3088 = vsel %vm3044, %v3023, %v2102
    %v3089 = vsel %vm3044, %v3024, %v2104
    %v3090 = vsel %vm3044, %v3025, %v2106
    %v3091 = vsel %vm3044, %v3026, %v2108
    %v3092 = vsel %vm3044, %v3027, %v2110
    %v3093 = vsel %vm3044, %v3028, %v2112
    %v3094 = vsel %vm3044, %v3029, %v2114
    %v3095 = vsel %vm3044, %v3030, %v2116
    %v3096 = vsel %vm3044, %v3031, %v2118
    %v3097 = vsel %vm3044, %v3032, %v2120
    %v3098 = vsel %vm3044, %v3033, %v2122
    %v3099 = vsel %vm3044, %v3034, %v2124
    %v3100 = vsel %vm3044, %v3035, %v2126
    %v3101 = vsel %vm3044, %v3036, %v2128
    %v3102 = vsel %vm3044, %v3037, %v2130
    %v3103 = vsel %vm3044, %v3038, %v2132
    %v3104 = vsel %vm3044, %v3039, %v2134
    %v3105 = vsel %vm3044, %v3040, %v2136
    %v3106 = vsel %vm3044, %v3041, %v2138
    %v3107 = vsel %vm3044, %v3042, %v2140
    %v3108 = vsel %vm3044, %v3043, %v2142
    %vm3109 = vcmask 1031168
    %v3110 = vsel %vm3109, %v3045, %v2272
    %v3111 = vsel %vm3109, %v3046, %v2274
    %v3112 = vsel %vm3109, %v3047, %v2276
    %v3113 = vsel %vm3109, %v3048, %v2278
    %v3114 = vsel %vm3109, %v3049, %v2280
    %v3115 = vsel %vm3109, %v3050, %v2282
    %v3116 = vsel %vm3109, %v3051, %v2284
    %v3117 = vsel %vm3109, %v3052, %v2286
    %v3118 = vsel %vm3109, %v3053, %v2288
    %v3119 = vsel %vm3109, %v3054, %v2290
    %v3120 = vsel %vm3109, %v3055, %v2292
    %v3121 = vsel %vm3109, %v3056, %v2294
    %v3122 = vsel %vm3109, %v3057, %v2296
    %v3123 = vsel %vm3109, %v3058, %v2298
    %v3124 = vsel %vm3109, %v3059, %v2300
    %v3125 = vsel %vm3109, %v3060, %v2302
    %v3126 = vsel %vm3109, %v3061, %v2304
    %v3127 = vsel %vm3109, %v3062, %v2306
    %v3128 = vsel %vm3109, %v3063, %v2308
    %v3129 = vsel %vm3109, %v3064, %v2310
    %v3130 = vsel %vm3109, %v3065, %v2312
    %v3131 = vsel %vm3109, %v3066, %v2314
    %v3132 = vsel %vm3109, %v3067, %v2316
    %v3133 = vsel %vm3109, %v3068, %v2318
    %v3134 = vsel %vm3109, %v3069, %v2320
    %v3135 = vsel %vm3109, %v3070, %v2322
    %v3136 = vsel %vm3109, %v3071, %v2324
    %v3137 = vsel %vm3109, %v3072, %v2326
    %v3138 = vsel %vm3109, %v3073, %v2328
    %v3139 = vsel %vm3109, %v3074, %v2330
    %v3140 = vsel %vm3109, %v3075, %v2332
    %v3141 = vsel %vm3109, %v3076, %v2334
    %v3142 = vsel %vm3109, %v3077, %v2336
    %v3143 = vsel %vm3109, %v3078, %v2338
    %v3144 = vsel %vm3109, %v3079, %v2340
    %v3145 = vsel %vm3109, %v3080, %v2342
    %v3146 = vsel %vm3109, %v3081, %v2344
    %v3147 = vsel %vm3109, %v3082, %v2346
    %v3148 = vsel %vm3109, %v3083, %v2348
    %v3149 = vsel %vm3109, %v3084, %v2350
    %v3150 = vsel %vm3109, %v3085, %v2352
    %v3151 = vsel %vm3109, %v3086, %v2354
    %v3152 = vsel %vm3109, %v3087, %v2356
    %v3153 = vsel %vm3109, %v3088, %v2358
    %v3154 = vsel %vm3109, %v3089, %v2360
    %v3155 = vsel %vm3109, %v3090, %v2362
    %v3156 = vsel %vm3109, %v3091, %v2364
    %v3157 = vsel %vm3109, %v3092, %v2366
    %v3158 = vsel %vm3109, %v3093, %v2368
    %v3159 = vsel %vm3109, %v3094, %v2370
    %v3160 = vsel %vm3109, %v3095, %v2372
    %v3161 = vsel %vm3109, %v3096, %v2374
    %v3162 = vsel %vm3109, %v3097, %v2376
    %v3163 = vsel %vm3109, %v3098, %v2378
    %v3164 = vsel %vm3109, %v3099, %v2380
    %v3165 = vsel %vm3109, %v3100, %v2382
    %v3166 = vsel %vm3109, %v3101, %v2384
    %v3167 = vsel %vm3109, %v3102, %v2386
    %v3168 = vsel %vm3109, %v3103, %v2388
    %v3169 = vsel %vm3109, %v3104, %v2390
    %v3170 = vsel %vm3109, %v3105, %v2392
    %v3171 = vsel %vm3109, %v3106, %v2394
    %v3172 = vsel %vm3109, %v3107, %v2396
    %v3173 = vsel %vm3109, %v3108, %v2398
    %vm3174 = vcmask 130048
    %v3175 = vsel %vm3174, %v2272, %v2528
    %v3176 = vsel %vm3174, %v2274, %v2530
    %v3177 = vsel %vm3174, %v2276, %v2532
    %v3178 = vsel %vm3174, %v2278, %v2534
    %v3179 = vsel %vm3174, %v2280, %v2536
    %v3180 = vsel %vm3174, %v2282, %v2538
    %v3181 = vsel %vm3174, %v2284, %v2540
    %v3182 = vsel %vm3174, %v2286, %v2542
    %v3183 = vsel %vm3174, %v2288, %v2544
    %v3184 = vsel %vm3174, %v2290, %v2546
    %v3185 = vsel %vm3174, %v2292, %v2548
    %v3186 = vsel %vm3174, %v2294, %v2550
    %v3187 = vsel %vm3174, %v2296, %v2552
    %v3188 = vsel %vm3174, %v2298, %v2554
    %v3189 = vsel %vm3174, %v2300, %v2556
    %v3190 = vsel %vm3174, %v2302, %v2558
    %v3191 = vsel %vm3174, %v2304, %v2560
    %v3192 = vsel %vm3174, %v2306, %v2562
    %v3193 = vsel %vm3174, %v2308, %v2564
    %v3194 = vsel %vm3174, %v2310, %v2566
    %v3195 = vsel %vm3174, %v2312, %v2568
    %v3196 = vsel %vm3174, %v2314, %v2570
    %v3197 = vsel %vm3174, %v2316, %v2572
    %v3198 = vsel %vm3174, %v2318, %v2574
    %v3199 = vsel %vm3174, %v2320, %v2576
    %v3200 = vsel %vm3174, %v2322, %v2578
    %v3201 = vsel %vm3174, %v2324, %v2580
    %v3202 = vsel %vm3174, %v2326, %v2582
    %v3203 = vsel %vm3174, %v2328, %v2584
    %v3204 = vsel %vm3174, %v2330, %v2586
    %v3205 = vsel %vm3174, %v2332, %v2588
    %v3206 = vsel %vm3174, %v2334, %v2590
    %v3207 = vsel %vm3174, %v2336, %v2592
    %v3208 = vsel %vm3174, %v2338, %v2594
    %v3209 = vsel %vm3174, %v2340, %v2596
    %v3210 = vsel %vm3174, %v2342, %v2598
    %v3211 = vsel %vm3174, %v2344, %v2600
    %v3212 = vsel %vm3174, %v2346, %v2602
    %v3213 = vsel %vm3174, %v2348, %v2604
    %v3214 = vsel %vm3174, %v2350, %v2606
    %v3215 = vsel %vm3174, %v2352, %v2608
    %v3216 = vsel %vm3174, %v2354, %v2610
    %v3217 = vsel %vm3174, %v2356, %v2612
    %v3218 = vsel %vm3174, %v2358, %v2614
    %v3219 = vsel %vm3174, %v2360, %v2616
    %v3220 = vsel %vm3174, %v2362, %v2618
    %v3221 = vsel %vm3174, %v2364, %v2620
    %v3222 = vsel %vm3174, %v2366, %v2622
    %v3223 = vsel %vm3174, %v2368, %v2624
    %v3224 = vsel %vm3174, %v2370, %v2626
    %v3225 = vsel %vm3174, %v2372, %v2628
    %v3226 = vsel %vm3174, %v2374, %v2630
    %v3227 = vsel %vm3174, %v2376, %v2632
    %v3228 = vsel %vm3174, %v2378, %v2634
    %v3229 = vsel %vm3174, %v2380, %v2636
    %v3230 = vsel %vm3174, %v2382, %v2638
    %v3231 = vsel %vm3174, %v2384, %v2640
    %v3232 = vsel %vm3174, %v2386, %v2642
    %v3233 = vsel %vm3174, %v2388, %v2644
    %v3234 = vsel %vm3174, %v2390, %v2646
    %v3235 = vsel %vm3174, %v2392, %v2648
    %v3236 = vsel %vm3174, %v2394, %v2650
    %v3237 = vsel %vm3174, %v2396, %v2652
    %v3238 = vsel %vm3174, %v2398, %v2654
    %v3239 = vld [vmem:[%s1] sm:$0xff]
    %v3240 = vld [vmem:[%s1 + $0x8] sm:$0xff]
    %v3241 = vld [vmem:[%s1 + $0x10] sm:$0xff]
    %v3242 = vld [vmem:[%s1 + $0x18] sm:$0xff]
    %v3243 = vld [vmem:[%s1 + $0x20] sm:$0xff]
    %v3244 = vld [vmem:[%s1 + $0x28] sm:$0xff]
    %v3245 = vld [vmem:[%s1 + $0x30] sm:$0xff]
    %v3246 = vld [vmem:[%s1 + $0x38] sm:$0xff]
    %v3247 = vld [vmem:[%s1 + $0x40] sm:$0xff]
    %v3248 = vld [vmem:[%s1 + $0x48] sm:$0xff]
    %v3249 = vld [vmem:[%s1 + $0x50] sm:$0xff]
    %v3250 = vld [vmem:[%s1 + $0x58] sm:$0xff]
    %v3251 = vld [vmem:[%s1 + $0x60] sm:$0xff]
    %v3252 = vld [vmem:[%s1 + $0x68] sm:$0xff]
    %v3253 = vld [vmem:[%s1 + $0x70] sm:$0xff]
    %v3254 = vld [vmem:[%s1 + $0x78] sm:$0xff]
    %v3255 = vld [vmem:[%s1 + $0x80] sm:$0xff]
    %v3256 = vld [vmem:[%s1 + $0x88] sm:$0xff]
    %v3257 = vld [vmem:[%s1 + $0x90] sm:$0xff]
    %v3258 = vld [vmem:[%s1 + $0x98] sm:$0xff]
    %v3259 = vld [vmem:[%s1 + $0xa0] sm:$0x3]
    %v3260 = vld [vmem:[#allocation3] sm:$0x1]
    %v3262 = vlaneseq
    %v3263 = vshrl.u32 %v3262, 7
    %v3264 = vsub.s32 0, %v3263
    %v3265 = vrot.slane %v3260, %v3264
    %vm3267 = vcmask 277504
    %v3269 = vsel %vm3267, %v3175, 0
    %v3272 = vsel %vm3267, %v3176, 0
    %v3275 = vsel %vm3267, %v3177, 0
    %v3278 = vsel %vm3267, %v3178, 0
    %v3281 = vsel %vm3267, %v3179, 0
    %v3284 = vsel %vm3267, %v3180, 0
    %v3287 = vsel %vm3267, %v3181, 0
    %v3290 = vsel %vm3267, %v3182, 0
    %v3293 = vsel %vm3267, %v3183, 0
    %v3296 = vsel %vm3267, %v3184, 0
    %v3299 = vsel %vm3267, %v3185, 0
    %v3302 = vsel %vm3267, %v3186, 0
    %v3305 = vsel %vm3267, %v3187, 0
    %v3308 = vsel %vm3267, %v3188, 0
    %v3311 = vsel %vm3267, %v3189, 0
    %v3314 = vsel %vm3267, %v3190, 0
    %v3317 = vsel %vm3267, %v3191, 0
    %v3320 = vsel %vm3267, %v3192, 0
    %v3323 = vsel %vm3267, %v3193, 0
    %v3326 = vsel %vm3267, %v3194, 0
    %v3329 = vsel %vm3267, %v3195, 0
    %v3332 = vsel %vm3267, %v3196, 0
    %v3335 = vsel %vm3267, %v3197, 0
    %v3338 = vsel %vm3267, %v3198, 0
    %v3341 = vsel %vm3267, %v3199, 0
    %v3344 = vsel %vm3267, %v3200, 0
    %v3347 = vsel %vm3267, %v3201, 0
    %v3350 = vsel %vm3267, %v3202, 0
    %v3353 = vsel %vm3267, %v3203, 0
    %v3356 = vsel %vm3267, %v3204, 0
    %v3359 = vsel %vm3267, %v3205, 0
    %v3362 = vsel %vm3267, %v3206, 0
    %v3365 = vsel %vm3267, %v3207, 0
    %v3368 = vsel %vm3267, %v3208, 0
    %v3371 = vsel %vm3267, %v3209, 0
    %v3374 = vsel %vm3267, %v3210, 0
    %v3377 = vsel %vm3267, %v3211, 0
    %v3380 = vsel %vm3267, %v3212, 0
    %v3383 = vsel %vm3267, %v3213, 0
    %v3386 = vsel %vm3267, %v3214, 0
    %v3389 = vsel %vm3267, %v3215, 0
    %v3392 = vsel %vm3267, %v3216, 0
    %v3395 = vsel %vm3267, %v3217, 0
    %v3398 = vsel %vm3267, %v3218, 0
    %v3401 = vsel %vm3267, %v3219, 0
    %v3404 = vsel %vm3267, %v3220, 0
    %v3407 = vsel %vm3267, %v3221, 0
    %v3410 = vsel %vm3267, %v3222, 0
    %v3413 = vsel %vm3267, %v3223, 0
    %v3416 = vsel %vm3267, %v3224, 0
    %v3419 = vsel %vm3267, %v3225, 0
    %v3422 = vsel %vm3267, %v3226, 0
    %v3425 = vsel %vm3267, %v3227, 0
    %v3428 = vsel %vm3267, %v3228, 0
    %v3431 = vsel %vm3267, %v3229, 0
    %v3434 = vsel %vm3267, %v3230, 0
    %v3437 = vsel %vm3267, %v3231, 0
    %v3440 = vsel %vm3267, %v3232, 0
    %v3443 = vsel %vm3267, %v3233, 0
    %v3446 = vsel %vm3267, %v3234, 0
    %v3449 = vsel %vm3267, %v3235, 0
    %v3452 = vsel %vm3267, %v3236, 0
    %v3455 = vsel %vm3267, %v3237, 0
    %v3458 = vsel %vm3267, %v3238, 0
    %vm3460 = vcmask 1041408
    %v3462 = vsel %vm3460, %v3259, 0
    %3464 = vmatprep.subr.mxu0 0.0
    %3465 = vmatpush1.msra.mxu0 %v3239
    %3466 = vmatprep.subr.mxu0 0.0
    %3467 = vmatpush1.msra.mxu0 %v3240
    %3468 = vmatprep.subr.mxu0 0.0
    %3469 = vmatpush1.msra.mxu0 %v3241
    %3470 = vmatprep.subr.mxu0 0.0
    %3471 = vmatpush1.msra.mxu0 %v3242
    %3472 = vmatprep.subr.mxu0 0.0
    %3473 = vmatpush1.msra.mxu0 %v3243
    %3474 = vmatprep.subr.mxu0 0.0
    %3475 = vmatpush1.msra.mxu0 %v3244
    %3476 = vmatprep.subr.mxu0 0.0
    %3477 = vmatpush1.msra.mxu0 %v3245
    %3478 = vmatprep.subr.mxu0 0.0
    %3479 = vmatpush1.msra.mxu0 %v3246
    %3480 = vmatprep.subr.mxu0 0.0
    %3481 = vmatpush1.msra.mxu0 %v3247
    %3482 = vmatprep.subr.mxu0 0.0
    %3483 = vmatpush1.msra.mxu0 %v3248
    %3484 = vmatprep.subr.mxu0 0.0
    %3485 = vmatpush1.msra.mxu0 %v3249
    %3486 = vmatprep.subr.mxu0 0.0
    %3487 = vmatpush1.msra.mxu0 %v3250
    %3488 = vmatprep.subr.mxu0 0.0
    %3489 = vmatpush1.msra.mxu0 %v3251
    %3490 = vmatprep.subr.mxu0 0.0
    %3491 = vmatpush1.msra.mxu0 %v3252
    %3492 = vmatprep.subr.mxu0 0.0
    %3493 = vmatpush1.msra.mxu0 %v3253
    %3494 = vmatprep.subr.mxu0 0.0
    %3495 = vmatpush1.msra.mxu0 %v3254
    %3496 = vmatprep.subr.mxu0 0.0
    %3497 = vmatpush1.msra.mxu0 %v3255
    %3498 = vmatprep.subr.mxu0 0.0
    %3499 = vmatpush1.msra.mxu0 %v3256
    %3500 = vmatprep.subr.mxu0 0.0
    %3501 = vmatpush1.msra.mxu0 %v3257
    %3502 = vmatprep.subr.mxu0 0.0
    %3503 = vmatpush1.msra.mxu0 %v3258
    %3504 = vmatprep.subr.mxu0 0.0
    %3505 = vmatpush1.msra.mxu0 %v3462
    %3506 = vmatprep.subr.mxu0 0.0
    %3507 = vmatpush1.msra.mxu0 0.0
    %3508 = vmatprep.subr.mxu0 0.0
    %3509 = vmatpush1.msra.mxu0 0.0
    %3510 = vmatprep.subr.mxu0 0.0
    %3511 = vmatpush1.msra.mxu0 0.0
    %3512 = vmatprep.subr.mxu0 0.0
    %3513 = vmatpush1.msra.mxu0 0.0
    %3514 = vmatprep.subr.mxu0 0.0
    %3515 = vmatpush1.msra.mxu0 0.0
    %3516 = vmatprep.subr.mxu0 0.0
    %3517 = vmatpush1.msra.mxu0 0.0
    %3518 = vmatprep.subr.mxu0 0.0
    %3519 = vmatpush1.msra.mxu0 0.0
    %3520 = vmatprep.subr.mxu0 0.0
    %3521 = vmatpush1.msra.mxu0 0.0
    %3522 = vmatprep.subr.mxu0 0.0
    %3523 = vmatpush1.msra.mxu0 0.0
    %3524 = vmatprep.subr.mxu0 0.0
    %3525 = vmatpush1.msra.mxu0 0.0
    %3526 = vmatprep.subr.mxu0 0.0
    %3527 = vmatpush1.msra.mxu0 0.0
    %3528 = vmatprep.mubr.f32.mxu0 %v3269
    %3529 = vmatmul.mubr.f32.gmra.mrb[0].mxu0 %v3110
    %v3530 = vpop.f32.mrb[0].mxu0
    %v3531 = vadd.f32 %v3265, %v3530
    %v3532 = vpop.f32.mrb[0].mxu0
    %3533 = vmatprep.mubr.f32.mxu0 %v3272
    %3534 = vmatmul.mubr.f32.gmra.mrb[0].mxu0 %v3111
    %v3535 = vpop.f32.mrb[0].mxu0
    %v3536 = vadd.f32 %v3265, %v3535
    %v3537 = vpop.f32.mrb[0].mxu0
    %3538 = vmatprep.mubr.f32.mxu0 %v3275
    %3539 = vmatmul.mubr.f32.gmra.mrb[0].mxu0 %v3112
    %v3540 = vpop.f32.mrb[0].mxu0
    %v3541 = vadd.f32 %v3265, %v3540
    %v3542 = vpop.f32.mrb[0].mxu0
    %3543 = vmatprep.mubr.f32.mxu0 %v3278
    %3544 = vmatmul.mubr.f32.gmra.mrb[0].mxu0 %v3113
    %v3545 = vpop.f32.mrb[0].mxu0
    %v3546 = vadd.f32 %v3265, %v3545
    %v3547 = vpop.f32.mrb[0].mxu0
    %3548 = vmatprep.mubr.f32.mxu0 %v3281
    %3549 = vmatmul.mubr.f32.gmra.mrb[0].mxu0 %v3114
    %v3550 = vpop.f32.mrb[0].mxu0
    %v3551 = vadd.f32 %v3265, %v3550
    %v3552 = vpop.f32.mrb[0].mxu0
    %3553 = vmatprep.mubr.f32.mxu0 %v3284
    %3554 = vmatmul.mubr.f32.gmra.mrb[0].mxu0 %v3115
    %v3555 = vpop.f32.mrb[0].mxu0
    %v3556 = vadd.f32 %v3265, %v3555
    %v3557 = vpop.f32.mrb[0].mxu0
    %3558 = vmatprep.mubr.f32.mxu0 %v3287
    %3559 = vmatmul.mubr.f32.gmra.mrb[0].mxu0 %v3116
    %v3560 = vpop.f32.mrb[0].mxu0
    %v3561 = vadd.f32 %v3265, %v3560
    %v3562 = vpop.f32.mrb[0].mxu0
    %3563 = vmatprep.mubr.f32.mxu0 %v3290
    %3564 = vmatmul.mubr.f32.gmra.mrb[0].mxu0 %v3117
    %v3565 = vpop.f32.mrb[0].mxu0
    %v3566 = vadd.f32 %v3265, %v3565
    %v3567 = vpop.f32.mrb[0].mxu0
    %3568 = vmatprep.mubr.f32.mxu0 %v3293
    %3569 = vmatmul.mubr.f32.gmra.mrb[0].mxu0 %v3118
    %v3570 = vpop.f32.mrb[0].mxu0
    %v3571 = vadd.f32 %v3265, %v3570
    %v3572 = vpop.f32.mrb[0].mxu0
    %3573 = vmatprep.mubr.f32.mxu0 %v3296
    %3574 = vmatmul.mubr.f32.gmra.mrb[0].mxu0 %v3119
    %v3575 = vpop.f32.mrb[0].mxu0
    %v3576 = vadd.f32 %v3265, %v3575
    %v3577 = vpop.f32.mrb[0].mxu0
    %3578 = vmatprep.mubr.f32.mxu0 %v3299
    %3579 = vmatmul.mubr.f32.gmra.mrb[0].mxu0 %v3120
    %v3580 = vpop.f32.mrb[0].mxu0
    %v3581 = vadd.f32 %v3265, %v3580
    %v3582 = vpop.f32.mrb[0].mxu0
    %3583 = vmatprep.mubr.f32.mxu0 %v3302
    %3584 = vmatmul.mubr.f32.gmra.mrb[0].mxu0 %v3121
    %v3585 = vpop.f32.mrb[0].mxu0
    %v3586 = vadd.f32 %v3265, %v3585
    %v3587 = vpop.f32.mrb[0].mxu0
    %3588 = vmatprep.mubr.f32.mxu0 %v3305
    %3589 = vmatmul.mubr.f32.gmra.mrb[0].mxu0 %v3122
    %v3590 = vpop.f32.mrb[0].mxu0
    %v3591 = vadd.f32 %v3265, %v3590
    %v3592 = vpop.f32.mrb[0].mxu0
    %3593 = vmatprep.mubr.f32.mxu0 %v3308
    %3594 = vmatmul.mubr.f32.gmra.mrb[0].mxu0 %v3123
    %v3595 = vpop.f32.mrb[0].mxu0
    %v3596 = vadd.f32 %v3265, %v3595
    %v3597 = vpop.f32.mrb[0].mxu0
    %3598 = vmatprep.mubr.f32.mxu0 %v3311
    %3599 = vmatmul.mubr.f32.gmra.mrb[0].mxu0 %v3124
    %v3600 = vpop.f32.mrb[0].mxu0
    %v3601 = vadd.f32 %v3265, %v3600
    %v3602 = vpop.f32.mrb[0].mxu0
    %3603 = vmatprep.mubr.f32.mxu0 %v3314
    %3604 = vmatmul.mubr.f32.gmra.mrb[0].mxu0 %v3125
    %v3605 = vpop.f32.mrb[0].mxu0
    %v3606 = vadd.f32 %v3265, %v3605
    %v3607 = vpop.f32.mrb[0].mxu0
    %3608 = vmatprep.mubr.f32.mxu0 %v3317
    %3609 = vmatmul.mubr.f32.gmra.mrb[0].mxu0 %v3126
    %v3610 = vpop.f32.mrb[0].mxu0
    %v3611 = vadd.f32 %v3265, %v3610
    %v3612 = vpop.f32.mrb[0].mxu0
    %3613 = vmatprep.mubr.f32.mxu0 %v3320
    %3614 = vmatmul.mubr.f32.gmra.mrb[0].mxu0 %v3127
    %v3615 = vpop.f32.mrb[0].mxu0
    %v3616 = vadd.f32 %v3265, %v3615
    %v3617 = vpop.f32.mrb[0].mxu0
    %3618 = vmatprep.mubr.f32.mxu0 %v3323
    %3619 = vmatmul.mubr.f32.gmra.mrb[0].mxu0 %v3128
    %v3620 = vpop.f32.mrb[0].mxu0
    %v3621 = vadd.f32 %v3265, %v3620
    %v3622 = vpop.f32.mrb[0].mxu0
    %3623 = vmatprep.mubr.f32.mxu0 %v3326
    %3624 = vmatmul.mubr.f32.gmra.mrb[0].mxu0 %v3129
    %v3625 = vpop.f32.mrb[0].mxu0
    %v3626 = vadd.f32 %v3265, %v3625
    %v3627 = vpop.f32.mrb[0].mxu0
    %3628 = vmatprep.mubr.f32.mxu0 %v3329
    %3629 = vmatmul.mubr.f32.gmra.mrb[0].mxu0 %v3130
    %v3630 = vpop.f32.mrb[0].mxu0
    %v3631 = vadd.f32 %v3265, %v3630
    %v3632 = vpop.f32.mrb[0].mxu0
    %3633 = vmatprep.mubr.f32.mxu0 %v3332
    %3634 = vmatmul.mubr.f32.gmra.mrb[0].mxu0 %v3131
    %v3635 = vpop.f32.mrb[0].mxu0
    %v3636 = vadd.f32 %v3265, %v3635
    %v3637 = vpop.f32.mrb[0].mxu0
    %3638 = vmatprep.mubr.f32.mxu0 %v3335
    %3639 = vmatmul.mubr.f32.gmra.mrb[0].mxu0 %v3132
    %v3640 = vpop.f32.mrb[0].mxu0
    %v3641 = vadd.f32 %v3265, %v3640
    %v3642 = vpop.f32.mrb[0].mxu0
    %3643 = vmatprep.mubr.f32.mxu0 %v3338
    %3644 = vmatmul.mubr.f32.gmra.mrb[0].mxu0 %v3133
    %v3645 = vpop.f32.mrb[0].mxu0
    %v3646 = vadd.f32 %v3265, %v3645
    %v3647 = vpop.f32.mrb[0].mxu0
    %3648 = vmatprep.mubr.f32.mxu0 %v3341
    %3649 = vmatmul.mubr.f32.gmra.mrb[0].mxu0 %v3134
    %v3650 = vpop.f32.mrb[0].mxu0
    %v3651 = vadd.f32 %v3265, %v3650
    %v3652 = vpop.f32.mrb[0].mxu0
    %3653 = vmatprep.mubr.f32.mxu0 %v3344
    %3654 = vmatmul.mubr.f32.gmra.mrb[0].mxu0 %v3135
    %v3655 = vpop.f32.mrb[0].mxu0
    %v3656 = vadd.f32 %v3265, %v3655
    %v3657 = vpop.f32.mrb[0].mxu0
    %3658 = vmatprep.mubr.f32.mxu0 %v3347
    %3659 = vmatmul.mubr.f32.gmra.mrb[0].mxu0 %v3136
    %v3660 = vpop.f32.mrb[0].mxu0
    %v3661 = vadd.f32 %v3265, %v3660
    %v3662 = vpop.f32.mrb[0].mxu0
    %3663 = vmatprep.mubr.f32.mxu0 %v3350
    %3664 = vmatmul.mubr.f32.gmra.mrb[0].mxu0 %v3137
    %v3665 = vpop.f32.mrb[0].mxu0
    %v3666 = vadd.f32 %v3265, %v3665
    %v3667 = vpop.f32.mrb[0].mxu0
    %3668 = vmatprep.mubr.f32.mxu0 %v3353
    %3669 = vmatmul.mubr.f32.gmra.mrb[0].mxu0 %v3138
    %v3670 = vpop.f32.mrb[0].mxu0
    %v3671 = vadd.f32 %v3265, %v3670
    %v3672 = vpop.f32.mrb[0].mxu0
    %3673 = vmatprep.mubr.f32.mxu0 %v3356
    %3674 = vmatmul.mubr.f32.gmra.mrb[0].mxu0 %v3139
    %v3675 = vpop.f32.mrb[0].mxu0
    %v3676 = vadd.f32 %v3265, %v3675
    %v3677 = vpop.f32.mrb[0].mxu0
    %3678 = vmatprep.mubr.f32.mxu0 %v3359
    %3679 = vmatmul.mubr.f32.gmra.mrb[0].mxu0 %v3140
    %v3680 = vpop.f32.mrb[0].mxu0
    %v3681 = vadd.f32 %v3265, %v3680
    %v3682 = vpop.f32.mrb[0].mxu0
    %3683 = vmatprep.mubr.f32.mxu0 %v3362
    %3684 = vmatmul.mubr.f32.gmra.mrb[0].mxu0 %v3141
    %v3685 = vpop.f32.mrb[0].mxu0
    %v3686 = vadd.f32 %v3265, %v3685
    %v3687 = vpop.f32.mrb[0].mxu0
    %3688 = vmatprep.mubr.f32.mxu0 %v3365
    %3689 = vmatmul.mubr.f32.gmra.mrb[0].mxu0 %v3142
    %v3690 = vpop.f32.mrb[0].mxu0
    %v3691 = vadd.f32 %v3265, %v3690
    %v3692 = vpop.f32.mrb[0].mxu0
    %3693 = vmatprep.mubr.f32.mxu0 %v3368
    %3694 = vmatmul.mubr.f32.gmra.mrb[0].mxu0 %v3143
    %v3695 = vpop.f32.mrb[0].mxu0
    %v3696 = vadd.f32 %v3265, %v3695
    %v3697 = vpop.f32.mrb[0].mxu0
    %3698 = vmatprep.mubr.f32.mxu0 %v3371
    %3699 = vmatmul.mubr.f32.gmra.mrb[0].mxu0 %v3144
    %v3700 = vpop.f32.mrb[0].mxu0
    %v3701 = vadd.f32 %v3265, %v3700
    %v3702 = vpop.f32.mrb[0].mxu0
    %3703 = vmatprep.mubr.f32.mxu0 %v3374
    %3704 = vmatmul.mubr.f32.gmra.mrb[0].mxu0 %v3145
    %v3705 = vpop.f32.mrb[0].mxu0
    %v3706 = vadd.f32 %v3265, %v3705
    %v3707 = vpop.f32.mrb[0].mxu0
    %3708 = vmatprep.mubr.f32.mxu0 %v3377
    %3709 = vmatmul.mubr.f32.gmra.mrb[0].mxu0 %v3146
    %v3710 = vpop.f32.mrb[0].mxu0
    %v3711 = vadd.f32 %v3265, %v3710
    %v3712 = vpop.f32.mrb[0].mxu0
    %3713 = vmatprep.mubr.f32.mxu0 %v3380
    %3714 = vmatmul.mubr.f32.gmra.mrb[0].mxu0 %v3147
    %v3715 = vpop.f32.mrb[0].mxu0
    %v3716 = vadd.f32 %v3265, %v3715
    %v3717 = vpop.f32.mrb[0].mxu0
    %3718 = vmatprep.mubr.f32.mxu0 %v3383
    %3719 = vmatmul.mubr.f32.gmra.mrb[0].mxu0 %v3148
    %v3720 = vpop.f32.mrb[0].mxu0
    %v3721 = vadd.f32 %v3265, %v3720
    %v3722 = vpop.f32.mrb[0].mxu0
    %3723 = vmatprep.mubr.f32.mxu0 %v3386
    %3724 = vmatmul.mubr.f32.gmra.mrb[0].mxu0 %v3149
    %v3725 = vpop.f32.mrb[0].mxu0
    %v3726 = vadd.f32 %v3265, %v3725
    %v3727 = vpop.f32.mrb[0].mxu0
    %3728 = vmatprep.mubr.f32.mxu0 %v3389
    %3729 = vmatmul.mubr.f32.gmra.mrb[0].mxu0 %v3150
    %v3730 = vpop.f32.mrb[0].mxu0
    %v3731 = vadd.f32 %v3265, %v3730
    %v3732 = vpop.f32.mrb[0].mxu0
    %3733 = vmatprep.mubr.f32.mxu0 %v3392
    %3734 = vmatmul.mubr.f32.gmra.mrb[0].mxu0 %v3151
    %v3735 = vpop.f32.mrb[0].mxu0
    %v3736 = vadd.f32 %v3265, %v3735
    %v3737 = vpop.f32.mrb[0].mxu0
    %3738 = vmatprep.mubr.f32.mxu0 %v3395
    %3739 = vmatmul.mubr.f32.gmra.mrb[0].mxu0 %v3152
    %v3740 = vpop.f32.mrb[0].mxu0
    %v3741 = vadd.f32 %v3265, %v3740
    %v3742 = vpop.f32.mrb[0].mxu0
    %3743 = vmatprep.mubr.f32.mxu0 %v3398
    %3744 = vmatmul.mubr.f32.gmra.mrb[0].mxu0 %v3153
    %v3745 = vpop.f32.mrb[0].mxu0
    %v3746 = vadd.f32 %v3265, %v3745
    %v3747 = vpop.f32.mrb[0].mxu0
    %3748 = vmatprep.mubr.f32.mxu0 %v3401
    %3749 = vmatmul.mubr.f32.gmra.mrb[0].mxu0 %v3154
    %v3750 = vpop.f32.mrb[0].mxu0
    %v3751 = vadd.f32 %v3265, %v3750
    %v3752 = vpop.f32.mrb[0].mxu0
    %3753 = vmatprep.mubr.f32.mxu0 %v3404
    %3754 = vmatmul.mubr.f32.gmra.mrb[0].mxu0 %v3155
    %v3755 = vpop.f32.mrb[0].mxu0
    %v3756 = vadd.f32 %v3265, %v3755
    %v3757 = vpop.f32.mrb[0].mxu0
    %3758 = vmatprep.mubr.f32.mxu0 %v3407
    %3759 = vmatmul.mubr.f32.gmra.mrb[0].mxu0 %v3156
    %v3760 = vpop.f32.mrb[0].mxu0
    %v3761 = vadd.f32 %v3265, %v3760
    %v3762 = vpop.f32.mrb[0].mxu0
    %3763 = vmatprep.mubr.f32.mxu0 %v3410
    %3764 = vmatmul.mubr.f32.gmra.mrb[0].mxu0 %v3157
    %v3765 = vpop.f32.mrb[0].mxu0
    %v3766 = vadd.f32 %v3265, %v3765
    %v3767 = vpop.f32.mrb[0].mxu0
    %3768 = vmatprep.mubr.f32.mxu0 %v3413
    %3769 = vmatmul.mubr.f32.gmra.mrb[0].mxu0 %v3158
    %v3770 = vpop.f32.mrb[0].mxu0
    %v3771 = vadd.f32 %v3265, %v3770
    %v3772 = vpop.f32.mrb[0].mxu0
    %3773 = vmatprep.mubr.f32.mxu0 %v3416
    %3774 = vmatmul.mubr.f32.gmra.mrb[0].mxu0 %v3159
    %v3775 = vpop.f32.mrb[0].mxu0
    %v3776 = vadd.f32 %v3265, %v3775
    %v3777 = vpop.f32.mrb[0].mxu0
    %3778 = vmatprep.mubr.f32.mxu0 %v3419
    %3779 = vmatmul.mubr.f32.gmra.mrb[0].mxu0 %v3160
    %v3780 = vpop.f32.mrb[0].mxu0
    %v3781 = vadd.f32 %v3265, %v3780
    %v3782 = vpop.f32.mrb[0].mxu0
    %3783 = vmatprep.mubr.f32.mxu0 %v3422
    %3784 = vmatmul.mubr.f32.gmra.mrb[0].mxu0 %v3161
    %v3785 = vpop.f32.mrb[0].mxu0
    %v3786 = vadd.f32 %v3265, %v3785
    %v3787 = vpop.f32.mrb[0].mxu0
    %3788 = vmatprep.mubr.f32.mxu0 %v3425
    %3789 = vmatmul.mubr.f32.gmra.mrb[0].mxu0 %v3162
    %v3790 = vpop.f32.mrb[0].mxu0
    %v3791 = vadd.f32 %v3265, %v3790
    %v3792 = vpop.f32.mrb[0].mxu0
    %3793 = vmatprep.mubr.f32.mxu0 %v3428
    %3794 = vmatmul.mubr.f32.gmra.mrb[0].mxu0 %v3163
    %v3795 = vpop.f32.mrb[0].mxu0
    %v3796 = vadd.f32 %v3265, %v3795
    %v3797 = vpop.f32.mrb[0].mxu0
    %3798 = vmatprep.mubr.f32.mxu0 %v3431
    %3799 = vmatmul.mubr.f32.gmra.mrb[0].mxu0 %v3164
    %v3800 = vpop.f32.mrb[0].mxu0
    %v3801 = vadd.f32 %v3265, %v3800
    %v3802 = vpop.f32.mrb[0].mxu0
    %3803 = vmatprep.mubr.f32.mxu0 %v3434
    %3804 = vmatmul.mubr.f32.gmra.mrb[0].mxu0 %v3165
    %v3805 = vpop.f32.mrb[0].mxu0
    %v3806 = vadd.f32 %v3265, %v3805
    %v3807 = vpop.f32.mrb[0].mxu0
    %3808 = vmatprep.mubr.f32.mxu0 %v3437
    %3809 = vmatmul.mubr.f32.gmra.mrb[0].mxu0 %v3166
    %v3810 = vpop.f32.mrb[0].mxu0
    %v3811 = vadd.f32 %v3265, %v3810
    %v3812 = vpop.f32.mrb[0].mxu0
    %3813 = vmatprep.mubr.f32.mxu0 %v3440
    %3814 = vmatmul.mubr.f32.gmra.mrb[0].mxu0 %v3167
    %v3815 = vpop.f32.mrb[0].mxu0
    %v3816 = vadd.f32 %v3265, %v3815
    %v3817 = vpop.f32.mrb[0].mxu0
    %3818 = vmatprep.mubr.f32.mxu0 %v3443
    %3819 = vmatmul.mubr.f32.gmra.mrb[0].mxu0 %v3168
    %v3820 = vpop.f32.mrb[0].mxu0
    %v3821 = vadd.f32 %v3265, %v3820
    %v3822 = vpop.f32.mrb[0].mxu0
    %3823 = vmatprep.mubr.f32.mxu0 %v3446
    %3824 = vmatmul.mubr.f32.gmra.mrb[0].mxu0 %v3169
    %v3825 = vpop.f32.mrb[0].mxu0
    %v3826 = vadd.f32 %v3265, %v3825
    %v3827 = vpop.f32.mrb[0].mxu0
    %3828 = vmatprep.mubr.f32.mxu0 %v3449
    %3829 = vmatmul.mubr.f32.gmra.mrb[0].mxu0 %v3170
    %v3830 = vpop.f32.mrb[0].mxu0
    %v3831 = vadd.f32 %v3265, %v3830
    %v3832 = vpop.f32.mrb[0].mxu0
    %3833 = vmatprep.mubr.f32.mxu0 %v3452
    %3834 = vmatmul.mubr.f32.gmra.mrb[0].mxu0 %v3171
    %v3835 = vpop.f32.mrb[0].mxu0
    %v3836 = vadd.f32 %v3265, %v3835
    %v3837 = vpop.f32.mrb[0].mxu0
    %3838 = vmatprep.mubr.f32.mxu0 %v3455
    %3839 = vmatmul.mubr.f32.gmra.mrb[0].mxu0 %v3172
    %v3840 = vpop.f32.mrb[0].mxu0
    %v3841 = vadd.f32 %v3265, %v3840
    %v3842 = vpop.f32.mrb[0].mxu0
    %3843 = vmatprep.mubr.f32.mxu0 %v3458
    %3844 = vmatmul.mubr.f32.gmra.mrb[0].mxu0 %v3173
    %v3845 = vpop.f32.mrb[0].mxu0
    %v3846 = vadd.f32 %v3265, %v3845
    %v3847 = vpop.f32.mrb[0].mxu0
    %3848 = vdwg.mxu0
    %v3849 = vmax.f32 %v3531, 0.0
    %v3850 = vmax.f32 %v3536, 0.0
    %v3851 = vmax.f32 %v3541, 0.0
    %v3852 = vmax.f32 %v3546, 0.0
    %v3853 = vmax.f32 %v3551, 0.0
    %v3854 = vmax.f32 %v3556, 0.0
    %v3855 = vmax.f32 %v3561, 0.0
    %v3856 = vmax.f32 %v3566, 0.0
    %v3857 = vmax.f32 %v3571, 0.0
    %v3858 = vmax.f32 %v3576, 0.0
    %v3859 = vmax.f32 %v3581, 0.0
    %v3860 = vmax.f32 %v3586, 0.0
    %v3861 = vmax.f32 %v3591, 0.0
    %v3862 = vmax.f32 %v3596, 0.0
    %v3863 = vmax.f32 %v3601, 0.0
    %v3864 = vmax.f32 %v3606, 0.0
    %v3865 = vmax.f32 %v3611, 0.0
    %v3866 = vmax.f32 %v3616, 0.0
    %v3867 = vmax.f32 %v3621, 0.0
    %v3868 = vmax.f32 %v3626, 0.0
    %v3869 = vmax.f32 %v3631, 0.0
    %v3870 = vmax.f32 %v3636, 0.0
    %v3871 = vmax.f32 %v3641, 0.0
    %v3872 = vmax.f32 %v3646, 0.0
    %v3873 = vmax.f32 %v3651, 0.0
    %v3874 = vmax.f32 %v3656, 0.0
    %v3875 = vmax.f32 %v3661, 0.0
    %v3876 = vmax.f32 %v3666, 0.0
    %v3877 = vmax.f32 %v3671, 0.0
    %v3878 = vmax.f32 %v3676, 0.0
    %v3879 = vmax.f32 %v3681, 0.0
    %v3880 = vmax.f32 %v3686, 0.0
    %v3881 = vmax.f32 %v3691, 0.0
    %v3882 = vmax.f32 %v3696, 0.0
    %v3883 = vmax.f32 %v3701, 0.0
    %v3884 = vmax.f32 %v3706, 0.0
    %v3885 = vmax.f32 %v3711, 0.0
    %v3886 = vmax.f32 %v3716, 0.0
    %v3887 = vmax.f32 %v3721, 0.0
    %v3888 = vmax.f32 %v3726, 0.0
    %v3889 = vmax.f32 %v3731, 0.0
    %v3890 = vmax.f32 %v3736, 0.0
    %v3891 = vmax.f32 %v3741, 0.0
    %v3892 = vmax.f32 %v3746, 0.0
    %v3893 = vmax.f32 %v3751, 0.0
    %v3894 = vmax.f32 %v3756, 0.0
    %v3895 = vmax.f32 %v3761, 0.0
    %v3896 = vmax.f32 %v3766, 0.0
    %v3897 = vmax.f32 %v3771, 0.0
    %v3898 = vmax.f32 %v3776, 0.0
    %v3899 = vmax.f32 %v3781, 0.0
    %v3900 = vmax.f32 %v3786, 0.0
    %v3901 = vmax.f32 %v3791, 0.0
    %v3902 = vmax.f32 %v3796, 0.0
    %v3903 = vmax.f32 %v3801, 0.0
    %v3904 = vmax.f32 %v3806, 0.0
    %v3905 = vmax.f32 %v3811, 0.0
    %v3906 = vmax.f32 %v3816, 0.0
    %v3907 = vmax.f32 %v3821, 0.0
    %v3908 = vmax.f32 %v3826, 0.0
    %v3909 = vmax.f32 %v3831, 0.0
    %v3910 = vmax.f32 %v3836, 0.0
    %v3911 = vmax.f32 %v3841, 0.0
    %v3912 = vmax.f32 %v3846, 0.0
    %vm3913 = vcmask 261120
    %v3914 = vsel %vm3913, %v3849, -inf
    %v3915 = vsel %vm3913, %v3851, -inf
    %v3916 = vmax.f32 %v3914, %v3915
    %v3917 = vsel %vm3913, %v3850, -inf
    %v3918 = vsel %vm3913, %v3852, -inf
    %v3919 = vmax.f32 %v3917, %v3918
    %v3920 = vsel %vm3913, %v3853, -inf
    %v3921 = vsel %vm3913, %v3855, -inf
    %v3922 = vmax.f32 %v3920, %v3921
    %v3923 = vsel %vm3913, %v3854, -inf
    %v3924 = vsel %vm3913, %v3856, -inf
    %v3925 = vmax.f32 %v3923, %v3924
    %v3926 = vsel %vm3913, %v3857, -inf
    %v3927 = vsel %vm3913, %v3859, -inf
    %v3928 = vmax.f32 %v3926, %v3927
    %v3929 = vsel %vm3913, %v3858, -inf
    %v3930 = vsel %vm3913, %v3860, -inf
    %v3931 = vmax.f32 %v3929, %v3930
    %v3932 = vsel %vm3913, %v3861, -inf
    %v3933 = vsel %vm3913, %v3863, -inf
    %v3934 = vmax.f32 %v3932, %v3933
    %v3935 = vsel %vm3913, %v3862, -inf
    %v3936 = vsel %vm3913, %v3864, -inf
    %v3937 = vmax.f32 %v3935, %v3936
    %v3938 = vsel %vm3913, %v3865, -inf
    %v3939 = vsel %vm3913, %v3867, -inf
    %v3940 = vmax.f32 %v3938, %v3939
    %v3941 = vsel %vm3913, %v3866, -inf
    %v3942 = vsel %vm3913, %v3868, -inf
    %v3943 = vmax.f32 %v3941, %v3942
    %v3944 = vsel %vm3913, %v3869, -inf
    %v3945 = vsel %vm3913, %v3871, -inf
    %v3946 = vmax.f32 %v3944, %v3945
    %v3947 = vsel %vm3913, %v3870, -inf
    %v3948 = vsel %vm3913, %v3872, -inf
    %v3949 = vmax.f32 %v3947, %v3948
    %v3950 = vsel %vm3913, %v3873, -inf
    %v3951 = vsel %vm3913, %v3875, -inf
    %v3952 = vmax.f32 %v3950, %v3951
    %v3953 = vsel %vm3913, %v3874, -inf
    %v3954 = vsel %vm3913, %v3876, -inf
    %v3955 = vmax.f32 %v3953, %v3954
    %v3956 = vsel %vm3913, %v3877, -inf
    %v3957 = vsel %vm3913, %v3879, -inf
    %v3958 = vmax.f32 %v3956, %v3957
    %v3959 = vsel %vm3913, %v3878, -inf
    %v3960 = vsel %vm3913, %v3880, -inf
    %v3961 = vmax.f32 %v3959, %v3960
    %v3962 = vsel %vm3913, %v3881, -inf
    %v3963 = vsel %vm3913, %v3883, -inf
    %v3964 = vmax.f32 %v3962, %v3963
    %v3965 = vsel %vm3913, %v3882, -inf
    %v3966 = vsel %vm3913, %v3884, -inf
    %v3967 = vmax.f32 %v3965, %v3966
    %v3968 = vsel %vm3913, %v3885, -inf
    %v3969 = vsel %vm3913, %v3887, -inf
    %v3970 = vmax.f32 %v3968, %v3969
    %v3971 = vsel %vm3913, %v3886, -inf
    %v3972 = vsel %vm3913, %v3888, -inf
    %v3973 = vmax.f32 %v3971, %v3972
    %v3974 = vsel %vm3913, %v3889, -inf
    %v3975 = vsel %vm3913, %v3891, -inf
    %v3976 = vmax.f32 %v3974, %v3975
    %v3977 = vsel %vm3913, %v3890, -inf
    %v3978 = vsel %vm3913, %v3892, -inf
    %v3979 = vmax.f32 %v3977, %v3978
    %v3980 = vsel %vm3913, %v3893, -inf
    %v3981 = vsel %vm3913, %v3895, -inf
    %v3982 = vmax.f32 %v3980, %v3981
    %v3983 = vsel %vm3913, %v3894, -inf
    %v3984 = vsel %vm3913, %v3896, -inf
    %v3985 = vmax.f32 %v3983, %v3984
    %v3986 = vsel %vm3913, %v3897, -inf
    %v3987 = vsel %vm3913, %v3899, -inf
    %v3988 = vmax.f32 %v3986, %v3987
    %v3989 = vsel %vm3913, %v3898, -inf
    %v3990 = vsel %vm3913, %v3900, -inf
    %v3991 = vmax.f32 %v3989, %v3990
    %v3992 = vsel %vm3913, %v3901, -inf
    %v3993 = vsel %vm3913, %v3903, -inf
    %v3994 = vmax.f32 %v3992, %v3993
    %v3995 = vsel %vm3913, %v3902, -inf
    %v3996 = vsel %vm3913, %v3904, -inf
    %v3997 = vmax.f32 %v3995, %v3996
    %v3998 = vsel %vm3913, %v3905, -inf
    %v3999 = vsel %vm3913, %v3907, -inf
    %v4000 = vmax.f32 %v3998, %v3999
    %v4001 = vsel %vm3913, %v3906, -inf
    %v4002 = vsel %vm3913, %v3908, -inf
    %v4003 = vmax.f32 %v4001, %v4002
    %v4004 = vsel %vm3913, %v3909, -inf
    %v4005 = vsel %vm3913, %v3911, -inf
    %v4006 = vmax.f32 %v4004, %v4005
    %v4007 = vsel %vm3913, %v3910, -inf
    %v4008 = vsel %vm3913, %v3912, -inf
    %v4009 = vmax.f32 %v4007, %v4008
    %vm4042 = vcmask 1046528
    %v4043 = vrot.slane %v3916, 1
    %v4044 = vrot.slane %v3919, 1
    %v4045 = vsel %vm4042, %v4043, %v4044
    %v4046 = vrot.slane %v3922, 1
    %v4047 = vrot.slane %v3925, 1
    %v4048 = vsel %vm4042, %v4046, %v4047
    %v4049 = vrot.slane %v3928, 1
    %v4050 = vrot.slane %v3931, 1
    %v4051 = vsel %vm4042, %v4049, %v4050
    %v4052 = vrot.slane %v3934, 1
    %v4053 = vrot.slane %v3937, 1
    %v4054 = vsel %vm4042, %v4052, %v4053
    %v4055 = vrot.slane %v3940, 1
    %v4056 = vrot.slane %v3943, 1
    %v4057 = vsel %vm4042, %v4055, %v4056
    %v4058 = vrot.slane %v3946, 1
    %v4059 = vrot.slane %v3949, 1
    %v4060 = vsel %vm4042, %v4058, %v4059
    %v4061 = vrot.slane %v3952, 1
    %v4062 = vrot.slane %v3955, 1
    %v4063 = vsel %vm4042, %v4061, %v4062
    %v4064 = vrot.slane %v3958, 1
    %v4065 = vrot.slane %v3961, 1
    %v4066 = vsel %vm4042, %v4064, %v4065
    %v4067 = vrot.slane %v3964, 1
    %v4068 = vrot.slane %v3967, 1
    %v4069 = vsel %vm4042, %v4067, %v4068
    %v4070 = vrot.slane %v3970, 1
    %v4071 = vrot.slane %v3973, 1
    %v4072 = vsel %vm4042, %v4070, %v4071
    %v4073 = vrot.slane %v3976, 1
    %v4074 = vrot.slane %v3979, 1
    %v4075 = vsel %vm4042, %v4073, %v4074
    %v4076 = vrot.slane %v3982, 1
    %v4077 = vrot.slane %v3985, 1
    %v4078 = vsel %vm4042, %v4076, %v4077
    %v4079 = vrot.slane %v3988, 1
    %v4080 = vrot.slane %v3991, 1
    %v4081 = vsel %vm4042, %v4079, %v4080
    %v4082 = vrot.slane %v3994, 1
    %v4083 = vrot.slane %v3997, 1
    %v4084 = vsel %vm4042, %v4082, %v4083
    %v4085 = vrot.slane %v4000, 1
    %v4086 = vrot.slane %v4003, 1
    %v4087 = vsel %vm4042, %v4085, %v4086
    %v4088 = vrot.slane %v4006, 1
    %v4089 = vrot.slane %v4009, 1
    %v4090 = vsel %vm4042, %v4088, %v4089
    %v4123 = vmax.f32 %v3916, %v4045
    %v4124 = vmax.f32 %v3919, %v4044
    %v4125 = vmax.f32 %v3922, %v4048
    %v4126 = vmax.f32 %v3925, %v4047
    %v4127 = vmax.f32 %v3928, %v4051
    %v4128 = vmax.f32 %v3931, %v4050
    %v4129 = vmax.f32 %v3934, %v4054
    %v4130 = vmax.f32 %v3937, %v4053
    %v4131 = vmax.f32 %v3940, %v4057
    %v4132 = vmax.f32 %v3943, %v4056
    %v4133 = vmax.f32 %v3946, %v4060
    %v4134 = vmax.f32 %v3949, %v4059
    %v4135 = vmax.f32 %v3952, %v4063
    %v4136 = vmax.f32 %v3955, %v4062
    %v4137 = vmax.f32 %v3958, %v4066
    %v4138 = vmax.f32 %v3961, %v4065
    %v4139 = vmax.f32 %v3964, %v4069
    %v4140 = vmax.f32 %v3967, %v4068
    %v4141 = vmax.f32 %v3970, %v4072
    %v4142 = vmax.f32 %v3973, %v4071
    %v4143 = vmax.f32 %v3976, %v4075
    %v4144 = vmax.f32 %v3979, %v4074
    %v4145 = vmax.f32 %v3982, %v4078
    %v4146 = vmax.f32 %v3985, %v4077
    %v4147 = vmax.f32 %v3988, %v4081
    %v4148 = vmax.f32 %v3991, %v4080
    %v4149 = vmax.f32 %v3994, %v4084
    %v4150 = vmax.f32 %v3997, %v4083
    %v4151 = vmax.f32 %v4000, %v4087
    %v4152 = vmax.f32 %v4003, %v4086
    %v4153 = vmax.f32 %v4006, %v4090
    %v4154 = vmax.f32 %v4009, %v4089
    %v4171 = vrot.slane %v4123, 1
    %v4172 = vrot.slane %v4125, 1
    %v4173 = vrot.slane %v4127, 1
    %v4174 = vrot.slane %v4129, 1
    %v4175 = vrot.slane %v4131, 1
    %v4176 = vrot.slane %v4133, 1
    %v4177 = vrot.slane %v4135, 1
    %v4178 = vrot.slane %v4137, 1
    %v4179 = vrot.slane %v4139, 1
    %v4180 = vrot.slane %v4141, 1
    %v4181 = vrot.slane %v4143, 1
    %v4182 = vrot.slane %v4145, 1
    %v4183 = vrot.slane %v4147, 1
    %v4184 = vrot.slane %v4149, 1
    %v4185 = vrot.slane %v4151, 1
    %v4186 = vrot.slane %v4153, 1
    %v4203 = vrot.slane %v4123, 2
    %v4204 = vrot.slane %v4125, 2
    %v4205 = vrot.slane %v4127, 2
    %v4206 = vrot.slane %v4129, 2
    %v4207 = vrot.slane %v4131, 2
    %v4208 = vrot.slane %v4133, 2
    %v4209 = vrot.slane %v4135, 2
    %v4210 = vrot.slane %v4137, 2
    %v4211 = vrot.slane %v4139, 2
    %v4212 = vrot.slane %v4141, 2
    %v4213 = vrot.slane %v4143, 2
    %v4214 = vrot.slane %v4145, 2
    %v4215 = vrot.slane %v4147, 2
    %v4216 = vrot.slane %v4149, 2
    %v4217 = vrot.slane %v4151, 2
    %v4218 = vrot.slane %v4153, 2
    %v4235 = vrot.slane %v4123, 3
    %v4236 = vrot.slane %v4125, 3
    %v4237 = vrot.slane %v4127, 3
    %v4238 = vrot.slane %v4129, 3
    %v4239 = vrot.slane %v4131, 3
    %v4240 = vrot.slane %v4133, 3
    %v4241 = vrot.slane %v4135, 3
    %v4242 = vrot.slane %v4137, 3
    %v4243 = vrot.slane %v4139, 3
    %v4244 = vrot.slane %v4141, 3
    %v4245 = vrot.slane %v4143, 3
    %v4246 = vrot.slane %v4145, 3
    %v4247 = vrot.slane %v4147, 3
    %v4248 = vrot.slane %v4149, 3
    %v4249 = vrot.slane %v4151, 3
    %v4250 = vrot.slane %v4153, 3
    %v4283 = vrot.slane %v4124, 4
    %v4284 = vrot.slane %v4126, 4
    %v4285 = vrot.slane %v4128, 4
    %v4286 = vrot.slane %v4130, 4
    %v4287 = vrot.slane %v4132, 4
    %v4288 = vrot.slane %v4134, 4
    %v4289 = vrot.slane %v4136, 4
    %v4290 = vrot.slane %v4138, 4
    %v4291 = vrot.slane %v4140, 4
    %v4292 = vrot.slane %v4142, 4
    %v4293 = vrot.slane %v4144, 4
    %v4294 = vrot.slane %v4146, 4
    %v4295 = vrot.slane %v4148, 4
    %v4296 = vrot.slane %v4150, 4
    %v4297 = vrot.slane %v4152, 4
    %v4298 = vrot.slane %v4154, 4
    %v4315 = vrot.slane %v4124, 5
    %v4316 = vrot.slane %v4126, 5
    %v4317 = vrot.slane %v4128, 5
    %v4318 = vrot.slane %v4130, 5
    %v4319 = vrot.slane %v4132, 5
    %v4320 = vrot.slane %v4134, 5
    %v4321 = vrot.slane %v4136, 5
    %v4322 = vrot.slane %v4138, 5
    %v4323 = vrot.slane %v4140, 5
    %v4324 = vrot.slane %v4142, 5
    %v4325 = vrot.slane %v4144, 5
    %v4326 = vrot.slane %v4146, 5
    %v4327 = vrot.slane %v4148, 5
    %v4328 = vrot.slane %v4150, 5
    %v4329 = vrot.slane %v4152, 5
    %v4330 = vrot.slane %v4154, 5
    %v4347 = vrot.slane %v4124, 6
    %v4348 = vrot.slane %v4126, 6
    %v4349 = vrot.slane %v4128, 6
    %v4350 = vrot.slane %v4130, 6
    %v4351 = vrot.slane %v4132, 6
    %v4352 = vrot.slane %v4134, 6
    %v4353 = vrot.slane %v4136, 6
    %v4354 = vrot.slane %v4138, 6
    %v4355 = vrot.slane %v4140, 6
    %v4356 = vrot.slane %v4142, 6
    %v4357 = vrot.slane %v4144, 6
    %v4358 = vrot.slane %v4146, 6
    %v4359 = vrot.slane %v4148, 6
    %v4360 = vrot.slane %v4150, 6
    %v4361 = vrot.slane %v4152, 6
    %v4362 = vrot.slane %v4154, 6
    %v4379 = vrot.slane %v4124, 7
    %v4380 = vrot.slane %v4126, 7
    %v4381 = vrot.slane %v4128, 7
    %v4382 = vrot.slane %v4130, 7
    %v4383 = vrot.slane %v4132, 7
    %v4384 = vrot.slane %v4134, 7
    %v4385 = vrot.slane %v4136, 7
    %v4386 = vrot.slane %v4138, 7
    %v4387 = vrot.slane %v4140, 7
    %v4388 = vrot.slane %v4142, 7
    %v4389 = vrot.slane %v4144, 7
    %v4390 = vrot.slane %v4146, 7
    %v4391 = vrot.slane %v4148, 7
    %v4392 = vrot.slane %v4150, 7
    %v4393 = vrot.slane %v4152, 7
    %v4394 = vrot.slane %v4154, 7
    %vm4411 = vcmask 1040384
    %v4412 = vsel %vm4411, %v4123, %v4171
    %v4413 = vsel %vm4411, %v4125, %v4172
    %v4414 = vsel %vm4411, %v4127, %v4173
    %v4415 = vsel %vm4411, %v4129, %v4174
    %v4416 = vsel %vm4411, %v4131, %v4175
    %v4417 = vsel %vm4411, %v4133, %v4176
    %v4418 = vsel %vm4411, %v4135, %v4177
    %v4419 = vsel %vm4411, %v4137, %v4178
    %v4420 = vsel %vm4411, %v4139, %v4179
    %v4421 = vsel %vm4411, %v4141, %v4180
    %v4422 = vsel %vm4411, %v4143, %v4181
    %v4423 = vsel %vm4411, %v4145, %v4182
    %v4424 = vsel %vm4411, %v4147, %v4183
    %v4425 = vsel %vm4411, %v4149, %v4184
    %v4426 = vsel %vm4411, %v4151, %v4185
    %v4427 = vsel %vm4411, %v4153, %v4186
    %v4428 = vsel %vm3460, %v4412, %v4203
    %v4429 = vsel %vm3460, %v4413, %v4204
    %v4430 = vsel %vm3460, %v4414, %v4205
    %v4431 = vsel %vm3460, %v4415, %v4206
    %v4432 = vsel %vm3460, %v4416, %v4207
    %v4433 = vsel %vm3460, %v4417, %v4208
    %v4434 = vsel %vm3460, %v4418, %v4209
    %v4435 = vsel %vm3460, %v4419, %v4210
    %v4436 = vsel %vm3460, %v4420, %v4211
    %v4437 = vsel %vm3460, %v4421, %v4212
    %v4438 = vsel %vm3460, %v4422, %v4213
    %v4439 = vsel %vm3460, %v4423, %v4214
    %v4440 = vsel %vm3460, %v4424, %v4215
    %v4441 = vsel %vm3460, %v4425, %v4216
    %v4442 = vsel %vm3460, %v4426, %v4217
    %v4443 = vsel %vm3460, %v4427, %v4218
    %vm4444 = vcmask 1042432
    %v4445 = vsel %vm4444, %v4428, %v4235
    %v4446 = vsel %vm4444, %v4429, %v4236
    %v4447 = vsel %vm4444, %v4430, %v4237
    %v4448 = vsel %vm4444, %v4431, %v4238
    %v4449 = vsel %vm4444, %v4432, %v4239
    %v4450 = vsel %vm4444, %v4433, %v4240
    %v4451 = vsel %vm4444, %v4434, %v4241
    %v4452 = vsel %vm4444, %v4435, %v4242
    %v4453 = vsel %vm4444, %v4436, %v4243
    %v4454 = vsel %vm4444, %v4437, %v4244
    %v4455 = vsel %vm4444, %v4438, %v4245
    %v4456 = vsel %vm4444, %v4439, %v4246
    %v4457 = vsel %vm4444, %v4440, %v4247
    %v4458 = vsel %vm4444, %v4441, %v4248
    %v4459 = vsel %vm4444, %v4442, %v4249
    %v4460 = vsel %vm4444, %v4443, %v4250
    %vm4461 = vcmask 1043456
    %v4462 = vsel %vm4461, %v4445, %v4283
    %v4463 = vsel %vm4461, %v4446, %v4284
    %v4464 = vsel %vm4461, %v4447, %v4285
    %v4465 = vsel %vm4461, %v4448, %v4286
    %v4466 = vsel %vm4461, %v4449, %v4287
    %v4467 = vsel %vm4461, %v4450, %v4288
    %v4468 = vsel %vm4461, %v4451, %v4289
    %v4469 = vsel %vm4461, %v4452, %v4290
    %v4470 = vsel %vm4461, %v4453, %v4291
    %v4471 = vsel %vm4461, %v4454, %v4292
    %v4472 = vsel %vm4461, %v4455, %v4293
    %v4473 = vsel %vm4461, %v4456, %v4294
    %v4474 = vsel %vm4461, %v4457, %v4295
    %v4475 = vsel %vm4461, %v4458, %v4296
    %v4476 = vsel %vm4461, %v4459, %v4297
    %v4477 = vsel %vm4461, %v4460, %v4298
    %vm4478 = vcmask 1044480
    %v4479 = vsel %vm4478, %v4462, %v4315
    %v4480 = vsel %vm4478, %v4463, %v4316
    %v4481 = vsel %vm4478, %v4464, %v4317
    %v4482 = vsel %vm4478, %v4465, %v4318
    %v4483 = vsel %vm4478, %v4466, %v4319
    %v4484 = vsel %vm4478, %v4467, %v4320
    %v4485 = vsel %vm4478, %v4468, %v4321
    %v4486 = vsel %vm4478, %v4469, %v4322
    %v4487 = vsel %vm4478, %v4470, %v4323
    %v4488 = vsel %vm4478, %v4471, %v4324
    %v4489 = vsel %vm4478, %v4472, %v4325
    %v4490 = vsel %vm4478, %v4473, %v4326
    %v4491 = vsel %vm4478, %v4474, %v4327
    %v4492 = vsel %vm4478, %v4475, %v4328
    %v4493 = vsel %vm4478, %v4476, %v4329
    %v4494 = vsel %vm4478, %v4477, %v4330
    %vm4495 = vcmask 1045504
    %v4496 = vsel %vm4495, %v4479, %v4347
    %v4497 = vsel %vm4495, %v4480, %v4348
    %v4498 = vsel %vm4495, %v4481, %v4349
    %v4499 = vsel %vm4495, %v4482, %v4350
    %v4500 = vsel %vm4495, %v4483, %v4351
    %v4501 = vsel %vm4495, %v4484, %v4352
    %v4502 = vsel %vm4495, %v4485, %v4353
    %v4503 = vsel %vm4495, %v4486, %v4354
    %v4504 = vsel %vm4495, %v4487, %v4355
    %v4505 = vsel %vm4495, %v4488, %v4356
    %v4506 = vsel %vm4495, %v4489, %v4357
    %v4507 = vsel %vm4495, %v4490, %v4358
    %v4508 = vsel %vm4495, %v4491, %v4359
    %v4509 = vsel %vm4495, %v4492, %v4360
    %v4510 = vsel %vm4495, %v4493, %v4361
    %v4511 = vsel %vm4495, %v4494, %v4362
    %v4512 = vsel %vm4042, %v4496, %v4379
    %v4513 = vsel %vm4042, %v4497, %v4380
    %v4514 = vsel %vm4042, %v4498, %v4381
    %v4515 = vsel %vm4042, %v4499, %v4382
    %v4516 = vsel %vm4042, %v4500, %v4383
    %v4517 = vsel %vm4042, %v4501, %v4384
    %v4518 = vsel %vm4042, %v4502, %v4385
    %v4519 = vsel %vm4042, %v4503, %v4386
    %v4520 = vsel %vm4042, %v4504, %v4387
    %v4521 = vsel %vm4042, %v4505, %v4388
    %v4522 = vsel %vm4042, %v4506, %v4389
    %v4523 = vsel %vm4042, %v4507, %v4390
    %v4524 = vsel %vm4042, %v4508, %v4391
    %v4525 = vsel %vm4042, %v4509, %v4392
    %v4526 = vsel %vm4042, %v4510, %v4393
    %v4527 = vsel %vm4042, %v4511, %v4394
    %4528 = vst.msk [vmem:[#allocation2] sm:$0xff] %vm3913, 0.0
    %4529 = vst.msk [vmem:[#allocation2 + $0x8] sm:$0xff] %vm3913, 0.0
    %vm4530 = vcmask 254976
    %4531 = vst.msk [vmem:[#allocation2 + $0x10] sm:$0x3] %vm4530, 0.0
    %4532 = vst.msk [vmem:[#allocation2 + $0x18] sm:$0xff] %vm3913, 0.0
    %4533 = vst.msk [vmem:[#allocation2 + $0x20] sm:$0xff] %vm3913, 0.0
    %4534 = vst.msk [vmem:[#allocation2 + $0x28] sm:$0x3] %vm4530, 0.0
    %4535 = vst.msk [vmem:[#allocation2 + $0x30] sm:$0xff] %vm3913, 0.0
    %4536 = vst.msk [vmem:[#allocation2 + $0x38] sm:$0xff] %vm3913, 0.0
    %4537 = vst.msk [vmem:[#allocation2 + $0x40] sm:$0x3] %vm4530, 0.0
    %4538 = vst.msk [vmem:[#allocation2 + $0x48] sm:$0xff] %vm3913, 0.0
    %4539 = vst.msk [vmem:[#allocation2 + $0x50] sm:$0xff] %vm3913, 0.0
    %4540 = vst.msk [vmem:[#allocation2 + $0x58] sm:$0x3] %vm4530, 0.0
    %4541 = vst.msk [vmem:[#allocation2 + $0x60] sm:$0xff] %vm3913, 0.0
    %4542 = vst.msk [vmem:[#allocation2 + $0x68] sm:$0xff] %vm3913, 0.0
    %4543 = vst.msk [vmem:[#allocation2 + $0x70] sm:$0x3] %vm4530, 0.0
    %4544 = vst.msk [vmem:[#allocation2 + $0x78] sm:$0xff] %vm3913, 0.0
    %4545 = vst.msk [vmem:[#allocation2 + $0x80] sm:$0xff] %vm3913, 0.0
    %4546 = vst.msk [vmem:[#allocation2 + $0x88] sm:$0x3] %vm4530, 0.0
    %4547 = vst.msk [vmem:[#allocation2 + $0x90] sm:$0xff] %vm3913, 0.0
    %4548 = vst.msk [vmem:[#allocation2 + $0x98] sm:$0xff] %vm3913, 0.0
    %4549 = vst.msk [vmem:[#allocation2 + $0xa0] sm:$0x3] %vm4530, 0.0
    %4550 = vst.msk [vmem:[#allocation2 + $0xa8] sm:$0xff] %vm3913, 0.0
    %4551 = vst.msk [vmem:[#allocation2 + $0xb0] sm:$0xff] %vm3913, 0.0
    %4552 = vst.msk [vmem:[#allocation2 + $0xb8] sm:$0x3] %vm4530, 0.0
    %4553 = vst.msk [vmem:[#allocation2 + $0xc0] sm:$0xff] %vm3913, 0.0
    %4554 = vst.msk [vmem:[#allocation2 + $0xc8] sm:$0xff] %vm3913, 0.0
    %4555 = vst.msk [vmem:[#allocation2 + $0xd0] sm:$0x3] %vm4530, 0.0
    %4556 = vst.msk [vmem:[#allocation2 + $0xd8] sm:$0xff] %vm3913, 0.0
    %4557 = vst.msk [vmem:[#allocation2 + $0xe0] sm:$0xff] %vm3913, 0.0
    %4558 = vst.msk [vmem:[#allocation2 + $0xe8] sm:$0x3] %vm4530, 0.0
    %4559 = vst.msk [vmem:[#allocation2 + $0xf0] sm:$0xff] %vm3913, 0.0
    %4560 = vst.msk [vmem:[#allocation2 + $0xf8] sm:$0xff] %vm3913, 0.0
    %4561 = vst.msk [vmem:[#allocation2 + $0x100] sm:$0x3] %vm4530, 0.0
    %4562 = vst.msk [vmem:[#allocation2 + $0x108] sm:$0xff] %vm3913, 0.0
    %4563 = vst.msk [vmem:[#allocation2 + $0x110] sm:$0xff] %vm3913, 0.0
    %4564 = vst.msk [vmem:[#allocation2 + $0x118] sm:$0x3] %vm4530, 0.0
    %4565 = vst.msk [vmem:[#allocation2 + $0x120] sm:$0xff] %vm3913, 0.0
    %4566 = vst.msk [vmem:[#allocation2 + $0x128] sm:$0xff] %vm3913, 0.0
    %4567 = vst.msk [vmem:[#allocation2 + $0x130] sm:$0x3] %vm4530, 0.0
    %4568 = vst.msk [vmem:[#allocation2 + $0x138] sm:$0xff] %vm3913, 0.0
    %4569 = vst.msk [vmem:[#allocation2 + $0x140] sm:$0xff] %vm3913, 0.0
    %4570 = vst.msk [vmem:[#allocation2 + $0x148] sm:$0x3] %vm4530, 0.0
    %4571 = vst.msk [vmem:[#allocation2 + $0x150] sm:$0xff] %vm3913, 0.0
    %4572 = vst.msk [vmem:[#allocation2 + $0x158] sm:$0xff] %vm3913, 0.0
    %4573 = vst.msk [vmem:[#allocation2 + $0x160] sm:$0x3] %vm4530, 0.0
    %4574 = vst.msk [vmem:[#allocation2 + $0x168] sm:$0xff] %vm3913, 0.0
    %4575 = vst.msk [vmem:[#allocation2 + $0x170] sm:$0xff] %vm3913, 0.0
    %4576 = vst.msk [vmem:[#allocation2 + $0x178] sm:$0x3] %vm4530, 0.0
    %4577 = vst.msk [vmem:[#allocation2 + $0x180] sm:$0xff] %vm3913, 0.0
    %4578 = vst.msk [vmem:[#allocation2 + $0x188] sm:$0xff] %vm3913, 0.0
    %4579 = vst.msk [vmem:[#allocation2 + $0x190] sm:$0x3] %vm4530, 0.0
    %4580 = vst.msk [vmem:[#allocation2 + $0x198] sm:$0xff] %vm3913, 0.0
    %4581 = vst.msk [vmem:[#allocation2 + $0x1a0] sm:$0xff] %vm3913, 0.0
    %4582 = vst.msk [vmem:[#allocation2 + $0x1a8] sm:$0x3] %vm4530, 0.0
    %4583 = vst.msk [vmem:[#allocation2 + $0x1b0] sm:$0xff] %vm3913, 0.0
    %4584 = vst.msk [vmem:[#allocation2 + $0x1b8] sm:$0xff] %vm3913, 0.0
    %4585 = vst.msk [vmem:[#allocation2 + $0x1c0] sm:$0x3] %vm4530, 0.0
    %4586 = vst.msk [vmem:[#allocation2 + $0x1c8] sm:$0xff] %vm3913, 0.0
    %4587 = vst.msk [vmem:[#allocation2 + $0x1d0] sm:$0xff] %vm3913, 0.0
    %4588 = vst.msk [vmem:[#allocation2 + $0x1d8] sm:$0x3] %vm4530, 0.0
    %4589 = vst.msk [vmem:[#allocation2 + $0x1e0] sm:$0xff] %vm3913, 0.0
    %4590 = vst.msk [vmem:[#allocation2 + $0x1e8] sm:$0xff] %vm3913, 0.0
    %4591 = vst.msk [vmem:[#allocation2 + $0x1f0] sm:$0x3] %vm4530, 0.0
    %4592 = vst.msk [vmem:[#allocation2 + $0x1f8] sm:$0xff] %vm3913, 0.0
    %4593 = vst.msk [vmem:[#allocation2 + $0x200] sm:$0xff] %vm3913, 0.0
    %4594 = vst.msk [vmem:[#allocation2 + $0x208] sm:$0x3] %vm4530, 0.0
    %4595 = vst.msk [vmem:[#allocation2 + $0x210] sm:$0xff] %vm3913, 0.0
    %4596 = vst.msk [vmem:[#allocation2 + $0x218] sm:$0xff] %vm3913, 0.0
    %4597 = vst.msk [vmem:[#allocation2 + $0x220] sm:$0x3] %vm4530, 0.0
    %4598 = vst.msk [vmem:[#allocation2 + $0x228] sm:$0xff] %vm3913, 0.0
    %4599 = vst.msk [vmem:[#allocation2 + $0x230] sm:$0xff] %vm3913, 0.0
    %4600 = vst.msk [vmem:[#allocation2 + $0x238] sm:$0x3] %vm4530, 0.0
    %s4601 = scalar_lea.vmem [#allocation2], 48
    %4602 = vst.msk [vmem:[%s4601 + $0x2] sm:$0xff] %vm3913, %v4512
    %4603 = vst.msk [vmem:[%s4601 + $0x1a] sm:$0xff] %vm3913, %v4513
    %4604 = vst.msk [vmem:[%s4601 + $0x32] sm:$0xff] %vm3913, %v4514
    %4605 = vst.msk [vmem:[%s4601 + $0x4a] sm:$0xff] %vm3913, %v4515
    %4606 = vst.msk [vmem:[%s4601 + $0x62] sm:$0xff] %vm3913, %v4516
    %4607 = vst.msk [vmem:[%s4601 + $0x7a] sm:$0xff] %vm3913, %v4517
    %4608 = vst.msk [vmem:[%s4601 + $0x92] sm:$0xff] %vm3913, %v4518
    %4609 = vst.msk [vmem:[%s4601 + $0xaa] sm:$0xff] %vm3913, %v4519
    %4610 = vst.msk [vmem:[%s4601 + $0x122] sm:$0xff] %vm3913, %v4520
    %4611 = vst.msk [vmem:[%s4601 + $0x13a] sm:$0xff] %vm3913, %v4521
    %4612 = vst.msk [vmem:[%s4601 + $0x152] sm:$0xff] %vm3913, %v4522
    %4613 = vst.msk [vmem:[%s4601 + $0x16a] sm:$0xff] %vm3913, %v4523
    %4614 = vst.msk [vmem:[%s4601 + $0x182] sm:$0xff] %vm3913, %v4524
    %4615 = vst.msk [vmem:[%s4601 + $0x19a] sm:$0xff] %vm3913, %v4525
    %4616 = vst.msk [vmem:[%s4601 + $0x1b2] sm:$0xff] %vm3913, %v4526
    %4617 = vst.msk [vmem:[%s4601 + $0x1ca] sm:$0xff] %vm3913, %v4527
    %v4618 = vld [vmem:[#allocation2] sm:$0xff]
    %v4619 = vld [vmem:[#allocation2 + $0x8] sm:$0xff]
    %v4620 = vld [vmem:[#allocation2 + $0x18] sm:$0xff]
    %v4621 = vld [vmem:[#allocation2 + $0x20] sm:$0xff]
    %v4622 = vld [vmem:[#allocation2 + $0x30] sm:$0xff]
    %v4623 = vld [vmem:[#allocation2 + $0x38] sm:$0xff]
    %v4624 = vld [vmem:[#allocation2 + $0x48] sm:$0xff]
    %v4625 = vld [vmem:[#allocation2 + $0x50] sm:$0xff]
    %v4626 = vld [vmem:[#allocation2 + $0x60] sm:$0xff]
    %v4627 = vld [vmem:[#allocation2 + $0x68] sm:$0xff]
    %v4628 = vld [vmem:[#allocation2 + $0x78] sm:$0xff]
    %v4629 = vld [vmem:[#allocation2 + $0x80] sm:$0xff]
    %v4630 = vld [vmem:[#allocation2 + $0x90] sm:$0xff]
    %v4631 = vld [vmem:[#allocation2 + $0x98] sm:$0xff]
    %v4632 = vld [vmem:[#allocation2 + $0xa8] sm:$0xff]
    %v4633 = vld [vmem:[#allocation2 + $0xb0] sm:$0xff]
    %v4634 = vld [vmem:[#allocation2 + $0xc0] sm:$0xff]
    %v4635 = vld [vmem:[#allocation2 + $0xc8] sm:$0xff]
    %v4636 = vld [vmem:[#allocation2 + $0xd8] sm:$0xff]
    %v4637 = vld [vmem:[#allocation2 + $0xe0] sm:$0xff]
    %v4638 = vld [vmem:[#allocation2 + $0x120] sm:$0xff]
    %v4639 = vld [vmem:[#allocation2 + $0x128] sm:$0xff]
    %v4640 = vld [vmem:[#allocation2 + $0x138] sm:$0xff]
    %v4641 = vld [vmem:[#allocation2 + $0x140] sm:$0xff]
    %v4642 = vld [vmem:[#allocation2 + $0x150] sm:$0xff]
    %v4643 = vld [vmem:[#allocation2 + $0x158] sm:$0xff]
    %v4644 = vld [vmem:[#allocation2 + $0x168] sm:$0xff]
    %v4645 = vld [vmem:[#allocation2 + $0x170] sm:$0xff]
    %v4646 = vld [vmem:[#allocation2 + $0x180] sm:$0xff]
    %v4647 = vld [vmem:[#allocation2 + $0x188] sm:$0xff]
    %v4648 = vld [vmem:[#allocation2 + $0x198] sm:$0xff]
    %v4649 = vld [vmem:[#allocation2 + $0x1a0] sm:$0xff]
    %v4650 = vld [vmem:[#allocation2 + $0x1b0] sm:$0xff]
    %v4651 = vld [vmem:[#allocation2 + $0x1b8] sm:$0xff]
    %v4652 = vld [vmem:[#allocation2 + $0x1c8] sm:$0xff]
    %v4653 = vld [vmem:[#allocation2 + $0x1d0] sm:$0xff]
    %v4654 = vld [vmem:[#allocation2 + $0x1e0] sm:$0xff]
    %v4655 = vld [vmem:[#allocation2 + $0x1e8] sm:$0xff]
    %v4656 = vld [vmem:[#allocation2 + $0x1f8] sm:$0xff]
    %v4657 = vld [vmem:[#allocation2 + $0x200] sm:$0xff]
    %v4658 = vld [vmem:[#allocation2 + $0x1] sm:$0xff]
    %v4659 = vld [vmem:[#allocation2 + $0x9] sm:$0xff]
    %v4660 = vld [vmem:[#allocation2 + $0x19] sm:$0xff]
    %v4661 = vld [vmem:[#allocation2 + $0x21] sm:$0xff]
    %v4662 = vld [vmem:[#allocation2 + $0x31] sm:$0xff]
    %v4663 = vld [vmem:[#allocation2 + $0x39] sm:$0xff]
    %v4664 = vld [vmem:[#allocation2 + $0x49] sm:$0xff]
    %v4665 = vld [vmem:[#allocation2 + $0x51] sm:$0xff]
    %v4666 = vld [vmem:[#allocation2 + $0x61] sm:$0xff]
    %v4667 = vld [vmem:[#allocation2 + $0x69] sm:$0xff]
    %v4668 = vld [vmem:[#allocation2 + $0x79] sm:$0xff]
    %v4669 = vld [vmem:[#allocation2 + $0x81] sm:$0xff]
    %v4670 = vld [vmem:[#allocation2 + $0x91] sm:$0xff]
    %v4671 = vld [vmem:[#allocation2 + $0x99] sm:$0xff]
    %v4672 = vld [vmem:[#allocation2 + $0xa9] sm:$0xff]
    %v4673 = vld [vmem:[#allocation2 + $0xb1] sm:$0xff]
    %v4674 = vld [vmem:[#allocation2 + $0xc1] sm:$0xff]
    %v4675 = vld [vmem:[#allocation2 + $0xc9] sm:$0xff]
    %v4676 = vld [vmem:[#allocation2 + $0xd9] sm:$0xff]
    %v4677 = vld [vmem:[#allocation2 + $0xe1] sm:$0xff]
    %v4678 = vld [vmem:[#allocation2 + $0x121] sm:$0xff]
    %v4679 = vld [vmem:[#allocation2 + $0x129] sm:$0xff]
    %v4680 = vld [vmem:[#allocation2 + $0x139] sm:$0xff]
    %v4681 = vld [vmem:[#allocation2 + $0x141] sm:$0xff]
    %v4682 = vld [vmem:[#allocation2 + $0x151] sm:$0xff]
    %v4683 = vld [vmem:[#allocation2 + $0x159] sm:$0xff]
    %v4684 = vld [vmem:[#allocation2 + $0x169] sm:$0xff]
    %v4685 = vld [vmem:[#allocation2 + $0x171] sm:$0xff]
    %v4686 = vld [vmem:[#allocation2 + $0x181] sm:$0xff]
    %v4687 = vld [vmem:[#allocation2 + $0x189] sm:$0xff]
    %v4688 = vld [vmem:[#allocation2 + $0x199] sm:$0xff]
    %v4689 = vld [vmem:[#allocation2 + $0x1a1] sm:$0xff]
    %v4690 = vld [vmem:[#allocation2 + $0x1b1] sm:$0xff]
    %v4691 = vld [vmem:[#allocation2 + $0x1b9] sm:$0xff]
    %v4692 = vld [vmem:[#allocation2 + $0x1c9] sm:$0xff]
    %v4693 = vld [vmem:[#allocation2 + $0x1d1] sm:$0xff]
    %v4694 = vld [vmem:[#allocation2 + $0x1e1] sm:$0xff]
    %v4695 = vld [vmem:[#allocation2 + $0x1e9] sm:$0xff]
    %v4696 = vld [vmem:[#allocation2 + $0x1f9] sm:$0xff]
    %v4697 = vld [vmem:[#allocation2 + $0x201] sm:$0xff]
    %v4698 = vld [vmem:[#allocation2 + $0x2] sm:$0xff]
    %v4699 = vld [vmem:[#allocation2 + $0xa] sm:$0xff]
    %v4700 = vld [vmem:[#allocation2 + $0x1a] sm:$0xff]
    %v4701 = vld [vmem:[#allocation2 + $0x22] sm:$0xff]
    %v4702 = vld [vmem:[#allocation2 + $0x32] sm:$0xff]
    %v4703 = vld [vmem:[#allocation2 + $0x3a] sm:$0xff]
    %v4704 = vld [vmem:[#allocation2 + $0x4a] sm:$0xff]
    %v4705 = vld [vmem:[#allocation2 + $0x52] sm:$0xff]
    %v4706 = vld [vmem:[#allocation2 + $0x62] sm:$0xff]
    %v4707 = vld [vmem:[#allocation2 + $0x6a] sm:$0xff]
    %v4708 = vld [vmem:[#allocation2 + $0x7a] sm:$0xff]
    %v4709 = vld [vmem:[#allocation2 + $0x82] sm:$0xff]
    %v4710 = vld [vmem:[#allocation2 + $0x92] sm:$0xff]
    %v4711 = vld [vmem:[#allocation2 + $0x9a] sm:$0xff]
    %v4712 = vld [vmem:[#allocation2 + $0xaa] sm:$0xff]
    %v4713 = vld [vmem:[#allocation2 + $0xb2] sm:$0xff]
    %v4714 = vld [vmem:[#allocation2 + $0xc2] sm:$0xff]
    %v4715 = vld [vmem:[#allocation2 + $0xca] sm:$0xff]
    %v4716 = vld [vmem:[#allocation2 + $0xda] sm:$0xff]
    %v4717 = vld [vmem:[#allocation2 + $0xe2] sm:$0xff]
    %v4718 = vld [vmem:[#allocation2 + $0x122] sm:$0xff]
    %v4719 = vld [vmem:[#allocation2 + $0x12a] sm:$0xff]
    %v4720 = vld [vmem:[#allocation2 + $0x13a] sm:$0xff]
    %v4721 = vld [vmem:[#allocation2 + $0x142] sm:$0xff]
    %v4722 = vld [vmem:[#allocation2 + $0x152] sm:$0xff]
    %v4723 = vld [vmem:[#allocation2 + $0x15a] sm:$0xff]
    %v4724 = vld [vmem:[#allocation2 + $0x16a] sm:$0xff]
    %v4725 = vld [vmem:[#allocation2 + $0x172] sm:$0xff]
    %v4726 = vld [vmem:[#allocation2 + $0x182] sm:$0xff]
    %v4727 = vld [vmem:[#allocation2 + $0x18a] sm:$0xff]
    %v4728 = vld [vmem:[#allocation2 + $0x19a] sm:$0xff]
    %v4729 = vld [vmem:[#allocation2 + $0x1a2] sm:$0xff]
    %v4730 = vld [vmem:[#allocation2 + $0x1b2] sm:$0xff]
    %v4731 = vld [vmem:[#allocation2 + $0x1ba] sm:$0xff]
    %v4732 = vld [vmem:[#allocation2 + $0x1ca] sm:$0xff]
    %v4733 = vld [vmem:[#allocation2 + $0x1d2] sm:$0xff]
    %v4734 = vld [vmem:[#allocation2 + $0x1e2] sm:$0xff]
    %v4735 = vld [vmem:[#allocation2 + $0x1ea] sm:$0xff]
    %v4736 = vld [vmem:[#allocation2 + $0x1fa] sm:$0xff]
    %v4737 = vld [vmem:[#allocation2 + $0x202] sm:$0xff]
    %s4738 = scalar_lea.vmem [#allocation2], 24
    %v4739 = vld [vmem:[%s4738] sm:$0xff]
    %v4740 = vld [vmem:[%s4738 + $0x8] sm:$0xff]
    %v4741 = vld [vmem:[%s4738 + $0x18] sm:$0xff]
    %v4742 = vld [vmem:[%s4738 + $0x20] sm:$0xff]
    %v4743 = vld [vmem:[%s4738 + $0x30] sm:$0xff]
    %v4744 = vld [vmem:[%s4738 + $0x38] sm:$0xff]
    %v4745 = vld [vmem:[%s4738 + $0x48] sm:$0xff]
    %v4746 = vld [vmem:[%s4738 + $0x50] sm:$0xff]
    %v4747 = vld [vmem:[%s4738 + $0x60] sm:$0xff]
    %v4748 = vld [vmem:[%s4738 + $0x68] sm:$0xff]
    %v4749 = vld [vmem:[%s4738 + $0x78] sm:$0xff]
    %v4750 = vld [vmem:[%s4738 + $0x80] sm:$0xff]
    %v4751 = vld [vmem:[%s4738 + $0x90] sm:$0xff]
    %v4752 = vld [vmem:[%s4738 + $0x98] sm:$0xff]
    %v4753 = vld [vmem:[%s4738 + $0xa8] sm:$0xff]
    %v4754 = vld [vmem:[%s4738 + $0xb0] sm:$0xff]
    %v4755 = vld [vmem:[%s4738 + $0xc0] sm:$0xff]
    %v4756 = vld [vmem:[%s4738 + $0xc8] sm:$0xff]
    %v4757 = vld [vmem:[%s4738 + $0xd8] sm:$0xff]
    %v4758 = vld [vmem:[%s4738 + $0xe0] sm:$0xff]
    %v4759 = vld [vmem:[%s4738 + $0x120] sm:$0xff]
    %v4760 = vld [vmem:[%s4738 + $0x128] sm:$0xff]
    %v4761 = vld [vmem:[%s4738 + $0x138] sm:$0xff]
    %v4762 = vld [vmem:[%s4738 + $0x140] sm:$0xff]
    %v4763 = vld [vmem:[%s4738 + $0x150] sm:$0xff]
    %v4764 = vld [vmem:[%s4738 + $0x158] sm:$0xff]
    %v4765 = vld [vmem:[%s4738 + $0x168] sm:$0xff]
    %v4766 = vld [vmem:[%s4738 + $0x170] sm:$0xff]
    %v4767 = vld [vmem:[%s4738 + $0x180] sm:$0xff]
    %v4768 = vld [vmem:[%s4738 + $0x188] sm:$0xff]
    %v4769 = vld [vmem:[%s4738 + $0x198] sm:$0xff]
    %v4770 = vld [vmem:[%s4738 + $0x1a0] sm:$0xff]
    %v4771 = vld [vmem:[%s4738 + $0x1b0] sm:$0xff]
    %v4772 = vld [vmem:[%s4738 + $0x1b8] sm:$0xff]
    %v4773 = vld [vmem:[%s4738 + $0x1c8] sm:$0xff]
    %v4774 = vld [vmem:[%s4738 + $0x1d0] sm:$0xff]
    %v4775 = vld [vmem:[%s4738 + $0x1e0] sm:$0xff]
    %v4776 = vld [vmem:[%s4738 + $0x1e8] sm:$0xff]
    %v4777 = vld [vmem:[%s4738 + $0x1f8] sm:$0xff]
    %v4778 = vld [vmem:[%s4738 + $0x200] sm:$0xff]
    %v4779 = vld [vmem:[%s4738 + $0x1] sm:$0xff]
    %v4780 = vld [vmem:[%s4738 + $0x9] sm:$0xff]
    %v4781 = vld [vmem:[%s4738 + $0x19] sm:$0xff]
    %v4782 = vld [vmem:[%s4738 + $0x21] sm:$0xff]
    %v4783 = vld [vmem:[%s4738 + $0x31] sm:$0xff]
    %v4784 = vld [vmem:[%s4738 + $0x39] sm:$0xff]
    %v4785 = vld [vmem:[%s4738 + $0x49] sm:$0xff]
    %v4786 = vld [vmem:[%s4738 + $0x51] sm:$0xff]
    %v4787 = vld [vmem:[%s4738 + $0x61] sm:$0xff]
    %v4788 = vld [vmem:[%s4738 + $0x69] sm:$0xff]
    %v4789 = vld [vmem:[%s4738 + $0x79] sm:$0xff]
    %v4790 = vld [vmem:[%s4738 + $0x81] sm:$0xff]
    %v4791 = vld [vmem:[%s4738 + $0x91] sm:$0xff]
    %v4792 = vld [vmem:[%s4738 + $0x99] sm:$0xff]
    %v4793 = vld [vmem:[%s4738 + $0xa9] sm:$0xff]
    %v4794 = vld [vmem:[%s4738 + $0xb1] sm:$0xff]
    %v4795 = vld [vmem:[%s4738 + $0xc1] sm:$0xff]
    %v4796 = vld [vmem:[%s4738 + $0xc9] sm:$0xff]
    %v4797 = vld [vmem:[%s4738 + $0xd9] sm:$0xff]
    %v4798 = vld [vmem:[%s4738 + $0xe1] sm:$0xff]
    %v4799 = vld [vmem:[%s4738 + $0x121] sm:$0xff]
    %v4800 = vld [vmem:[%s4738 + $0x129] sm:$0xff]
    %v4801 = vld [vmem:[%s4738 + $0x139] sm:$0xff]
    %v4802 = vld [vmem:[%s4738 + $0x141] sm:$0xff]
    %v4803 = vld [vmem:[%s4738 + $0x151] sm:$0xff]
    %v4804 = vld [vmem:[%s4738 + $0x159] sm:$0xff]
    %v4805 = vld [vmem:[%s4738 + $0x169] sm:$0xff]
    %v4806 = vld [vmem:[%s4738 + $0x171] sm:$0xff]
    %v4807 = vld [vmem:[%s4738 + $0x181] sm:$0xff]
    %v4808 = vld [vmem:[%s4738 + $0x189] sm:$0xff]
    %v4809 = vld [vmem:[%s4738 + $0x199] sm:$0xff]
    %v4810 = vld [vmem:[%s4738 + $0x1a1] sm:$0xff]
    %v4811 = vld [vmem:[%s4738 + $0x1b1] sm:$0xff]
    %v4812 = vld [vmem:[%s4738 + $0x1b9] sm:$0xff]
    %v4813 = vld [vmem:[%s4738 + $0x1c9] sm:$0xff]
    %v4814 = vld [vmem:[%s4738 + $0x1d1] sm:$0xff]
    %v4815 = vld [vmem:[%s4738 + $0x1e1] sm:$0xff]
    %v4816 = vld [vmem:[%s4738 + $0x1e9] sm:$0xff]
    %v4817 = vld [vmem:[%s4738 + $0x1f9] sm:$0xff]
    %v4818 = vld [vmem:[%s4738 + $0x201] sm:$0xff]
    %v4819 = vld [vmem:[%s4738 + $0x2] sm:$0xff]
    %v4820 = vld [vmem:[%s4738 + $0xa] sm:$0xff]
    %v4821 = vld [vmem:[%s4738 + $0x1a] sm:$0xff]
    %v4822 = vld [vmem:[%s4738 + $0x22] sm:$0xff]
    %v4823 = vld [vmem:[%s4738 + $0x32] sm:$0xff]
    %v4824 = vld [vmem:[%s4738 + $0x3a] sm:$0xff]
    %v4825 = vld [vmem:[%s4738 + $0x4a] sm:$0xff]
    %v4826 = vld [vmem:[%s4738 + $0x52] sm:$0xff]
    %v4827 = vld [vmem:[%s4738 + $0x62] sm:$0xff]
    %v4828 = vld [vmem:[%s4738 + $0x6a] sm:$0xff]
    %v4829 = vld [vmem:[%s4738 + $0x7a] sm:$0xff]
    %v4830 = vld [vmem:[%s4738 + $0x82] sm:$0xff]
    %v4831 = vld [vmem:[%s4738 + $0x92] sm:$0xff]
    %v4832 = vld [vmem:[%s4738 + $0x9a] sm:$0xff]
    %v4833 = vld [vmem:[%s4738 + $0xaa] sm:$0xff]
    %v4834 = vld [vmem:[%s4738 + $0xb2] sm:$0xff]
    %v4835 = vld [vmem:[%s4738 + $0xc2] sm:$0xff]
    %v4836 = vld [vmem:[%s4738 + $0xca] sm:$0xff]
    %v4837 = vld [vmem:[%s4738 + $0xda] sm:$0xff]
    %v4838 = vld [vmem:[%s4738 + $0xe2] sm:$0xff]
    %v4839 = vld [vmem:[%s4738 + $0x122] sm:$0xff]
    %v4840 = vld [vmem:[%s4738 + $0x12a] sm:$0xff]
    %v4841 = vld [vmem:[%s4738 + $0x13a] sm:$0xff]
    %v4842 = vld [vmem:[%s4738 + $0x142] sm:$0xff]
    %v4843 = vld [vmem:[%s4738 + $0x152] sm:$0xff]
    %v4844 = vld [vmem:[%s4738 + $0x15a] sm:$0xff]
    %v4845 = vld [vmem:[%s4738 + $0x16a] sm:$0xff]
    %v4846 = vld [vmem:[%s4738 + $0x172] sm:$0xff]
    %v4847 = vld [vmem:[%s4738 + $0x182] sm:$0xff]
    %v4848 = vld [vmem:[%s4738 + $0x18a] sm:$0xff]
    %v4849 = vld [vmem:[%s4738 + $0x19a] sm:$0xff]
    %v4850 = vld [vmem:[%s4738 + $0x1a2] sm:$0xff]
    %v4851 = vld [vmem:[%s4738 + $0x1b2] sm:$0xff]
    %v4852 = vld [vmem:[%s4738 + $0x1ba] sm:$0xff]
    %v4853 = vld [vmem:[%s4738 + $0x1ca] sm:$0xff]
    %v4854 = vld [vmem:[%s4738 + $0x1d2] sm:$0xff]
    %v4855 = vld [vmem:[%s4738 + $0x1e2] sm:$0xff]
    %v4856 = vld [vmem:[%s4738 + $0x1ea] sm:$0xff]
    %v4857 = vld [vmem:[%s4738 + $0x1fa] sm:$0xff]
    %v4858 = vld [vmem:[%s4738 + $0x202] sm:$0xff]
    %v4859 = vld [vmem:[%s4601] sm:$0xff]
    %v4860 = vld [vmem:[%s4601 + $0x8] sm:$0xff]
    %v4861 = vld [vmem:[%s4601 + $0x18] sm:$0xff]
    %v4862 = vld [vmem:[%s4601 + $0x20] sm:$0xff]
    %v4863 = vld [vmem:[%s4601 + $0x30] sm:$0xff]
    %v4864 = vld [vmem:[%s4601 + $0x38] sm:$0xff]
    %v4865 = vld [vmem:[%s4601 + $0x48] sm:$0xff]
    %v4866 = vld [vmem:[%s4601 + $0x50] sm:$0xff]
    %v4867 = vld [vmem:[%s4601 + $0x60] sm:$0xff]
    %v4868 = vld [vmem:[%s4601 + $0x68] sm:$0xff]
    %v4869 = vld [vmem:[%s4601 + $0x78] sm:$0xff]
    %v4870 = vld [vmem:[%s4601 + $0x80] sm:$0xff]
    %v4871 = vld [vmem:[%s4601 + $0x90] sm:$0xff]
    %v4872 = vld [vmem:[%s4601 + $0x98] sm:$0xff]
    %v4873 = vld [vmem:[%s4601 + $0xa8] sm:$0xff]
    %v4874 = vld [vmem:[%s4601 + $0xb0] sm:$0xff]
    %v4875 = vld [vmem:[%s4601 + $0xc0] sm:$0xff]
    %v4876 = vld [vmem:[%s4601 + $0xc8] sm:$0xff]
    %v4877 = vld [vmem:[%s4601 + $0xd8] sm:$0xff]
    %v4878 = vld [vmem:[%s4601 + $0xe0] sm:$0xff]
    %v4879 = vld [vmem:[%s4601 + $0x120] sm:$0xff]
    %v4880 = vld [vmem:[%s4601 + $0x128] sm:$0xff]
    %v4881 = vld [vmem:[%s4601 + $0x138] sm:$0xff]
    %v4882 = vld [vmem:[%s4601 + $0x140] sm:$0xff]
    %v4883 = vld [vmem:[%s4601 + $0x150] sm:$0xff]
    %v4884 = vld [vmem:[%s4601 + $0x158] sm:$0xff]
    %v4885 = vld [vmem:[%s4601 + $0x168] sm:$0xff]
    %v4886 = vld [vmem:[%s4601 + $0x170] sm:$0xff]
    %v4887 = vld [vmem:[%s4601 + $0x180] sm:$0xff]
    %v4888 = vld [vmem:[%s4601 + $0x188] sm:$0xff]
    %v4889 = vld [vmem:[%s4601 + $0x198] sm:$0xff]
    %v4890 = vld [vmem:[%s4601 + $0x1a0] sm:$0xff]
    %v4891 = vld [vmem:[%s4601 + $0x1b0] sm:$0xff]
    %v4892 = vld [vmem:[%s4601 + $0x1b8] sm:$0xff]
    %v4893 = vld [vmem:[%s4601 + $0x1c8] sm:$0xff]
    %v4894 = vld [vmem:[%s4601 + $0x1d0] sm:$0xff]
    %v4895 = vld [vmem:[%s4601 + $0x1e0] sm:$0xff]
    %v4896 = vld [vmem:[%s4601 + $0x1e8] sm:$0xff]
    %v4897 = vld [vmem:[%s4601 + $0x1f8] sm:$0xff]
    %v4898 = vld [vmem:[%s4601 + $0x200] sm:$0xff]
    %v4899 = vld [vmem:[%s4601 + $0x1] sm:$0xff]
    %v4900 = vld [vmem:[%s4601 + $0x9] sm:$0xff]
    %v4901 = vld [vmem:[%s4601 + $0x19] sm:$0xff]
    %v4902 = vld [vmem:[%s4601 + $0x21] sm:$0xff]
    %v4903 = vld [vmem:[%s4601 + $0x31] sm:$0xff]
    %v4904 = vld [vmem:[%s4601 + $0x39] sm:$0xff]
    %v4905 = vld [vmem:[%s4601 + $0x49] sm:$0xff]
    %v4906 = vld [vmem:[%s4601 + $0x51] sm:$0xff]
    %v4907 = vld [vmem:[%s4601 + $0x61] sm:$0xff]
    %v4908 = vld [vmem:[%s4601 + $0x69] sm:$0xff]
    %v4909 = vld [vmem:[%s4601 + $0x79] sm:$0xff]
    %v4910 = vld [vmem:[%s4601 + $0x81] sm:$0xff]
    %v4911 = vld [vmem:[%s4601 + $0x91] sm:$0xff]
    %v4912 = vld [vmem:[%s4601 + $0x99] sm:$0xff]
    %v4913 = vld [vmem:[%s4601 + $0xa9] sm:$0xff]
    %v4914 = vld [vmem:[%s4601 + $0xb1] sm:$0xff]
    %v4915 = vld [vmem:[%s4601 + $0xc1] sm:$0xff]
    %v4916 = vld [vmem:[%s4601 + $0xc9] sm:$0xff]
    %v4917 = vld [vmem:[%s4601 + $0xd9] sm:$0xff]
    %v4918 = vld [vmem:[%s4601 + $0xe1] sm:$0xff]
    %v4919 = vld [vmem:[%s4601 + $0x121] sm:$0xff]
    %v4920 = vld [vmem:[%s4601 + $0x129] sm:$0xff]
    %v4921 = vld [vmem:[%s4601 + $0x139] sm:$0xff]
    %v4922 = vld [vmem:[%s4601 + $0x141] sm:$0xff]
    %v4923 = vld [vmem:[%s4601 + $0x151] sm:$0xff]
    %v4924 = vld [vmem:[%s4601 + $0x159] sm:$0xff]
    %v4925 = vld [vmem:[%s4601 + $0x169] sm:$0xff]
    %v4926 = vld [vmem:[%s4601 + $0x171] sm:$0xff]
    %v4927 = vld [vmem:[%s4601 + $0x181] sm:$0xff]
    %v4928 = vld [vmem:[%s4601 + $0x189] sm:$0xff]
    %v4929 = vld [vmem:[%s4601 + $0x199] sm:$0xff]
    %v4930 = vld [vmem:[%s4601 + $0x1a1] sm:$0xff]
    %v4931 = vld [vmem:[%s4601 + $0x1b1] sm:$0xff]
    %v4932 = vld [vmem:[%s4601 + $0x1b9] sm:$0xff]
    %v4933 = vld [vmem:[%s4601 + $0x1c9] sm:$0xff]
    %v4934 = vld [vmem:[%s4601 + $0x1d1] sm:$0xff]
    %v4935 = vld [vmem:[%s4601 + $0x1e1] sm:$0xff]
    %v4936 = vld [vmem:[%s4601 + $0x1e9] sm:$0xff]
    %v4937 = vld [vmem:[%s4601 + $0x1f9] sm:$0xff]
    %v4938 = vld [vmem:[%s4601 + $0x201] sm:$0xff]
    %v4939 = vld [vmem:[%s4601 + $0x2] sm:$0xff]
    %v4940 = vld [vmem:[%s4601 + $0xa] sm:$0xff]
    %v4941 = vld [vmem:[%s4601 + $0x1a] sm:$0xff]
    %v4942 = vld [vmem:[%s4601 + $0x22] sm:$0xff]
    %v4943 = vld [vmem:[%s4601 + $0x32] sm:$0xff]
    %v4944 = vld [vmem:[%s4601 + $0x3a] sm:$0xff]
    %v4945 = vld [vmem:[%s4601 + $0x4a] sm:$0xff]
    %v4946 = vld [vmem:[%s4601 + $0x52] sm:$0xff]
    %v4947 = vld [vmem:[%s4601 + $0x62] sm:$0xff]
    %v4948 = vld [vmem:[%s4601 + $0x6a] sm:$0xff]
    %v4949 = vld [vmem:[%s4601 + $0x7a] sm:$0xff]
    %v4950 = vld [vmem:[%s4601 + $0x82] sm:$0xff]
    %v4951 = vld [vmem:[%s4601 + $0x92] sm:$0xff]
    %v4952 = vld [vmem:[%s4601 + $0x9a] sm:$0xff]
    %v4953 = vld [vmem:[%s4601 + $0xaa] sm:$0xff]
    %v4954 = vld [vmem:[%s4601 + $0xb2] sm:$0xff]
    %v4955 = vld [vmem:[%s4601 + $0xc2] sm:$0xff]
    %v4956 = vld [vmem:[%s4601 + $0xca] sm:$0xff]
    %v4957 = vld [vmem:[%s4601 + $0xda] sm:$0xff]
    %v4958 = vld [vmem:[%s4601 + $0xe2] sm:$0xff]
    %v4959 = vld [vmem:[%s4601 + $0x122] sm:$0xff]
    %v4960 = vld [vmem:[%s4601 + $0x12a] sm:$0xff]
    %v4961 = vld [vmem:[%s4601 + $0x13a] sm:$0xff]
    %v4962 = vld [vmem:[%s4601 + $0x142] sm:$0xff]
    %v4963 = vld [vmem:[%s4601 + $0x152] sm:$0xff]
    %v4964 = vld [vmem:[%s4601 + $0x15a] sm:$0xff]
    %v4965 = vld [vmem:[%s4601 + $0x16a] sm:$0xff]
    %v4966 = vld [vmem:[%s4601 + $0x172] sm:$0xff]
    %v4967 = vld [vmem:[%s4601 + $0x182] sm:$0xff]
    %v4968 = vld [vmem:[%s4601 + $0x18a] sm:$0xff]
    %v4969 = vld [vmem:[%s4601 + $0x19a] sm:$0xff]
    %v4970 = vld [vmem:[%s4601 + $0x1a2] sm:$0xff]
    %v4971 = vld [vmem:[%s4601 + $0x1b2] sm:$0xff]
    %v4972 = vld [vmem:[%s4601 + $0x1ba] sm:$0xff]
    %v4973 = vld [vmem:[%s4601 + $0x1ca] sm:$0xff]
    %v4974 = vld [vmem:[%s4601 + $0x1d2] sm:$0xff]
    %v4975 = vld [vmem:[%s4601 + $0x1e2] sm:$0xff]
    %v4976 = vld [vmem:[%s4601 + $0x1ea] sm:$0xff]
    %v4977 = vld [vmem:[%s4601 + $0x1fa] sm:$0xff]
    %v4978 = vld [vmem:[%s4601 + $0x202] sm:$0xff]
    %5019 = vrot.lane.b32.xlu0 %v4658, 32
    %v5020 = vpop.permute.xlu0 %5019
    %5021 = vrot.lane.b32.xlu0 %v4659, 32
    %v5022 = vpop.permute.xlu0 %5021
    %5023 = vrot.lane.b32.xlu0 %v4660, 32
    %v5024 = vpop.permute.xlu0 %5023
    %5025 = vrot.lane.b32.xlu0 %v4661, 32
    %v5026 = vpop.permute.xlu0 %5025
    %5027 = vrot.lane.b32.xlu0 %v4662, 32
    %v5028 = vpop.permute.xlu0 %5027
    %5029 = vrot.lane.b32.xlu0 %v4663, 32
    %v5030 = vpop.permute.xlu0 %5029
    %5031 = vrot.lane.b32.xlu0 %v4664, 32
    %v5032 = vpop.permute.xlu0 %5031
    %5033 = vrot.lane.b32.xlu0 %v4665, 32
    %v5034 = vpop.permute.xlu0 %5033
    %5035 = vrot.lane.b32.xlu0 %v4666, 32
    %v5036 = vpop.permute.xlu0 %5035
    %5037 = vrot.lane.b32.xlu0 %v4667, 32
    %v5038 = vpop.permute.xlu0 %5037
    %5039 = vrot.lane.b32.xlu0 %v4668, 32
    %v5040 = vpop.permute.xlu0 %5039
    %5041 = vrot.lane.b32.xlu0 %v4669, 32
    %v5042 = vpop.permute.xlu0 %5041
    %5043 = vrot.lane.b32.xlu0 %v4670, 32
    %v5044 = vpop.permute.xlu0 %5043
    %5045 = vrot.lane.b32.xlu0 %v4671, 32
    %v5046 = vpop.permute.xlu0 %5045
    %5047 = vrot.lane.b32.xlu0 %v4672, 32
    %v5048 = vpop.permute.xlu0 %5047
    %5049 = vrot.lane.b32.xlu0 %v4673, 32
    %v5050 = vpop.permute.xlu0 %5049
    %5051 = vrot.lane.b32.xlu0 %v4674, 32
    %v5052 = vpop.permute.xlu0 %5051
    %5053 = vrot.lane.b32.xlu0 %v4675, 32
    %v5054 = vpop.permute.xlu0 %5053
    %5055 = vrot.lane.b32.xlu0 %v4676, 32
    %v5056 = vpop.permute.xlu0 %5055
    %5057 = vrot.lane.b32.xlu0 %v4677, 32
    %v5058 = vpop.permute.xlu0 %5057
    %5059 = vrot.lane.b32.xlu0 %v4678, 32
    %v5060 = vpop.permute.xlu0 %5059
    %5061 = vrot.lane.b32.xlu0 %v4679, 32
    %v5062 = vpop.permute.xlu0 %5061
    %5063 = vrot.lane.b32.xlu0 %v4680, 32
    %v5064 = vpop.permute.xlu0 %5063
    %5065 = vrot.lane.b32.xlu0 %v4681, 32
    %v5066 = vpop.permute.xlu0 %5065
    %5067 = vrot.lane.b32.xlu0 %v4682, 32
    %v5068 = vpop.permute.xlu0 %5067
    %5069 = vrot.lane.b32.xlu0 %v4683, 32
    %v5070 = vpop.permute.xlu0 %5069
    %5071 = vrot.lane.b32.xlu0 %v4684, 32
    %v5072 = vpop.permute.xlu0 %5071
    %5073 = vrot.lane.b32.xlu0 %v4685, 32
    %v5074 = vpop.permute.xlu0 %5073
    %5075 = vrot.lane.b32.xlu0 %v4686, 32
    %v5076 = vpop.permute.xlu0 %5075
    %5077 = vrot.lane.b32.xlu0 %v4687, 32
    %v5078 = vpop.permute.xlu0 %5077
    %5079 = vrot.lane.b32.xlu0 %v4688, 32
    %v5080 = vpop.permute.xlu0 %5079
    %5081 = vrot.lane.b32.xlu0 %v4689, 32
    %v5082 = vpop.permute.xlu0 %5081
    %5083 = vrot.lane.b32.xlu0 %v4690, 32
    %v5084 = vpop.permute.xlu0 %5083
    %5085 = vrot.lane.b32.xlu0 %v4691, 32
    %v5086 = vpop.permute.xlu0 %5085
    %5087 = vrot.lane.b32.xlu0 %v4692, 32
    %v5088 = vpop.permute.xlu0 %5087
    %5089 = vrot.lane.b32.xlu0 %v4693, 32
    %v5090 = vpop.permute.xlu0 %5089
    %5091 = vrot.lane.b32.xlu0 %v4694, 32
    %v5092 = vpop.permute.xlu0 %5091
    %5093 = vrot.lane.b32.xlu0 %v4695, 32
    %v5094 = vpop.permute.xlu0 %5093
    %5095 = vrot.lane.b32.xlu0 %v4696, 32
    %v5096 = vpop.permute.xlu0 %5095
    %5097 = vrot.lane.b32.xlu0 %v4697, 32
    %v5098 = vpop.permute.xlu0 %5097
    %5179 = vrot.lane.b32.xlu0 %v4698, 64
    %v5180 = vpop.permute.xlu0 %5179
    %5181 = vrot.lane.b32.xlu0 %v4699, 64
    %v5182 = vpop.permute.xlu0 %5181
    %5183 = vrot.lane.b32.xlu0 %v4700, 64
    %v5184 = vpop.permute.xlu0 %5183
    %5185 = vrot.lane.b32.xlu0 %v4701, 64
    %v5186 = vpop.permute.xlu0 %5185
    %5187 = vrot.lane.b32.xlu0 %v4702, 64
    %v5188 = vpop.permute.xlu0 %5187
    %5189 = vrot.lane.b32.xlu0 %v4703, 64
    %v5190 = vpop.permute.xlu0 %5189
    %5191 = vrot.lane.b32.xlu0 %v4704, 64
    %v5192 = vpop.permute.xlu0 %5191
    %5193 = vrot.lane.b32.xlu0 %v4705, 64
    %v5194 = vpop.permute.xlu0 %5193
    %5195 = vrot.lane.b32.xlu0 %v4706, 64
    %v5196 = vpop.permute.xlu0 %5195
    %5197 = vrot.lane.b32.xlu0 %v4707, 64
    %v5198 = vpop.permute.xlu0 %5197
    %5199 = vrot.lane.b32.xlu0 %v4708, 64
    %v5200 = vpop.permute.xlu0 %5199
    %5201 = vrot.lane.b32.xlu0 %v4709, 64
    %v5202 = vpop.permute.xlu0 %5201
    %5203 = vrot.lane.b32.xlu0 %v4710, 64
    %v5204 = vpop.permute.xlu0 %5203
    %5205 = vrot.lane.b32.xlu0 %v4711, 64
    %v5206 = vpop.permute.xlu0 %5205
    %5207 = vrot.lane.b32.xlu0 %v4712, 64
    %v5208 = vpop.permute.xlu0 %5207
    %5209 = vrot.lane.b32.xlu0 %v4713, 64
    %v5210 = vpop.permute.xlu0 %5209
    %5211 = vrot.lane.b32.xlu0 %v4714, 64
    %v5212 = vpop.permute.xlu0 %5211
    %5213 = vrot.lane.b32.xlu0 %v4715, 64
    %v5214 = vpop.permute.xlu0 %5213
    %5215 = vrot.lane.b32.xlu0 %v4716, 64
    %v5216 = vpop.permute.xlu0 %5215
    %5217 = vrot.lane.b32.xlu0 %v4717, 64
    %v5218 = vpop.permute.xlu0 %5217
    %5219 = vrot.lane.b32.xlu0 %v4718, 64
    %v5220 = vpop.permute.xlu0 %5219
    %5221 = vrot.lane.b32.xlu0 %v4719, 64
    %v5222 = vpop.permute.xlu0 %5221
    %5223 = vrot.lane.b32.xlu0 %v4720, 64
    %v5224 = vpop.permute.xlu0 %5223
    %5225 = vrot.lane.b32.xlu0 %v4721, 64
    %v5226 = vpop.permute.xlu0 %5225
    %5227 = vrot.lane.b32.xlu0 %v4722, 64
    %v5228 = vpop.permute.xlu0 %5227
    %5229 = vrot.lane.b32.xlu0 %v4723, 64
    %v5230 = vpop.permute.xlu0 %5229
    %5231 = vrot.lane.b32.xlu0 %v4724, 64
    %v5232 = vpop.permute.xlu0 %5231
    %5233 = vrot.lane.b32.xlu0 %v4725, 64
    %v5234 = vpop.permute.xlu0 %5233
    %5235 = vrot.lane.b32.xlu0 %v4726, 64
    %v5236 = vpop.permute.xlu0 %5235
    %5237 = vrot.lane.b32.xlu0 %v4727, 64
    %v5238 = vpop.permute.xlu0 %5237
    %5239 = vrot.lane.b32.xlu0 %v4728, 64
    %v5240 = vpop.permute.xlu0 %5239
    %5241 = vrot.lane.b32.xlu0 %v4729, 64
    %v5242 = vpop.permute.xlu0 %5241
    %5243 = vrot.lane.b32.xlu0 %v4730, 64
    %v5244 = vpop.permute.xlu0 %5243
    %5245 = vrot.lane.b32.xlu0 %v4731, 64
    %v5246 = vpop.permute.xlu0 %5245
    %5247 = vrot.lane.b32.xlu0 %v4732, 64
    %v5248 = vpop.permute.xlu0 %5247
    %5249 = vrot.lane.b32.xlu0 %v4733, 64
    %v5250 = vpop.permute.xlu0 %5249
    %5251 = vrot.lane.b32.xlu0 %v4734, 64
    %v5252 = vpop.permute.xlu0 %5251
    %5253 = vrot.lane.b32.xlu0 %v4735, 64
    %v5254 = vpop.permute.xlu0 %5253
    %5255 = vrot.lane.b32.xlu0 %v4736, 64
    %v5256 = vpop.permute.xlu0 %5255
    %5257 = vrot.lane.b32.xlu0 %v4737, 64
    %v5258 = vpop.permute.xlu0 %5257
    %5339 = vrot.lane.b32.xlu0 %v4739, 96
    %v5340 = vpop.permute.xlu0 %5339
    %5341 = vrot.lane.b32.xlu0 %v4740, 96
    %v5342 = vpop.permute.xlu0 %5341
    %5343 = vrot.lane.b32.xlu0 %v4741, 96
    %v5344 = vpop.permute.xlu0 %5343
    %5345 = vrot.lane.b32.xlu0 %v4742, 96
    %v5346 = vpop.permute.xlu0 %5345
    %5347 = vrot.lane.b32.xlu0 %v4743, 96
    %v5348 = vpop.permute.xlu0 %5347
    %5349 = vrot.lane.b32.xlu0 %v4744, 96
    %v5350 = vpop.permute.xlu0 %5349
    %5351 = vrot.lane.b32.xlu0 %v4745, 96
    %v5352 = vpop.permute.xlu0 %5351
    %5353 = vrot.lane.b32.xlu0 %v4746, 96
    %v5354 = vpop.permute.xlu0 %5353
    %5355 = vrot.lane.b32.xlu0 %v4747, 96
    %v5356 = vpop.permute.xlu0 %5355
    %5357 = vrot.lane.b32.xlu0 %v4748, 96
    %v5358 = vpop.permute.xlu0 %5357
    %5359 = vrot.lane.b32.xlu0 %v4749, 96
    %v5360 = vpop.permute.xlu0 %5359
    %5361 = vrot.lane.b32.xlu0 %v4750, 96
    %v5362 = vpop.permute.xlu0 %5361
    %5363 = vrot.lane.b32.xlu0 %v4751, 96
    %v5364 = vpop.permute.xlu0 %5363
    %5365 = vrot.lane.b32.xlu0 %v4752, 96
    %v5366 = vpop.permute.xlu0 %5365
    %5367 = vrot.lane.b32.xlu0 %v4753, 96
    %v5368 = vpop.permute.xlu0 %5367
    %5369 = vrot.lane.b32.xlu0 %v4754, 96
    %v5370 = vpop.permute.xlu0 %5369
    %5371 = vrot.lane.b32.xlu0 %v4755, 96
    %v5372 = vpop.permute.xlu0 %5371
    %5373 = vrot.lane.b32.xlu0 %v4756, 96
    %v5374 = vpop.permute.xlu0 %5373
    %5375 = vrot.lane.b32.xlu0 %v4757, 96
    %v5376 = vpop.permute.xlu0 %5375
    %5377 = vrot.lane.b32.xlu0 %v4758, 96
    %v5378 = vpop.permute.xlu0 %5377
    %5379 = vrot.lane.b32.xlu0 %v4759, 96
    %v5380 = vpop.permute.xlu0 %5379
    %5381 = vrot.lane.b32.xlu0 %v4760, 96
    %v5382 = vpop.permute.xlu0 %5381
    %5383 = vrot.lane.b32.xlu0 %v4761, 96
    %v5384 = vpop.permute.xlu0 %5383
    %5385 = vrot.lane.b32.xlu0 %v4762, 96
    %v5386 = vpop.permute.xlu0 %5385
    %5387 = vrot.lane.b32.xlu0 %v4763, 96
    %v5388 = vpop.permute.xlu0 %5387
    %5389 = vrot.lane.b32.xlu0 %v4764, 96
    %v5390 = vpop.permute.xlu0 %5389
    %5391 = vrot.lane.b32.xlu0 %v4765, 96
    %v5392 = vpop.permute.xlu0 %5391
    %5393 = vrot.lane.b32.xlu0 %v4766, 96
    %v5394 = vpop.permute.xlu0 %5393
    %5395 = vrot.lane.b32.xlu0 %v4767, 96
    %v5396 = vpop.permute.xlu0 %5395
    %5397 = vrot.lane.b32.xlu0 %v4768, 96
    %v5398 = vpop.permute.xlu0 %5397
    %5399 = vrot.lane.b32.xlu0 %v4769, 96
    %v5400 = vpop.permute.xlu0 %5399
    %5401 = vrot.lane.b32.xlu0 %v4770, 96
    %v5402 = vpop.permute.xlu0 %5401
    %5403 = vrot.lane.b32.xlu0 %v4771, 96
    %v5404 = vpop.permute.xlu0 %5403
    %5405 = vrot.lane.b32.xlu0 %v4772, 96
    %v5406 = vpop.permute.xlu0 %5405
    %5407 = vrot.lane.b32.xlu0 %v4773, 96
    %v5408 = vpop.permute.xlu0 %5407
    %5409 = vrot.lane.b32.xlu0 %v4774, 96
    %v5410 = vpop.permute.xlu0 %5409
    %5411 = vrot.lane.b32.xlu0 %v4775, 96
    %v5412 = vpop.permute.xlu0 %5411
    %5413 = vrot.lane.b32.xlu0 %v4776, 96
    %v5414 = vpop.permute.xlu0 %5413
    %5415 = vrot.lane.b32.xlu0 %v4777, 96
    %v5416 = vpop.permute.xlu0 %5415
    %5417 = vrot.lane.b32.xlu0 %v4778, 96
    %v5418 = vpop.permute.xlu0 %5417
    %5499 = vrot.lane.b32.xlu0 %v4819, 32
    %v5500 = vpop.permute.xlu0 %5499
    %5501 = vrot.lane.b32.xlu0 %v4820, 32
    %v5502 = vpop.permute.xlu0 %5501
    %5503 = vrot.lane.b32.xlu0 %v4821, 32
    %v5504 = vpop.permute.xlu0 %5503
    %5505 = vrot.lane.b32.xlu0 %v4822, 32
    %v5506 = vpop.permute.xlu0 %5505
    %5507 = vrot.lane.b32.xlu0 %v4823, 32
    %v5508 = vpop.permute.xlu0 %5507
    %5509 = vrot.lane.b32.xlu0 %v4824, 32
    %v5510 = vpop.permute.xlu0 %5509
    %5511 = vrot.lane.b32.xlu0 %v4825, 32
    %v5512 = vpop.permute.xlu0 %5511
    %5513 = vrot.lane.b32.xlu0 %v4826, 32
    %v5514 = vpop.permute.xlu0 %5513
    %5515 = vrot.lane.b32.xlu0 %v4827, 32
    %v5516 = vpop.permute.xlu0 %5515
    %5517 = vrot.lane.b32.xlu0 %v4828, 32
    %v5518 = vpop.permute.xlu0 %5517
    %5519 = vrot.lane.b32.xlu0 %v4829, 32
    %v5520 = vpop.permute.xlu0 %5519
    %5521 = vrot.lane.b32.xlu0 %v4830, 32
    %v5522 = vpop.permute.xlu0 %5521
    %5523 = vrot.lane.b32.xlu0 %v4831, 32
    %v5524 = vpop.permute.xlu0 %5523
    %5525 = vrot.lane.b32.xlu0 %v4832, 32
    %v5526 = vpop.permute.xlu0 %5525
    %5527 = vrot.lane.b32.xlu0 %v4833, 32
    %v5528 = vpop.permute.xlu0 %5527
    %5529 = vrot.lane.b32.xlu0 %v4834, 32
    %v5530 = vpop.permute.xlu0 %5529
    %5531 = vrot.lane.b32.xlu0 %v4835, 32
    %v5532 = vpop.permute.xlu0 %5531
    %5533 = vrot.lane.b32.xlu0 %v4836, 32
    %v5534 = vpop.permute.xlu0 %5533
    %5535 = vrot.lane.b32.xlu0 %v4837, 32
    %v5536 = vpop.permute.xlu0 %5535
    %5537 = vrot.lane.b32.xlu0 %v4838, 32
    %v5538 = vpop.permute.xlu0 %5537
    %5539 = vrot.lane.b32.xlu0 %v4839, 32
    %v5540 = vpop.permute.xlu0 %5539
    %5541 = vrot.lane.b32.xlu0 %v4840, 32
    %v5542 = vpop.permute.xlu0 %5541
    %5543 = vrot.lane.b32.xlu0 %v4841, 32
    %v5544 = vpop.permute.xlu0 %5543
    %5545 = vrot.lane.b32.xlu0 %v4842, 32
    %v5546 = vpop.permute.xlu0 %5545
    %5547 = vrot.lane.b32.xlu0 %v4843, 32
    %v5548 = vpop.permute.xlu0 %5547
    %5549 = vrot.lane.b32.xlu0 %v4844, 32
    %v5550 = vpop.permute.xlu0 %5549
    %5551 = vrot.lane.b32.xlu0 %v4845, 32
    %v5552 = vpop.permute.xlu0 %5551
    %5553 = vrot.lane.b32.xlu0 %v4846, 32
    %v5554 = vpop.permute.xlu0 %5553
    %5555 = vrot.lane.b32.xlu0 %v4847, 32
    %v5556 = vpop.permute.xlu0 %5555
    %5557 = vrot.lane.b32.xlu0 %v4848, 32
    %v5558 = vpop.permute.xlu0 %5557
    %5559 = vrot.lane.b32.xlu0 %v4849, 32
    %v5560 = vpop.permute.xlu0 %5559
    %5561 = vrot.lane.b32.xlu0 %v4850, 32
    %v5562 = vpop.permute.xlu0 %5561
    %5563 = vrot.lane.b32.xlu0 %v4851, 32
    %v5564 = vpop.permute.xlu0 %5563
    %5565 = vrot.lane.b32.xlu0 %v4852, 32
    %v5566 = vpop.permute.xlu0 %5565
    %5567 = vrot.lane.b32.xlu0 %v4853, 32
    %v5568 = vpop.permute.xlu0 %5567
    %5569 = vrot.lane.b32.xlu0 %v4854, 32
    %v5570 = vpop.permute.xlu0 %5569
    %5571 = vrot.lane.b32.xlu0 %v4855, 32
    %v5572 = vpop.permute.xlu0 %5571
    %5573 = vrot.lane.b32.xlu0 %v4856, 32
    %v5574 = vpop.permute.xlu0 %5573
    %5575 = vrot.lane.b32.xlu0 %v4857, 32
    %v5576 = vpop.permute.xlu0 %5575
    %5577 = vrot.lane.b32.xlu0 %v4858, 32
    %v5578 = vpop.permute.xlu0 %5577
    %5659 = vrot.lane.b32.xlu0 %v4859, 64
    %v5660 = vpop.permute.xlu0 %5659
    %5661 = vrot.lane.b32.xlu0 %v4860, 64
    %v5662 = vpop.permute.xlu0 %5661
    %5663 = vrot.lane.b32.xlu0 %v4861, 64
    %v5664 = vpop.permute.xlu0 %5663
    %5665 = vrot.lane.b32.xlu0 %v4862, 64
    %v5666 = vpop.permute.xlu0 %5665
    %5667 = vrot.lane.b32.xlu0 %v4863, 64
    %v5668 = vpop.permute.xlu0 %5667
    %5669 = vrot.lane.b32.xlu0 %v4864, 64
    %v5670 = vpop.permute.xlu0 %5669
    %5671 = vrot.lane.b32.xlu0 %v4865, 64
    %v5672 = vpop.permute.xlu0 %5671
    %5673 = vrot.lane.b32.xlu0 %v4866, 64
    %v5674 = vpop.permute.xlu0 %5673
    %5675 = vrot.lane.b32.xlu0 %v4867, 64
    %v5676 = vpop.permute.xlu0 %5675
    %5677 = vrot.lane.b32.xlu0 %v4868, 64
    %v5678 = vpop.permute.xlu0 %5677
    %5679 = vrot.lane.b32.xlu0 %v4869, 64
    %v5680 = vpop.permute.xlu0 %5679
    %5681 = vrot.lane.b32.xlu0 %v4870, 64
    %v5682 = vpop.permute.xlu0 %5681
    %5683 = vrot.lane.b32.xlu0 %v4871, 64
    %v5684 = vpop.permute.xlu0 %5683
    %5685 = vrot.lane.b32.xlu0 %v4872, 64
    %v5686 = vpop.permute.xlu0 %5685
    %5687 = vrot.lane.b32.xlu0 %v4873, 64
    %v5688 = vpop.permute.xlu0 %5687
    %5689 = vrot.lane.b32.xlu0 %v4874, 64
    %v5690 = vpop.permute.xlu0 %5689
    %5691 = vrot.lane.b32.xlu0 %v4875, 64
    %v5692 = vpop.permute.xlu0 %5691
    %5693 = vrot.lane.b32.xlu0 %v4876, 64
    %v5694 = vpop.permute.xlu0 %5693
    %5695 = vrot.lane.b32.xlu0 %v4877, 64
    %v5696 = vpop.permute.xlu0 %5695
    %5697 = vrot.lane.b32.xlu0 %v4878, 64
    %v5698 = vpop.permute.xlu0 %5697
    %5699 = vrot.lane.b32.xlu0 %v4879, 64
    %v5700 = vpop.permute.xlu0 %5699
    %5701 = vrot.lane.b32.xlu0 %v4880, 64
    %v5702 = vpop.permute.xlu0 %5701
    %5703 = vrot.lane.b32.xlu0 %v4881, 64
    %v5704 = vpop.permute.xlu0 %5703
    %5705 = vrot.lane.b32.xlu0 %v4882, 64
    %v5706 = vpop.permute.xlu0 %5705
    %5707 = vrot.lane.b32.xlu0 %v4883, 64
    %v5708 = vpop.permute.xlu0 %5707
    %5709 = vrot.lane.b32.xlu0 %v4884, 64
    %v5710 = vpop.permute.xlu0 %5709
    %5711 = vrot.lane.b32.xlu0 %v4885, 64
    %v5712 = vpop.permute.xlu0 %5711
    %5713 = vrot.lane.b32.xlu0 %v4886, 64
    %v5714 = vpop.permute.xlu0 %5713
    %5715 = vrot.lane.b32.xlu0 %v4887, 64
    %v5716 = vpop.permute.xlu0 %5715
    %5717 = vrot.lane.b32.xlu0 %v4888, 64
    %v5718 = vpop.permute.xlu0 %5717
    %5719 = vrot.lane.b32.xlu0 %v4889, 64
    %v5720 = vpop.permute.xlu0 %5719
    %5721 = vrot.lane.b32.xlu0 %v4890, 64
    %v5722 = vpop.permute.xlu0 %5721
    %5723 = vrot.lane.b32.xlu0 %v4891, 64
    %v5724 = vpop.permute.xlu0 %5723
    %5725 = vrot.lane.b32.xlu0 %v4892, 64
    %v5726 = vpop.permute.xlu0 %5725
    %5727 = vrot.lane.b32.xlu0 %v4893, 64
    %v5728 = vpop.permute.xlu0 %5727
    %5729 = vrot.lane.b32.xlu0 %v4894, 64
    %v5730 = vpop.permute.xlu0 %5729
    %5731 = vrot.lane.b32.xlu0 %v4895, 64
    %v5732 = vpop.permute.xlu0 %5731
    %5733 = vrot.lane.b32.xlu0 %v4896, 64
    %v5734 = vpop.permute.xlu0 %5733
    %5735 = vrot.lane.b32.xlu0 %v4897, 64
    %v5736 = vpop.permute.xlu0 %5735
    %5737 = vrot.lane.b32.xlu0 %v4898, 64
    %v5738 = vpop.permute.xlu0 %5737
    %5819 = vrot.lane.b32.xlu0 %v4899, 96
    %v5820 = vpop.permute.xlu0 %5819
    %5821 = vrot.lane.b32.xlu0 %v4900, 96
    %v5822 = vpop.permute.xlu0 %5821
    %5823 = vrot.lane.b32.xlu0 %v4901, 96
    %v5824 = vpop.permute.xlu0 %5823
    %5825 = vrot.lane.b32.xlu0 %v4902, 96
    %v5826 = vpop.permute.xlu0 %5825
    %5827 = vrot.lane.b32.xlu0 %v4903, 96
    %v5828 = vpop.permute.xlu0 %5827
    %5829 = vrot.lane.b32.xlu0 %v4904, 96
    %v5830 = vpop.permute.xlu0 %5829
    %5831 = vrot.lane.b32.xlu0 %v4905, 96
    %v5832 = vpop.permute.xlu0 %5831
    %5833 = vrot.lane.b32.xlu0 %v4906, 96
    %v5834 = vpop.permute.xlu0 %5833
    %5835 = vrot.lane.b32.xlu0 %v4907, 96
    %v5836 = vpop.permute.xlu0 %5835
    %5837 = vrot.lane.b32.xlu0 %v4908, 96
    %v5838 = vpop.permute.xlu0 %5837
    %5839 = vrot.lane.b32.xlu0 %v4909, 96
    %v5840 = vpop.permute.xlu0 %5839
    %5841 = vrot.lane.b32.xlu0 %v4910, 96
    %v5842 = vpop.permute.xlu0 %5841
    %5843 = vrot.lane.b32.xlu0 %v4911, 96
    %v5844 = vpop.permute.xlu0 %5843
    %5845 = vrot.lane.b32.xlu0 %v4912, 96
    %v5846 = vpop.permute.xlu0 %5845
    %5847 = vrot.lane.b32.xlu0 %v4913, 96
    %v5848 = vpop.permute.xlu0 %5847
    %5849 = vrot.lane.b32.xlu0 %v4914, 96
    %v5850 = vpop.permute.xlu0 %5849
    %5851 = vrot.lane.b32.xlu0 %v4915, 96
    %v5852 = vpop.permute.xlu0 %5851
    %5853 = vrot.lane.b32.xlu0 %v4916, 96
    %v5854 = vpop.permute.xlu0 %5853
    %5855 = vrot.lane.b32.xlu0 %v4917, 96
    %v5856 = vpop.permute.xlu0 %5855
    %5857 = vrot.lane.b32.xlu0 %v4918, 96
    %v5858 = vpop.permute.xlu0 %5857
    %5859 = vrot.lane.b32.xlu0 %v4919, 96
    %v5860 = vpop.permute.xlu0 %5859
    %5861 = vrot.lane.b32.xlu0 %v4920, 96
    %v5862 = vpop.permute.xlu0 %5861
    %5863 = vrot.lane.b32.xlu0 %v4921, 96
    %v5864 = vpop.permute.xlu0 %5863
    %5865 = vrot.lane.b32.xlu0 %v4922, 96
    %v5866 = vpop.permute.xlu0 %5865
    %5867 = vrot.lane.b32.xlu0 %v4923, 96
    %v5868 = vpop.permute.xlu0 %5867
    %5869 = vrot.lane.b32.xlu0 %v4924, 96
    %v5870 = vpop.permute.xlu0 %5869
    %5871 = vrot.lane.b32.xlu0 %v4925, 96
    %v5872 = vpop.permute.xlu0 %5871
    %5873 = vrot.lane.b32.xlu0 %v4926, 96
    %v5874 = vpop.permute.xlu0 %5873
    %5875 = vrot.lane.b32.xlu0 %v4927, 96
    %v5876 = vpop.permute.xlu0 %5875
    %5877 = vrot.lane.b32.xlu0 %v4928, 96
    %v5878 = vpop.permute.xlu0 %5877
    %5879 = vrot.lane.b32.xlu0 %v4929, 96
    %v5880 = vpop.permute.xlu0 %5879
    %5881 = vrot.lane.b32.xlu0 %v4930, 96
    %v5882 = vpop.permute.xlu0 %5881
    %5883 = vrot.lane.b32.xlu0 %v4931, 96
    %v5884 = vpop.permute.xlu0 %5883
    %5885 = vrot.lane.b32.xlu0 %v4932, 96
    %v5886 = vpop.permute.xlu0 %5885
    %5887 = vrot.lane.b32.xlu0 %v4933, 96
    %v5888 = vpop.permute.xlu0 %5887
    %5889 = vrot.lane.b32.xlu0 %v4934, 96
    %v5890 = vpop.permute.xlu0 %5889
    %5891 = vrot.lane.b32.xlu0 %v4935, 96
    %v5892 = vpop.permute.xlu0 %5891
    %5893 = vrot.lane.b32.xlu0 %v4936, 96
    %v5894 = vpop.permute.xlu0 %5893
    %5895 = vrot.lane.b32.xlu0 %v4937, 96
    %v5896 = vpop.permute.xlu0 %5895
    %5897 = vrot.lane.b32.xlu0 %v4938, 96
    %v5898 = vpop.permute.xlu0 %5897
    %v5939 = vsel %vm3913, %v4618, %v5020
    %v5940 = vsel %vm3913, %v4619, %v5022
    %v5941 = vsel %vm3913, %v4620, %v5024
    %v5942 = vsel %vm3913, %v4621, %v5026
    %v5943 = vsel %vm3913, %v4622, %v5028
    %v5944 = vsel %vm3913, %v4623, %v5030
    %v5945 = vsel %vm3913, %v4624, %v5032
    %v5946 = vsel %vm3913, %v4625, %v5034
    %v5947 = vsel %vm3913, %v4626, %v5036
    %v5948 = vsel %vm3913, %v4627, %v5038
    %v5949 = vsel %vm3913, %v4628, %v5040
    %v5950 = vsel %vm3913, %v4629, %v5042
    %v5951 = vsel %vm3913, %v4630, %v5044
    %v5952 = vsel %vm3913, %v4631, %v5046
    %v5953 = vsel %vm3913, %v4632, %v5048
    %v5954 = vsel %vm3913, %v4633, %v5050
    %v5955 = vsel %vm3913, %v4634, %v5052
    %v5956 = vsel %vm3913, %v4635, %v5054
    %v5957 = vsel %vm3913, %v4636, %v5056
    %v5958 = vsel %vm3913, %v4637, %v5058
    %v5959 = vsel %vm3913, %v4638, %v5060
    %v5960 = vsel %vm3913, %v4639, %v5062
    %v5961 = vsel %vm3913, %v4640, %v5064
    %v5962 = vsel %vm3913, %v4641, %v5066
    %v5963 = vsel %vm3913, %v4642, %v5068
    %v5964 = vsel %vm3913, %v4643, %v5070
    %v5965 = vsel %vm3913, %v4644, %v5072
    %v5966 = vsel %vm3913, %v4645, %v5074
    %v5967 = vsel %vm3913, %v4646, %v5076
    %v5968 = vsel %vm3913, %v4647, %v5078
    %v5969 = vsel %vm3913, %v4648, %v5080
    %v5970 = vsel %vm3913, %v4649, %v5082
    %v5971 = vsel %vm3913, %v4650, %v5084
    %v5972 = vsel %vm3913, %v4651, %v5086
    %v5973 = vsel %vm3913, %v4652, %v5088
    %v5974 = vsel %vm3913, %v4653, %v5090
    %v5975 = vsel %vm3913, %v4654, %v5092
    %v5976 = vsel %vm3913, %v4655, %v5094
    %v5977 = vsel %vm3913, %v4656, %v5096
    %v5978 = vsel %vm3913, %v4657, %v5098
    %vm5979 = vcmask 523264
    %v5980 = vsel %vm5979, %v5939, %v5180
    %v5981 = vsel %vm5979, %v5940, %v5182
    %v5982 = vsel %vm5979, %v5941, %v5184
    %v5983 = vsel %vm5979, %v5942, %v5186
    %v5984 = vsel %vm5979, %v5943, %v5188
    %v5985 = vsel %vm5979, %v5944, %v5190
    %v5986 = vsel %vm5979, %v5945, %v5192
    %v5987 = vsel %vm5979, %v5946, %v5194
    %v5988 = vsel %vm5979, %v5947, %v5196
    %v5989 = vsel %vm5979, %v5948, %v5198
    %v5990 = vsel %vm5979, %v5949, %v5200
    %v5991 = vsel %vm5979, %v5950, %v5202
    %v5992 = vsel %vm5979, %v5951, %v5204
    %v5993 = vsel %vm5979, %v5952, %v5206
    %v5994 = vsel %vm5979, %v5953, %v5208
    %v5995 = vsel %vm5979, %v5954, %v5210
    %v5996 = vsel %vm5979, %v5955, %v5212
    %v5997 = vsel %vm5979, %v5956, %v5214
    %v5998 = vsel %vm5979, %v5957, %v5216
    %v5999 = vsel %vm5979, %v5958, %v5218
    %v6000 = vsel %vm5979, %v5959, %v5220
    %v6001 = vsel %vm5979, %v5960, %v5222
    %v6002 = vsel %vm5979, %v5961, %v5224
    %v6003 = vsel %vm5979, %v5962, %v5226
    %v6004 = vsel %vm5979, %v5963, %v5228
    %v6005 = vsel %vm5979, %v5964, %v5230
    %v6006 = vsel %vm5979, %v5965, %v5232
    %v6007 = vsel %vm5979, %v5966, %v5234
    %v6008 = vsel %vm5979, %v5967, %v5236
    %v6009 = vsel %vm5979, %v5968, %v5238
    %v6010 = vsel %vm5979, %v5969, %v5240
    %v6011 = vsel %vm5979, %v5970, %v5242
    %v6012 = vsel %vm5979, %v5971, %v5244
    %v6013 = vsel %vm5979, %v5972, %v5246
    %v6014 = vsel %vm5979, %v5973, %v5248
    %v6015 = vsel %vm5979, %v5974, %v5250
    %v6016 = vsel %vm5979, %v5975, %v5252
    %v6017 = vsel %vm5979, %v5976, %v5254
    %v6018 = vsel %vm5979, %v5977, %v5256
    %v6019 = vsel %vm5979, %v5978, %v5258
    %vm6020 = vcmask 785408
    %v6021 = vsel %vm6020, %v5980, %v5340
    %v6022 = vsel %vm6020, %v5981, %v5342
    %v6023 = vsel %vm6020, %v5982, %v5344
    %v6024 = vsel %vm6020, %v5983, %v5346
    %v6025 = vsel %vm6020, %v5984, %v5348
    %v6026 = vsel %vm6020, %v5985, %v5350
    %v6027 = vsel %vm6020, %v5986, %v5352
    %v6028 = vsel %vm6020, %v5987, %v5354
    %v6029 = vsel %vm6020, %v5988, %v5356
    %v6030 = vsel %vm6020, %v5989, %v5358
    %v6031 = vsel %vm6020, %v5990, %v5360
    %v6032 = vsel %vm6020, %v5991, %v5362
    %v6033 = vsel %vm6020, %v5992, %v5364
    %v6034 = vsel %vm6020, %v5993, %v5366
    %v6035 = vsel %vm6020, %v5994, %v5368
    %v6036 = vsel %vm6020, %v5995, %v5370
    %v6037 = vsel %vm6020, %v5996, %v5372
    %v6038 = vsel %vm6020, %v5997, %v5374
    %v6039 = vsel %vm6020, %v5998, %v5376
    %v6040 = vsel %vm6020, %v5999, %v5378
    %v6041 = vsel %vm6020, %v6000, %v5380
    %v6042 = vsel %vm6020, %v6001, %v5382
    %v6043 = vsel %vm6020, %v6002, %v5384
    %v6044 = vsel %vm6020, %v6003, %v5386
    %v6045 = vsel %vm6020, %v6004, %v5388
    %v6046 = vsel %vm6020, %v6005, %v5390
    %v6047 = vsel %vm6020, %v6006, %v5392
    %v6048 = vsel %vm6020, %v6007, %v5394
    %v6049 = vsel %vm6020, %v6008, %v5396
    %v6050 = vsel %vm6020, %v6009, %v5398
    %v6051 = vsel %vm6020, %v6010, %v5400
    %v6052 = vsel %vm6020, %v6011, %v5402
    %v6053 = vsel %vm6020, %v6012, %v5404
    %v6054 = vsel %vm6020, %v6013, %v5406
    %v6055 = vsel %vm6020, %v6014, %v5408
    %v6056 = vsel %vm6020, %v6015, %v5410
    %v6057 = vsel %vm6020, %v6016, %v5412
    %v6058 = vsel %vm6020, %v6017, %v5414
    %v6059 = vsel %vm6020, %v6018, %v5416
    %v6060 = vsel %vm6020, %v6019, %v5418
    %v6061 = vsel %vm3913, %v4779, %v5500
    %v6062 = vsel %vm3913, %v4780, %v5502
    %v6063 = vsel %vm3913, %v4781, %v5504
    %v6064 = vsel %vm3913, %v4782, %v5506
    %v6065 = vsel %vm3913, %v4783, %v5508
    %v6066 = vsel %vm3913, %v4784, %v5510
    %v6067 = vsel %vm3913, %v4785, %v5512
    %v6068 = vsel %vm3913, %v4786, %v5514
    %v6069 = vsel %vm3913, %v4787, %v5516
    %v6070 = vsel %vm3913, %v4788, %v5518
    %v6071 = vsel %vm3913, %v4789, %v5520
    %v6072 = vsel %vm3913, %v4790, %v5522
    %v6073 = vsel %vm3913, %v4791, %v5524
    %v6074 = vsel %vm3913, %v4792, %v5526
    %v6075 = vsel %vm3913, %v4793, %v5528
    %v6076 = vsel %vm3913, %v4794, %v5530
    %v6077 = vsel %vm3913, %v4795, %v5532
    %v6078 = vsel %vm3913, %v4796, %v5534
    %v6079 = vsel %vm3913, %v4797, %v5536
    %v6080 = vsel %vm3913, %v4798, %v5538
    %v6081 = vsel %vm3913, %v4799, %v5540
    %v6082 = vsel %vm3913, %v4800, %v5542
    %v6083 = vsel %vm3913, %v4801, %v5544
    %v6084 = vsel %vm3913, %v4802, %v5546
    %v6085 = vsel %vm3913, %v4803, %v5548
    %v6086 = vsel %vm3913, %v4804, %v5550
    %v6087 = vsel %vm3913, %v4805, %v5552
    %v6088 = vsel %vm3913, %v4806, %v5554
    %v6089 = vsel %vm3913, %v4807, %v5556
    %v6090 = vsel %vm3913, %v4808, %v5558
    %v6091 = vsel %vm3913, %v4809, %v5560
    %v6092 = vsel %vm3913, %v4810, %v5562
    %v6093 = vsel %vm3913, %v4811, %v5564
    %v6094 = vsel %vm3913, %v4812, %v5566
    %v6095 = vsel %vm3913, %v4813, %v5568
    %v6096 = vsel %vm3913, %v4814, %v5570
    %v6097 = vsel %vm3913, %v4815, %v5572
    %v6098 = vsel %vm3913, %v4816, %v5574
    %v6099 = vsel %vm3913, %v4817, %v5576
    %v6100 = vsel %vm3913, %v4818, %v5578
    %v6101 = vsel %vm5979, %v6061, %v5660
    %v6102 = vsel %vm5979, %v6062, %v5662
    %v6103 = vsel %vm5979, %v6063, %v5664
    %v6104 = vsel %vm5979, %v6064, %v5666
    %v6105 = vsel %vm5979, %v6065, %v5668
    %v6106 = vsel %vm5979, %v6066, %v5670
    %v6107 = vsel %vm5979, %v6067, %v5672
    %v6108 = vsel %vm5979, %v6068, %v5674
    %v6109 = vsel %vm5979, %v6069, %v5676
    %v6110 = vsel %vm5979, %v6070, %v5678
    %v6111 = vsel %vm5979, %v6071, %v5680
    %v6112 = vsel %vm5979, %v6072, %v5682
    %v6113 = vsel %vm5979, %v6073, %v5684
    %v6114 = vsel %vm5979, %v6074, %v5686
    %v6115 = vsel %vm5979, %v6075, %v5688
    %v6116 = vsel %vm5979, %v6076, %v5690
    %v6117 = vsel %vm5979, %v6077, %v5692
    %v6118 = vsel %vm5979, %v6078, %v5694
    %v6119 = vsel %vm5979, %v6079, %v5696
    %v6120 = vsel %vm5979, %v6080, %v5698
    %v6121 = vsel %vm5979, %v6081, %v5700
    %v6122 = vsel %vm5979, %v6082, %v5702
    %v6123 = vsel %vm5979, %v6083, %v5704
    %v6124 = vsel %vm5979, %v6084, %v5706
    %v6125 = vsel %vm5979, %v6085, %v5708
    %v6126 = vsel %vm5979, %v6086, %v5710
    %v6127 = vsel %vm5979, %v6087, %v5712
    %v6128 = vsel %vm5979, %v6088, %v5714
    %v6129 = vsel %vm5979, %v6089, %v5716
    %v6130 = vsel %vm5979, %v6090, %v5718
    %v6131 = vsel %vm5979, %v6091, %v5720
    %v6132 = vsel %vm5979, %v6092, %v5722
    %v6133 = vsel %vm5979, %v6093, %v5724
    %v6134 = vsel %vm5979, %v6094, %v5726
    %v6135 = vsel %vm5979, %v6095, %v5728
    %v6136 = vsel %vm5979, %v6096, %v5730
    %v6137 = vsel %vm5979, %v6097, %v5732
    %v6138 = vsel %vm5979, %v6098, %v5734
    %v6139 = vsel %vm5979, %v6099, %v5736
    %v6140 = vsel %vm5979, %v6100, %v5738
    %v6141 = vsel %vm6020, %v6101, %v5820
    %v6142 = vsel %vm6020, %v6102, %v5822
    %v6143 = vsel %vm6020, %v6103, %v5824
    %v6144 = vsel %vm6020, %v6104, %v5826
    %v6145 = vsel %vm6020, %v6105, %v5828
    %v6146 = vsel %vm6020, %v6106, %v5830
    %v6147 = vsel %vm6020, %v6107, %v5832
    %v6148 = vsel %vm6020, %v6108, %v5834
    %v6149 = vsel %vm6020, %v6109, %v5836
    %v6150 = vsel %vm6020, %v6110, %v5838
    %v6151 = vsel %vm6020, %v6111, %v5840
    %v6152 = vsel %vm6020, %v6112, %v5842
    %v6153 = vsel %vm6020, %v6113, %v5844
    %v6154 = vsel %vm6020, %v6114, %v5846
    %v6155 = vsel %vm6020, %v6115, %v5848
    %v6156 = vsel %vm6020, %v6116, %v5850
    %v6157 = vsel %vm6020, %v6117, %v5852
    %v6158 = vsel %vm6020, %v6118, %v5854
    %v6159 = vsel %vm6020, %v6119, %v5856
    %v6160 = vsel %vm6020, %v6120, %v5858
    %v6161 = vsel %vm6020, %v6121, %v5860
    %v6162 = vsel %vm6020, %v6122, %v5862
    %v6163 = vsel %vm6020, %v6123, %v5864
    %v6164 = vsel %vm6020, %v6124, %v5866
    %v6165 = vsel %vm6020, %v6125, %v5868
    %v6166 = vsel %vm6020, %v6126, %v5870
    %v6167 = vsel %vm6020, %v6127, %v5872
    %v6168 = vsel %vm6020, %v6128, %v5874
    %v6169 = vsel %vm6020, %v6129, %v5876
    %v6170 = vsel %vm6020, %v6130, %v5878
    %v6171 = vsel %vm6020, %v6131, %v5880
    %v6172 = vsel %vm6020, %v6132, %v5882
    %v6173 = vsel %vm6020, %v6133, %v5884
    %v6174 = vsel %vm6020, %v6134, %v5886
    %v6175 = vsel %vm6020, %v6135, %v5888
    %v6176 = vsel %vm6020, %v6136, %v5890
    %v6177 = vsel %vm6020, %v6137, %v5892
    %v6178 = vsel %vm6020, %v6138, %v5894
    %v6179 = vsel %vm6020, %v6139, %v5896
    %v6180 = vsel %vm6020, %v6140, %v5898
    %v6181 = vld [vmem:[%s3] sm:$0xff]
    %v6182 = vld [vmem:[%s3 + $0x8] sm:$0xff]
    %v6183 = vld [vmem:[%s3 + $0x10] sm:$0xff]
    %v6184 = vld [vmem:[%s3 + $0x18] sm:$0xff]
    %v6185 = vld [vmem:[%s3 + $0x20] sm:$0xff]
    %v6186 = vld [vmem:[%s3 + $0x28] sm:$0xff]
    %v6187 = vld [vmem:[%s3 + $0x30] sm:$0xff]
    %v6188 = vld [vmem:[%s3 + $0x38] sm:$0xff]
    %v6189 = vld [vmem:[%s3 + $0x40] sm:$0xff]
    %v6190 = vld [vmem:[%s3 + $0x48] sm:$0xff]
    %v6191 = vld [vmem:[%s3 + $0x50] sm:$0xff]
    %v6192 = vld [vmem:[%s3 + $0x58] sm:$0xff]
    %v6193 = vld [vmem:[%s3 + $0x60] sm:$0xff]
    %v6194 = vld [vmem:[%s3 + $0x68] sm:$0xff]
    %v6195 = vld [vmem:[%s3 + $0x70] sm:$0xff]
    %v6196 = vld [vmem:[%s3 + $0x78] sm:$0xff]
    %v6197 = vld [vmem:[%s3 + $0x80] sm:$0xff]
    %v6198 = vld [vmem:[%s3 + $0x88] sm:$0xff]
    %v6199 = vld [vmem:[%s3 + $0x90] sm:$0xff]
    %v6200 = vld [vmem:[%s3 + $0x98] sm:$0xff]
    %v6201 = vld [vmem:[%s3 + $0xa0] sm:$0xff]
    %v6202 = vld [vmem:[%s3 + $0xa8] sm:$0xff]
    %v6203 = vld [vmem:[%s3 + $0xb0] sm:$0xff]
    %v6204 = vld [vmem:[%s3 + $0xb8] sm:$0xff]
    %v6205 = vld [vmem:[%s3 + $0xc0] sm:$0xff]
    %v6206 = vld [vmem:[%s3 + $0xc8] sm:$0xff]
    %v6207 = vld [vmem:[%s3 + $0xd0] sm:$0xff]
    %v6208 = vld [vmem:[%s3 + $0xd8] sm:$0xff]
    %v6209 = vld [vmem:[%s3 + $0xe0] sm:$0xff]
    %v6210 = vld [vmem:[%s3 + $0xe8] sm:$0xff]
    %v6211 = vld [vmem:[%s3 + $0xf0] sm:$0xff]
    %v6212 = vld [vmem:[%s3 + $0xf8] sm:$0xff]
    %v6213 = vld [vmem:[%s3 + $0x100] sm:$0xff]
    %v6214 = vld [vmem:[%s3 + $0x108] sm:$0xff]
    %v6215 = vld [vmem:[%s3 + $0x110] sm:$0xff]
    %v6216 = vld [vmem:[%s3 + $0x118] sm:$0xff]
    %v6217 = vld [vmem:[#allocation6] sm:$0x1]
    %v6219 = vlaneseq
    %v6220 = vshrl.u32 %v6219, 7
    %v6221 = vsub.s32 0, %v6220
    %v6222 = vrot.slane %v6217, %v6221
    %v6225 = vsel %vm3913, %v4939, 0
    %v6228 = vsel %vm3913, %v4940, 0
    %v6231 = vsel %vm3913, %v4941, 0
    %v6234 = vsel %vm3913, %v4942, 0
    %v6237 = vsel %vm3913, %v4943, 0
    %v6240 = vsel %vm3913, %v4944, 0
    %v6243 = vsel %vm3913, %v4945, 0
    %v6246 = vsel %vm3913, %v4946, 0
    %v6249 = vsel %vm3913, %v4947, 0
    %v6252 = vsel %vm3913, %v4948, 0
    %v6255 = vsel %vm3913, %v4949, 0
    %v6258 = vsel %vm3913, %v4950, 0
    %v6261 = vsel %vm3913, %v4951, 0
    %v6264 = vsel %vm3913, %v4952, 0
    %v6267 = vsel %vm3913, %v4953, 0
    %v6270 = vsel %vm3913, %v4954, 0
    %v6273 = vsel %vm3913, %v4955, 0
    %v6276 = vsel %vm3913, %v4956, 0
    %v6279 = vsel %vm3913, %v4957, 0
    %v6282 = vsel %vm3913, %v4958, 0
    %v6285 = vsel %vm3913, %v4959, 0
    %v6288 = vsel %vm3913, %v4960, 0
    %v6291 = vsel %vm3913, %v4961, 0
    %v6294 = vsel %vm3913, %v4962, 0
    %v6297 = vsel %vm3913, %v4963, 0
    %v6300 = vsel %vm3913, %v4964, 0
    %v6303 = vsel %vm3913, %v4965, 0
    %v6306 = vsel %vm3913, %v4966, 0
    %v6309 = vsel %vm3913, %v4967, 0
    %v6312 = vsel %vm3913, %v4968, 0
    %v6315 = vsel %vm3913, %v4969, 0
    %v6318 = vsel %vm3913, %v4970, 0
    %v6321 = vsel %vm3913, %v4971, 0
    %v6324 = vsel %vm3913, %v4972, 0
    %v6327 = vsel %vm3913, %v4973, 0
    %v6330 = vsel %vm3913, %v4974, 0
    %v6333 = vsel %vm3913, %v4975, 0
    %v6336 = vsel %vm3913, %v4976, 0
    %v6339 = vsel %vm3913, %v4977, 0
    %v6342 = vsel %vm3913, %v4978, 0
    %6344 = vmatprep.subr.mxu0 0.0
    %6345 = vmatpush1.msra.mxu0 %v6181
    %6346 = vmatprep.subr.mxu0 0.0
    %6347 = vmatpush1.msra.mxu0 %v6182
    %6348 = vmatprep.subr.mxu0 0.0
    %6349 = vmatpush1.msra.mxu0 %v6183
    %6350 = vmatprep.subr.mxu0 0.0
    %6351 = vmatpush1.msra.mxu0 %v6184
    %6352 = vmatprep.subr.mxu0 0.0
    %6353 = vmatpush1.msra.mxu0 %v6185
    %6354 = vmatprep.subr.mxu0 0.0
    %6355 = vmatpush1.msra.mxu0 %v6186
    %6356 = vmatprep.subr.mxu0 0.0
    %6357 = vmatpush1.msra.mxu0 %v6187
    %6358 = vmatprep.subr.mxu0 0.0
    %6359 = vmatpush1.msra.mxu0 %v6188
    %6360 = vmatprep.subr.mxu0 0.0
    %6361 = vmatpush1.msra.mxu0 %v6189
    %6362 = vmatprep.subr.mxu0 0.0
    %6363 = vmatpush1.msra.mxu0 %v6190
    %6364 = vmatprep.subr.mxu0 0.0
    %6365 = vmatpush1.msra.mxu0 %v6191
    %6366 = vmatprep.subr.mxu0 0.0
    %6367 = vmatpush1.msra.mxu0 %v6192
    %6368 = vmatprep.subr.mxu0 0.0
    %6369 = vmatpush1.msra.mxu0 %v6193
    %6370 = vmatprep.subr.mxu0 0.0
    %6371 = vmatpush1.msra.mxu0 %v6194
    %6372 = vmatprep.subr.mxu0 0.0
    %6373 = vmatpush1.msra.mxu0 %v6195
    %6374 = vmatprep.subr.mxu0 0.0
    %6375 = vmatpush1.msra.mxu0 %v6196
    %6376 = vmatprep.subr.mxu0 0.0
    %6377 = vmatpush1.msra.mxu0 %v6197
    %6378 = vmatprep.subr.mxu0 0.0
    %6379 = vmatpush1.msra.mxu0 %v6198
    %6380 = vmatprep.subr.mxu0 0.0
    %6381 = vmatpush1.msra.mxu0 %v6199
    %6382 = vmatprep.subr.mxu0 0.0
    %6383 = vmatpush1.msra.mxu0 %v6200
    %6384 = vmatprep.subr.mxu0 0.0
    %6385 = vmatpush1.msra.mxu0 %v6201
    %6386 = vmatprep.subr.mxu0 0.0
    %6387 = vmatpush1.msra.mxu0 %v6202
    %6388 = vmatprep.subr.mxu0 0.0
    %6389 = vmatpush1.msra.mxu0 %v6203
    %6390 = vmatprep.subr.mxu0 0.0
    %6391 = vmatpush1.msra.mxu0 %v6204
    %6392 = vmatprep.subr.mxu0 0.0
    %6393 = vmatpush1.msra.mxu0 %v6205
    %6394 = vmatprep.subr.mxu0 0.0
    %6395 = vmatpush1.msra.mxu0 %v6206
    %6396 = vmatprep.subr.mxu0 0.0
    %6397 = vmatpush1.msra.mxu0 %v6207
    %6398 = vmatprep.subr.mxu0 0.0
    %6399 = vmatpush1.msra.mxu0 %v6208
    %6400 = vmatprep.subr.mxu0 0.0
    %6401 = vmatpush1.msra.mxu0 %v6209
    %6402 = vmatprep.subr.mxu0 0.0
    %6403 = vmatpush1.msra.mxu0 %v6210
    %6404 = vmatprep.subr.mxu0 0.0
    %6405 = vmatpush1.msra.mxu0 %v6211
    %6406 = vmatprep.subr.mxu0 0.0
    %6407 = vmatpush1.msra.mxu0 %v6212
    %6408 = vmatprep.mubr.f32.mxu0 %v6141
    %6409 = vmatmul.mubr.f32.gmra.mrb[0].mxu0 %v6021
    %v6410 = vpop.f32.mrb[0].mxu0
    %v6411 = vadd.f32 %v6222, %v6410
    %v6412 = vpop.f32.mrb[0].mxu0
    %6413 = vmatprep.mubr.f32.mxu0 %v6142
    %6414 = vmatmul.mubr.f32.gmra.mrb[0].mxu0 %v6022
    %v6415 = vpop.f32.mrb[0].mxu0
    %v6416 = vadd.f32 %v6222, %v6415
    %v6417 = vpop.f32.mrb[0].mxu0
    %6418 = vmatprep.mubr.f32.mxu0 %v6143
    %6419 = vmatmul.mubr.f32.gmra.mrb[0].mxu0 %v6023
    %v6420 = vpop.f32.mrb[0].mxu0
    %v6421 = vadd.f32 %v6222, %v6420
    %v6422 = vpop.f32.mrb[0].mxu0
    %6423 = vmatprep.mubr.f32.mxu0 %v6144
    %6424 = vmatmul.mubr.f32.gmra.mrb[0].mxu0 %v6024
    %v6425 = vpop.f32.mrb[0].mxu0
    %v6426 = vadd.f32 %v6222, %v6425
    %v6427 = vpop.f32.mrb[0].mxu0
    %6428 = vmatprep.mubr.f32.mxu0 %v6145
    %6429 = vmatmul.mubr.f32.gmra.mrb[0].mxu0 %v6025
    %v6430 = vpop.f32.mrb[0].mxu0
    %v6431 = vadd.f32 %v6222, %v6430
    %v6432 = vpop.f32.mrb[0].mxu0
    %6433 = vmatprep.mubr.f32.mxu0 %v6146
    %6434 = vmatmul.mubr.f32.gmra.mrb[0].mxu0 %v6026
    %v6435 = vpop.f32.mrb[0].mxu0
    %v6436 = vadd.f32 %v6222, %v6435
    %v6437 = vpop.f32.mrb[0].mxu0
    %6438 = vmatprep.mubr.f32.mxu0 %v6147
    %6439 = vmatmul.mubr.f32.gmra.mrb[0].mxu0 %v6027
    %v6440 = vpop.f32.mrb[0].mxu0
    %v6441 = vadd.f32 %v6222, %v6440
    %v6442 = vpop.f32.mrb[0].mxu0
    %6443 = vmatprep.mubr.f32.mxu0 %v6148
    %6444 = vmatmul.mubr.f32.gmra.mrb[0].mxu0 %v6028
    %v6445 = vpop.f32.mrb[0].mxu0
    %v6446 = vadd.f32 %v6222, %v6445
    %v6447 = vpop.f32.mrb[0].mxu0
    %6448 = vmatprep.mubr.f32.mxu0 %v6149
    %6449 = vmatmul.mubr.f32.gmra.mrb[0].mxu0 %v6029
    %v6450 = vpop.f32.mrb[0].mxu0
    %v6451 = vadd.f32 %v6222, %v6450
    %v6452 = vpop.f32.mrb[0].mxu0
    %6453 = vmatprep.mubr.f32.mxu0 %v6150
    %6454 = vmatmul.mubr.f32.gmra.mrb[0].mxu0 %v6030
    %v6455 = vpop.f32.mrb[0].mxu0
    %v6456 = vadd.f32 %v6222, %v6455
    %v6457 = vpop.f32.mrb[0].mxu0
    %6458 = vmatprep.mubr.f32.mxu0 %v6151
    %6459 = vmatmul.mubr.f32.gmra.mrb[0].mxu0 %v6031
    %v6460 = vpop.f32.mrb[0].mxu0
    %v6461 = vadd.f32 %v6222, %v6460
    %v6462 = vpop.f32.mrb[0].mxu0
    %6463 = vmatprep.mubr.f32.mxu0 %v6152
    %6464 = vmatmul.mubr.f32.gmra.mrb[0].mxu0 %v6032
    %v6465 = vpop.f32.mrb[0].mxu0
    %v6466 = vadd.f32 %v6222, %v6465
    %v6467 = vpop.f32.mrb[0].mxu0
    %6468 = vmatprep.mubr.f32.mxu0 %v6153
    %6469 = vmatmul.mubr.f32.gmra.mrb[0].mxu0 %v6033
    %v6470 = vpop.f32.mrb[0].mxu0
    %v6471 = vadd.f32 %v6222, %v6470
    %v6472 = vpop.f32.mrb[0].mxu0
    %6473 = vmatprep.mubr.f32.mxu0 %v6154
    %6474 = vmatmul.mubr.f32.gmra.mrb[0].mxu0 %v6034
    %v6475 = vpop.f32.mrb[0].mxu0
    %v6476 = vadd.f32 %v6222, %v6475
    %v6477 = vpop.f32.mrb[0].mxu0
    %6478 = vmatprep.mubr.f32.mxu0 %v6155
    %6479 = vmatmul.mubr.f32.gmra.mrb[0].mxu0 %v6035
    %v6480 = vpop.f32.mrb[0].mxu0
    %v6481 = vadd.f32 %v6222, %v6480
    %v6482 = vpop.f32.mrb[0].mxu0
    %6483 = vmatprep.mubr.f32.mxu0 %v6156
    %6484 = vmatmul.mubr.f32.gmra.mrb[0].mxu0 %v6036
    %v6485 = vpop.f32.mrb[0].mxu0
    %v6486 = vadd.f32 %v6222, %v6485
    %v6487 = vpop.f32.mrb[0].mxu0
    %6488 = vmatprep.mubr.f32.mxu0 %v6157
    %6489 = vmatmul.mubr.f32.gmra.mrb[0].mxu0 %v6037
    %v6490 = vpop.f32.mrb[0].mxu0
    %v6491 = vadd.f32 %v6222, %v6490
    %v6492 = vpop.f32.mrb[0].mxu0
    %6493 = vmatprep.mubr.f32.mxu0 %v6158
    %6494 = vmatmul.mubr.f32.gmra.mrb[0].mxu0 %v6038
    %v6495 = vpop.f32.mrb[0].mxu0
    %v6496 = vadd.f32 %v6222, %v6495
    %v6497 = vpop.f32.mrb[0].mxu0
    %6498 = vmatprep.mubr.f32.mxu0 %v6159
    %6499 = vmatmul.mubr.f32.gmra.mrb[0].mxu0 %v6039
    %v6500 = vpop.f32.mrb[0].mxu0
    %v6501 = vadd.f32 %v6222, %v6500
    %v6502 = vpop.f32.mrb[0].mxu0
    %6503 = vmatprep.mubr.f32.mxu0 %v6160
    %6504 = vmatmul.mubr.f32.gmra.mrb[0].mxu0 %v6040
    %v6505 = vpop.f32.mrb[0].mxu0
    %v6506 = vadd.f32 %v6222, %v6505
    %v6507 = vpop.f32.mrb[0].mxu0
    %6508 = vmatprep.mubr.f32.mxu0 %v6161
    %6509 = vmatmul.mubr.f32.gmra.mrb[0].mxu0 %v6041
    %v6510 = vpop.f32.mrb[0].mxu0
    %v6511 = vadd.f32 %v6222, %v6510
    %v6512 = vpop.f32.mrb[0].mxu0
    %6513 = vmatprep.mubr.f32.mxu0 %v6162
    %6514 = vmatmul.mubr.f32.gmra.mrb[0].mxu0 %v6042
    %v6515 = vpop.f32.mrb[0].mxu0
    %v6516 = vadd.f32 %v6222, %v6515
    %v6517 = vpop.f32.mrb[0].mxu0
    %6518 = vmatprep.mubr.f32.mxu0 %v6163
    %6519 = vmatmul.mubr.f32.gmra.mrb[0].mxu0 %v6043
    %v6520 = vpop.f32.mrb[0].mxu0
    %v6521 = vadd.f32 %v6222, %v6520
    %v6522 = vpop.f32.mrb[0].mxu0
    %6523 = vmatprep.mubr.f32.mxu0 %v6164
    %6524 = vmatmul.mubr.f32.gmra.mrb[0].mxu0 %v6044
    %v6525 = vpop.f32.mrb[0].mxu0
    %v6526 = vadd.f32 %v6222, %v6525
    %v6527 = vpop.f32.mrb[0].mxu0
    %6528 = vmatprep.mubr.f32.mxu0 %v6165
    %6529 = vmatmul.mubr.f32.gmra.mrb[0].mxu0 %v6045
    %v6530 = vpop.f32.mrb[0].mxu0
    %v6531 = vadd.f32 %v6222, %v6530
    %v6532 = vpop.f32.mrb[0].mxu0
    %6533 = vmatprep.mubr.f32.mxu0 %v6166
    %6534 = vmatmul.mubr.f32.gmra.mrb[0].mxu0 %v6046
    %v6535 = vpop.f32.mrb[0].mxu0
    %v6536 = vadd.f32 %v6222, %v6535
    %v6537 = vpop.f32.mrb[0].mxu0
    %6538 = vmatprep.mubr.f32.mxu0 %v6167
    %6539 = vmatmul.mubr.f32.gmra.mrb[0].mxu0 %v6047
    %v6540 = vpop.f32.mrb[0].mxu0
    %v6541 = vadd.f32 %v6222, %v6540
    %v6542 = vpop.f32.mrb[0].mxu0
    %6543 = vmatprep.mubr.f32.mxu0 %v6168
    %6544 = vmatmul.mubr.f32.gmra.mrb[0].mxu0 %v6048
    %v6545 = vpop.f32.mrb[0].mxu0
    %v6546 = vadd.f32 %v6222, %v6545
    %v6547 = vpop.f32.mrb[0].mxu0
    %6548 = vmatprep.mubr.f32.mxu0 %v6169
    %6549 = vmatmul.mubr.f32.gmra.mrb[0].mxu0 %v6049
    %v6550 = vpop.f32.mrb[0].mxu0
    %v6551 = vadd.f32 %v6222, %v6550
    %v6552 = vpop.f32.mrb[0].mxu0
    %6553 = vmatprep.mubr.f32.mxu0 %v6170
    %6554 = vmatmul.mubr.f32.gmra.mrb[0].mxu0 %v6050
    %v6555 = vpop.f32.mrb[0].mxu0
    %v6556 = vadd.f32 %v6222, %v6555
    %v6557 = vpop.f32.mrb[0].mxu0
    %6558 = vmatprep.mubr.f32.mxu0 %v6171
    %6559 = vmatmul.mubr.f32.gmra.mrb[0].mxu0 %v6051
    %v6560 = vpop.f32.mrb[0].mxu0
    %v6561 = vadd.f32 %v6222, %v6560
    %v6562 = vpop.f32.mrb[0].mxu0
    %6563 = vmatprep.mubr.f32.mxu0 %v6172
    %6564 = vmatmul.mubr.f32.gmra.mrb[0].mxu0 %v6052
    %v6565 = vpop.f32.mrb[0].mxu0
    %v6566 = vadd.f32 %v6222, %v6565
    %v6567 = vpop.f32.mrb[0].mxu0
    %6568 = vmatprep.mubr.f32.mxu0 %v6173
    %6569 = vmatmul.mubr.f32.gmra.mrb[0].mxu0 %v6053
    %v6570 = vpop.f32.mrb[0].mxu0
    %v6571 = vadd.f32 %v6222, %v6570
    %v6572 = vpop.f32.mrb[0].mxu0
    %6573 = vmatprep.mubr.f32.mxu0 %v6174
    %6574 = vmatmul.mubr.f32.gmra.mrb[0].mxu0 %v6054
    %v6575 = vpop.f32.mrb[0].mxu0
    %v6576 = vadd.f32 %v6222, %v6575
    %v6577 = vpop.f32.mrb[0].mxu0
    %6578 = vmatprep.mubr.f32.mxu0 %v6175
    %6579 = vmatmul.mubr.f32.gmra.mrb[0].mxu0 %v6055
    %v6580 = vpop.f32.mrb[0].mxu0
    %v6581 = vadd.f32 %v6222, %v6580
    %v6582 = vpop.f32.mrb[0].mxu0
    %6583 = vmatprep.mubr.f32.mxu0 %v6176
    %6584 = vmatmul.mubr.f32.gmra.mrb[0].mxu0 %v6056
    %v6585 = vpop.f32.mrb[0].mxu0
    %v6586 = vadd.f32 %v6222, %v6585
    %v6587 = vpop.f32.mrb[0].mxu0
    %6588 = vmatprep.mubr.f32.mxu0 %v6177
    %6589 = vmatmul.mubr.f32.gmra.mrb[0].mxu0 %v6057
    %v6590 = vpop.f32.mrb[0].mxu0
    %v6591 = vadd.f32 %v6222, %v6590
    %v6592 = vpop.f32.mrb[0].mxu0
    %6593 = vmatprep.mubr.f32.mxu0 %v6178
    %6594 = vmatmul.mubr.f32.gmra.mrb[0].mxu0 %v6058
    %v6595 = vpop.f32.mrb[0].mxu0
    %v6596 = vadd.f32 %v6222, %v6595
    %v6597 = vpop.f32.mrb[0].mxu0
    %6598 = vmatprep.mubr.f32.mxu0 %v6179
    %6599 = vmatmul.mubr.f32.gmra.mrb[0].mxu0 %v6059
    %v6600 = vpop.f32.mrb[0].mxu0
    %v6601 = vadd.f32 %v6222, %v6600
    %v6602 = vpop.f32.mrb[0].mxu0
    %6603 = vmatprep.mubr.f32.mxu0 %v6180
    %6604 = vmatmul.mubr.f32.gmra.mrb[0].mxu0 %v6060
    %v6605 = vpop.f32.mrb[0].mxu0
    %v6606 = vadd.f32 %v6222, %v6605
    %v6607 = vpop.f32.mrb[0].mxu0
    %6608 = vdwg.mxu0
    %6609 = vmatprep.subr.mxu0 0.0
    %6610 = vmatpush1.msra.mxu0 %v6213
    %6611 = vmatprep.subr.mxu0 0.0
    %6612 = vmatpush1.msra.mxu0 %v6214
    %6613 = vmatprep.subr.mxu0 0.0
    %6614 = vmatpush1.msra.mxu0 %v6215
    %6615 = vmatprep.subr.mxu0 0.0
    %6616 = vmatpush1.msra.mxu0 %v6216
    %6617 = vmatprep.subr.mxu0 0.0
    %6618 = vmatpush1.msra.mxu0 0.0
    %6619 = vmatprep.subr.mxu0 0.0
    %6620 = vmatpush1.msra.mxu0 0.0
    %6621 = vmatprep.subr.mxu0 0.0
    %6622 = vmatpush1.msra.mxu0 0.0
    %6623 = vmatprep.subr.mxu0 0.0
    %6624 = vmatpush1.msra.mxu0 0.0
    %6625 = vmatprep.subr.mxu0 0.0
    %6626 = vmatpush1.msra.mxu0 0.0
    %6627 = vmatprep.subr.mxu0 0.0
    %6628 = vmatpush1.msra.mxu0 0.0
    %6629 = vmatprep.subr.mxu0 0.0
    %6630 = vmatpush1.msra.mxu0 0.0
    %6631 = vmatprep.subr.mxu0 0.0
    %6632 = vmatpush1.msra.mxu0 0.0
    %6633 = vmatprep.subr.mxu0 0.0
    %6634 = vmatpush1.msra.mxu0 0.0
    %6635 = vmatprep.subr.mxu0 0.0
    %6636 = vmatpush1.msra.mxu0 0.0
    %6637 = vmatprep.subr.mxu0 0.0
    %6638 = vmatpush1.msra.mxu0 0.0
    %6639 = vmatprep.subr.mxu0 0.0
    %6640 = vmatpush1.msra.mxu0 0.0
    %6641 = vmatprep.subr.mxu0 0.0
    %6642 = vmatpush1.msra.mxu0 0.0
    %6643 = vmatprep.subr.mxu0 0.0
    %6644 = vmatpush1.msra.mxu0 0.0
    %6645 = vmatprep.subr.mxu0 0.0
    %6646 = vmatpush1.msra.mxu0 0.0
    %6647 = vmatprep.subr.mxu0 0.0
    %6648 = vmatpush1.msra.mxu0 0.0
    %6649 = vmatprep.subr.mxu0 0.0
    %6650 = vmatpush1.msra.mxu0 0.0
    %6651 = vmatprep.subr.mxu0 0.0
    %6652 = vmatpush1.msra.mxu0 0.0
    %6653 = vmatprep.subr.mxu0 0.0
    %6654 = vmatpush1.msra.mxu0 0.0
    %6655 = vmatprep.subr.mxu0 0.0
    %6656 = vmatpush1.msra.mxu0 0.0
    %6657 = vmatprep.subr.mxu0 0.0
    %6658 = vmatpush1.msra.mxu0 0.0
    %6659 = vmatprep.subr.mxu0 0.0
    %6660 = vmatpush1.msra.mxu0 0.0
    %6661 = vmatprep.subr.mxu0 0.0
    %6662 = vmatpush1.msra.mxu0 0.0
    %6663 = vmatprep.subr.mxu0 0.0
    %6664 = vmatpush1.msra.mxu0 0.0
    %6665 = vmatprep.subr.mxu0 0.0
    %6666 = vmatpush1.msra.mxu0 0.0
    %6667 = vmatprep.subr.mxu0 0.0
    %6668 = vmatpush1.msra.mxu0 0.0
    %6669 = vmatprep.subr.mxu0 0.0
    %6670 = vmatpush1.msra.mxu0 0.0
    %6671 = vmatprep.subr.mxu0 0.0
    %6672 = vmatpush1.msra.mxu0 0.0
    %6673 = vmatprep.mubr.f32.mxu0 0.0
    %6674 = vmatmul.mubr.f32.gmra.mrb[0].mxu0 %v6225
    %v6675 = vpop.f32.mrb[0].mxu0
    %v6676 = vadd.f32 %v6411, %v6675
    %v6677 = vpop.f32.mrb[0].mxu0
    %6678 = vmatprep.mubr.f32.mxu0 0.0
    %6679 = vmatmul.mubr.f32.gmra.mrb[0].mxu0 %v6228
    %v6680 = vpop.f32.mrb[0].mxu0
    %v6681 = vadd.f32 %v6416, %v6680
    %v6682 = vpop.f32.mrb[0].mxu0
    %6683 = vmatprep.mubr.f32.mxu0 0.0
    %6684 = vmatmul.mubr.f32.gmra.mrb[0].mxu0 %v6231
    %v6685 = vpop.f32.mrb[0].mxu0
    %v6686 = vadd.f32 %v6421, %v6685
    %v6687 = vpop.f32.mrb[0].mxu0
    %6688 = vmatprep.mubr.f32.mxu0 0.0
    %6689 = vmatmul.mubr.f32.gmra.mrb[0].mxu0 %v6234
    %v6690 = vpop.f32.mrb[0].mxu0
    %v6691 = vadd.f32 %v6426, %v6690
    %v6692 = vpop.f32.mrb[0].mxu0
    %6693 = vmatprep.mubr.f32.mxu0 0.0
    %6694 = vmatmul.mubr.f32.gmra.mrb[0].mxu0 %v6237
    %v6695 = vpop.f32.mrb[0].mxu0
    %v6696 = vadd.f32 %v6431, %v6695
    %v6697 = vpop.f32.mrb[0].mxu0
    %6698 = vmatprep.mubr.f32.mxu0 0.0
    %6699 = vmatmul.mubr.f32.gmra.mrb[0].mxu0 %v6240
    %v6700 = vpop.f32.mrb[0].mxu0
    %v6701 = vadd.f32 %v6436, %v6700
    %v6702 = vpop.f32.mrb[0].mxu0
    %6703 = vmatprep.mubr.f32.mxu0 0.0
    %6704 = vmatmul.mubr.f32.gmra.mrb[0].mxu0 %v6243
    %v6705 = vpop.f32.mrb[0].mxu0
    %v6706 = vadd.f32 %v6441, %v6705
    %v6707 = vpop.f32.mrb[0].mxu0
    %6708 = vmatprep.mubr.f32.mxu0 0.0
    %6709 = vmatmul.mubr.f32.gmra.mrb[0].mxu0 %v6246
    %v6710 = vpop.f32.mrb[0].mxu0
    %v6711 = vadd.f32 %v6446, %v6710
    %v6712 = vpop.f32.mrb[0].mxu0
    %6713 = vmatprep.mubr.f32.mxu0 0.0
    %6714 = vmatmul.mubr.f32.gmra.mrb[0].mxu0 %v6249
    %v6715 = vpop.f32.mrb[0].mxu0
    %v6716 = vadd.f32 %v6451, %v6715
    %v6717 = vpop.f32.mrb[0].mxu0
    %6718 = vmatprep.mubr.f32.mxu0 0.0
    %6719 = vmatmul.mubr.f32.gmra.mrb[0].mxu0 %v6252
    %v6720 = vpop.f32.mrb[0].mxu0
    %v6721 = vadd.f32 %v6456, %v6720
    %v6722 = vpop.f32.mrb[0].mxu0
    %6723 = vmatprep.mubr.f32.mxu0 0.0
    %6724 = vmatmul.mubr.f32.gmra.mrb[0].mxu0 %v6255
    %v6725 = vpop.f32.mrb[0].mxu0
    %v6726 = vadd.f32 %v6461, %v6725
    %v6727 = vpop.f32.mrb[0].mxu0
    %6728 = vmatprep.mubr.f32.mxu0 0.0
    %6729 = vmatmul.mubr.f32.gmra.mrb[0].mxu0 %v6258
    %v6730 = vpop.f32.mrb[0].mxu0
    %v6731 = vadd.f32 %v6466, %v6730
    %v6732 = vpop.f32.mrb[0].mxu0
    %6733 = vmatprep.mubr.f32.mxu0 0.0
    %6734 = vmatmul.mubr.f32.gmra.mrb[0].mxu0 %v6261
    %v6735 = vpop.f32.mrb[0].mxu0
    %v6736 = vadd.f32 %v6471, %v6735
    %v6737 = vpop.f32.mrb[0].mxu0
    %6738 = vmatprep.mubr.f32.mxu0 0.0
    %6739 = vmatmul.mubr.f32.gmra.mrb[0].mxu0 %v6264
    %v6740 = vpop.f32.mrb[0].mxu0
    %v6741 = vadd.f32 %v6476, %v6740
    %v6742 = vpop.f32.mrb[0].mxu0
    %6743 = vmatprep.mubr.f32.mxu0 0.0
    %6744 = vmatmul.mubr.f32.gmra.mrb[0].mxu0 %v6267
    %v6745 = vpop.f32.mrb[0].mxu0
    %v6746 = vadd.f32 %v6481, %v6745
    %v6747 = vpop.f32.mrb[0].mxu0
    %6748 = vmatprep.mubr.f32.mxu0 0.0
    %6749 = vmatmul.mubr.f32.gmra.mrb[0].mxu0 %v6270
    %v6750 = vpop.f32.mrb[0].mxu0
    %v6751 = vadd.f32 %v6486, %v6750
    %v6752 = vpop.f32.mrb[0].mxu0
    %6753 = vmatprep.mubr.f32.mxu0 0.0
    %6754 = vmatmul.mubr.f32.gmra.mrb[0].mxu0 %v6273
    %v6755 = vpop.f32.mrb[0].mxu0
    %v6756 = vadd.f32 %v6491, %v6755
    %v6757 = vpop.f32.mrb[0].mxu0
    %6758 = vmatprep.mubr.f32.mxu0 0.0
    %6759 = vmatmul.mubr.f32.gmra.mrb[0].mxu0 %v6276
    %v6760 = vpop.f32.mrb[0].mxu0
    %v6761 = vadd.f32 %v6496, %v6760
    %v6762 = vpop.f32.mrb[0].mxu0
    %6763 = vmatprep.mubr.f32.mxu0 0.0
    %6764 = vmatmul.mubr.f32.gmra.mrb[0].mxu0 %v6279
    %v6765 = vpop.f32.mrb[0].mxu0
    %v6766 = vadd.f32 %v6501, %v6765
    %v6767 = vpop.f32.mrb[0].mxu0
    %6768 = vmatprep.mubr.f32.mxu0 0.0
    %6769 = vmatmul.mubr.f32.gmra.mrb[0].mxu0 %v6282
    %v6770 = vpop.f32.mrb[0].mxu0
    %v6771 = vadd.f32 %v6506, %v6770
    %v6772 = vpop.f32.mrb[0].mxu0
    %6773 = vmatprep.mubr.f32.mxu0 0.0
    %6774 = vmatmul.mubr.f32.gmra.mrb[0].mxu0 %v6285
    %v6775 = vpop.f32.mrb[0].mxu0
    %v6776 = vadd.f32 %v6511, %v6775
    %v6777 = vpop.f32.mrb[0].mxu0
    %6778 = vmatprep.mubr.f32.mxu0 0.0
    %6779 = vmatmul.mubr.f32.gmra.mrb[0].mxu0 %v6288
    %v6780 = vpop.f32.mrb[0].mxu0
    %v6781 = vadd.f32 %v6516, %v6780
    %v6782 = vpop.f32.mrb[0].mxu0
    %6783 = vmatprep.mubr.f32.mxu0 0.0
    %6784 = vmatmul.mubr.f32.gmra.mrb[0].mxu0 %v6291
    %v6785 = vpop.f32.mrb[0].mxu0
    %v6786 = vadd.f32 %v6521, %v6785
    %v6787 = vpop.f32.mrb[0].mxu0
    %6788 = vmatprep.mubr.f32.mxu0 0.0
    %6789 = vmatmul.mubr.f32.gmra.mrb[0].mxu0 %v6294
    %v6790 = vpop.f32.mrb[0].mxu0
    %v6791 = vadd.f32 %v6526, %v6790
    %v6792 = vpop.f32.mrb[0].mxu0
    %6793 = vmatprep.mubr.f32.mxu0 0.0
    %6794 = vmatmul.mubr.f32.gmra.mrb[0].mxu0 %v6297
    %v6795 = vpop.f32.mrb[0].mxu0
    %v6796 = vadd.f32 %v6531, %v6795
    %v6797 = vpop.f32.mrb[0].mxu0
    %6798 = vmatprep.mubr.f32.mxu0 0.0
    %6799 = vmatmul.mubr.f32.gmra.mrb[0].mxu0 %v6300
    %v6800 = vpop.f32.mrb[0].mxu0
    %v6801 = vadd.f32 %v6536, %v6800
    %v6802 = vpop.f32.mrb[0].mxu0
    %6803 = vmatprep.mubr.f32.mxu0 0.0
    %6804 = vmatmul.mubr.f32.gmra.mrb[0].mxu0 %v6303
    %v6805 = vpop.f32.mrb[0].mxu0
    %v6806 = vadd.f32 %v6541, %v6805
    %v6807 = vpop.f32.mrb[0].mxu0
    %6808 = vmatprep.mubr.f32.mxu0 0.0
    %6809 = vmatmul.mubr.f32.gmra.mrb[0].mxu0 %v6306
    %v6810 = vpop.f32.mrb[0].mxu0
    %v6811 = vadd.f32 %v6546, %v6810
    %v6812 = vpop.f32.mrb[0].mxu0
    %6813 = vmatprep.mubr.f32.mxu0 0.0
    %6814 = vmatmul.mubr.f32.gmra.mrb[0].mxu0 %v6309
    %v6815 = vpop.f32.mrb[0].mxu0
    %v6816 = vadd.f32 %v6551, %v6815
    %v6817 = vpop.f32.mrb[0].mxu0
    %6818 = vmatprep.mubr.f32.mxu0 0.0
    %6819 = vmatmul.mubr.f32.gmra.mrb[0].mxu0 %v6312
    %v6820 = vpop.f32.mrb[0].mxu0
    %v6821 = vadd.f32 %v6556, %v6820
    %v6822 = vpop.f32.mrb[0].mxu0
    %6823 = vmatprep.mubr.f32.mxu0 0.0
    %6824 = vmatmul.mubr.f32.gmra.mrb[0].mxu0 %v6315
    %v6825 = vpop.f32.mrb[0].mxu0
    %v6826 = vadd.f32 %v6561, %v6825
    %v6827 = vpop.f32.mrb[0].mxu0
    %6828 = vmatprep.mubr.f32.mxu0 0.0
    %6829 = vmatmul.mubr.f32.gmra.mrb[0].mxu0 %v6318
    %v6830 = vpop.f32.mrb[0].mxu0
    %v6831 = vadd.f32 %v6566, %v6830
    %v6832 = vpop.f32.mrb[0].mxu0
    %6833 = vmatprep.mubr.f32.mxu0 0.0
    %6834 = vmatmul.mubr.f32.gmra.mrb[0].mxu0 %v6321
    %v6835 = vpop.f32.mrb[0].mxu0
    %v6836 = vadd.f32 %v6571, %v6835
    %v6837 = vpop.f32.mrb[0].mxu0
    %6838 = vmatprep.mubr.f32.mxu0 0.0
    %6839 = vmatmul.mubr.f32.gmra.mrb[0].mxu0 %v6324
    %v6840 = vpop.f32.mrb[0].mxu0
    %v6841 = vadd.f32 %v6576, %v6840
    %v6842 = vpop.f32.mrb[0].mxu0
    %6843 = vmatprep.mubr.f32.mxu0 0.0
    %6844 = vmatmul.mubr.f32.gmra.mrb[0].mxu0 %v6327
    %v6845 = vpop.f32.mrb[0].mxu0
    %v6846 = vadd.f32 %v6581, %v6845
    %v6847 = vpop.f32.mrb[0].mxu0
    %6848 = vmatprep.mubr.f32.mxu0 0.0
    %6849 = vmatmul.mubr.f32.gmra.mrb[0].mxu0 %v6330
    %v6850 = vpop.f32.mrb[0].mxu0
    %v6851 = vadd.f32 %v6586, %v6850
    %v6852 = vpop.f32.mrb[0].mxu0
    %6853 = vmatprep.mubr.f32.mxu0 0.0
    %6854 = vmatmul.mubr.f32.gmra.mrb[0].mxu0 %v6333
    %v6855 = vpop.f32.mrb[0].mxu0
    %v6856 = vadd.f32 %v6591, %v6855
    %v6857 = vpop.f32.mrb[0].mxu0
    %6858 = vmatprep.mubr.f32.mxu0 0.0
    %6859 = vmatmul.mubr.f32.gmra.mrb[0].mxu0 %v6336
    %v6860 = vpop.f32.mrb[0].mxu0
    %v6861 = vadd.f32 %v6596, %v6860
    %v6862 = vpop.f32.mrb[0].mxu0
    %6863 = vmatprep.mubr.f32.mxu0 0.0
    %6864 = vmatmul.mubr.f32.gmra.mrb[0].mxu0 %v6339
    %v6865 = vpop.f32.mrb[0].mxu0
    %v6866 = vadd.f32 %v6601, %v6865
    %v6867 = vpop.f32.mrb[0].mxu0
    %6868 = vmatprep.mubr.f32.mxu0 0.0
    %6869 = vmatmul.mubr.f32.gmra.mrb[0].mxu0 %v6342
    %v6870 = vpop.f32.mrb[0].mxu0
    %v6871 = vadd.f32 %v6606, %v6870
    %v6872 = vpop.f32.mrb[0].mxu0
    %6873 = vdwg.mxu0
    %v6874 = vmax.f32 %v6676, 0.0
    %v6875 = vmax.f32 %v6681, 0.0
    %v6876 = vmax.f32 %v6686, 0.0
    %v6877 = vmax.f32 %v6691, 0.0
    %v6878 = vmax.f32 %v6696, 0.0
    %v6879 = vmax.f32 %v6701, 0.0
    %v6880 = vmax.f32 %v6706, 0.0
    %v6881 = vmax.f32 %v6711, 0.0
    %v6882 = vmax.f32 %v6716, 0.0
    %v6883 = vmax.f32 %v6721, 0.0
    %v6884 = vmax.f32 %v6726, 0.0
    %v6885 = vmax.f32 %v6731, 0.0
    %v6886 = vmax.f32 %v6736, 0.0
    %v6887 = vmax.f32 %v6741, 0.0
    %v6888 = vmax.f32 %v6746, 0.0
    %v6889 = vmax.f32 %v6751, 0.0
    %v6890 = vmax.f32 %v6756, 0.0
    %v6891 = vmax.f32 %v6761, 0.0
    %v6892 = vmax.f32 %v6766, 0.0
    %v6893 = vmax.f32 %v6771, 0.0
    %v6894 = vmax.f32 %v6776, 0.0
    %v6895 = vmax.f32 %v6781, 0.0
    %v6896 = vmax.f32 %v6786, 0.0
    %v6897 = vmax.f32 %v6791, 0.0
    %v6898 = vmax.f32 %v6796, 0.0
    %v6899 = vmax.f32 %v6801, 0.0
    %v6900 = vmax.f32 %v6806, 0.0
    %v6901 = vmax.f32 %v6811, 0.0
    %v6902 = vmax.f32 %v6816, 0.0
    %v6903 = vmax.f32 %v6821, 0.0
    %v6904 = vmax.f32 %v6826, 0.0
    %v6905 = vmax.f32 %v6831, 0.0
    %v6906 = vmax.f32 %v6836, 0.0
    %v6907 = vmax.f32 %v6841, 0.0
    %v6908 = vmax.f32 %v6846, 0.0
    %v6909 = vmax.f32 %v6851, 0.0
    %v6910 = vmax.f32 %v6856, 0.0
    %v6911 = vmax.f32 %v6861, 0.0
    %v6912 = vmax.f32 %v6866, 0.0
    %v6913 = vmax.f32 %v6871, 0.0
    %v6914 = vsel %vm5979, %v6874, -inf
    %v6915 = vsel %vm5979, %v6876, -inf
    %v6916 = vmax.f32 %v6914, %v6915
    %v6917 = vsel %vm5979, %v6875, -inf
    %v6918 = vsel %vm5979, %v6877, -inf
    %v6919 = vmax.f32 %v6917, %v6918
    %v6920 = vsel %vm5979, %v6878, -inf
    %v6921 = vsel %vm5979, %v6880, -inf
    %v6922 = vmax.f32 %v6920, %v6921
    %v6923 = vsel %vm5979, %v6879, -inf
    %v6924 = vsel %vm5979, %v6881, -inf
    %v6925 = vmax.f32 %v6923, %v6924
    %v6926 = vsel %vm5979, %v6882, -inf
    %v6927 = vsel %vm5979, %v6884, -inf
    %v6928 = vmax.f32 %v6926, %v6927
    %v6929 = vsel %vm5979, %v6883, -inf
    %v6930 = vsel %vm5979, %v6885, -inf
    %v6931 = vmax.f32 %v6929, %v6930
    %v6932 = vsel %vm5979, %v6886, -inf
    %v6933 = vsel %vm5979, %v6888, -inf
    %v6934 = vmax.f32 %v6932, %v6933
    %v6935 = vsel %vm5979, %v6887, -inf
    %v6936 = vsel %vm5979, %v6889, -inf
    %v6937 = vmax.f32 %v6935, %v6936
    %v6938 = vsel %vm5979, %v6890, -inf
    %v6939 = vsel %vm5979, %v6892, -inf
    %v6940 = vmax.f32 %v6938, %v6939
    %v6941 = vsel %vm5979, %v6891, -inf
    %v6942 = vsel %vm5979, %v6893, -inf
    %v6943 = vmax.f32 %v6941, %v6942
    %v6944 = vsel %vm5979, %v6894, -inf
    %v6945 = vsel %vm5979, %v6896, -inf
    %v6946 = vmax.f32 %v6944, %v6945
    %v6947 = vsel %vm5979, %v6895, -inf
    %v6948 = vsel %vm5979, %v6897, -inf
    %v6949 = vmax.f32 %v6947, %v6948
    %v6950 = vsel %vm5979, %v6898, -inf
    %v6951 = vsel %vm5979, %v6900, -inf
    %v6952 = vmax.f32 %v6950, %v6951
    %v6953 = vsel %vm5979, %v6899, -inf
    %v6954 = vsel %vm5979, %v6901, -inf
    %v6955 = vmax.f32 %v6953, %v6954
    %v6956 = vsel %vm5979, %v6902, -inf
    %v6957 = vsel %vm5979, %v6904, -inf
    %v6958 = vmax.f32 %v6956, %v6957
    %v6959 = vsel %vm5979, %v6903, -inf
    %v6960 = vsel %vm5979, %v6905, -inf
    %v6961 = vmax.f32 %v6959, %v6960
    %v6962 = vsel %vm5979, %v6906, -inf
    %v6963 = vsel %vm5979, %v6908, -inf
    %v6964 = vmax.f32 %v6962, %v6963
    %v6965 = vsel %vm5979, %v6907, -inf
    %v6966 = vsel %vm5979, %v6909, -inf
    %v6967 = vmax.f32 %v6965, %v6966
    %v6968 = vsel %vm5979, %v6910, -inf
    %v6969 = vsel %vm5979, %v6912, -inf
    %v6970 = vmax.f32 %v6968, %v6969
    %v6971 = vsel %vm5979, %v6911, -inf
    %v6972 = vsel %vm5979, %v6913, -inf
    %v6973 = vmax.f32 %v6971, %v6972
    %v6994 = vrot.slane %v6916, 1
    %v6995 = vrot.slane %v6919, 1
    %v6996 = vsel %vm4042, %v6994, %v6995
    %v6997 = vrot.slane %v6922, 1
    %v6998 = vrot.slane %v6925, 1
    %v6999 = vsel %vm4042, %v6997, %v6998
    %v7000 = vrot.slane %v6928, 1
    %v7001 = vrot.slane %v6931, 1
    %v7002 = vsel %vm4042, %v7000, %v7001
    %v7003 = vrot.slane %v6934, 1
    %v7004 = vrot.slane %v6937, 1
    %v7005 = vsel %vm4042, %v7003, %v7004
    %v7006 = vrot.slane %v6940, 1
    %v7007 = vrot.slane %v6943, 1
    %v7008 = vsel %vm4042, %v7006, %v7007
    %v7009 = vrot.slane %v6946, 1
    %v7010 = vrot.slane %v6949, 1
    %v7011 = vsel %vm4042, %v7009, %v7010
    %v7012 = vrot.slane %v6952, 1
    %v7013 = vrot.slane %v6955, 1
    %v7014 = vsel %vm4042, %v7012, %v7013
    %v7015 = vrot.slane %v6958, 1
    %v7016 = vrot.slane %v6961, 1
    %v7017 = vsel %vm4042, %v7015, %v7016
    %v7018 = vrot.slane %v6964, 1
    %v7019 = vrot.slane %v6967, 1
    %v7020 = vsel %vm4042, %v7018, %v7019
    %v7021 = vrot.slane %v6970, 1
    %v7022 = vrot.slane %v6973, 1
    %v7023 = vsel %vm4042, %v7021, %v7022
    %v7044 = vmax.f32 %v6916, %v6996
    %v7045 = vmax.f32 %v6919, %v6995
    %v7046 = vmax.f32 %v6922, %v6999
    %v7047 = vmax.f32 %v6925, %v6998
    %v7048 = vmax.f32 %v6928, %v7002
    %v7049 = vmax.f32 %v6931, %v7001
    %v7050 = vmax.f32 %v6934, %v7005
    %v7051 = vmax.f32 %v6937, %v7004
    %v7052 = vmax.f32 %v6940, %v7008
    %v7053 = vmax.f32 %v6943, %v7007
    %v7054 = vmax.f32 %v6946, %v7011
    %v7055 = vmax.f32 %v6949, %v7010
    %v7056 = vmax.f32 %v6952, %v7014
    %v7057 = vmax.f32 %v6955, %v7013
    %v7058 = vmax.f32 %v6958, %v7017
    %v7059 = vmax.f32 %v6961, %v7016
    %v7060 = vmax.f32 %v6964, %v7020
    %v7061 = vmax.f32 %v6967, %v7019
    %v7062 = vmax.f32 %v6970, %v7023
    %v7063 = vmax.f32 %v6973, %v7022
    %v7066 = vrot.slane %v7054, 7
    %vm7067 = vcmask 1041409
    %v7068 = vsel %vm7067, %v7066, %v7044
    %v7070 = vrot.slane %v7044, 2
    %v7071 = vrot.slane %v7054, 1
    %v7072 = vsel %vm7067, %v7071, %v7070
    %7073 = vrot.lane.b32.xlu0 %v7072, 64
    %v7074 = vpop.permute.xlu0 %7073
    %v7076 = vrot.slane %v7044, 4
    %v7077 = vrot.slane %v7054, 3
    %v7078 = vsel %vm7067, %v7077, %v7076
    %v7080 = vrot.slane %v7044, 6
    %v7081 = vrot.slane %v7054, 5
    %v7082 = vsel %vm7067, %v7081, %v7080
    %7083 = vrot.lane.b32.xlu0 %v7082, 64
    %v7084 = vpop.permute.xlu0 %7083
    %v7088 = vrot.slane %v7055, 7
    %v7089 = vsel %vm7067, %v7088, %v7045
    %v7093 = vrot.slane %v7056, 7
    %v7094 = vsel %vm7067, %v7093, %v7046
    %7095 = vrot.lane.b32.xlu0 %v7094, 64
    %v7096 = vpop.permute.xlu0 %7095
    %v7098 = vrot.slane %v7046, 2
    %v7099 = vrot.slane %v7056, 1
    %v7100 = vsel %vm7067, %v7099, %v7098
    %v7102 = vrot.slane %v7046, 4
    %v7103 = vrot.slane %v7056, 3
    %v7104 = vsel %vm7067, %v7103, %v7102
    %7105 = vrot.lane.b32.xlu0 %v7104, 64
    %v7106 = vpop.permute.xlu0 %7105
    %v7108 = vrot.slane %v7046, 6
    %v7109 = vrot.slane %v7056, 5
    %v7110 = vsel %vm7067, %v7109, %v7108
    %v7114 = vrot.slane %v7057, 7
    %v7115 = vsel %vm7067, %v7114, %v7047
    %7116 = vrot.lane.b32.xlu0 %v7115, 64
    %v7117 = vpop.permute.xlu0 %7116
    %v7121 = vrot.slane %v7058, 7
    %v7122 = vsel %vm7067, %v7121, %v7048
    %v7124 = vrot.slane %v7048, 2
    %v7125 = vrot.slane %v7058, 1
    %v7126 = vsel %vm7067, %v7125, %v7124
    %7127 = vrot.lane.b32.xlu0 %v7126, 64
    %v7128 = vpop.permute.xlu0 %7127
    %v7130 = vrot.slane %v7048, 4
    %v7131 = vrot.slane %v7058, 3
    %v7132 = vsel %vm7067, %v7131, %v7130
    %v7134 = vrot.slane %v7048, 6
    %v7135 = vrot.slane %v7058, 5
    %v7136 = vsel %vm7067, %v7135, %v7134
    %7137 = vrot.lane.b32.xlu0 %v7136, 64
    %v7138 = vpop.permute.xlu0 %7137
    %v7142 = vrot.slane %v7059, 7
    %v7143 = vsel %vm7067, %v7142, %v7049
    %v7147 = vrot.slane %v7060, 7
    %v7148 = vsel %vm7067, %v7147, %v7050
    %7149 = vrot.lane.b32.xlu0 %v7148, 64
    %v7150 = vpop.permute.xlu0 %7149
    %v7152 = vsel %vm5979, %v7068, %v7074
    %v7153 = vsel %vm5979, %v7078, %v7084
    %v7154 = vsel %vm5979, %v7089, %v7096
    %v7155 = vsel %vm5979, %v7100, %v7106
    %v7156 = vsel %vm5979, %v7110, %v7117
    %v7157 = vsel %vm5979, %v7122, %v7128
    %v7158 = vsel %vm5979, %v7132, %v7138
    %v7159 = vsel %vm5979, %v7143, %v7150
    %vm7160 = vcmask 1043459
    %v7161 = vsel %vm7160, %v7147, %v7050
    %v7163 = vrot.slane %v7050, 2
    %v7164 = vrot.slane %v7060, 1
    %v7165 = vsel %vm7160, %v7164, %v7163
    %7166 = vrot.lane.b32.xlu0 %v7165, 64
    %v7167 = vpop.permute.xlu0 %7166
    %v7169 = vrot.slane %v7050, 4
    %v7170 = vrot.slane %v7060, 3
    %v7171 = vsel %vm7160, %v7170, %v7169
    %v7175 = vrot.slane %v7051, 6
    %v7176 = vrot.slane %v7061, 5
    %v7177 = vsel %vm7160, %v7176, %v7175
    %7178 = vrot.lane.b32.xlu0 %v7177, 64
    %v7179 = vpop.permute.xlu0 %7178
    %v7183 = vrot.slane %v7052, 6
    %v7184 = vrot.slane %v7062, 5
    %v7185 = vsel %vm7160, %v7184, %v7183
    %v7187 = vrot.slane %v7062, 7
    %v7188 = vsel %vm7160, %v7187, %v7052
    %7189 = vrot.lane.b32.xlu0 %v7188, 64
    %v7190 = vpop.permute.xlu0 %7189
    %v7192 = vrot.slane %v7052, 2
    %v7193 = vrot.slane %v7062, 1
    %v7194 = vsel %vm7160, %v7193, %v7192
    %v7196 = vrot.slane %v7052, 4
    %v7197 = vrot.slane %v7062, 3
    %v7198 = vsel %vm7160, %v7197, %v7196
    %7199 = vrot.lane.b32.xlu0 %v7198, 64
    %v7200 = vpop.permute.xlu0 %7199
    %v7204 = vrot.slane %v7053, 6
    %v7205 = vrot.slane %v7063, 5
    %v7206 = vsel %vm7160, %v7205, %v7204
    %v7207 = vsel %vm5979, %v7161, %v7167
    %v7208 = vsel %vm5979, %v7171, %v7179
    %v7209 = vsel %vm5979, %v7185, %v7190
    %v7210 = vsel %vm5979, %v7194, %v7200
    %v7215 = vrot.slane %v7207, 2
    %v7216 = vrot.slane %v7208, 2
    %v7217 = vrot.slane %v7209, 2
    %v7218 = vrot.slane %v7210, 2
    %v7219 = vrot.slane %v7206, 2
    %v7224 = vld [vmem:[#allocation8] sm:$0xff]
    %v7225 = vld [vmem:[#allocation8 + $0x8] sm:$0xff]
    %v7226 = vld [vmem:[#allocation8 + $0x10] sm:$0xff]
    %v7227 = vld [vmem:[#allocation8 + $0x18] sm:$0xff]
    %v7228 = vld [vmem:[#allocation8 + $0x20] sm:$0xff]
    %v7229 = vld [vmem:[#allocation8 + $0x28] sm:$0xff]
    %v7230 = vld [vmem:[#allocation8 + $0x30] sm:$0xff]
    %v7231 = vld [vmem:[#allocation8 + $0x38] sm:$0xff]
    %v7232 = vld [vmem:[#allocation8 + $0x40] sm:$0xff]
    %v7233 = vld [vmem:[#allocation8 + $0x48] sm:$0xff]
    %v7234 = vld [vmem:[#allocation8 + $0x50] sm:$0xff]
    %v7235 = vld [vmem:[#allocation8 + $0x58] sm:$0xff]
    %v7236 = vld [vmem:[#allocation8 + $0x60] sm:$0xff]
    %v7237 = vld [vmem:[#allocation8 + $0x68] sm:$0xff]
    %v7238 = vld [vmem:[#allocation8 + $0x70] sm:$0xff]
    %v7239 = vld [vmem:[#allocation8 + $0x78] sm:$0xff]
    %v7240 = vld [vmem:[#allocation8 + $0x80] sm:$0xff]
    %v7241 = vld [vmem:[#allocation8 + $0x88] sm:$0xff]
    %v7242 = vld [vmem:[#allocation8 + $0x90] sm:$0xff]
    %v7243 = vld [vmem:[#allocation8 + $0x98] sm:$0xff]
    %v7244 = vld [vmem:[#allocation8 + $0xa0] sm:$0xff]
    %v7245 = vld [vmem:[#allocation8 + $0xa8] sm:$0xff]
    %v7246 = vld [vmem:[#allocation8 + $0xb0] sm:$0xff]
    %v7247 = vld [vmem:[#allocation8 + $0xb8] sm:$0xff]
    %v7248 = vld [vmem:[#allocation8 + $0xc0] sm:$0xff]
    %v7249 = vld [vmem:[#allocation8 + $0xc8] sm:$0xff]
    %v7250 = vld [vmem:[#allocation8 + $0xd0] sm:$0xff]
    %v7251 = vld [vmem:[#allocation8 + $0xd8] sm:$0xff]
    %v7252 = vld [vmem:[#allocation8 + $0xe0] sm:$0xff]
    %v7253 = vld [vmem:[#allocation8 + $0xe8] sm:$0xff]
    %v7254 = vld [vmem:[#allocation8 + $0xf0] sm:$0xff]
    %v7255 = vld [vmem:[#allocation8 + $0xf8] sm:$0xff]
    %v7256 = vld [vmem:[#allocation8 + $0x100] sm:$0xff]
    %v7257 = vld [vmem:[#allocation8 + $0x108] sm:$0xff]
    %v7258 = vld [vmem:[#allocation8 + $0x110] sm:$0xff]
    %v7259 = vld [vmem:[#allocation8 + $0x118] sm:$0xff]
    %v7260 = vld [vmem:[#allocation8 + $0x120] sm:$0xff]
    %v7261 = vld [vmem:[#allocation8 + $0x128] sm:$0xff]
    %v7262 = vld [vmem:[#allocation8 + $0x130] sm:$0xff]
    %v7263 = vld [vmem:[#allocation8 + $0x138] sm:$0xff]
    %v7264 = vld [vmem:[#allocation8 + $0x140] sm:$0xff]
    %v7265 = vld [vmem:[#allocation8 + $0x148] sm:$0xff]
    %v7266 = vld [vmem:[#allocation8 + $0x150] sm:$0xff]
    %v7267 = vld [vmem:[#allocation8 + $0x158] sm:$0xff]
    %v7268 = vld [vmem:[#allocation8 + $0x160] sm:$0xff]
    %v7269 = vld [vmem:[#allocation8 + $0x168] sm:$0xff]
    %v7270 = vld [vmem:[#allocation8 + $0x170] sm:$0xff]
    %v7271 = vld [vmem:[#allocation8 + $0x178] sm:$0xff]
    %v7272 = vld [vmem:[#allocation8 + $0x180] sm:$0xff]
    %v7273 = vld [vmem:[#allocation8 + $0x188] sm:$0xff]
    %v7274 = vld [vmem:[#allocation8 + $0x190] sm:$0xff]
    %v7275 = vld [vmem:[#allocation8 + $0x198] sm:$0xff]
    %v7276 = vld [vmem:[#allocation8 + $0x1a0] sm:$0xff]
    %v7277 = vld [vmem:[#allocation8 + $0x1a8] sm:$0xff]
    %v7278 = vld [vmem:[#allocation8 + $0x1b0] sm:$0xff]
    %v7279 = vld [vmem:[#allocation8 + $0x1b8] sm:$0xff]
    %v7280 = vld [vmem:[#allocation8 + $0x1c0] sm:$0xff]
    %v7281 = vld [vmem:[#allocation8 + $0x1c8] sm:$0xff]
    %v7282 = vld [vmem:[#allocation8 + $0x1d0] sm:$0xff]
    %v7283 = vld [vmem:[#allocation8 + $0x1d8] sm:$0xff]
    %v7284 = vld [vmem:[#allocation8 + $0x1e0] sm:$0xff]
    %v7285 = vld [vmem:[#allocation8 + $0x1e8] sm:$0xff]
    %v7286 = vld [vmem:[#allocation8 + $0x1f0] sm:$0xff]
    %v7287 = vld [vmem:[#allocation8 + $0x1f8] sm:$0xff]
    %v7288 = vld [vmem:[#allocation8 + $0x200] sm:$0xff]
    %v7289 = vld [vmem:[#allocation8 + $0x208] sm:$0xff]
    %v7290 = vld [vmem:[#allocation8 + $0x210] sm:$0xff]
    %v7291 = vld [vmem:[#allocation8 + $0x218] sm:$0xff]
    %v7292 = vld [vmem:[#allocation8 + $0x220] sm:$0xff]
    %v7293 = vld [vmem:[#allocation8 + $0x228] sm:$0xff]
    %v7294 = vld [vmem:[#allocation8 + $0x230] sm:$0xff]
    %v7295 = vld [vmem:[#allocation8 + $0x238] sm:$0xff]
    %v7296 = vld [vmem:[#allocation8 + $0x240] sm:$0xff]
    %v7297 = vld [vmem:[#allocation8 + $0x248] sm:$0xff]
    %v7298 = vld [vmem:[#allocation8 + $0x250] sm:$0xff]
    %v7299 = vld [vmem:[#allocation8 + $0x258] sm:$0xff]
    %v7300 = vld [vmem:[#allocation8 + $0x260] sm:$0xff]
    %v7301 = vld [vmem:[#allocation8 + $0x268] sm:$0xff]
    %v7302 = vld [vmem:[#allocation8 + $0x270] sm:$0xff]
    %v7303 = vld [vmem:[#allocation8 + $0x278] sm:$0xff]
    %v7304 = vld [vmem:[#allocation8 + $0x280] sm:$0xff]
    %v7305 = vld [vmem:[#allocation8 + $0x288] sm:$0xff]
    %v7306 = vld [vmem:[#allocation8 + $0x290] sm:$0xff]
    %v7307 = vld [vmem:[#allocation8 + $0x298] sm:$0xff]
    %v7308 = vld [vmem:[#allocation8 + $0x2a0] sm:$0xff]
    %v7309 = vld [vmem:[#allocation8 + $0x2a8] sm:$0xff]
    %v7310 = vld [vmem:[#allocation8 + $0x2b0] sm:$0xff]
    %v7311 = vld [vmem:[#allocation8 + $0x2b8] sm:$0xff]
    %v7312 = vld [vmem:[#allocation8 + $0x2c0] sm:$0xff]
    %v7313 = vld [vmem:[#allocation8 + $0x2c8] sm:$0xff]
    %v7314 = vld [vmem:[#allocation8 + $0x2d0] sm:$0xff]
    %v7315 = vld [vmem:[#allocation8 + $0x2d8] sm:$0xff]
    %v7316 = vld [vmem:[#allocation8 + $0x2e0] sm:$0xff]
    %v7317 = vld [vmem:[#allocation8 + $0x2e8] sm:$0xff]
    %v7318 = vld [vmem:[#allocation8 + $0x2f0] sm:$0xff]
    %v7319 = vld [vmem:[#allocation8 + $0x2f8] sm:$0xff]
    %v7320 = vld [vmem:[#allocation8 + $0x300] sm:$0xff]
    %v7321 = vld [vmem:[#allocation8 + $0x308] sm:$0xff]
    %v7322 = vld [vmem:[#allocation8 + $0x310] sm:$0xff]
    %v7323 = vld [vmem:[#allocation8 + $0x318] sm:$0xff]
    %v7324 = vld [vmem:[#allocation8 + $0x320] sm:$0xff]
    %v7325 = vld [vmem:[#allocation8 + $0x328] sm:$0xff]
    %v7326 = vld [vmem:[#allocation8 + $0x330] sm:$0xff]
    %v7327 = vld [vmem:[#allocation8 + $0x338] sm:$0xff]
    %v7328 = vld [vmem:[#allocation8 + $0x340] sm:$0xff]
    %v7329 = vld [vmem:[#allocation8 + $0x348] sm:$0xff]
    %v7330 = vld [vmem:[#allocation8 + $0x350] sm:$0xff]
    %v7331 = vld [vmem:[#allocation8 + $0x358] sm:$0xff]
    %v7332 = vld [vmem:[#allocation8 + $0x360] sm:$0xff]
    %v7333 = vld [vmem:[#allocation8 + $0x368] sm:$0xff]
    %v7334 = vld [vmem:[#allocation8 + $0x370] sm:$0xff]
    %v7335 = vld [vmem:[#allocation8 + $0x378] sm:$0xff]
    %v7336 = vld [vmem:[#allocation8 + $0x380] sm:$0xff]
    %v7337 = vld [vmem:[#allocation8 + $0x388] sm:$0xff]
    %v7338 = vld [vmem:[#allocation8 + $0x390] sm:$0xff]
    %v7339 = vld [vmem:[#allocation8 + $0x398] sm:$0xff]
    %v7340 = vld [vmem:[#allocation8 + $0x3a0] sm:$0xff]
    %v7341 = vld [vmem:[#allocation8 + $0x3a8] sm:$0xff]
    %v7342 = vld [vmem:[#allocation8 + $0x3b0] sm:$0xff]
    %v7343 = vld [vmem:[#allocation8 + $0x3b8] sm:$0xff]
    %v7344 = vld [vmem:[#allocation8 + $0x3c0] sm:$0xff]
    %v7345 = vld [vmem:[#allocation8 + $0x3c8] sm:$0xff]
    %v7346 = vld [vmem:[#allocation8 + $0x3d0] sm:$0xff]
    %v7347 = vld [vmem:[#allocation8 + $0x3d8] sm:$0xff]
    %v7348 = vld [vmem:[#allocation8 + $0x3e0] sm:$0xff]
    %v7349 = vld [vmem:[#allocation8 + $0x3e8] sm:$0xff]
    %v7350 = vld [vmem:[#allocation8 + $0x3f0] sm:$0xff]
    %v7351 = vld [vmem:[#allocation8 + $0x3f8] sm:$0xff]
    %v7352 = vld [vmem:[#allocation8 + $0x400] sm:$0xff]
    %v7353 = vld [vmem:[#allocation8 + $0x408] sm:$0xff]
    %v7354 = vld [vmem:[#allocation8 + $0x410] sm:$0xff]
    %v7355 = vld [vmem:[#allocation8 + $0x418] sm:$0xff]
    %v7356 = vld [vmem:[#allocation8 + $0x420] sm:$0xff]
    %v7357 = vld [vmem:[#allocation8 + $0x428] sm:$0xff]
    %v7358 = vld [vmem:[#allocation8 + $0x430] sm:$0xff]
    %v7359 = vld [vmem:[#allocation8 + $0x438] sm:$0xff]
    %v7360 = vld [vmem:[#allocation8 + $0x440] sm:$0xff]
    %v7361 = vld [vmem:[#allocation8 + $0x448] sm:$0xff]
    %v7362 = vld [vmem:[#allocation8 + $0x450] sm:$0xff]
    %v7363 = vld [vmem:[#allocation8 + $0x458] sm:$0xff]
    %v7364 = vld [vmem:[#allocation8 + $0x460] sm:$0xff]
    %v7365 = vld [vmem:[#allocation8 + $0x468] sm:$0xff]
    %v7366 = vld [vmem:[#allocation8 + $0x470] sm:$0xff]
    %v7367 = vld [vmem:[#allocation8 + $0x478] sm:$0xff]
    %v7368 = vld [vmem:[#allocation8 + $0x480] sm:$0xff]
    %v7369 = vld [vmem:[#allocation8 + $0x488] sm:$0xff]
    %v7370 = vld [vmem:[#allocation8 + $0x490] sm:$0xff]
    %v7371 = vld [vmem:[#allocation8 + $0x498] sm:$0xff]
    %v7372 = vld [vmem:[#allocation8 + $0x4a0] sm:$0xff]
    %v7373 = vld [vmem:[#allocation8 + $0x4a8] sm:$0xff]
    %v7374 = vld [vmem:[#allocation8 + $0x4b0] sm:$0xff]
    %v7375 = vld [vmem:[#allocation8 + $0x4b8] sm:$0xff]
    %v7376 = vld [vmem:[#allocation8 + $0x4c0] sm:$0xff]
    %v7377 = vld [vmem:[#allocation8 + $0x4c8] sm:$0xff]
    %v7378 = vld [vmem:[#allocation8 + $0x4d0] sm:$0xff]
    %v7379 = vld [vmem:[#allocation8 + $0x4d8] sm:$0xff]
    %v7380 = vld [vmem:[#allocation8 + $0x4e0] sm:$0xff]
    %v7381 = vld [vmem:[#allocation8 + $0x4e8] sm:$0xff]
    %v7382 = vld [vmem:[#allocation8 + $0x4f0] sm:$0xff]
    %v7383 = vld [vmem:[#allocation8 + $0x4f8] sm:$0xff]
    %v7384 = vld [vmem:[#allocation8 + $0x500] sm:$0xff]
    %v7385 = vld [vmem:[#allocation8 + $0x508] sm:$0xff]
    %v7386 = vld [vmem:[#allocation8 + $0x510] sm:$0xff]
    %v7387 = vld [vmem:[#allocation8 + $0x518] sm:$0xff]
    %v7388 = vld [vmem:[#allocation8 + $0x520] sm:$0xff]
    %v7389 = vld [vmem:[#allocation8 + $0x528] sm:$0xff]
    %v7390 = vld [vmem:[#allocation8 + $0x530] sm:$0xff]
    %v7391 = vld [vmem:[#allocation8 + $0x538] sm:$0xff]
    %v7392 = vld [vmem:[#allocation8 + $0x540] sm:$0xff]
    %v7393 = vld [vmem:[#allocation8 + $0x548] sm:$0xff]
    %v7394 = vld [vmem:[#allocation8 + $0x550] sm:$0xff]
    %v7395 = vld [vmem:[#allocation8 + $0x558] sm:$0xff]
    %v7396 = vld [vmem:[#allocation8 + $0x560] sm:$0xff]
    %v7397 = vld [vmem:[#allocation8 + $0x568] sm:$0xff]
    %v7398 = vld [vmem:[#allocation8 + $0x570] sm:$0xff]
    %v7399 = vld [vmem:[#allocation8 + $0x578] sm:$0xff]
    %v7400 = vld [vmem:[#allocation8 + $0x580] sm:$0xff]
    %v7401 = vld [vmem:[#allocation8 + $0x588] sm:$0xff]
    %v7402 = vld [vmem:[#allocation8 + $0x590] sm:$0xff]
    %v7403 = vld [vmem:[#allocation8 + $0x598] sm:$0xff]
    %v7404 = vld [vmem:[#allocation8 + $0x5a0] sm:$0xff]
    %v7405 = vld [vmem:[#allocation8 + $0x5a8] sm:$0xff]
    %v7406 = vld [vmem:[#allocation8 + $0x5b0] sm:$0xff]
    %v7407 = vld [vmem:[#allocation8 + $0x5b8] sm:$0xff]
    %v7408 = vld [vmem:[#allocation8 + $0x5c0] sm:$0xff]
    %v7409 = vld [vmem:[#allocation8 + $0x5c8] sm:$0xff]
    %v7410 = vld [vmem:[#allocation8 + $0x5d0] sm:$0xff]
    %v7411 = vld [vmem:[#allocation8 + $0x5d8] sm:$0xff]
    %v7412 = vld [vmem:[#allocation8 + $0x5e0] sm:$0xff]
    %v7413 = vld [vmem:[#allocation8 + $0x5e8] sm:$0xff]
    %v7414 = vld [vmem:[#allocation8 + $0x5f0] sm:$0xff]
    %v7415 = vld [vmem:[#allocation8 + $0x5f8] sm:$0xff]
    %v7416 = vld [vmem:[#allocation8 + $0x600] sm:$0xff]
    %v7417 = vld [vmem:[#allocation8 + $0x608] sm:$0xff]
    %v7418 = vld [vmem:[#allocation8 + $0x610] sm:$0xff]
    %v7419 = vld [vmem:[#allocation8 + $0x618] sm:$0xff]
    %v7420 = vld [vmem:[#allocation8 + $0x620] sm:$0xff]
    %v7421 = vld [vmem:[#allocation8 + $0x628] sm:$0xff]
    %v7422 = vld [vmem:[#allocation8 + $0x630] sm:$0xff]
    %v7423 = vld [vmem:[#allocation8 + $0x638] sm:$0xff]
    %v7424 = vld [vmem:[#allocation8 + $0x640] sm:$0xff]
    %v7425 = vld [vmem:[#allocation8 + $0x648] sm:$0xff]
    %v7426 = vld [vmem:[#allocation8 + $0x650] sm:$0xff]
    %v7427 = vld [vmem:[#allocation8 + $0x658] sm:$0xff]
    %v7428 = vld [vmem:[#allocation8 + $0x660] sm:$0xff]
    %v7429 = vld [vmem:[#allocation8 + $0x668] sm:$0xff]
    %v7430 = vld [vmem:[#allocation8 + $0x670] sm:$0xff]
    %v7431 = vld [vmem:[#allocation8 + $0x678] sm:$0xff]
    %v7432 = vld [vmem:[#allocation8 + $0x680] sm:$0xff]
    %v7433 = vld [vmem:[#allocation8 + $0x688] sm:$0xff]
    %v7434 = vld [vmem:[#allocation8 + $0x690] sm:$0xff]
    %v7435 = vld [vmem:[#allocation8 + $0x698] sm:$0xff]
    %v7436 = vld [vmem:[#allocation8 + $0x6a0] sm:$0xff]
    %v7437 = vld [vmem:[#allocation8 + $0x6a8] sm:$0xff]
    %v7438 = vld [vmem:[#allocation8 + $0x6b0] sm:$0xff]
    %v7439 = vld [vmem:[#allocation8 + $0x6b8] sm:$0xff]
    %v7440 = vld [vmem:[#allocation8 + $0x6c0] sm:$0xff]
    %v7441 = vld [vmem:[#allocation8 + $0x6c8] sm:$0xff]
    %v7442 = vld [vmem:[#allocation8 + $0x6d0] sm:$0xff]
    %v7443 = vld [vmem:[#allocation8 + $0x6d8] sm:$0xff]
    %v7444 = vld [vmem:[#allocation8 + $0x6e0] sm:$0xff]
    %v7445 = vld [vmem:[#allocation8 + $0x6e8] sm:$0xff]
    %v7446 = vld [vmem:[#allocation8 + $0x6f0] sm:$0xff]
    %v7447 = vld [vmem:[#allocation8 + $0x6f8] sm:$0xff]
    %v7448 = vld [vmem:[#allocation8 + $0x700] sm:$0xff]
    %v7449 = vld [vmem:[#allocation8 + $0x708] sm:$0xff]
    %v7450 = vld [vmem:[#allocation8 + $0x710] sm:$0xff]
    %v7451 = vld [vmem:[#allocation8 + $0x718] sm:$0xff]
    %v7452 = vld [vmem:[#allocation8 + $0x720] sm:$0xff]
    %v7453 = vld [vmem:[#allocation8 + $0x728] sm:$0xff]
    %v7454 = vld [vmem:[#allocation8 + $0x730] sm:$0xff]
    %v7455 = vld [vmem:[#allocation8 + $0x738] sm:$0xff]
    %v7456 = vld [vmem:[#allocation8 + $0x740] sm:$0xff]
    %v7457 = vld [vmem:[#allocation8 + $0x748] sm:$0xff]
    %v7458 = vld [vmem:[#allocation8 + $0x750] sm:$0xff]
    %v7459 = vld [vmem:[#allocation8 + $0x758] sm:$0xff]
    %v7460 = vld [vmem:[#allocation8 + $0x760] sm:$0xff]
    %v7461 = vld [vmem:[#allocation8 + $0x768] sm:$0xff]
    %v7462 = vld [vmem:[#allocation8 + $0x770] sm:$0xff]
    %v7463 = vld [vmem:[#allocation8 + $0x778] sm:$0xff]
    %v7464 = vld [vmem:[#allocation8 + $0x780] sm:$0xff]
    %v7465 = vld [vmem:[#allocation8 + $0x788] sm:$0xff]
    %v7466 = vld [vmem:[#allocation8 + $0x790] sm:$0xff]
    %v7467 = vld [vmem:[#allocation8 + $0x798] sm:$0xff]
    %v7468 = vld [vmem:[#allocation8 + $0x7a0] sm:$0xff]
    %v7469 = vld [vmem:[#allocation8 + $0x7a8] sm:$0xff]
    %v7470 = vld [vmem:[#allocation8 + $0x7b0] sm:$0xff]
    %v7471 = vld [vmem:[#allocation8 + $0x7b8] sm:$0xff]
    %v7472 = vld [vmem:[#allocation8 + $0x7c0] sm:$0xff]
    %v7473 = vld [vmem:[#allocation8 + $0x7c8] sm:$0xff]
    %v7474 = vld [vmem:[#allocation8 + $0x7d0] sm:$0xff]
    %v7475 = vld [vmem:[#allocation8 + $0x7d8] sm:$0xff]
    %v7476 = vld [vmem:[#allocation8 + $0x7e0] sm:$0xff]
    %v7477 = vld [vmem:[#allocation8 + $0x7e8] sm:$0xff]
    %v7478 = vld [vmem:[#allocation8 + $0x7f0] sm:$0xff]
    %v7479 = vld [vmem:[#allocation8 + $0x7f8] sm:$0xff]
    %v7480 = vld [vmem:[#allocation8 + $0x800] sm:$0xff]
    %v7481 = vld [vmem:[#allocation8 + $0x808] sm:$0xff]
    %v7482 = vld [vmem:[#allocation8 + $0x810] sm:$0xff]
    %v7483 = vld [vmem:[#allocation8 + $0x818] sm:$0xff]
    %v7484 = vld [vmem:[#allocation8 + $0x820] sm:$0xff]
    %v7485 = vld [vmem:[#allocation8 + $0x828] sm:$0xff]
    %v7486 = vld [vmem:[#allocation8 + $0x830] sm:$0xff]
    %v7487 = vld [vmem:[#allocation8 + $0x838] sm:$0xff]
    %v7488 = vld [vmem:[#allocation8 + $0x840] sm:$0xff]
    %v7489 = vld [vmem:[#allocation8 + $0x848] sm:$0xff]
    %v7490 = vld [vmem:[#allocation8 + $0x850] sm:$0xff]
    %v7491 = vld [vmem:[#allocation8 + $0x858] sm:$0xff]
    %v7492 = vld [vmem:[#allocation8 + $0x860] sm:$0xff]
    %v7493 = vld [vmem:[#allocation8 + $0x868] sm:$0xff]
    %v7494 = vld [vmem:[#allocation8 + $0x870] sm:$0xff]
    %v7495 = vld [vmem:[#allocation8 + $0x878] sm:$0xff]
    %v7496 = vld [vmem:[#allocation8 + $0x880] sm:$0xff]
    %v7497 = vld [vmem:[#allocation8 + $0x888] sm:$0xff]
    %v7498 = vld [vmem:[#allocation8 + $0x890] sm:$0xff]
    %v7499 = vld [vmem:[#allocation8 + $0x898] sm:$0xff]
    %v7500 = vld [vmem:[#allocation8 + $0x8a0] sm:$0xff]
    %v7501 = vld [vmem:[#allocation8 + $0x8a8] sm:$0xff]
    %v7502 = vld [vmem:[#allocation8 + $0x8b0] sm:$0xff]
    %v7503 = vld [vmem:[#allocation8 + $0x8b8] sm:$0xff]
    %v7504 = vld [vmem:[#allocation8 + $0x8c0] sm:$0xff]
    %v7505 = vld [vmem:[#allocation8 + $0x8c8] sm:$0xff]
    %v7506 = vld [vmem:[#allocation8 + $0x8d0] sm:$0xff]
    %v7507 = vld [vmem:[#allocation8 + $0x8d8] sm:$0xff]
    %v7508 = vld [vmem:[#allocation8 + $0x8e0] sm:$0xff]
    %v7509 = vld [vmem:[#allocation8 + $0x8e8] sm:$0xff]
    %v7510 = vld [vmem:[#allocation8 + $0x8f0] sm:$0xff]
    %v7511 = vld [vmem:[#allocation8 + $0x8f8] sm:$0xff]
    %v7512 = vld [vmem:[#allocation8 + $0x900] sm:$0xff]
    %v7513 = vld [vmem:[#allocation8 + $0x908] sm:$0xff]
    %v7514 = vld [vmem:[#allocation8 + $0x910] sm:$0xff]
    %v7515 = vld [vmem:[#allocation8 + $0x918] sm:$0xff]
    %v7516 = vld [vmem:[#allocation8 + $0x920] sm:$0xff]
    %v7517 = vld [vmem:[#allocation8 + $0x928] sm:$0xff]
    %v7518 = vld [vmem:[#allocation8 + $0x930] sm:$0xff]
    %v7519 = vld [vmem:[#allocation8 + $0x938] sm:$0xff]
    %v7520 = vld [vmem:[#allocation8 + $0x940] sm:$0xff]
    %v7521 = vld [vmem:[#allocation8 + $0x948] sm:$0xff]
    %v7522 = vld [vmem:[#allocation8 + $0x950] sm:$0xff]
    %v7523 = vld [vmem:[#allocation8 + $0x958] sm:$0xff]
    %v7524 = vld [vmem:[#allocation8 + $0x960] sm:$0xff]
    %v7525 = vld [vmem:[#allocation8 + $0x968] sm:$0xff]
    %v7526 = vld [vmem:[#allocation8 + $0x970] sm:$0xff]
    %v7527 = vld [vmem:[#allocation8 + $0x978] sm:$0xff]
    %v7528 = vld [vmem:[#allocation8 + $0x980] sm:$0xff]
    %v7529 = vld [vmem:[#allocation8 + $0x988] sm:$0xff]
    %v7530 = vld [vmem:[#allocation8 + $0x990] sm:$0xff]
    %v7531 = vld [vmem:[#allocation8 + $0x998] sm:$0xff]
    %v7532 = vld [vmem:[#allocation8 + $0x9a0] sm:$0xff]
    %v7533 = vld [vmem:[#allocation8 + $0x9a8] sm:$0xff]
    %v7534 = vld [vmem:[#allocation8 + $0x9b0] sm:$0xff]
    %v7535 = vld [vmem:[#allocation8 + $0x9b8] sm:$0xff]
    %v7536 = vld [vmem:[#allocation8 + $0x9c0] sm:$0xff]
    %v7537 = vld [vmem:[#allocation8 + $0x9c8] sm:$0xff]
    %v7538 = vld [vmem:[#allocation8 + $0x9d0] sm:$0xff]
    %v7539 = vld [vmem:[#allocation8 + $0x9d8] sm:$0xff]
    %v7540 = vld [vmem:[#allocation8 + $0x9e0] sm:$0xff]
    %v7541 = vld [vmem:[#allocation8 + $0x9e8] sm:$0xff]
    %v7542 = vld [vmem:[#allocation8 + $0x9f0] sm:$0xff]
    %v7543 = vld [vmem:[#allocation8 + $0x9f8] sm:$0xff]
    %v7544 = vld [vmem:[#allocation8 + $0xa00] sm:$0xff]
    %v7545 = vld [vmem:[#allocation8 + $0xa08] sm:$0xff]
    %v7546 = vld [vmem:[#allocation8 + $0xa10] sm:$0xff]
    %v7547 = vld [vmem:[#allocation8 + $0xa18] sm:$0xff]
    %v7548 = vld [vmem:[#allocation8 + $0xa20] sm:$0xff]
    %v7549 = vld [vmem:[#allocation8 + $0xa28] sm:$0xff]
    %v7550 = vld [vmem:[#allocation8 + $0xa30] sm:$0xff]
    %v7551 = vld [vmem:[#allocation8 + $0xa38] sm:$0xff]
    %v7552 = vld [vmem:[#allocation8 + $0xa40] sm:$0xff]
    %v7553 = vld [vmem:[#allocation8 + $0xa48] sm:$0xff]
    %v7554 = vld [vmem:[#allocation8 + $0xa50] sm:$0xff]
    %v7555 = vld [vmem:[#allocation8 + $0xa58] sm:$0xff]
    %v7556 = vld [vmem:[#allocation8 + $0xa60] sm:$0xff]
    %v7557 = vld [vmem:[#allocation8 + $0xa68] sm:$0xff]
    %v7558 = vld [vmem:[#allocation8 + $0xa70] sm:$0xff]
    %v7559 = vld [vmem:[#allocation8 + $0xa78] sm:$0xff]
    %v7560 = vld [vmem:[#allocation8 + $0xa80] sm:$0xff]
    %v7561 = vld [vmem:[#allocation8 + $0xa88] sm:$0xff]
    %v7562 = vld [vmem:[#allocation8 + $0xa90] sm:$0xff]
    %v7563 = vld [vmem:[#allocation8 + $0xa98] sm:$0xff]
    %v7564 = vld [vmem:[#allocation8 + $0xaa0] sm:$0xff]
    %v7565 = vld [vmem:[#allocation8 + $0xaa8] sm:$0xff]
    %v7566 = vld [vmem:[#allocation8 + $0xab0] sm:$0xff]
    %v7567 = vld [vmem:[#allocation8 + $0xab8] sm:$0xff]
    %v7568 = vld [vmem:[#allocation8 + $0xac0] sm:$0xff]
    %v7569 = vld [vmem:[#allocation8 + $0xac8] sm:$0xff]
    %v7570 = vld [vmem:[#allocation8 + $0xad0] sm:$0xff]
    %v7571 = vld [vmem:[#allocation8 + $0xad8] sm:$0xff]
    %v7572 = vld [vmem:[#allocation8 + $0xae0] sm:$0xff]
    %v7573 = vld [vmem:[#allocation8 + $0xae8] sm:$0xff]
    %v7574 = vld [vmem:[#allocation8 + $0xaf0] sm:$0xff]
    %v7575 = vld [vmem:[#allocation8 + $0xaf8] sm:$0xff]
    %v7576 = vld [vmem:[#allocation8 + $0xb00] sm:$0xff]
    %v7577 = vld [vmem:[#allocation8 + $0xb08] sm:$0xff]
    %v7578 = vld [vmem:[#allocation8 + $0xb10] sm:$0xff]
    %v7579 = vld [vmem:[#allocation8 + $0xb18] sm:$0xff]
    %v7580 = vld [vmem:[#allocation8 + $0xb20] sm:$0xff]
    %v7581 = vld [vmem:[#allocation8 + $0xb28] sm:$0xff]
    %v7582 = vld [vmem:[#allocation8 + $0xb30] sm:$0xff]
    %v7583 = vld [vmem:[#allocation8 + $0xb38] sm:$0xff]
    %v7584 = vld [vmem:[#allocation8 + $0xb40] sm:$0xff]
    %v7585 = vld [vmem:[#allocation8 + $0xb48] sm:$0xff]
    %v7586 = vld [vmem:[#allocation8 + $0xb50] sm:$0xff]
    %v7587 = vld [vmem:[#allocation8 + $0xb58] sm:$0xff]
    %v7588 = vld [vmem:[#allocation8 + $0xb60] sm:$0xff]
    %v7589 = vld [vmem:[#allocation8 + $0xb68] sm:$0xff]
    %v7590 = vld [vmem:[#allocation8 + $0xb70] sm:$0xff]
    %v7591 = vld [vmem:[#allocation8 + $0xb78] sm:$0xff]
    %v7592 = vld [vmem:[#allocation8 + $0xb80] sm:$0xff]
    %v7593 = vld [vmem:[#allocation8 + $0xb88] sm:$0xff]
    %v7594 = vld [vmem:[#allocation8 + $0xb90] sm:$0xff]
    %v7595 = vld [vmem:[#allocation8 + $0xb98] sm:$0xff]
    %v7596 = vld [vmem:[#allocation8 + $0xba0] sm:$0xff]
    %v7597 = vld [vmem:[#allocation8 + $0xba8] sm:$0xff]
    %v7598 = vld [vmem:[#allocation8 + $0xbb0] sm:$0xff]
    %v7599 = vld [vmem:[#allocation8 + $0xbb8] sm:$0xff]
    %v7600 = vld [vmem:[#allocation8 + $0xbc0] sm:$0xff]
    %v7601 = vld [vmem:[#allocation8 + $0xbc8] sm:$0xff]
    %v7602 = vld [vmem:[#allocation8 + $0xbd0] sm:$0xff]
    %v7603 = vld [vmem:[#allocation8 + $0xbd8] sm:$0xff]
    %v7604 = vld [vmem:[#allocation8 + $0xbe0] sm:$0xff]
    %v7605 = vld [vmem:[#allocation8 + $0xbe8] sm:$0xff]
    %v7606 = vld [vmem:[#allocation8 + $0xbf0] sm:$0xff]
    %v7607 = vld [vmem:[#allocation8 + $0xbf8] sm:$0xff]
    %v7608 = vld [vmem:[#allocation8 + $0xc00] sm:$0xff]
    %v7609 = vld [vmem:[#allocation8 + $0xc08] sm:$0xff]
    %v7610 = vld [vmem:[#allocation8 + $0xc10] sm:$0xff]
    %v7611 = vld [vmem:[#allocation8 + $0xc18] sm:$0xff]
    %v7612 = vld [vmem:[#allocation8 + $0xc20] sm:$0xff]
    %v7613 = vld [vmem:[#allocation8 + $0xc28] sm:$0xff]
    %v7614 = vld [vmem:[#allocation8 + $0xc30] sm:$0xff]
    %v7615 = vld [vmem:[#allocation8 + $0xc38] sm:$0xff]
    %v7616 = vld [vmem:[#allocation8 + $0xc40] sm:$0xff]
    %v7617 = vld [vmem:[#allocation8 + $0xc48] sm:$0xff]
    %v7618 = vld [vmem:[#allocation8 + $0xc50] sm:$0xff]
    %v7619 = vld [vmem:[#allocation8 + $0xc58] sm:$0xff]
    %v7620 = vld [vmem:[#allocation8 + $0xc60] sm:$0xff]
    %v7621 = vld [vmem:[#allocation8 + $0xc68] sm:$0xff]
    %v7622 = vld [vmem:[#allocation8 + $0xc70] sm:$0xff]
    %v7623 = vld [vmem:[#allocation8 + $0xc78] sm:$0xff]
    %v7624 = vld [vmem:[#allocation9] sm:$0x3]
    %v7626 = vlaneseq
    %v7627 = vshrl.u32 %v7626, 7
    %v7628 = vsub.s32 0, %v7627
    %v7629 = vrot.slane %v7624, %v7628
    %v7630 = vlaneseq
    %v7631 = vshrl.u32 %v7630, 7
    %v7632 = vsub.s32 1, %v7631
    %v7633 = vrot.slane %v7624, %v7632
    %v7636 = vsel %vm5979, %v7219, 0
    %7638 = vmatprep.subr.mxu0 %v7225
    %7639 = vmatpush1.msra.mxu0 %v7224
    %7640 = vmatprep.subr.mxu0 %v7227
    %7641 = vmatpush1.msra.mxu0 %v7226
    %7642 = vmatprep.subr.mxu0 %v7229
    %7643 = vmatpush1.msra.mxu0 %v7228
    %7644 = vmatprep.subr.mxu0 %v7231
    %7645 = vmatpush1.msra.mxu0 %v7230
    %7646 = vmatprep.subr.mxu0 %v7233
    %7647 = vmatpush1.msra.mxu0 %v7232
    %7648 = vmatprep.subr.mxu0 %v7235
    %7649 = vmatpush1.msra.mxu0 %v7234
    %7650 = vmatprep.subr.mxu0 %v7237
    %7651 = vmatpush1.msra.mxu0 %v7236
    %7652 = vmatprep.subr.mxu0 %v7239
    %7653 = vmatpush1.msra.mxu0 %v7238
    %7654 = vmatprep.subr.mxu0 %v7241
    %7655 = vmatpush1.msra.mxu0 %v7240
    %7656 = vmatprep.subr.mxu0 %v7243
    %7657 = vmatpush1.msra.mxu0 %v7242
    %7658 = vmatprep.subr.mxu0 %v7245
    %7659 = vmatpush1.msra.mxu0 %v7244
    %7660 = vmatprep.subr.mxu0 %v7247
    %7661 = vmatpush1.msra.mxu0 %v7246
    %7662 = vmatprep.subr.mxu0 %v7249
    %7663 = vmatpush1.msra.mxu0 %v7248
    %7664 = vmatprep.subr.mxu0 %v7251
    %7665 = vmatpush1.msra.mxu0 %v7250
    %7666 = vmatprep.subr.mxu0 %v7253
    %7667 = vmatpush1.msra.mxu0 %v7252
    %7668 = vmatprep.subr.mxu0 %v7255
    %7669 = vmatpush1.msra.mxu0 %v7254
    %7670 = vmatprep.subr.mxu0 %v7257
    %7671 = vmatpush1.msra.mxu0 %v7256
    %7672 = vmatprep.subr.mxu0 %v7259
    %7673 = vmatpush1.msra.mxu0 %v7258
    %7674 = vmatprep.subr.mxu0 %v7261
    %7675 = vmatpush1.msra.mxu0 %v7260
    %7676 = vmatprep.subr.mxu0 %v7263
    %7677 = vmatpush1.msra.mxu0 %v7262
    %7678 = vmatprep.subr.mxu0 %v7265
    %7679 = vmatpush1.msra.mxu0 %v7264
    %7680 = vmatprep.subr.mxu0 %v7267
    %7681 = vmatpush1.msra.mxu0 %v7266
    %7682 = vmatprep.subr.mxu0 %v7269
    %7683 = vmatpush1.msra.mxu0 %v7268
    %7684 = vmatprep.subr.mxu0 %v7271
    %7685 = vmatpush1.msra.mxu0 %v7270
    %7686 = vmatprep.subr.mxu0 %v7273
    %7687 = vmatpush1.msra.mxu0 %v7272
    %7688 = vmatprep.subr.mxu0 %v7275
    %7689 = vmatpush1.msra.mxu0 %v7274
    %7690 = vmatprep.subr.mxu0 %v7277
    %7691 = vmatpush1.msra.mxu0 %v7276
    %7692 = vmatprep.subr.mxu0 %v7279
    %7693 = vmatpush1.msra.mxu0 %v7278
    %7694 = vmatprep.subr.mxu0 %v7281
    %7695 = vmatpush1.msra.mxu0 %v7280
    %7696 = vmatprep.subr.mxu0 %v7283
    %7697 = vmatpush1.msra.mxu0 %v7282
    %7698 = vmatprep.subr.mxu0 %v7285
    %7699 = vmatpush1.msra.mxu0 %v7284
    %7700 = vmatprep.subr.mxu0 %v7287
    %7701 = vmatpush1.msra.mxu0 %v7286
    %7702 = vmatprep.mubr.f32.mxu0 %v7153
    %7703 = vmatmul.mubr.f32.gmra.mrb[0].mxu0 %v7152
    %v7704 = vpop.f32.mrb[0].mxu0
    %v7705 = vadd.f32 %v7629, %v7704
    %v7706 = vpop.f32.mrb[0].mxu0
    %v7707 = vadd.f32 %v7633, %v7706
    %7708 = vdwg.mxu0
    %7709 = vmatprep.subr.mxu0 %v7289
    %7710 = vmatpush1.msra.mxu0 %v7288
    %7711 = vmatprep.subr.mxu0 %v7291
    %7712 = vmatpush1.msra.mxu0 %v7290
    %7713 = vmatprep.subr.mxu0 %v7293
    %7714 = vmatpush1.msra.mxu0 %v7292
    %7715 = vmatprep.subr.mxu0 %v7295
    %7716 = vmatpush1.msra.mxu0 %v7294
    %7717 = vmatprep.subr.mxu0 %v7297
    %7718 = vmatpush1.msra.mxu0 %v7296
    %7719 = vmatprep.subr.mxu0 %v7299
    %7720 = vmatpush1.msra.mxu0 %v7298
    %7721 = vmatprep.subr.mxu0 %v7301
    %7722 = vmatpush1.msra.mxu0 %v7300
    %7723 = vmatprep.subr.mxu0 %v7303
    %7724 = vmatpush1.msra.mxu0 %v7302
    %7725 = vmatprep.subr.mxu0 %v7305
    %7726 = vmatpush1.msra.mxu0 %v7304
    %7727 = vmatprep.subr.mxu0 %v7307
    %7728 = vmatpush1.msra.mxu0 %v7306
    %7729 = vmatprep.subr.mxu0 %v7309
    %7730 = vmatpush1.msra.mxu0 %v7308
    %7731 = vmatprep.subr.mxu0 %v7311
    %7732 = vmatpush1.msra.mxu0 %v7310
    %7733 = vmatprep.subr.mxu0 %v7313
    %7734 = vmatpush1.msra.mxu0 %v7312
    %7735 = vmatprep.subr.mxu0 %v7315
    %7736 = vmatpush1.msra.mxu0 %v7314
    %7737 = vmatprep.subr.mxu0 %v7317
    %7738 = vmatpush1.msra.mxu0 %v7316
    %7739 = vmatprep.subr.mxu0 %v7319
    %7740 = vmatpush1.msra.mxu0 %v7318
    %7741 = vmatprep.subr.mxu0 %v7321
    %7742 = vmatpush1.msra.mxu0 %v7320
    %7743 = vmatprep.subr.mxu0 %v7323
    %7744 = vmatpush1.msra.mxu0 %v7322
    %7745 = vmatprep.subr.mxu0 %v7325
    %7746 = vmatpush1.msra.mxu0 %v7324
    %7747 = vmatprep.subr.mxu0 %v7327
    %7748 = vmatpush1.msra.mxu0 %v7326
    %7749 = vmatprep.subr.mxu0 %v7329
    %7750 = vmatpush1.msra.mxu0 %v7328
    %7751 = vmatprep.subr.mxu0 %v7331
    %7752 = vmatpush1.msra.mxu0 %v7330
    %7753 = vmatprep.subr.mxu0 %v7333
    %7754 = vmatpush1.msra.mxu0 %v7332
    %7755 = vmatprep.subr.mxu0 %v7335
    %7756 = vmatpush1.msra.mxu0 %v7334
    %7757 = vmatprep.subr.mxu0 %v7337
    %7758 = vmatpush1.msra.mxu0 %v7336
    %7759 = vmatprep.subr.mxu0 %v7339
    %7760 = vmatpush1.msra.mxu0 %v7338
    %7761 = vmatprep.subr.mxu0 %v7341
    %7762 = vmatpush1.msra.mxu0 %v7340
    %7763 = vmatprep.subr.mxu0 %v7343
    %7764 = vmatpush1.msra.mxu0 %v7342
    %7765 = vmatprep.subr.mxu0 %v7345
    %7766 = vmatpush1.msra.mxu0 %v7344
    %7767 = vmatprep.subr.mxu0 %v7347
    %7768 = vmatpush1.msra.mxu0 %v7346
    %7769 = vmatprep.subr.mxu0 %v7349
    %7770 = vmatpush1.msra.mxu0 %v7348
    %7771 = vmatprep.subr.mxu0 %v7351
    %7772 = vmatpush1.msra.mxu0 %v7350
    %7773 = vmatprep.mubr.f32.mxu0 %v7155
    %7774 = vmatmul.mubr.f32.gmra.mrb[0].mxu0 %v7154
    %v7775 = vpop.f32.mrb[0].mxu0
    %v7776 = vadd.f32 %v7705, %v7775
    %v7777 = vpop.f32.mrb[0].mxu0
    %v7778 = vadd.f32 %v7707, %v7777
    %7779 = vdwg.mxu0
    %7780 = vmatprep.subr.mxu0 %v7353
    %7781 = vmatpush1.msra.mxu0 %v7352
    %7782 = vmatprep.subr.mxu0 %v7355
    %7783 = vmatpush1.msra.mxu0 %v7354
    %7784 = vmatprep.subr.mxu0 %v7357
    %7785 = vmatpush1.msra.mxu0 %v7356
    %7786 = vmatprep.subr.mxu0 %v7359
    %7787 = vmatpush1.msra.mxu0 %v7358
    %7788 = vmatprep.subr.mxu0 %v7361
    %7789 = vmatpush1.msra.mxu0 %v7360
    %7790 = vmatprep.subr.mxu0 %v7363
    %7791 = vmatpush1.msra.mxu0 %v7362
    %7792 = vmatprep.subr.mxu0 %v7365
    %7793 = vmatpush1.msra.mxu0 %v7364
    %7794 = vmatprep.subr.mxu0 %v7367
    %7795 = vmatpush1.msra.mxu0 %v7366
    %7796 = vmatprep.subr.mxu0 %v7369
    %7797 = vmatpush1.msra.mxu0 %v7368
    %7798 = vmatprep.subr.mxu0 %v7371
    %7799 = vmatpush1.msra.mxu0 %v7370
    %7800 = vmatprep.subr.mxu0 %v7373
    %7801 = vmatpush1.msra.mxu0 %v7372
    %7802 = vmatprep.subr.mxu0 %v7375
    %7803 = vmatpush1.msra.mxu0 %v7374
    %7804 = vmatprep.subr.mxu0 %v7377
    %7805 = vmatpush1.msra.mxu0 %v7376
    %7806 = vmatprep.subr.mxu0 %v7379
    %7807 = vmatpush1.msra.mxu0 %v7378
    %7808 = vmatprep.subr.mxu0 %v7381
    %7809 = vmatpush1.msra.mxu0 %v7380
    %7810 = vmatprep.subr.mxu0 %v7383
    %7811 = vmatpush1.msra.mxu0 %v7382
    %7812 = vmatprep.subr.mxu0 %v7385
    %7813 = vmatpush1.msra.mxu0 %v7384
    %7814 = vmatprep.subr.mxu0 %v7387
    %7815 = vmatpush1.msra.mxu0 %v7386
    %7816 = vmatprep.subr.mxu0 %v7389
    %7817 = vmatpush1.msra.mxu0 %v7388
    %7818 = vmatprep.subr.mxu0 %v7391
    %7819 = vmatpush1.msra.mxu0 %v7390
    %7820 = vmatprep.subr.mxu0 %v7393
    %7821 = vmatpush1.msra.mxu0 %v7392
    %7822 = vmatprep.subr.mxu0 %v7395
    %7823 = vmatpush1.msra.mxu0 %v7394
    %7824 = vmatprep.subr.mxu0 %v7397
    %7825 = vmatpush1.msra.mxu0 %v7396
    %7826 = vmatprep.subr.mxu0 %v7399
    %7827 = vmatpush1.msra.mxu0 %v7398
    %7828 = vmatprep.subr.mxu0 %v7401
    %7829 = vmatpush1.msra.mxu0 %v7400
    %7830 = vmatprep.subr.mxu0 %v7403
    %7831 = vmatpush1.msra.mxu0 %v7402
    %7832 = vmatprep.subr.mxu0 %v7405
    %7833 = vmatpush1.msra.mxu0 %v7404
    %7834 = vmatprep.subr.mxu0 %v7407
    %7835 = vmatpush1.msra.mxu0 %v7406
    %7836 = vmatprep.subr.mxu0 %v7409
    %7837 = vmatpush1.msra.mxu0 %v7408
    %7838 = vmatprep.subr.mxu0 %v7411
    %7839 = vmatpush1.msra.mxu0 %v7410
    %7840 = vmatprep.subr.mxu0 %v7413
    %7841 = vmatpush1.msra.mxu0 %v7412
    %7842 = vmatprep.subr.mxu0 %v7415
    %7843 = vmatpush1.msra.mxu0 %v7414
    %7844 = vmatprep.mubr.f32.mxu0 %v7157
    %7845 = vmatmul.mubr.f32.gmra.mrb[0].mxu0 %v7156
    %v7846 = vpop.f32.mrb[0].mxu0
    %v7847 = vadd.f32 %v7776, %v7846
    %v7848 = vpop.f32.mrb[0].mxu0
    %v7849 = vadd.f32 %v7778, %v7848
    %7850 = vdwg.mxu0
    %7851 = vmatprep.subr.mxu0 %v7417
    %7852 = vmatpush1.msra.mxu0 %v7416
    %7853 = vmatprep.subr.mxu0 %v7419
    %7854 = vmatpush1.msra.mxu0 %v7418
    %7855 = vmatprep.subr.mxu0 %v7421
    %7856 = vmatpush1.msra.mxu0 %v7420
    %7857 = vmatprep.subr.mxu0 %v7423
    %7858 = vmatpush1.msra.mxu0 %v7422
    %7859 = vmatprep.subr.mxu0 %v7425
    %7860 = vmatpush1.msra.mxu0 %v7424
    %7861 = vmatprep.subr.mxu0 %v7427
    %7862 = vmatpush1.msra.mxu0 %v7426
    %7863 = vmatprep.subr.mxu0 %v7429
    %7864 = vmatpush1.msra.mxu0 %v7428
    %7865 = vmatprep.subr.mxu0 %v7431
    %7866 = vmatpush1.msra.mxu0 %v7430
    %7867 = vmatprep.subr.mxu0 %v7433
    %7868 = vmatpush1.msra.mxu0 %v7432
    %7869 = vmatprep.subr.mxu0 %v7435
    %7870 = vmatpush1.msra.mxu0 %v7434
    %7871 = vmatprep.subr.mxu0 %v7437
    %7872 = vmatpush1.msra.mxu0 %v7436
    %7873 = vmatprep.subr.mxu0 %v7439
    %7874 = vmatpush1.msra.mxu0 %v7438
    %7875 = vmatprep.subr.mxu0 %v7441
    %7876 = vmatpush1.msra.mxu0 %v7440
    %7877 = vmatprep.subr.mxu0 %v7443
    %7878 = vmatpush1.msra.mxu0 %v7442
    %7879 = vmatprep.subr.mxu0 %v7445
    %7880 = vmatpush1.msra.mxu0 %v7444
    %7881 = vmatprep.subr.mxu0 %v7447
    %7882 = vmatpush1.msra.mxu0 %v7446
    %7883 = vmatprep.subr.mxu0 %v7449
    %7884 = vmatpush1.msra.mxu0 %v7448
    %7885 = vmatprep.subr.mxu0 %v7451
    %7886 = vmatpush1.msra.mxu0 %v7450
    %7887 = vmatprep.subr.mxu0 %v7453
    %7888 = vmatpush1.msra.mxu0 %v7452
    %7889 = vmatprep.subr.mxu0 %v7455
    %7890 = vmatpush1.msra.mxu0 %v7454
    %7891 = vmatprep.subr.mxu0 %v7457
    %7892 = vmatpush1.msra.mxu0 %v7456
    %7893 = vmatprep.subr.mxu0 %v7459
    %7894 = vmatpush1.msra.mxu0 %v7458
    %7895 = vmatprep.subr.mxu0 %v7461
    %7896 = vmatpush1.msra.mxu0 %v7460
    %7897 = vmatprep.subr.mxu0 %v7463
    %7898 = vmatpush1.msra.mxu0 %v7462
    %7899 = vmatprep.subr.mxu0 %v7465
    %7900 = vmatpush1.msra.mxu0 %v7464
    %7901 = vmatprep.subr.mxu0 %v7467
    %7902 = vmatpush1.msra.mxu0 %v7466
    %7903 = vmatprep.subr.mxu0 %v7469
    %7904 = vmatpush1.msra.mxu0 %v7468
    %7905 = vmatprep.subr.mxu0 %v7471
    %7906 = vmatpush1.msra.mxu0 %v7470
    %7907 = vmatprep.subr.mxu0 %v7473
    %7908 = vmatpush1.msra.mxu0 %v7472
    %7909 = vmatprep.subr.mxu0 %v7475
    %7910 = vmatpush1.msra.mxu0 %v7474
    %7911 = vmatprep.subr.mxu0 %v7477
    %7912 = vmatpush1.msra.mxu0 %v7476
    %7913 = vmatprep.subr.mxu0 %v7479
    %7914 = vmatpush1.msra.mxu0 %v7478
    %7915 = vmatprep.mubr.f32.mxu0 %v7159
    %7916 = vmatmul.mubr.f32.gmra.mrb[0].mxu0 %v7158
    %v7917 = vpop.f32.mrb[0].mxu0
    %v7918 = vadd.f32 %v7847, %v7917
    %v7919 = vpop.f32.mrb[0].mxu0
    %v7920 = vadd.f32 %v7849, %v7919
    %7921 = vdwg.mxu0
    %7922 = vmatprep.subr.mxu0 %v7481
    %7923 = vmatpush1.msra.mxu0 %v7480
    %7924 = vmatprep.subr.mxu0 %v7483
    %7925 = vmatpush1.msra.mxu0 %v7482
    %7926 = vmatprep.subr.mxu0 %v7485
    %7927 = vmatpush1.msra.mxu0 %v7484
    %7928 = vmatprep.subr.mxu0 %v7487
    %7929 = vmatpush1.msra.mxu0 %v7486
    %7930 = vmatprep.subr.mxu0 %v7489
    %7931 = vmatpush1.msra.mxu0 %v7488
    %7932 = vmatprep.subr.mxu0 %v7491
    %7933 = vmatpush1.msra.mxu0 %v7490
    %7934 = vmatprep.subr.mxu0 %v7493
    %7935 = vmatpush1.msra.mxu0 %v7492
    %7936 = vmatprep.subr.mxu0 %v7495
    %7937 = vmatpush1.msra.mxu0 %v7494
    %7938 = vmatprep.subr.mxu0 %v7497
    %7939 = vmatpush1.msra.mxu0 %v7496
    %7940 = vmatprep.subr.mxu0 %v7499
    %7941 = vmatpush1.msra.mxu0 %v7498
    %7942 = vmatprep.subr.mxu0 %v7501
    %7943 = vmatpush1.msra.mxu0 %v7500
    %7944 = vmatprep.subr.mxu0 %v7503
    %7945 = vmatpush1.msra.mxu0 %v7502
    %7946 = vmatprep.subr.mxu0 %v7505
    %7947 = vmatpush1.msra.mxu0 %v7504
    %7948 = vmatprep.subr.mxu0 %v7507
    %7949 = vmatpush1.msra.mxu0 %v7506
    %7950 = vmatprep.subr.mxu0 %v7509
    %7951 = vmatpush1.msra.mxu0 %v7508
    %7952 = vmatprep.subr.mxu0 %v7511
    %7953 = vmatpush1.msra.mxu0 %v7510
    %7954 = vmatprep.subr.mxu0 %v7513
    %7955 = vmatpush1.msra.mxu0 %v7512
    %7956 = vmatprep.subr.mxu0 %v7515
    %7957 = vmatpush1.msra.mxu0 %v7514
    %7958 = vmatprep.subr.mxu0 %v7517
    %7959 = vmatpush1.msra.mxu0 %v7516
    %7960 = vmatprep.subr.mxu0 %v7519
    %7961 = vmatpush1.msra.mxu0 %v7518
    %7962 = vmatprep.subr.mxu0 %v7521
    %7963 = vmatpush1.msra.mxu0 %v7520
    %7964 = vmatprep.subr.mxu0 %v7523
    %7965 = vmatpush1.msra.mxu0 %v7522
    %7966 = vmatprep.subr.mxu0 %v7525
    %7967 = vmatpush1.msra.mxu0 %v7524
    %7968 = vmatprep.subr.mxu0 %v7527
    %7969 = vmatpush1.msra.mxu0 %v7526
    %7970 = vmatprep.subr.mxu0 %v7529
    %7971 = vmatpush1.msra.mxu0 %v7528
    %7972 = vmatprep.subr.mxu0 %v7531
    %7973 = vmatpush1.msra.mxu0 %v7530
    %7974 = vmatprep.subr.mxu0 %v7533
    %7975 = vmatpush1.msra.mxu0 %v7532
    %7976 = vmatprep.subr.mxu0 %v7535
    %7977 = vmatpush1.msra.mxu0 %v7534
    %7978 = vmatprep.subr.mxu0 %v7537
    %7979 = vmatpush1.msra.mxu0 %v7536
    %7980 = vmatprep.subr.mxu0 %v7539
    %7981 = vmatpush1.msra.mxu0 %v7538
    %7982 = vmatprep.subr.mxu0 %v7541
    %7983 = vmatpush1.msra.mxu0 %v7540
    %7984 = vmatprep.subr.mxu0 %v7543
    %7985 = vmatpush1.msra.mxu0 %v7542
    %7986 = vmatprep.mubr.f32.mxu0 %v7216
    %7987 = vmatmul.mubr.f32.gmra.mrb[0].mxu0 %v7215
    %v7988 = vpop.f32.mrb[0].mxu0
    %v7989 = vadd.f32 %v7918, %v7988
    %v7990 = vpop.f32.mrb[0].mxu0
    %v7991 = vadd.f32 %v7920, %v7990
    %7992 = vdwg.mxu0
    %7993 = vmatprep.subr.mxu0 %v7545
    %7994 = vmatpush1.msra.mxu0 %v7544
    %7995 = vmatprep.subr.mxu0 %v7547
    %7996 = vmatpush1.msra.mxu0 %v7546
    %7997 = vmatprep.subr.mxu0 %v7549
    %7998 = vmatpush1.msra.mxu0 %v7548
    %7999 = vmatprep.subr.mxu0 %v7551
    %8000 = vmatpush1.msra.mxu0 %v7550
    %8001 = vmatprep.subr.mxu0 %v7553
    %8002 = vmatpush1.msra.mxu0 %v7552
    %8003 = vmatprep.subr.mxu0 %v7555
    %8004 = vmatpush1.msra.mxu0 %v7554
    %8005 = vmatprep.subr.mxu0 %v7557
    %8006 = vmatpush1.msra.mxu0 %v7556
    %8007 = vmatprep.subr.mxu0 %v7559
    %8008 = vmatpush1.msra.mxu0 %v7558
    %8009 = vmatprep.subr.mxu0 %v7561
    %8010 = vmatpush1.msra.mxu0 %v7560
    %8011 = vmatprep.subr.mxu0 %v7563
    %8012 = vmatpush1.msra.mxu0 %v7562
    %8013 = vmatprep.subr.mxu0 %v7565
    %8014 = vmatpush1.msra.mxu0 %v7564
    %8015 = vmatprep.subr.mxu0 %v7567
    %8016 = vmatpush1.msra.mxu0 %v7566
    %8017 = vmatprep.subr.mxu0 %v7569
    %8018 = vmatpush1.msra.mxu0 %v7568
    %8019 = vmatprep.subr.mxu0 %v7571
    %8020 = vmatpush1.msra.mxu0 %v7570
    %8021 = vmatprep.subr.mxu0 %v7573
    %8022 = vmatpush1.msra.mxu0 %v7572
    %8023 = vmatprep.subr.mxu0 %v7575
    %8024 = vmatpush1.msra.mxu0 %v7574
    %8025 = vmatprep.subr.mxu0 %v7577
    %8026 = vmatpush1.msra.mxu0 %v7576
    %8027 = vmatprep.subr.mxu0 %v7579
    %8028 = vmatpush1.msra.mxu0 %v7578
    %8029 = vmatprep.subr.mxu0 %v7581
    %8030 = vmatpush1.msra.mxu0 %v7580
    %8031 = vmatprep.subr.mxu0 %v7583
    %8032 = vmatpush1.msra.mxu0 %v7582
    %8033 = vmatprep.subr.mxu0 %v7585
    %8034 = vmatpush1.msra.mxu0 %v7584
    %8035 = vmatprep.subr.mxu0 %v7587
    %8036 = vmatpush1.msra.mxu0 %v7586
    %8037 = vmatprep.subr.mxu0 %v7589
    %8038 = vmatpush1.msra.mxu0 %v7588
    %8039 = vmatprep.subr.mxu0 %v7591
    %8040 = vmatpush1.msra.mxu0 %v7590
    %8041 = vmatprep.subr.mxu0 %v7593
    %8042 = vmatpush1.msra.mxu0 %v7592
    %8043 = vmatprep.subr.mxu0 %v7595
    %8044 = vmatpush1.msra.mxu0 %v7594
    %8045 = vmatprep.subr.mxu0 %v7597
    %8046 = vmatpush1.msra.mxu0 %v7596
    %8047 = vmatprep.subr.mxu0 %v7599
    %8048 = vmatpush1.msra.mxu0 %v7598
    %8049 = vmatprep.subr.mxu0 %v7601
    %8050 = vmatpush1.msra.mxu0 %v7600
    %8051 = vmatprep.subr.mxu0 %v7603
    %8052 = vmatpush1.msra.mxu0 %v7602
    %8053 = vmatprep.subr.mxu0 %v7605
    %8054 = vmatpush1.msra.mxu0 %v7604
    %8055 = vmatprep.subr.mxu0 %v7607
    %8056 = vmatpush1.msra.mxu0 %v7606
    %8057 = vmatprep.mubr.f32.mxu0 %v7218
    %8058 = vmatmul.mubr.f32.gmra.mrb[0].mxu0 %v7217
    %v8059 = vpop.f32.mrb[0].mxu0
    %v8060 = vadd.f32 %v7989, %v8059
    %v8061 = vpop.f32.mrb[0].mxu0
    %v8062 = vadd.f32 %v7991, %v8061
    %8063 = vdwg.mxu0
    %8064 = vmatprep.subr.mxu0 %v7609
    %8065 = vmatpush1.msra.mxu0 %v7608
    %8066 = vmatprep.subr.mxu0 %v7611
    %8067 = vmatpush1.msra.mxu0 %v7610
    %8068 = vmatprep.subr.mxu0 %v7613
    %8069 = vmatpush1.msra.mxu0 %v7612
    %8070 = vmatprep.subr.mxu0 %v7615
    %8071 = vmatpush1.msra.mxu0 %v7614
    %8072 = vmatprep.subr.mxu0 %v7617
    %8073 = vmatpush1.msra.mxu0 %v7616
    %8074 = vmatprep.subr.mxu0 %v7619
    %8075 = vmatpush1.msra.mxu0 %v7618
    %8076 = vmatprep.subr.mxu0 %v7621
    %8077 = vmatpush1.msra.mxu0 %v7620
    %8078 = vmatprep.subr.mxu0 %v7623
    %8079 = vmatpush1.msra.mxu0 %v7622
    %8080 = vmatprep.subr.mxu0 0.0
    %8081 = vmatpush1.msra.mxu0 0.0
    %8082 = vmatprep.subr.mxu0 0.0
    %8083 = vmatpush1.msra.mxu0 0.0
    %8084 = vmatprep.subr.mxu0 0.0
    %8085 = vmatpush1.msra.mxu0 0.0
    %8086 = vmatprep.subr.mxu0 0.0
    %8087 = vmatpush1.msra.mxu0 0.0
    %8088 = vmatprep.subr.mxu0 0.0
    %8089 = vmatpush1.msra.mxu0 0.0
    %8090 = vmatprep.subr.mxu0 0.0
    %8091 = vmatpush1.msra.mxu0 0.0
    %8092 = vmatprep.subr.mxu0 0.0
    %8093 = vmatpush1.msra.mxu0 0.0
    %8094 = vmatprep.subr.mxu0 0.0
    %8095 = vmatpush1.msra.mxu0 0.0
    %8096 = vmatprep.subr.mxu0 0.0
    %8097 = vmatpush1.msra.mxu0 0.0
    %8098 = vmatprep.subr.mxu0 0.0
    %8099 = vmatpush1.msra.mxu0 0.0
    %8100 = vmatprep.subr.mxu0 0.0
    %8101 = vmatpush1.msra.mxu0 0.0
    %8102 = vmatprep.subr.mxu0 0.0
    %8103 = vmatpush1.msra.mxu0 0.0
    %8104 = vmatprep.subr.mxu0 0.0
    %8105 = vmatpush1.msra.mxu0 0.0
    %8106 = vmatprep.subr.mxu0 0.0
    %8107 = vmatpush1.msra.mxu0 0.0
    %8108 = vmatprep.subr.mxu0 0.0
    %8109 = vmatpush1.msra.mxu0 0.0
    %8110 = vmatprep.subr.mxu0 0.0
    %8111 = vmatpush1.msra.mxu0 0.0
    %8112 = vmatprep.subr.mxu0 0.0
    %8113 = vmatpush1.msra.mxu0 0.0
    %8114 = vmatprep.subr.mxu0 0.0
    %8115 = vmatpush1.msra.mxu0 0.0
    %8116 = vmatprep.subr.mxu0 0.0
    %8117 = vmatpush1.msra.mxu0 0.0
    %8118 = vmatprep.subr.mxu0 0.0
    %8119 = vmatpush1.msra.mxu0 0.0
    %8120 = vmatprep.subr.mxu0 0.0
    %8121 = vmatpush1.msra.mxu0 0.0
    %8122 = vmatprep.subr.mxu0 0.0
    %8123 = vmatpush1.msra.mxu0 0.0
    %8124 = vmatprep.subr.mxu0 0.0
    %8125 = vmatpush1.msra.mxu0 0.0
    %8126 = vmatprep.subr.mxu0 0.0
    %8127 = vmatpush1.msra.mxu0 0.0
    %8128 = vmatprep.mubr.f32.mxu0 0.0
    %8129 = vmatmul.mubr.f32.gmra.mrb[0].mxu0 %v7636
    %v8130 = vpop.f32.mrb[0].mxu0
    %v8131 = vadd.f32 %v8060, %v8130
    %v8132 = vpop.f32.mrb[0].mxu0
    %v8133 = vadd.f32 %v8062, %v8132
    %8134 = vdwg.mxu0
    %v8135 = vmax.f32 %v8131, 0.0
    %v8136 = vmax.f32 %v8133, 0.0
    %v8137 = vld [vmem:[%s7] sm:$0xff]
    %v8138 = vld [vmem:[%s7 + $0x8] sm:$0xff]
    %v8139 = vld [vmem:[%s7 + $0x10] sm:$0xff]
    %v8140 = vld [vmem:[%s7 + $0x18] sm:$0xff]
    %v8141 = vld [vmem:[%s7 + $0x20] sm:$0xff]
    %v8142 = vld [vmem:[%s7 + $0x28] sm:$0xff]
    %v8143 = vld [vmem:[%s7 + $0x30] sm:$0xff]
    %v8144 = vld [vmem:[%s7 + $0x38] sm:$0xff]
    %v8145 = vld [vmem:[%s7 + $0x40] sm:$0xff]
    %v8146 = vld [vmem:[%s7 + $0x48] sm:$0xff]
    %v8147 = vld [vmem:[%s7 + $0x50] sm:$0xff]
    %v8148 = vld [vmem:[%s7 + $0x58] sm:$0xff]
    %v8149 = vld [vmem:[%s7 + $0x60] sm:$0xff]
    %v8150 = vld [vmem:[%s7 + $0x68] sm:$0xff]
    %v8151 = vld [vmem:[%s7 + $0x70] sm:$0xff]
    %v8152 = vld [vmem:[%s7 + $0x78] sm:$0xff]
    %v8153 = vld [vmem:[%s7 + $0x80] sm:$0xff]
    %v8154 = vld [vmem:[%s7 + $0x88] sm:$0xff]
    %v8155 = vld [vmem:[%s7 + $0x90] sm:$0xff]
    %v8156 = vld [vmem:[%s7 + $0x98] sm:$0xff]
    %v8157 = vld [vmem:[%s7 + $0xa0] sm:$0xff]
    %v8158 = vld [vmem:[%s7 + $0xa8] sm:$0xff]
    %v8159 = vld [vmem:[%s7 + $0xb0] sm:$0xff]
    %v8160 = vld [vmem:[%s7 + $0xb8] sm:$0xff]
    %v8161 = vld [vmem:[%s7 + $0xc0] sm:$0xff]
    %v8162 = vld [vmem:[%s7 + $0xc8] sm:$0xff]
    %v8163 = vld [vmem:[%s7 + $0xd0] sm:$0xff]
    %v8164 = vld [vmem:[%s7 + $0xd8] sm:$0xff]
    %v8165 = vld [vmem:[%s7 + $0xe0] sm:$0xff]
    %v8166 = vld [vmem:[%s7 + $0xe8] sm:$0xff]
    %v8167 = vld [vmem:[%s7 + $0xf0] sm:$0xff]
    %v8168 = vld [vmem:[%s7 + $0xf8] sm:$0xff]
    %v8169 = vld [vmem:[#allocation11] sm:$0x1]
    %v8171 = vlaneseq
    %v8172 = vshrl.u32 %v8171, 7
    %v8173 = vsub.s32 0, %v8172
    %v8174 = vrot.slane %v8169, %v8173
    %8176 = vmatprep.subr.mxu0 0.0
    %8177 = vmatpush1.msra.mxu0 %v8137
    %8178 = vmatprep.subr.mxu0 0.0
    %8179 = vmatpush1.msra.mxu0 %v8138
    %8180 = vmatprep.subr.mxu0 0.0
    %8181 = vmatpush1.msra.mxu0 %v8139
    %8182 = vmatprep.subr.mxu0 0.0
    %8183 = vmatpush1.msra.mxu0 %v8140
    %8184 = vmatprep.subr.mxu0 0.0
    %8185 = vmatpush1.msra.mxu0 %v8141
    %8186 = vmatprep.subr.mxu0 0.0
    %8187 = vmatpush1.msra.mxu0 %v8142
    %8188 = vmatprep.subr.mxu0 0.0
    %8189 = vmatpush1.msra.mxu0 %v8143
    %8190 = vmatprep.subr.mxu0 0.0
    %8191 = vmatpush1.msra.mxu0 %v8144
    %8192 = vmatprep.subr.mxu0 0.0
    %8193 = vmatpush1.msra.mxu0 %v8145
    %8194 = vmatprep.subr.mxu0 0.0
    %8195 = vmatpush1.msra.mxu0 %v8146
    %8196 = vmatprep.subr.mxu0 0.0
    %8197 = vmatpush1.msra.mxu0 %v8147
    %8198 = vmatprep.subr.mxu0 0.0
    %8199 = vmatpush1.msra.mxu0 %v8148
    %8200 = vmatprep.subr.mxu0 0.0
    %8201 = vmatpush1.msra.mxu0 %v8149
    %8202 = vmatprep.subr.mxu0 0.0
    %8203 = vmatpush1.msra.mxu0 %v8150
    %8204 = vmatprep.subr.mxu0 0.0
    %8205 = vmatpush1.msra.mxu0 %v8151
    %8206 = vmatprep.subr.mxu0 0.0
    %8207 = vmatpush1.msra.mxu0 %v8152
    %8208 = vmatprep.subr.mxu0 0.0
    %8209 = vmatpush1.msra.mxu0 %v8153
    %8210 = vmatprep.subr.mxu0 0.0
    %8211 = vmatpush1.msra.mxu0 %v8154
    %8212 = vmatprep.subr.mxu0 0.0
    %8213 = vmatpush1.msra.mxu0 %v8155
    %8214 = vmatprep.subr.mxu0 0.0
    %8215 = vmatpush1.msra.mxu0 %v8156
    %8216 = vmatprep.subr.mxu0 0.0
    %8217 = vmatpush1.msra.mxu0 %v8157
    %8218 = vmatprep.subr.mxu0 0.0
    %8219 = vmatpush1.msra.mxu0 %v8158
    %8220 = vmatprep.subr.mxu0 0.0
    %8221 = vmatpush1.msra.mxu0 %v8159
    %8222 = vmatprep.subr.mxu0 0.0
    %8223 = vmatpush1.msra.mxu0 %v8160
    %8224 = vmatprep.subr.mxu0 0.0
    %8225 = vmatpush1.msra.mxu0 %v8161
    %8226 = vmatprep.subr.mxu0 0.0
    %8227 = vmatpush1.msra.mxu0 %v8162
    %8228 = vmatprep.subr.mxu0 0.0
    %8229 = vmatpush1.msra.mxu0 %v8163
    %8230 = vmatprep.subr.mxu0 0.0
    %8231 = vmatpush1.msra.mxu0 %v8164
    %8232 = vmatprep.subr.mxu0 0.0
    %8233 = vmatpush1.msra.mxu0 %v8165
    %8234 = vmatprep.subr.mxu0 0.0
    %8235 = vmatpush1.msra.mxu0 %v8166
    %8236 = vmatprep.subr.mxu0 0.0
    %8237 = vmatpush1.msra.mxu0 %v8167
    %8238 = vmatprep.subr.mxu0 0.0
    %8239 = vmatpush1.msra.mxu0 %v8168
    %8240 = vmatprep.mubr.f32.mxu0 %v8136
    %8241 = vmatmul.mubr.f32.gmra.mrb[0].mxu0 %v8135
    %v8242 = vpop.f32.mrb[0].mxu0
    %v8243 = vadd.f32 %v8174, %v8242
    %v8244 = vpop.f32.mrb[0].mxu0
    %8245 = vdwg.mxu0
    %vm8246 = vcmask 25600
    %8247 = vst.msk [vmem:[#allocation12] sm:$0x3] %vm8246, %v8243
    // Predicated region
    $region58: #{dclass_net_forward.1} parent=1 // pred_check
      _
    $region59: #{dclass_net_forward.1} parent=1 // pred_check_branch
      %8249 = sbr.rel (0) target = $region61
    $region60: #{dclass_net_forward.1} parent=1 // pred_region
      %s8251 = ssub.s32 32, 32
      %8252 = vsyncadd [#allocation5], %s8251
      %s8254 = sshll.u32 [#allocation12], 4
      %s8255 = int_to_ptr.vmem [resolvable:$true] %s8254
      %8257 = dma.vmem_to_hbm [thread:$0]  %s8255, 32, %s9, [#allocation5]
    $region61: #{dclass_net_forward.1} parent=1 // pred_fallthru
      _
    // Predicated region
    $region62: #{dclass_net_forward.1} parent=1 // pred_check
      _
    $region63: #{dclass_net_forward.1} parent=1 // pred_check_branch
      %8259 = sbr.rel (0) target = $region65
    $region64: #{dclass_net_forward.1} parent=1 // pred_region
      %8260 = dma.done [#allocation5], 32
    $region65: #{dclass_net_forward.1} parent=1 // pred_fallthru
      _
    %8261 = vsyncpa [#allocation4], 1
    %8262 = vsyncpa [#allocation7], 1
    %8263 = vsyncpa [#allocation10], 1
    %8264 = vsyncpa [#allocation5], 1

</llo_original>
